<compile_context>
chip_gen: v7x
topology: tpu7x:2x2x1
jax: 0.10.0
libtpu: 0.0.40
codegen_flags: <defaults>
</compile_context>

<pallas_src>
import jax
import jax.numpy as jnp
from jax import lax
from jax.experimental import pallas as pl
from jax.experimental.pallas import tpu as pltpu

N_EMBD = 128
N_HEAD = 4
HEAD_SIZE = N_EMBD // N_HEAD
BLOCK_SIZE = 128
LN_EPS = 1e-5


def _layernorm(h, g, b):
    # Single-pass stats: two independent lane reductions instead of two
    # serially-dependent ones (better XLU ILP).
    mu = jnp.mean(h, axis=-1, keepdims=True)
    ms = jnp.mean(h * h, axis=-1, keepdims=True)
    var = jnp.maximum(ms - mu * mu, 0.0)
    return (h - mu) * lax.rsqrt(var + LN_EPS) * g + b


def block_kernel(x_ref, ln1g, ln1b, wq, wk, wv, wproj, bproj,
                 ln2g, ln2b, w1, b1, w2, b2, out_ref):
    B_blk, T, C = x_ref.shape
    M = B_blk * T
    x = x_ref[...].reshape(M, C)                         # (M, C) f32

    # ---- self-attention branch: x + proj(heads(attn(ln1(x)))) ----
    h = _layernorm(x, ln1g[...], ln1b[...])
    hb = h.astype(jnp.bfloat16)                          # bf16 MXU inputs, f32 accum

    rows = lax.broadcasted_iota(jnp.int32, (T, T), 0)
    cols = lax.broadcasted_iota(jnp.int32, (T, T), 1)
    causal = cols <= rows                                # tril mask

    sa = jnp.zeros((M, C), jnp.float32)
    for hd in range(N_HEAD):                             # static unroll over heads
        # Head-major weights: contiguous matmul operands, no lane slices.
        # 1/sqrt(HEAD_SIZE) is pre-folded into wq (see prepare_params).
        qh = jnp.dot(hb, wq[hd], preferred_element_type=jnp.float32).astype(jnp.bfloat16)
        kh = jnp.dot(hb, wk[hd], preferred_element_type=jnp.float32).astype(jnp.bfloat16)
        vh = jnp.dot(hb, wv[hd], preferred_element_type=jnp.float32).astype(jnp.bfloat16)
        o_parts = []
        for b in range(B_blk):                           # causal attention per sequence
            sl = slice(b * T, (b + 1) * T)
            qb, kb, vb = qh[sl], kh[sl], vh[sl]
            # contract on last dims of both operands: no materialized kb.T
            wei = lax.dot_general(qb, kb, (((1,), (1,)), ((), ())),
                                  preferred_element_type=jnp.float32)
            wei = jnp.where(causal, wei, -jnp.inf)
            p = jnp.exp(wei - jnp.max(wei, axis=-1, keepdims=True))
            o = jnp.dot(p.astype(jnp.bfloat16), vb,
                        preferred_element_type=jnp.float32)
            # deferred normalization: EUP reciprocal on (T,1), applied to the
            # (T, HEAD_SIZE) output instead of dividing the (T,T) probabilities.
            o = o * pl.reciprocal(jnp.sum(p, axis=-1, keepdims=True), approx=True)
            o_parts.append(o)
        o_hd = o_parts[0] if B_blk == 1 else jnp.concatenate(o_parts, axis=0)
        sa = sa + jnp.dot(o_hd.astype(jnp.bfloat16), wproj[hd],
                          preferred_element_type=jnp.float32)
    # TODO(synk): nn.Dropout is identity in eval mode; stochastic dropout not implemented.
    x1 = x + sa + bproj[...]

    # ---- feed-forward branch: x1 + W2 @ relu(W1 @ ln2(x1)) ----
    h2 = _layernorm(x1, ln2g[...], ln2b[...]).astype(jnp.bfloat16)
    f = jnp.dot(h2, w1[...], preferred_element_type=jnp.float32) + b1[...]
    f = jnp.maximum(f, 0.0).astype(jnp.bfloat16)
    f = jnp.dot(f, w2[...], preferred_element_type=jnp.float32) + b2[...]
    out_ref[...] = (x1 + f).reshape(B_blk, T, C).astype(out_ref.dtype)


def prepare_params(params):
    """One-time repack of the parameters for the kernel: head-major QKV /
    output-projection weights, attention scale folded into the Q weights,
    bf16 storage for all MXU operands (f32 accumulation in-kernel)."""
    (ln1g, ln1b, wq, wk, wv, wproj, bproj, ln2g, ln2b, w1, b1, w2, b2) = params
    C = N_EMBD
    scale = HEAD_SIZE ** -0.5

    def head_major(w):                     # (C, C) -> (N_HEAD, C, HEAD_SIZE)
        return jnp.transpose(w.reshape(C, N_HEAD, HEAD_SIZE), (1, 0, 2))

    wq_h = (head_major(wq) * scale).astype(jnp.bfloat16)   # fold 1/sqrt(hs) here
    wk_h = head_major(wk).astype(jnp.bfloat16)
    wv_h = head_major(wv).astype(jnp.bfloat16)
    wproj_h = wproj.reshape(N_HEAD, HEAD_SIZE, C).astype(jnp.bfloat16)
    return (ln1g, ln1b, wq_h, wk_h, wv_h, wproj_h, bproj, ln2g, ln2b,
            w1.astype(jnp.bfloat16), b1, w2.astype(jnp.bfloat16), b2)


def transformer_block(x, prepped_params, *, batch_per_step=None):
    B, T, C = x.shape
    if batch_per_step is None:
        kind = jax.devices()[0].device_kind.lower()
        # v7x: 2 TensorCores/chip -> one batch element per grid step, sharded
        # across cores via "parallel". v5e/v6e: single TC -> fold the batch
        # into one step so dense matmuls see B*T rows (no per-step overhead).
        batch_per_step = 1 if "7" in kind else B
    assert B % batch_per_step == 0
    grid = (B // batch_per_step,)

    # Weights/biases: whole-array, VMEM-resident, single-buffered (a constant
    # index_map would otherwise waste a second DMA buffer per operand).
    wspec = pl.BlockSpec(memory_space=pltpu.MemorySpace.VMEM)
    in_specs = [pl.BlockSpec((batch_per_step, T, C), lambda i: (i, 0, 0))]
    in_specs += [wspec] * 13

    return pl.pallas_call(
        block_kernel,
        out_shape=jax.ShapeDtypeStruct((B, T, C), x.dtype),
        grid=grid,
        in_specs=in_specs,
        out_specs=pl.BlockSpec((batch_per_step, T, C), lambda i: (i, 0, 0)),
        compiler_params=pltpu.CompilerParams(
            dimension_semantics=("parallel",)),
    )(x, *prepped_params)


def init_params(key):
    C = N_EMBD
    ks = jax.random.split(key, 13)

    def lin_w(k, fan_in, fan_out):
        bound = 1.0 / (fan_in ** 0.5)
        return jax.random.uniform(k, (fan_in, fan_out), jnp.float32, -bound, bound)

    def lin_b(k, fan_in, fan_out):
        bound = 1.0 / (fan_in ** 0.5)
        return jax.random.uniform(k, (1, fan_out), jnp.float32, -bound, bound)

    ln1g = 1.0 + 0.1 * jax.random.normal(ks[0], (1, C), jnp.float32)
    ln1b = 0.1 * jax.random.normal(ks[1], (1, C), jnp.float32)
    wq = lin_w(ks[2], C, C)
    wk = lin_w(ks[3], C, C)
    wv = lin_w(ks[4], C, C)
    wproj = lin_w(ks[5], C, C)
    bproj = lin_b(ks[6], C, C)
    ln2g = 1.0 + 0.1 * jax.random.normal(ks[7], (1, C), jnp.float32)
    ln2b = 0.1 * jax.random.normal(ks[8], (1, C), jnp.float32)
    w1 = lin_w(ks[9], C, 4 * C)
    b1 = lin_b(ks[10], C, 4 * C)
    w2 = lin_w(ks[11], 4 * C, C)
    b2 = lin_b(ks[12], 4 * C, C)
    return (ln1g, ln1b, wq, wk, wv, wproj, bproj, ln2g, ln2b, w1, b1, w2, b2)


def ref_block(x, params):
    (ln1g, ln1b, wq, wk, wv, wproj, bproj, ln2g, ln2b, w1, b1, w2, b2) = params

    def ln(h, g, b):
        mu = h.mean(-1, keepdims=True)
        var = ((h - mu) ** 2).mean(-1, keepdims=True)
        return (h - mu) / jnp.sqrt(var + LN_EPS) * g + b

    B, T, C = x.shape
    h = ln(x, ln1g, ln1b)
    q = (h @ wq).reshape(B, T, N_HEAD, HEAD_SIZE)
    k = (h @ wk).reshape(B, T, N_HEAD, HEAD_SIZE)
    v = (h @ wv).reshape(B, T, N_HEAD, HEAD_SIZE)
    wei = jnp.einsum("btnh,bsnh->bnts", q, k) * (HEAD_SIZE ** -0.5)
    mask = jnp.tril(jnp.ones((T, T), bool))
    wei = jnp.where(mask[None, None], wei, -jnp.inf)
    wei = jax.nn.softmax(wei, axis=-1)
    sa = jnp.einsum("bnts,bsnh->btnh", wei, v).reshape(B, T, C)
    sa = sa @ wproj + bproj
    x1 = x + sa
    h2 = ln(x1, ln2g, ln2b)
    f = jnp.maximum(h2 @ w1 + b1, 0.0) @ w2 + b2
    return x1 + f


if __name__ == "__main__":
    key = jax.random.PRNGKey(0)
    kx, kp = jax.random.split(key)
    B, T, C = 2, BLOCK_SIZE, N_EMBD          # (2, 128, 128)
    x = jax.random.normal(kx, (B, T, C), jnp.float32)
    params = init_params(kp)
    prepped = prepare_params(params)

    out = transformer_block(x, prepped)
    out = jax.block_until_ready(out)

    ref = ref_block(x, params)
    assert out.shape == (B, T, C)
    # bf16 MXU inputs with f32 accumulation -> tolerance relaxed per review.
    assert jnp.allclose(out, ref, atol=5e-2, rtol=5e-2), "mismatch vs reference"
    print("KERNEL_OK")
</pallas_src>

<mosaic_0001>
module attributes {stable_mosaic.version = 11 : i64} {
  func.func @block_kernel(%arg0: i32, %arg1: memref<2x128x128xf32, #tpu.memory_space<vmem>>, %arg2: memref<1x128xf32, #tpu.memory_space<vmem>>, %arg3: memref<1x128xf32, #tpu.memory_space<vmem>>, %arg4: memref<4x128x32xbf16, #tpu.memory_space<vmem>>, %arg5: memref<4x128x32xbf16, #tpu.memory_space<vmem>>, %arg6: memref<4x128x32xbf16, #tpu.memory_space<vmem>>, %arg7: memref<4x32x128xbf16, #tpu.memory_space<vmem>>, %arg8: memref<1x128xf32, #tpu.memory_space<vmem>>, %arg9: memref<1x128xf32, #tpu.memory_space<vmem>>, %arg10: memref<1x128xf32, #tpu.memory_space<vmem>>, %arg11: memref<128x512xbf16, #tpu.memory_space<vmem>>, %arg12: memref<1x512xf32, #tpu.memory_space<vmem>>, %arg13: memref<512x128xbf16, #tpu.memory_space<vmem>>, %arg14: memref<1x128xf32, #tpu.memory_space<vmem>>, %arg15: memref<2x128x128xf32, #tpu.memory_space<vmem>>) attributes {dimension_semantics = [#tpu.dimension_semantics<parallel>], iteration_bounds = array<i64: 1>, scalar_prefetch = 0 : i64, scratch_operands = 0 : i64, tpu.core_type = #tpu.core_type<tc>, window_params = [{transform_indices = @transform_0, window_bounds = array<i64: 2, 128, 128>}, {pipeline_mode = #tpu.pipeline_mode<synchronous>, transform_indices = @transform_1, window_bounds = array<i64: 1, 128>}, {pipeline_mode = #tpu.pipeline_mode<synchronous>, transform_indices = @transform_2, window_bounds = array<i64: 1, 128>}, {pipeline_mode = #tpu.pipeline_mode<synchronous>, transform_indices = @transform_3, window_bounds = array<i64: 4, 128, 32>}, {pipeline_mode = #tpu.pipeline_mode<synchronous>, transform_indices = @transform_4, window_bounds = array<i64: 4, 128, 32>}, {pipeline_mode = #tpu.pipeline_mode<synchronous>, transform_indices = @transform_5, window_bounds = array<i64: 4, 128, 32>}, {pipeline_mode = #tpu.pipeline_mode<synchronous>, transform_indices = @transform_6, window_bounds = array<i64: 4, 32, 128>}, {pipeline_mode = #tpu.pipeline_mode<synchronous>, transform_indices = @transform_7, window_bounds = array<i64: 1, 128>}, {pipeline_mode = #tpu.pipeline_mode<synchronous>, transform_indices = @transform_8, window_bounds = array<i64: 1, 128>}, {pipeline_mode = #tpu.pipeline_mode<synchronous>, transform_indices = @transform_9, window_bounds = array<i64: 1, 128>}, {pipeline_mode = #tpu.pipeline_mode<synchronous>, transform_indices = @transform_10, window_bounds = array<i64: 128, 512>}, {pipeline_mode = #tpu.pipeline_mode<synchronous>, transform_indices = @transform_11, window_bounds = array<i64: 1, 512>}, {pipeline_mode = #tpu.pipeline_mode<synchronous>, transform_indices = @transform_12, window_bounds = array<i64: 512, 128>}, {pipeline_mode = #tpu.pipeline_mode<synchronous>, transform_indices = @transform_13, window_bounds = array<i64: 1, 128>}, {transform_indices = @transform_14, window_bounds = array<i64: 2, 128, 128>}]} {
    %c0 = arith.constant 0 : index
    %c0_0 = arith.constant 0 : index
    %c0_1 = arith.constant 0 : index
    %0 = vector.load %arg1[%c0, %c0_0, %c0_1] : memref<2x128x128xf32, #tpu.memory_space<vmem>>, vector<2x128x128xf32>
    %1 = vector.shape_cast %0 : vector<2x128x128xf32> to vector<256x128xf32>
    %c0_2 = arith.constant 0 : index
    %c0_3 = arith.constant 0 : index
    %2 = vector.load %arg2[%c0_2, %c0_3] : memref<1x128xf32, #tpu.memory_space<vmem>>, vector<1x128xf32>
    %c0_4 = arith.constant 0 : index
    %c0_5 = arith.constant 0 : index
    %3 = vector.load %arg3[%c0_4, %c0_5] : memref<1x128xf32, #tpu.memory_space<vmem>>, vector<1x128xf32>
    %cst = arith.constant dense<0.000000e+00> : vector<256xf32>
    %4 = vector.multi_reduction <add>, %1, %cst [1] : vector<256x128xf32> to vector<256xf32>
    %5 = vector.shape_cast %4 : vector<256xf32> to vector<256x1xf32>
    %cst_6 = arith.constant 1.280000e+02 : f32
    %6 = vector.broadcast %cst_6 : f32 to vector<256x1xf32>
    %7 = arith.divf %5, %6 : vector<256x1xf32>
    %8 = arith.mulf %1, %1 : vector<256x128xf32>
    %cst_7 = arith.constant dense<0.000000e+00> : vector<256xf32>
    %9 = vector.multi_reduction <add>, %8, %cst_7 [1] : vector<256x128xf32> to vector<256xf32>
    %10 = vector.shape_cast %9 : vector<256xf32> to vector<256x1xf32>
    %cst_8 = arith.constant 1.280000e+02 : f32
    %11 = vector.broadcast %cst_8 : f32 to vector<256x1xf32>
    %12 = arith.divf %10, %11 : vector<256x1xf32>
    %13 = arith.mulf %7, %7 : vector<256x1xf32>
    %14 = arith.subf %12, %13 : vector<256x1xf32>
    %cst_9 = arith.constant 0.000000e+00 : f32
    %15 = vector.broadcast %cst_9 : f32 to vector<256x1xf32>
    %16 = arith.maximumf %14, %15 : vector<256x1xf32>
    %17 = vector.broadcast %7 : vector<256x1xf32> to vector<256x128xf32>
    %18 = arith.subf %1, %17 : vector<256x128xf32>
    %cst_10 = arith.constant 9.99999974E-6 : f32
    %19 = vector.broadcast %cst_10 : f32 to vector<256x1xf32>
    %20 = arith.addf %16, %19 : vector<256x1xf32>
    %21 = math.rsqrt %20 : vector<256x1xf32>
    %22 = vector.broadcast %21 : vector<256x1xf32> to vector<256x128xf32>
    %23 = arith.mulf %18, %22 : vector<256x128xf32>
    %24 = vector.broadcast %2 : vector<1x128xf32> to vector<256x128xf32>
    %25 = arith.mulf %23, %24 : vector<256x128xf32>
    %26 = vector.broadcast %3 : vector<1x128xf32> to vector<256x128xf32>
    %27 = arith.addf %25, %26 : vector<256x128xf32>
    %28 = arith.truncf %27 : vector<256x128xf32> to vector<256x128xbf16>
    %29 = tpu.iota {dimensions = array<i32: 0>} : vector<128x128xi32>
    %30 = tpu.iota {dimensions = array<i32: 1>} : vector<128x128xi32>
    %31 = arith.cmpi sle, %30, %29 : vector<128x128xi32>
    %cst_11 = arith.constant 0.000000e+00 : f32
    %32 = vector.broadcast %cst_11 : f32 to vector<256x128xf32>
    %c0_12 = arith.constant 0 : index
    %c0_13 = arith.constant 0 : index
    %c0_14 = arith.constant 0 : index
    %33 = vector.load %arg4[%c0_12, %c0_13, %c0_14] : memref<4x128x32xbf16, #tpu.memory_space<vmem>>, vector<1x128x32xbf16>
    %34 = vector.shape_cast %33 : vector<1x128x32xbf16> to vector<128x32xbf16>
    %cst_15 = arith.constant dense<0.000000e+00> : vector<256x32xf32>
    %35 = tpu.matmul %28, %34, %cst_15 {dimension_numbers = #tpu.dot_dimension_numbers<[1], [0], [0], [1], [0, 0, 1, 1], [], []>} : vector<256x128xbf16>, vector<128x32xbf16>, vector<256x32xf32> -> vector<256x32xf32>
    %36 = arith.truncf %35 : vector<256x32xf32> to vector<256x32xbf16>
    %c0_16 = arith.constant 0 : index
    %c0_17 = arith.constant 0 : index
    %c0_18 = arith.constant 0 : index
    %37 = vector.load %arg5[%c0_16, %c0_17, %c0_18] : memref<4x128x32xbf16, #tpu.memory_space<vmem>>, vector<1x128x32xbf16>
    %38 = vector.shape_cast %37 : vector<1x128x32xbf16> to vector<128x32xbf16>
    %cst_19 = arith.constant dense<0.000000e+00> : vector<256x32xf32>
    %39 = tpu.matmul %28, %38, %cst_19 {dimension_numbers = #tpu.dot_dimension_numbers<[1], [0], [0], [1], [0, 0, 1, 1], [], []>} : vector<256x128xbf16>, vector<128x32xbf16>, vector<256x32xf32> -> vector<256x32xf32>
    %40 = arith.truncf %39 : vector<256x32xf32> to vector<256x32xbf16>
    %c0_20 = arith.constant 0 : index
    %c0_21 = arith.constant 0 : index
    %c0_22 = arith.constant 0 : index
    %41 = vector.load %arg6[%c0_20, %c0_21, %c0_22] : memref<4x128x32xbf16, #tpu.memory_space<vmem>>, vector<1x128x32xbf16>
    %42 = vector.shape_cast %41 : vector<1x128x32xbf16> to vector<128x32xbf16>
    %cst_23 = arith.constant dense<0.000000e+00> : vector<256x32xf32>
    %43 = tpu.matmul %28, %42, %cst_23 {dimension_numbers = #tpu.dot_dimension_numbers<[1], [0], [0], [1], [0, 0, 1, 1], [], []>} : vector<256x128xbf16>, vector<128x32xbf16>, vector<256x32xf32> -> vector<256x32xf32>
    %44 = arith.truncf %43 : vector<256x32xf32> to vector<256x32xbf16>
    %45 = vector.extract_strided_slice %36 {offsets = [0, 0], sizes = [128, 32], strides = [1, 1]} : vector<256x32xbf16> to vector<128x32xbf16>
    %46 = vector.extract_strided_slice %40 {offsets = [0, 0], sizes = [128, 32], strides = [1, 1]} : vector<256x32xbf16> to vector<128x32xbf16>
    %47 = vector.extract_strided_slice %44 {offsets = [0, 0], sizes = [128, 32], strides = [1, 1]} : vector<256x32xbf16> to vector<128x32xbf16>
    %cst_24 = arith.constant dense<0.000000e+00> : vector<128x128xf32>
    %48 = tpu.matmul %45, %46, %cst_24 {dimension_numbers = #tpu.dot_dimension_numbers<[1], [1], [0], [0], [0, 0, 1, 0], [], []>} : vector<128x32xbf16>, vector<128x32xbf16>, vector<128x128xf32> -> vector<128x128xf32>
    %cst_25 = arith.constant 0xFF800000 : f32
    %49 = vector.broadcast %cst_25 : f32 to vector<128x128xf32>
    %50 = arith.select %31, %48, %49 : vector<128x128xi1>, vector<128x128xf32>
    %cst_26 = arith.constant dense<0xFF800000> : vector<128xf32>
    %51 = vector.multi_reduction <maximumf>, %50, %cst_26 [1] : vector<128x128xf32> to vector<128xf32>
    %52 = vector.shape_cast %51 : vector<128xf32> to vector<128x1xf32>
    %53 = vector.broadcast %52 : vector<128x1xf32> to vector<128x128xf32>
    %54 = arith.subf %50, %53 : vector<128x128xf32>
    %55 = math.exp %54 : vector<128x128xf32>
    %56 = arith.truncf %55 : vector<128x128xf32> to vector<128x128xbf16>
    %cst_27 = arith.constant dense<0.000000e+00> : vector<128x32xf32>
    %57 = tpu.matmul %56, %47, %cst_27 {dimension_numbers = #tpu.dot_dimension_numbers<[1], [0], [0], [1], [0, 0, 1, 1], [], []>} : vector<128x128xbf16>, vector<128x32xbf16>, vector<128x32xf32> -> vector<128x32xf32>
    %cst_28 = arith.constant dense<0.000000e+00> : vector<128xf32>
    %58 = vector.multi_reduction <add>, %55, %cst_28 [1] : vector<128x128xf32> to vector<128xf32>
    %59 = vector.shape_cast %58 : vector<128xf32> to vector<128x1xf32>
    %60 = tpu.reciprocal %59 {approx = true} : vector<128x1xf32> -> vector<128x1xf32>
    %61 = vector.broadcast %60 : vector<128x1xf32> to vector<128x32xf32>
    %62 = arith.mulf %57, %61 : vector<128x32xf32>
    %63 = vector.extract_strided_slice %36 {offsets = [128, 0], sizes = [128, 32], strides = [1, 1]} : vector<256x32xbf16> to vector<128x32xbf16>
    %64 = vector.extract_strided_slice %40 {offsets = [128, 0], sizes = [128, 32], strides = [1, 1]} : vector<256x32xbf16> to vector<128x32xbf16>
    %65 = vector.extract_strided_slice %44 {offsets = [128, 0], sizes = [128, 32], strides = [1, 1]} : vector<256x32xbf16> to vector<128x32xbf16>
    %cst_29 = arith.constant dense<0.000000e+00> : vector<128x128xf32>
    %66 = tpu.matmul %63, %64, %cst_29 {dimension_numbers = #tpu.dot_dimension_numbers<[1], [1], [0], [0], [0, 0, 1, 0], [], []>} : vector<128x32xbf16>, vector<128x32xbf16>, vector<128x128xf32> -> vector<128x128xf32>
    %cst_30 = arith.constant 0xFF800000 : f32
    %67 = vector.broadcast %cst_30 : f32 to vector<128x128xf32>
    %68 = arith.select %31, %66, %67 : vector<128x128xi1>, vector<128x128xf32>
    %cst_31 = arith.constant dense<0xFF800000> : vector<128xf32>
    %69 = vector.multi_reduction <maximumf>, %68, %cst_31 [1] : vector<128x128xf32> to vector<128xf32>
    %70 = vector.shape_cast %69 : vector<128xf32> to vector<128x1xf32>
    %71 = vector.broadcast %70 : vector<128x1xf32> to vector<128x128xf32>
    %72 = arith.subf %68, %71 : vector<128x128xf32>
    %73 = math.exp %72 : vector<128x128xf32>
    %74 = arith.truncf %73 : vector<128x128xf32> to vector<128x128xbf16>
    %cst_32 = arith.constant dense<0.000000e+00> : vector<128x32xf32>
    %75 = tpu.matmul %74, %65, %cst_32 {dimension_numbers = #tpu.dot_dimension_numbers<[1], [0], [0], [1], [0, 0, 1, 1], [], []>} : vector<128x128xbf16>, vector<128x32xbf16>, vector<128x32xf32> -> vector<128x32xf32>
    %cst_33 = arith.constant dense<0.000000e+00> : vector<128xf32>
    %76 = vector.multi_reduction <add>, %73, %cst_33 [1] : vector<128x128xf32> to vector<128xf32>
    %77 = vector.shape_cast %76 : vector<128xf32> to vector<128x1xf32>
    %78 = tpu.reciprocal %77 {approx = true} : vector<128x1xf32> -> vector<128x1xf32>
    %79 = vector.broadcast %78 : vector<128x1xf32> to vector<128x32xf32>
    %80 = arith.mulf %75, %79 : vector<128x32xf32>
    %81 = tpu.concatenate %62, %80 in 0 : vector<128x32xf32>, vector<128x32xf32> -> vector<256x32xf32>
    %82 = arith.truncf %81 : vector<256x32xf32> to vector<256x32xbf16>
    %c0_34 = arith.constant 0 : index
    %c0_35 = arith.constant 0 : index
    %c0_36 = arith.constant 0 : index
    %83 = vector.load %arg7[%c0_34, %c0_35, %c0_36] : memref<4x32x128xbf16, #tpu.memory_space<vmem>>, vector<1x32x128xbf16>
    %84 = vector.shape_cast %83 : vector<1x32x128xbf16> to vector<32x128xbf16>
    %cst_37 = arith.constant dense<0.000000e+00> : vector<256x128xf32>
    %85 = tpu.matmul %82, %84, %cst_37 {dimension_numbers = #tpu.dot_dimension_numbers<[1], [0], [0], [1], [0, 0, 1, 1], [], []>} : vector<256x32xbf16>, vector<32x128xbf16>, vector<256x128xf32> -> vector<256x128xf32>
    %86 = arith.addf %32, %85 : vector<256x128xf32>
    %c1 = arith.constant 1 : index
    %c0_38 = arith.constant 0 : index
    %c0_39 = arith.constant 0 : index
    %87 = vector.load %arg4[%c1, %c0_38, %c0_39] : memref<4x128x32xbf16, #tpu.memory_space<vmem>>, vector<1x128x32xbf16>
    %88 = vector.shape_cast %87 : vector<1x128x32xbf16> to vector<128x32xbf16>
    %cst_40 = arith.constant dense<0.000000e+00> : vector<256x32xf32>
    %89 = tpu.matmul %28, %88, %cst_40 {dimension_numbers = #tpu.dot_dimension_numbers<[1], [0], [0], [1], [0, 0, 1, 1], [], []>} : vector<256x128xbf16>, vector<128x32xbf16>, vector<256x32xf32> -> vector<256x32xf32>
    %90 = arith.truncf %89 : vector<256x32xf32> to vector<256x32xbf16>
    %c1_41 = arith.constant 1 : index
    %c0_42 = arith.constant 0 : index
    %c0_43 = arith.constant 0 : index
    %91 = vector.load %arg5[%c1_41, %c0_42, %c0_43] : memref<4x128x32xbf16, #tpu.memory_space<vmem>>, vector<1x128x32xbf16>
    %92 = vector.shape_cast %91 : vector<1x128x32xbf16> to vector<128x32xbf16>
    %cst_44 = arith.constant dense<0.000000e+00> : vector<256x32xf32>
    %93 = tpu.matmul %28, %92, %cst_44 {dimension_numbers = #tpu.dot_dimension_numbers<[1], [0], [0], [1], [0, 0, 1, 1], [], []>} : vector<256x128xbf16>, vector<128x32xbf16>, vector<256x32xf32> -> vector<256x32xf32>
    %94 = arith.truncf %93 : vector<256x32xf32> to vector<256x32xbf16>
    %c1_45 = arith.constant 1 : index
    %c0_46 = arith.constant 0 : index
    %c0_47 = arith.constant 0 : index
    %95 = vector.load %arg6[%c1_45, %c0_46, %c0_47] : memref<4x128x32xbf16, #tpu.memory_space<vmem>>, vector<1x128x32xbf16>
    %96 = vector.shape_cast %95 : vector<1x128x32xbf16> to vector<128x32xbf16>
    %cst_48 = arith.constant dense<0.000000e+00> : vector<256x32xf32>
    %97 = tpu.matmul %28, %96, %cst_48 {dimension_numbers = #tpu.dot_dimension_numbers<[1], [0], [0], [1], [0, 0, 1, 1], [], []>} : vector<256x128xbf16>, vector<128x32xbf16>, vector<256x32xf32> -> vector<256x32xf32>
    %98 = arith.truncf %97 : vector<256x32xf32> to vector<256x32xbf16>
    %99 = vector.extract_strided_slice %90 {offsets = [0, 0], sizes = [128, 32], strides = [1, 1]} : vector<256x32xbf16> to vector<128x32xbf16>
    %100 = vector.extract_strided_slice %94 {offsets = [0, 0], sizes = [128, 32], strides = [1, 1]} : vector<256x32xbf16> to vector<128x32xbf16>
    %101 = vector.extract_strided_slice %98 {offsets = [0, 0], sizes = [128, 32], strides = [1, 1]} : vector<256x32xbf16> to vector<128x32xbf16>
    %cst_49 = arith.constant dense<0.000000e+00> : vector<128x128xf32>
    %102 = tpu.matmul %99, %100, %cst_49 {dimension_numbers = #tpu.dot_dimension_numbers<[1], [1], [0], [0], [0, 0, 1, 0], [], []>} : vector<128x32xbf16>, vector<128x32xbf16>, vector<128x128xf32> -> vector<128x128xf32>
    %cst_50 = arith.constant 0xFF800000 : f32
    %103 = vector.broadcast %cst_50 : f32 to vector<128x128xf32>
    %104 = arith.select %31, %102, %103 : vector<128x128xi1>, vector<128x128xf32>
    %cst_51 = arith.constant dense<0xFF800000> : vector<128xf32>
    %105 = vector.multi_reduction <maximumf>, %104, %cst_51 [1] : vector<128x128xf32> to vector<128xf32>
    %106 = vector.shape_cast %105 : vector<128xf32> to vector<128x1xf32>
    %107 = vector.broadcast %106 : vector<128x1xf32> to vector<128x128xf32>
    %108 = arith.subf %104, %107 : vector<128x128xf32>
    %109 = math.exp %108 : vector<128x128xf32>
    %110 = arith.truncf %109 : vector<128x128xf32> to vector<128x128xbf16>
    %cst_52 = arith.constant dense<0.000000e+00> : vector<128x32xf32>
    %111 = tpu.matmul %110, %101, %cst_52 {dimension_numbers = #tpu.dot_dimension_numbers<[1], [0], [0], [1], [0, 0, 1, 1], [], []>} : vector<128x128xbf16>, vector<128x32xbf16>, vector<128x32xf32> -> vector<128x32xf32>
    %cst_53 = arith.constant dense<0.000000e+00> : vector<128xf32>
    %112 = vector.multi_reduction <add>, %109, %cst_53 [1] : vector<128x128xf32> to vector<128xf32>
    %113 = vector.shape_cast %112 : vector<128xf32> to vector<128x1xf32>
    %114 = tpu.reciprocal %113 {approx = true} : vector<128x1xf32> -> vector<128x1xf32>
    %115 = vector.broadcast %114 : vector<128x1xf32> to vector<128x32xf32>
    %116 = arith.mulf %111, %115 : vector<128x32xf32>
    %117 = vector.extract_strided_slice %90 {offsets = [128, 0], sizes = [128, 32], strides = [1, 1]} : vector<256x32xbf16> to vector<128x32xbf16>
    %118 = vector.extract_strided_slice %94 {offsets = [128, 0], sizes = [128, 32], strides = [1, 1]} : vector<256x32xbf16> to vector<128x32xbf16>
    %119 = vector.extract_strided_slice %98 {offsets = [128, 0], sizes = [128, 32], strides = [1, 1]} : vector<256x32xbf16> to vector<128x32xbf16>
    %cst_54 = arith.constant dense<0.000000e+00> : vector<128x128xf32>
    %120 = tpu.matmul %117, %118, %cst_54 {dimension_numbers = #tpu.dot_dimension_numbers<[1], [1], [0], [0], [0, 0, 1, 0], [], []>} : vector<128x32xbf16>, vector<128x32xbf16>, vector<128x128xf32> -> vector<128x128xf32>
    %cst_55 = arith.constant 0xFF800000 : f32
    %121 = vector.broadcast %cst_55 : f32 to vector<128x128xf32>
    %122 = arith.select %31, %120, %121 : vector<128x128xi1>, vector<128x128xf32>
    %cst_56 = arith.constant dense<0xFF800000> : vector<128xf32>
    %123 = vector.multi_reduction <maximumf>, %122, %cst_56 [1] : vector<128x128xf32> to vector<128xf32>
    %124 = vector.shape_cast %123 : vector<128xf32> to vector<128x1xf32>
    %125 = vector.broadcast %124 : vector<128x1xf32> to vector<128x128xf32>
    %126 = arith.subf %122, %125 : vector<128x128xf32>
    %127 = math.exp %126 : vector<128x128xf32>
    %128 = arith.truncf %127 : vector<128x128xf32> to vector<128x128xbf16>
    %cst_57 = arith.constant dense<0.000000e+00> : vector<128x32xf32>
    %129 = tpu.matmul %128, %119, %cst_57 {dimension_numbers = #tpu.dot_dimension_numbers<[1], [0], [0], [1], [0, 0, 1, 1], [], []>} : vector<128x128xbf16>, vector<128x32xbf16>, vector<128x32xf32> -> vector<128x32xf32>
    %cst_58 = arith.constant dense<0.000000e+00> : vector<128xf32>
    %130 = vector.multi_reduction <add>, %127, %cst_58 [1] : vector<128x128xf32> to vector<128xf32>
    %131 = vector.shape_cast %130 : vector<128xf32> to vector<128x1xf32>
    %132 = tpu.reciprocal %131 {approx = true} : vector<128x1xf32> -> vector<128x1xf32>
    %133 = vector.broadcast %132 : vector<128x1xf32> to vector<128x32xf32>
    %134 = arith.mulf %129, %133 : vector<128x32xf32>
    %135 = tpu.concatenate %116, %134 in 0 : vector<128x32xf32>, vector<128x32xf32> -> vector<256x32xf32>
    %136 = arith.truncf %135 : vector<256x32xf32> to vector<256x32xbf16>
    %c1_59 = arith.constant 1 : index
    %c0_60 = arith.constant 0 : index
    %c0_61 = arith.constant 0 : index
    %137 = vector.load %arg7[%c1_59, %c0_60, %c0_61] : memref<4x32x128xbf16, #tpu.memory_space<vmem>>, vector<1x32x128xbf16>
    %138 = vector.shape_cast %137 : vector<1x32x128xbf16> to vector<32x128xbf16>
    %cst_62 = arith.constant dense<0.000000e+00> : vector<256x128xf32>
    %139 = tpu.matmul %136, %138, %cst_62 {dimension_numbers = #tpu.dot_dimension_numbers<[1], [0], [0], [1], [0, 0, 1, 1], [], []>} : vector<256x32xbf16>, vector<32x128xbf16>, vector<256x128xf32> -> vector<256x128xf32>
    %140 = arith.addf %86, %139 : vector<256x128xf32>
    %c2 = arith.constant 2 : index
    %c0_63 = arith.constant 0 : index
    %c0_64 = arith.constant 0 : index
    %141 = vector.load %arg4[%c2, %c0_63, %c0_64] : memref<4x128x32xbf16, #tpu.memory_space<vmem>>, vector<1x128x32xbf16>
    %142 = vector.shape_cast %141 : vector<1x128x32xbf16> to vector<128x32xbf16>
    %cst_65 = arith.constant dense<0.000000e+00> : vector<256x32xf32>
    %143 = tpu.matmul %28, %142, %cst_65 {dimension_numbers = #tpu.dot_dimension_numbers<[1], [0], [0], [1], [0, 0, 1, 1], [], []>} : vector<256x128xbf16>, vector<128x32xbf16>, vector<256x32xf32> -> vector<256x32xf32>
    %144 = arith.truncf %143 : vector<256x32xf32> to vector<256x32xbf16>
    %c2_66 = arith.constant 2 : index
    %c0_67 = arith.constant 0 : index
    %c0_68 = arith.constant 0 : index
    %145 = vector.load %arg5[%c2_66, %c0_67, %c0_68] : memref<4x128x32xbf16, #tpu.memory_space<vmem>>, vector<1x128x32xbf16>
    %146 = vector.shape_cast %145 : vector<1x128x32xbf16> to vector<128x32xbf16>
    %cst_69 = arith.constant dense<0.000000e+00> : vector<256x32xf32>
    %147 = tpu.matmul %28, %146, %cst_69 {dimension_numbers = #tpu.dot_dimension_numbers<[1], [0], [0], [1], [0, 0, 1, 1], [], []>} : vector<256x128xbf16>, vector<128x32xbf16>, vector<256x32xf32> -> vector<256x32xf32>
    %148 = arith.truncf %147 : vector<256x32xf32> to vector<256x32xbf16>
    %c2_70 = arith.constant 2 : index
    %c0_71 = arith.constant 0 : index
    %c0_72 = arith.constant 0 : index
    %149 = vector.load %arg6[%c2_70, %c0_71, %c0_72] : memref<4x128x32xbf16, #tpu.memory_space<vmem>>, vector<1x128x32xbf16>
    %150 = vector.shape_cast %149 : vector<1x128x32xbf16> to vector<128x32xbf16>
    %cst_73 = arith.constant dense<0.000000e+00> : vector<256x32xf32>
    %151 = tpu.matmul %28, %150, %cst_73 {dimension_numbers = #tpu.dot_dimension_numbers<[1], [0], [0], [1], [0, 0, 1, 1], [], []>} : vector<256x128xbf16>, vector<128x32xbf16>, vector<256x32xf32> -> vector<256x32xf32>
    %152 = arith.truncf %151 : vector<256x32xf32> to vector<256x32xbf16>
    %153 = vector.extract_strided_slice %144 {offsets = [0, 0], sizes = [128, 32], strides = [1, 1]} : vector<256x32xbf16> to vector<128x32xbf16>
    %154 = vector.extract_strided_slice %148 {offsets = [0, 0], sizes = [128, 32], strides = [1, 1]} : vector<256x32xbf16> to vector<128x32xbf16>
    %155 = vector.extract_strided_slice %152 {offsets = [0, 0], sizes = [128, 32], strides = [1, 1]} : vector<256x32xbf16> to vector<128x32xbf16>
    %cst_74 = arith.constant dense<0.000000e+00> : vector<128x128xf32>
    %156 = tpu.matmul %153, %154, %cst_74 {dimension_numbers = #tpu.dot_dimension_numbers<[1], [1], [0], [0], [0, 0, 1, 0], [], []>} : vector<128x32xbf16>, vector<128x32xbf16>, vector<128x128xf32> -> vector<128x128xf32>
    %cst_75 = arith.constant 0xFF800000 : f32
    %157 = vector.broadcast %cst_75 : f32 to vector<128x128xf32>
    %158 = arith.select %31, %156, %157 : vector<128x128xi1>, vector<128x128xf32>
    %cst_76 = arith.constant dense<0xFF800000> : vector<128xf32>
    %159 = vector.multi_reduction <maximumf>, %158, %cst_76 [1] : vector<128x128xf32> to vector<128xf32>
    %160 = vector.shape_cast %159 : vector<128xf32> to vector<128x1xf32>
    %161 = vector.broadcast %160 : vector<128x1xf32> to vector<128x128xf32>
    %162 = arith.subf %158, %161 : vector<128x128xf32>
    %163 = math.exp %162 : vector<128x128xf32>
    %164 = arith.truncf %163 : vector<128x128xf32> to vector<128x128xbf16>
    %cst_77 = arith.constant dense<0.000000e+00> : vector<128x32xf32>
    %165 = tpu.matmul %164, %155, %cst_77 {dimension_numbers = #tpu.dot_dimension_numbers<[1], [0], [0], [1], [0, 0, 1, 1], [], []>} : vector<128x128xbf16>, vector<128x32xbf16>, vector<128x32xf32> -> vector<128x32xf32>
    %cst_78 = arith.constant dense<0.000000e+00> : vector<128xf32>
    %166 = vector.multi_reduction <add>, %163, %cst_78 [1] : vector<128x128xf32> to vector<128xf32>
    %167 = vector.shape_cast %166 : vector<128xf32> to vector<128x1xf32>
    %168 = tpu.reciprocal %167 {approx = true} : vector<128x1xf32> -> vector<128x1xf32>
    %169 = vector.broadcast %168 : vector<128x1xf32> to vector<128x32xf32>
    %170 = arith.mulf %165, %169 : vector<128x32xf32>
    %171 = vector.extract_strided_slice %144 {offsets = [128, 0], sizes = [128, 32], strides = [1, 1]} : vector<256x32xbf16> to vector<128x32xbf16>
    %172 = vector.extract_strided_slice %148 {offsets = [128, 0], sizes = [128, 32], strides = [1, 1]} : vector<256x32xbf16> to vector<128x32xbf16>
    %173 = vector.extract_strided_slice %152 {offsets = [128, 0], sizes = [128, 32], strides = [1, 1]} : vector<256x32xbf16> to vector<128x32xbf16>
    %cst_79 = arith.constant dense<0.000000e+00> : vector<128x128xf32>
    %174 = tpu.matmul %171, %172, %cst_79 {dimension_numbers = #tpu.dot_dimension_numbers<[1], [1], [0], [0], [0, 0, 1, 0], [], []>} : vector<128x32xbf16>, vector<128x32xbf16>, vector<128x128xf32> -> vector<128x128xf32>
    %cst_80 = arith.constant 0xFF800000 : f32
    %175 = vector.broadcast %cst_80 : f32 to vector<128x128xf32>
    %176 = arith.select %31, %174, %175 : vector<128x128xi1>, vector<128x128xf32>
    %cst_81 = arith.constant dense<0xFF800000> : vector<128xf32>
    %177 = vector.multi_reduction <maximumf>, %176, %cst_81 [1] : vector<128x128xf32> to vector<128xf32>
    %178 = vector.shape_cast %177 : vector<128xf32> to vector<128x1xf32>
    %179 = vector.broadcast %178 : vector<128x1xf32> to vector<128x128xf32>
    %180 = arith.subf %176, %179 : vector<128x128xf32>
    %181 = math.exp %180 : vector<128x128xf32>
    %182 = arith.truncf %181 : vector<128x128xf32> to vector<128x128xbf16>
    %cst_82 = arith.constant dense<0.000000e+00> : vector<128x32xf32>
    %183 = tpu.matmul %182, %173, %cst_82 {dimension_numbers = #tpu.dot_dimension_numbers<[1], [0], [0], [1], [0, 0, 1, 1], [], []>} : vector<128x128xbf16>, vector<128x32xbf16>, vector<128x32xf32> -> vector<128x32xf32>
    %cst_83 = arith.constant dense<0.000000e+00> : vector<128xf32>
    %184 = vector.multi_reduction <add>, %181, %cst_83 [1] : vector<128x128xf32> to vector<128xf32>
    %185 = vector.shape_cast %184 : vector<128xf32> to vector<128x1xf32>
    %186 = tpu.reciprocal %185 {approx = true} : vector<128x1xf32> -> vector<128x1xf32>
    %187 = vector.broadcast %186 : vector<128x1xf32> to vector<128x32xf32>
    %188 = arith.mulf %183, %187 : vector<128x32xf32>
    %189 = tpu.concatenate %170, %188 in 0 : vector<128x32xf32>, vector<128x32xf32> -> vector<256x32xf32>
    %190 = arith.truncf %189 : vector<256x32xf32> to vector<256x32xbf16>
    %c2_84 = arith.constant 2 : index
    %c0_85 = arith.constant 0 : index
    %c0_86 = arith.constant 0 : index
    %191 = vector.load %arg7[%c2_84, %c0_85, %c0_86] : memref<4x32x128xbf16, #tpu.memory_space<vmem>>, vector<1x32x128xbf16>
    %192 = vector.shape_cast %191 : vector<1x32x128xbf16> to vector<32x128xbf16>
    %cst_87 = arith.constant dense<0.000000e+00> : vector<256x128xf32>
    %193 = tpu.matmul %190, %192, %cst_87 {dimension_numbers = #tpu.dot_dimension_numbers<[1], [0], [0], [1], [0, 0, 1, 1], [], []>} : vector<256x32xbf16>, vector<32x128xbf16>, vector<256x128xf32> -> vector<256x128xf32>
    %194 = arith.addf %140, %193 : vector<256x128xf32>
    %c3 = arith.constant 3 : index
    %c0_88 = arith.constant 0 : index
    %c0_89 = arith.constant 0 : index
    %195 = vector.load %arg4[%c3, %c0_88, %c0_89] : memref<4x128x32xbf16, #tpu.memory_space<vmem>>, vector<1x128x32xbf16>
    %196 = vector.shape_cast %195 : vector<1x128x32xbf16> to vector<128x32xbf16>
    %cst_90 = arith.constant dense<0.000000e+00> : vector<256x32xf32>
    %197 = tpu.matmul %28, %196, %cst_90 {dimension_numbers = #tpu.dot_dimension_numbers<[1], [0], [0], [1], [0, 0, 1, 1], [], []>} : vector<256x128xbf16>, vector<128x32xbf16>, vector<256x32xf32> -> vector<256x32xf32>
    %198 = arith.truncf %197 : vector<256x32xf32> to vector<256x32xbf16>
    %c3_91 = arith.constant 3 : index
    %c0_92 = arith.constant 0 : index
    %c0_93 = arith.constant 0 : index
    %199 = vector.load %arg5[%c3_91, %c0_92, %c0_93] : memref<4x128x32xbf16, #tpu.memory_space<vmem>>, vector<1x128x32xbf16>
    %200 = vector.shape_cast %199 : vector<1x128x32xbf16> to vector<128x32xbf16>
    %cst_94 = arith.constant dense<0.000000e+00> : vector<256x32xf32>
    %201 = tpu.matmul %28, %200, %cst_94 {dimension_numbers = #tpu.dot_dimension_numbers<[1], [0], [0], [1], [0, 0, 1, 1], [], []>} : vector<256x128xbf16>, vector<128x32xbf16>, vector<256x32xf32> -> vector<256x32xf32>
    %202 = arith.truncf %201 : vector<256x32xf32> to vector<256x32xbf16>
    %c3_95 = arith.constant 3 : index
    %c0_96 = arith.constant 0 : index
    %c0_97 = arith.constant 0 : index
    %203 = vector.load %arg6[%c3_95, %c0_96, %c0_97] : memref<4x128x32xbf16, #tpu.memory_space<vmem>>, vector<1x128x32xbf16>
    %204 = vector.shape_cast %203 : vector<1x128x32xbf16> to vector<128x32xbf16>
    %cst_98 = arith.constant dense<0.000000e+00> : vector<256x32xf32>
    %205 = tpu.matmul %28, %204, %cst_98 {dimension_numbers = #tpu.dot_dimension_numbers<[1], [0], [0], [1], [0, 0, 1, 1], [], []>} : vector<256x128xbf16>, vector<128x32xbf16>, vector<256x32xf32> -> vector<256x32xf32>
    %206 = arith.truncf %205 : vector<256x32xf32> to vector<256x32xbf16>
    %207 = vector.extract_strided_slice %198 {offsets = [0, 0], sizes = [128, 32], strides = [1, 1]} : vector<256x32xbf16> to vector<128x32xbf16>
    %208 = vector.extract_strided_slice %202 {offsets = [0, 0], sizes = [128, 32], strides = [1, 1]} : vector<256x32xbf16> to vector<128x32xbf16>
    %209 = vector.extract_strided_slice %206 {offsets = [0, 0], sizes = [128, 32], strides = [1, 1]} : vector<256x32xbf16> to vector<128x32xbf16>
    %cst_99 = arith.constant dense<0.000000e+00> : vector<128x128xf32>
    %210 = tpu.matmul %207, %208, %cst_99 {dimension_numbers = #tpu.dot_dimension_numbers<[1], [1], [0], [0], [0, 0, 1, 0], [], []>} : vector<128x32xbf16>, vector<128x32xbf16>, vector<128x128xf32> -> vector<128x128xf32>
    %cst_100 = arith.constant 0xFF800000 : f32
    %211 = vector.broadcast %cst_100 : f32 to vector<128x128xf32>
    %212 = arith.select %31, %210, %211 : vector<128x128xi1>, vector<128x128xf32>
    %cst_101 = arith.constant dense<0xFF800000> : vector<128xf32>
    %213 = vector.multi_reduction <maximumf>, %212, %cst_101 [1] : vector<128x128xf32> to vector<128xf32>
    %214 = vector.shape_cast %213 : vector<128xf32> to vector<128x1xf32>
    %215 = vector.broadcast %214 : vector<128x1xf32> to vector<128x128xf32>
    %216 = arith.subf %212, %215 : vector<128x128xf32>
    %217 = math.exp %216 : vector<128x128xf32>
    %218 = arith.truncf %217 : vector<128x128xf32> to vector<128x128xbf16>
    %cst_102 = arith.constant dense<0.000000e+00> : vector<128x32xf32>
    %219 = tpu.matmul %218, %209, %cst_102 {dimension_numbers = #tpu.dot_dimension_numbers<[1], [0], [0], [1], [0, 0, 1, 1], [], []>} : vector<128x128xbf16>, vector<128x32xbf16>, vector<128x32xf32> -> vector<128x32xf32>
    %cst_103 = arith.constant dense<0.000000e+00> : vector<128xf32>
    %220 = vector.multi_reduction <add>, %217, %cst_103 [1] : vector<128x128xf32> to vector<128xf32>
    %221 = vector.shape_cast %220 : vector<128xf32> to vector<128x1xf32>
    %222 = tpu.reciprocal %221 {approx = true} : vector<128x1xf32> -> vector<128x1xf32>
    %223 = vector.broadcast %222 : vector<128x1xf32> to vector<128x32xf32>
    %224 = arith.mulf %219, %223 : vector<128x32xf32>
    %225 = vector.extract_strided_slice %198 {offsets = [128, 0], sizes = [128, 32], strides = [1, 1]} : vector<256x32xbf16> to vector<128x32xbf16>
    %226 = vector.extract_strided_slice %202 {offsets = [128, 0], sizes = [128, 32], strides = [1, 1]} : vector<256x32xbf16> to vector<128x32xbf16>
    %227 = vector.extract_strided_slice %206 {offsets = [128, 0], sizes = [128, 32], strides = [1, 1]} : vector<256x32xbf16> to vector<128x32xbf16>
    %cst_104 = arith.constant dense<0.000000e+00> : vector<128x128xf32>
    %228 = tpu.matmul %225, %226, %cst_104 {dimension_numbers = #tpu.dot_dimension_numbers<[1], [1], [0], [0], [0, 0, 1, 0], [], []>} : vector<128x32xbf16>, vector<128x32xbf16>, vector<128x128xf32> -> vector<128x128xf32>
    %cst_105 = arith.constant 0xFF800000 : f32
    %229 = vector.broadcast %cst_105 : f32 to vector<128x128xf32>
    %230 = arith.select %31, %228, %229 : vector<128x128xi1>, vector<128x128xf32>
    %cst_106 = arith.constant dense<0xFF800000> : vector<128xf32>
    %231 = vector.multi_reduction <maximumf>, %230, %cst_106 [1] : vector<128x128xf32> to vector<128xf32>
    %232 = vector.shape_cast %231 : vector<128xf32> to vector<128x1xf32>
    %233 = vector.broadcast %232 : vector<128x1xf32> to vector<128x128xf32>
    %234 = arith.subf %230, %233 : vector<128x128xf32>
    %235 = math.exp %234 : vector<128x128xf32>
    %236 = arith.truncf %235 : vector<128x128xf32> to vector<128x128xbf16>
    %cst_107 = arith.constant dense<0.000000e+00> : vector<128x32xf32>
    %237 = tpu.matmul %236, %227, %cst_107 {dimension_numbers = #tpu.dot_dimension_numbers<[1], [0], [0], [1], [0, 0, 1, 1], [], []>} : vector<128x128xbf16>, vector<128x32xbf16>, vector<128x32xf32> -> vector<128x32xf32>
    %cst_108 = arith.constant dense<0.000000e+00> : vector<128xf32>
    %238 = vector.multi_reduction <add>, %235, %cst_108 [1] : vector<128x128xf32> to vector<128xf32>
    %239 = vector.shape_cast %238 : vector<128xf32> to vector<128x1xf32>
    %240 = tpu.reciprocal %239 {approx = true} : vector<128x1xf32> -> vector<128x1xf32>
    %241 = vector.broadcast %240 : vector<128x1xf32> to vector<128x32xf32>
    %242 = arith.mulf %237, %241 : vector<128x32xf32>
    %243 = tpu.concatenate %224, %242 in 0 : vector<128x32xf32>, vector<128x32xf32> -> vector<256x32xf32>
    %244 = arith.truncf %243 : vector<256x32xf32> to vector<256x32xbf16>
    %c3_109 = arith.constant 3 : index
    %c0_110 = arith.constant 0 : index
    %c0_111 = arith.constant 0 : index
    %245 = vector.load %arg7[%c3_109, %c0_110, %c0_111] : memref<4x32x128xbf16, #tpu.memory_space<vmem>>, vector<1x32x128xbf16>
    %246 = vector.shape_cast %245 : vector<1x32x128xbf16> to vector<32x128xbf16>
    %cst_112 = arith.constant dense<0.000000e+00> : vector<256x128xf32>
    %247 = tpu.matmul %244, %246, %cst_112 {dimension_numbers = #tpu.dot_dimension_numbers<[1], [0], [0], [1], [0, 0, 1, 1], [], []>} : vector<256x32xbf16>, vector<32x128xbf16>, vector<256x128xf32> -> vector<256x128xf32>
    %248 = arith.addf %194, %247 : vector<256x128xf32>
    %249 = arith.addf %1, %248 : vector<256x128xf32>
    %c0_113 = arith.constant 0 : index
    %c0_114 = arith.constant 0 : index
    %250 = vector.load %arg8[%c0_113, %c0_114] : memref<1x128xf32, #tpu.memory_space<vmem>>, vector<1x128xf32>
    %251 = vector.broadcast %250 : vector<1x128xf32> to vector<256x128xf32>
    %252 = arith.addf %249, %251 : vector<256x128xf32>
    %c0_115 = arith.constant 0 : index
    %c0_116 = arith.constant 0 : index
    %253 = vector.load %arg9[%c0_115, %c0_116] : memref<1x128xf32, #tpu.memory_space<vmem>>, vector<1x128xf32>
    %c0_117 = arith.constant 0 : index
    %c0_118 = arith.constant 0 : index
    %254 = vector.load %arg10[%c0_117, %c0_118] : memref<1x128xf32, #tpu.memory_space<vmem>>, vector<1x128xf32>
    %cst_119 = arith.constant dense<0.000000e+00> : vector<256xf32>
    %255 = vector.multi_reduction <add>, %252, %cst_119 [1] : vector<256x128xf32> to vector<256xf32>
    %256 = vector.shape_cast %255 : vector<256xf32> to vector<256x1xf32>
    %cst_120 = arith.constant 1.280000e+02 : f32
    %257 = vector.broadcast %cst_120 : f32 to vector<256x1xf32>
    %258 = arith.divf %256, %257 : vector<256x1xf32>
    %259 = arith.mulf %252, %252 : vector<256x128xf32>
    %cst_121 = arith.constant dense<0.000000e+00> : vector<256xf32>
    %260 = vector.multi_reduction <add>, %259, %cst_121 [1] : vector<256x128xf32> to vector<256xf32>
    %261 = vector.shape_cast %260 : vector<256xf32> to vector<256x1xf32>
    %cst_122 = arith.constant 1.280000e+02 : f32
    %262 = vector.broadcast %cst_122 : f32 to vector<256x1xf32>
    %263 = arith.divf %261, %262 : vector<256x1xf32>
    %264 = arith.mulf %258, %258 : vector<256x1xf32>
    %265 = arith.subf %263, %264 : vector<256x1xf32>
    %cst_123 = arith.constant 0.000000e+00 : f32
    %266 = vector.broadcast %cst_123 : f32 to vector<256x1xf32>
    %267 = arith.maximumf %265, %266 : vector<256x1xf32>
    %268 = vector.broadcast %258 : vector<256x1xf32> to vector<256x128xf32>
    %269 = arith.subf %252, %268 : vector<256x128xf32>
    %cst_124 = arith.constant 9.99999974E-6 : f32
    %270 = vector.broadcast %cst_124 : f32 to vector<256x1xf32>
    %271 = arith.addf %267, %270 : vector<256x1xf32>
    %272 = math.rsqrt %271 : vector<256x1xf32>
    %273 = vector.broadcast %272 : vector<256x1xf32> to vector<256x128xf32>
    %274 = arith.mulf %269, %273 : vector<256x128xf32>
    %275 = vector.broadcast %253 : vector<1x128xf32> to vector<256x128xf32>
    %276 = arith.mulf %274, %275 : vector<256x128xf32>
    %277 = vector.broadcast %254 : vector<1x128xf32> to vector<256x128xf32>
    %278 = arith.addf %276, %277 : vector<256x128xf32>
    %279 = arith.truncf %278 : vector<256x128xf32> to vector<256x128xbf16>
    %c0_125 = arith.constant 0 : index
    %c0_126 = arith.constant 0 : index
    %280 = vector.load %arg11[%c0_125, %c0_126] : memref<128x512xbf16, #tpu.memory_space<vmem>>, vector<128x512xbf16>
    %cst_127 = arith.constant dense<0.000000e+00> : vector<256x512xf32>
    %281 = tpu.matmul %279, %280, %cst_127 {dimension_numbers = #tpu.dot_dimension_numbers<[1], [0], [0], [1], [0, 0, 1, 1], [], []>} : vector<256x128xbf16>, vector<128x512xbf16>, vector<256x512xf32> -> vector<256x512xf32>
    %c0_128 = arith.constant 0 : index
    %c0_129 = arith.constant 0 : index
    %282 = vector.load %arg12[%c0_128, %c0_129] : memref<1x512xf32, #tpu.memory_space<vmem>>, vector<1x512xf32>
    %283 = vector.broadcast %282 : vector<1x512xf32> to vector<256x512xf32>
    %284 = arith.addf %281, %283 : vector<256x512xf32>
    %cst_130 = arith.constant 0.000000e+00 : f32
    %285 = vector.broadcast %cst_130 : f32 to vector<256x512xf32>
    %286 = arith.maximumf %284, %285 : vector<256x512xf32>
    %287 = arith.truncf %286 : vector<256x512xf32> to vector<256x512xbf16>
    %c0_131 = arith.constant 0 : index
    %c0_132 = arith.constant 0 : index
    %288 = vector.load %arg13[%c0_131, %c0_132] : memref<512x128xbf16, #tpu.memory_space<vmem>>, vector<512x128xbf16>
    %cst_133 = arith.constant dense<0.000000e+00> : vector<256x128xf32>
    %289 = tpu.matmul %287, %288, %cst_133 {dimension_numbers = #tpu.dot_dimension_numbers<[1], [0], [0], [1], [0, 0, 1, 1], [], []>} : vector<256x512xbf16>, vector<512x128xbf16>, vector<256x128xf32> -> vector<256x128xf32>
    %c0_134 = arith.constant 0 : index
    %c0_135 = arith.constant 0 : index
    %290 = vector.load %arg14[%c0_134, %c0_135] : memref<1x128xf32, #tpu.memory_space<vmem>>, vector<1x128xf32>
    %291 = vector.broadcast %290 : vector<1x128xf32> to vector<256x128xf32>
    %292 = arith.addf %289, %291 : vector<256x128xf32>
    %293 = arith.addf %252, %292 : vector<256x128xf32>
    %294 = vector.shape_cast %293 : vector<256x128xf32> to vector<2x128x128xf32>
    %c0_136 = arith.constant 0 : index
    %c0_137 = arith.constant 0 : index
    %c0_138 = arith.constant 0 : index
    %295 = vector.load %arg15[%c0_136, %c0_137, %c0_138] : memref<2x128x128xf32, #tpu.memory_space<vmem>>, vector<2x128x128xf32>
    tpu.vector_store %arg15[%c0_136, %c0_137, %c0_138], %294 {strides = array<i32>} : memref<2x128x128xf32, #tpu.memory_space<vmem>>, vector<2x128x128xf32>,
    return
  }
  func.func @transform_0(%arg0: i32) -> (i32, i32, i32) {
    %c0_i32 = arith.constant 0 : i32
    %c0_i32_0 = arith.constant 0 : i32
    %c0_i32_1 = arith.constant 0 : i32
    return %arg0, %c0_i32, %c0_i32_0 : i32, i32, i32
  }
  func.func @transform_1(%arg0: i32) -> (i32, i32) {
    %c0_i32 = arith.constant 0 : i32
    %c0_i32_0 = arith.constant 0 : i32
    %c0_i32_1 = arith.constant 0 : i32
    return %c0_i32, %c0_i32_0 : i32, i32
  }
  func.func @transform_2(%arg0: i32) -> (i32, i32) {
    %c0_i32 = arith.constant 0 : i32
    %c0_i32_0 = arith.constant 0 : i32
    %c0_i32_1 = arith.constant 0 : i32
    return %c0_i32, %c0_i32_0 : i32, i32
  }
  func.func @transform_3(%arg0: i32) -> (i32, i32, i32) {
    %c0_i32 = arith.constant 0 : i32
    %c0_i32_0 = arith.constant 0 : i32
    %c0_i32_1 = arith.constant 0 : i32
    %c0_i32_2 = arith.constant 0 : i32
    return %c0_i32, %c0_i32_0, %c0_i32_1 : i32, i32, i32
  }
  func.func @transform_4(%arg0: i32) -> (i32, i32, i32) {
    %c0_i32 = arith.constant 0 : i32
    %c0_i32_0 = arith.constant 0 : i32
    %c0_i32_1 = arith.constant 0 : i32
    %c0_i32_2 = arith.constant 0 : i32
    return %c0_i32, %c0_i32_0, %c0_i32_1 : i32, i32, i32
  }
  func.func @transform_5(%arg0: i32) -> (i32, i32, i32) {
    %c0_i32 = arith.constant 0 : i32
    %c0_i32_0 = arith.constant 0 : i32
    %c0_i32_1 = arith.constant 0 : i32
    %c0_i32_2 = arith.constant 0 : i32
    return %c0_i32, %c0_i32_0, %c0_i32_1 : i32, i32, i32
  }
  func.func @transform_6(%arg0: i32) -> (i32, i32, i32) {
    %c0_i32 = arith.constant 0 : i32
    %c0_i32_0 = arith.constant 0 : i32
    %c0_i32_1 = arith.constant 0 : i32
    %c0_i32_2 = arith.constant 0 : i32
    return %c0_i32, %c0_i32_0, %c0_i32_1 : i32, i32, i32
  }
  func.func @transform_7(%arg0: i32) -> (i32, i32) {
    %c0_i32 = arith.constant 0 : i32
    %c0_i32_0 = arith.constant 0 : i32
    %c0_i32_1 = arith.constant 0 : i32
    return %c0_i32, %c0_i32_0 : i32, i32
  }
  func.func @transform_8(%arg0: i32) -> (i32, i32) {
    %c0_i32 = arith.constant 0 : i32
    %c0_i32_0 = arith.constant 0 : i32
    %c0_i32_1 = arith.constant 0 : i32
    return %c0_i32, %c0_i32_0 : i32, i32
  }
  func.func @transform_9(%arg0: i32) -> (i32, i32) {
    %c0_i32 = arith.constant 0 : i32
    %c0_i32_0 = arith.constant 0 : i32
    %c0_i32_1 = arith.constant 0 : i32
    return %c0_i32, %c0_i32_0 : i32, i32
  }
  func.func @transform_10(%arg0: i32) -> (i32, i32) {
    %c0_i32 = arith.constant 0 : i32
    %c0_i32_0 = arith.constant 0 : i32
    %c0_i32_1 = arith.constant 0 : i32
    return %c0_i32, %c0_i32_0 : i32, i32
  }
  func.func @transform_11(%arg0: i32) -> (i32, i32) {
    %c0_i32 = arith.constant 0 : i32
    %c0_i32_0 = arith.constant 0 : i32
    %c0_i32_1 = arith.constant 0 : i32
    return %c0_i32, %c0_i32_0 : i32, i32
  }
  func.func @transform_12(%arg0: i32) -> (i32, i32) {
    %c0_i32 = arith.constant 0 : i32
    %c0_i32_0 = arith.constant 0 : i32
    %c0_i32_1 = arith.constant 0 : i32
    return %c0_i32, %c0_i32_0 : i32, i32
  }
  func.func @transform_13(%arg0: i32) -> (i32, i32) {
    %c0_i32 = arith.constant 0 : i32
    %c0_i32_0 = arith.constant 0 : i32
    %c0_i32_1 = arith.constant 0 : i32
    return %c0_i32, %c0_i32_0 : i32, i32
  }
  func.func @transform_14(%arg0: i32) -> (i32, i32, i32) {
    %c0_i32 = arith.constant 0 : i32
    %c0_i32_0 = arith.constant 0 : i32
    %c0_i32_1 = arith.constant 0 : i32
    return %arg0, %c0_i32, %c0_i32_0 : i32, i32, i32
  }
}

</mosaic_0001>

<llo_original>
// kernel: tpu_custom_call.1
$region0: #{tpu_custom_call.1}
  #allocation0 [shape = 'u32[]', space=smem, size = 0x4, offset = 0x4, fixed_abs, tag = 'smem constant byte address 0x4 - core index']
  #allocation1 [shape = 'u32[144,128]{1,0:T(1,128)}', space=vmem, size = 0x12000, scoped, tag = 'internal scratch']
  %s0 = inlined_call_operand.vmem [shape: f32[2,128,128], index: 0, kind: input, shape index: {}]
  %s1 = inlined_call_operand.hbm [shape: f32[1,128], index: 1, kind: input, shape index: {}]
  %s2 = inlined_call_operand.hbm [shape: f32[1,128], index: 2, kind: input, shape index: {}]
  %s3 = inlined_call_operand.vmem [shape: bf16[4,128,32], index: 3, kind: input, shape index: {}]
  %s4 = inlined_call_operand.vmem [shape: bf16[4,128,32], index: 4, kind: input, shape index: {}]
  %s5 = inlined_call_operand.vmem [shape: bf16[4,128,32], index: 5, kind: input, shape index: {}]
  %s6 = inlined_call_operand.vmem [shape: bf16[4,32,128], index: 6, kind: input, shape index: {}]
  %s7 = inlined_call_operand.vmem [shape: f32[1,128], index: 7, kind: input, shape index: {}]
  %s8 = inlined_call_operand.vmem [shape: f32[1,128], index: 8, kind: input, shape index: {}]
  %s9 = inlined_call_operand.vmem [shape: f32[1,128], index: 9, kind: input, shape index: {}]
  %s10 = inlined_call_operand.vmem [shape: bf16[128,512], index: 10, kind: input, shape index: {}]
  %s11 = inlined_call_operand.vmem [shape: f32[1,512], index: 11, kind: input, shape index: {}]
  %s12 = inlined_call_operand.vmem [shape: bf16[512,128], index: 12, kind: input, shape index: {}]
  %s13 = inlined_call_operand.vmem [shape: f32[1,128], index: 13, kind: input, shape index: {}]
  %s14 = inlined_call_operand.hbm [shape: f32[2,128,128], index: 14, kind: output, shape index: {}]
  %s15 = sld [smem:[#allocation0]]
  $region74: #{tpu_custom_call.1} parent=0
    _
  %s17 = ssub.s32 1, %s15
  %s18 = scalar_select 0, %s17, %s15
  $region1: #{tpu_custom_call.1} parent=0
    #allocation2 [shape = 'u8[512]{0}', space=vmem, size = 0x400, scoped, tag = 'input window, operand 1, single buffered']
    #allocation3 [shape = 's32[1]{0}', space=sflag, size = 0x4, scoped, tag = 'scoped memory for tpu_custom_call.1']
    #allocation4 [shape = 's32[1]{0}', space=sflag, size = 0x4, scoped, tag = 'scoped memory for tpu_custom_call.1']
    #allocation5 [shape = 'u8[512]{0}', space=vmem, size = 0x400, scoped, tag = 'input window, operand 2, single buffered']
    #allocation6 [shape = 's32[1]{0}', space=sflag, size = 0x4, scoped, tag = 'scoped memory for tpu_custom_call.1']
    #allocation7 [shape = 'u8[131072]{0}', space=vmem, size = 0x20000, scoped, tag = 'output window, operand 0, single buffered']
    %19 = vsyncpa [#allocation3], 0
    %20 = vsyncpa [#allocation6], 0
    %21 = vsyncpa [#allocation4], 0
    // Predicated region
    $region2: #{tpu_custom_call.1} parent=1 // pred_check
      _
    $region3: #{tpu_custom_call.1} parent=1 // pred_check_branch
      %23 = sbr.rel (0) target = $region5
    $region4: #{tpu_custom_call.1} parent=1 // pred_region
      _
    $region5: #{tpu_custom_call.1} parent=1 // pred_fallthru
      _
    // Predicated region
    $region6: #{tpu_custom_call.1} parent=1 // pred_check
      _
    $region7: #{tpu_custom_call.1} parent=1 // pred_check_branch
      %25 = sbr.rel (0) target = $region9
    $region8: #{tpu_custom_call.1} parent=1 // pred_region
      %s27 = ssub.s32 16, 16
      %28 = vsyncadd [#allocation3], %s27
      %s30 = sshll.u32 [#allocation2], 4
      %s31 = int_to_ptr.vmem [resolvable:$true] %s30
      %33 = dma.hbm_to_vmem [thread:$0]  %s1, 16, %s31, [#allocation3]
    $region9: #{tpu_custom_call.1} parent=1 // pred_fallthru
      _
    // Predicated region
    $region10: #{tpu_custom_call.1} parent=1 // pred_check
      _
    $region11: #{tpu_custom_call.1} parent=1 // pred_check_branch
      %35 = sbr.rel (0) target = $region13
    $region12: #{tpu_custom_call.1} parent=1 // pred_region
      %s37 = ssub.s32 16, 16
      %38 = vsyncadd [#allocation6], %s37
      %s40 = sshll.u32 [#allocation5], 4
      %s41 = int_to_ptr.vmem [resolvable:$true] %s40
      %43 = dma.hbm_to_vmem [thread:$0]  %s2, 16, %s41, [#allocation6]
    $region13: #{tpu_custom_call.1} parent=1 // pred_fallthru
      _
    // Predicated region
    $region14: #{tpu_custom_call.1} parent=1 // pred_check
      _
    $region15: #{tpu_custom_call.1} parent=1 // pred_check_branch
      %45 = sbr.rel (0) target = $region17
    $region16: #{tpu_custom_call.1} parent=1 // pred_region
      _
    $region17: #{tpu_custom_call.1} parent=1 // pred_fallthru
      _
    // Predicated region
    $region18: #{tpu_custom_call.1} parent=1 // pred_check
      _
    $region19: #{tpu_custom_call.1} parent=1 // pred_check_branch
      %47 = sbr.rel (0) target = $region21
    $region20: #{tpu_custom_call.1} parent=1 // pred_region
      _
    $region21: #{tpu_custom_call.1} parent=1 // pred_fallthru
      _
    // Predicated region
    $region22: #{tpu_custom_call.1} parent=1 // pred_check
      _
    $region23: #{tpu_custom_call.1} parent=1 // pred_check_branch
      %49 = sbr.rel (0) target = $region25
    $region24: #{tpu_custom_call.1} parent=1 // pred_region
      _
    $region25: #{tpu_custom_call.1} parent=1 // pred_fallthru
      _
    // Predicated region
    $region26: #{tpu_custom_call.1} parent=1 // pred_check
      _
    $region27: #{tpu_custom_call.1} parent=1 // pred_check_branch
      %51 = sbr.rel (0) target = $region29
    $region28: #{tpu_custom_call.1} parent=1 // pred_region
      _
    $region29: #{tpu_custom_call.1} parent=1 // pred_fallthru
      _
    // Predicated region
    $region30: #{tpu_custom_call.1} parent=1 // pred_check
      _
    $region31: #{tpu_custom_call.1} parent=1 // pred_check_branch
      %53 = sbr.rel (0) target = $region33
    $region32: #{tpu_custom_call.1} parent=1 // pred_region
      _
    $region33: #{tpu_custom_call.1} parent=1 // pred_fallthru
      _
    // Predicated region
    $region34: #{tpu_custom_call.1} parent=1 // pred_check
      _
    $region35: #{tpu_custom_call.1} parent=1 // pred_check_branch
      %55 = sbr.rel (0) target = $region37
    $region36: #{tpu_custom_call.1} parent=1 // pred_region
      _
    $region37: #{tpu_custom_call.1} parent=1 // pred_fallthru
      _
    // Predicated region
    $region38: #{tpu_custom_call.1} parent=1 // pred_check
      _
    $region39: #{tpu_custom_call.1} parent=1 // pred_check_branch
      %57 = sbr.rel (0) target = $region41
    $region40: #{tpu_custom_call.1} parent=1 // pred_region
      _
    $region41: #{tpu_custom_call.1} parent=1 // pred_fallthru
      _
    // Predicated region
    $region42: #{tpu_custom_call.1} parent=1 // pred_check
      _
    $region43: #{tpu_custom_call.1} parent=1 // pred_check_branch
      %59 = sbr.rel (0) target = $region45
    $region44: #{tpu_custom_call.1} parent=1 // pred_region
      _
    $region45: #{tpu_custom_call.1} parent=1 // pred_fallthru
      _
    // Predicated region
    $region46: #{tpu_custom_call.1} parent=1 // pred_check
      _
    $region47: #{tpu_custom_call.1} parent=1 // pred_check_branch
      %61 = sbr.rel (0) target = $region49
    $region48: #{tpu_custom_call.1} parent=1 // pred_region
      _
    $region49: #{tpu_custom_call.1} parent=1 // pred_fallthru
      _
    // Predicated region
    $region50: #{tpu_custom_call.1} parent=1 // pred_check
      _
    $region51: #{tpu_custom_call.1} parent=1 // pred_check_branch
      %63 = sbr.rel (0) target = $region53
    $region52: #{tpu_custom_call.1} parent=1 // pred_region
      _
    $region53: #{tpu_custom_call.1} parent=1 // pred_fallthru
      _
    // Predicated region
    $region54: #{tpu_custom_call.1} parent=1 // pred_check
      _
    $region55: #{tpu_custom_call.1} parent=1 // pred_check_branch
      %65 = sbr.rel (0) target = $region57
    $region56: #{tpu_custom_call.1} parent=1 // pred_region
      _
    $region57: #{tpu_custom_call.1} parent=1 // pred_fallthru
      _
    // Predicated region
    $region58: #{tpu_custom_call.1} parent=1 // pred_check
      _
    $region59: #{tpu_custom_call.1} parent=1 // pred_check_branch
      %67 = sbr.rel (0) target = $region61
    $region60: #{tpu_custom_call.1} parent=1 // pred_region
      %68 = dma.done [#allocation3], 16
    $region61: #{tpu_custom_call.1} parent=1 // pred_fallthru
      _
    // Predicated region
    $region62: #{tpu_custom_call.1} parent=1 // pred_check
      _
    $region63: #{tpu_custom_call.1} parent=1 // pred_check_branch
      %70 = sbr.rel (0) target = $region65
    $region64: #{tpu_custom_call.1} parent=1 // pred_region
      %71 = dma.done [#allocation6], 16
    $region65: #{tpu_custom_call.1} parent=1 // pred_fallthru
      _
    %v73 = vld [vmem:[%s0] sm:$0xff]
    %v74 = vld [vmem:[%s0 + $0x8] sm:$0xff]
    %v75 = vld [vmem:[%s0 + $0x10] sm:$0xff]
    %v76 = vld [vmem:[%s0 + $0x18] sm:$0xff]
    %v77 = vld [vmem:[%s0 + $0x20] sm:$0xff]
    %v78 = vld [vmem:[%s0 + $0x28] sm:$0xff]
    %v79 = vld [vmem:[%s0 + $0x30] sm:$0xff]
    %v80 = vld [vmem:[%s0 + $0x38] sm:$0xff]
    %v81 = vld [vmem:[%s0 + $0x40] sm:$0xff]
    %v82 = vld [vmem:[%s0 + $0x48] sm:$0xff]
    %v83 = vld [vmem:[%s0 + $0x50] sm:$0xff]
    %v84 = vld [vmem:[%s0 + $0x58] sm:$0xff]
    %v85 = vld [vmem:[%s0 + $0x60] sm:$0xff]
    %v86 = vld [vmem:[%s0 + $0x68] sm:$0xff]
    %v87 = vld [vmem:[%s0 + $0x70] sm:$0xff]
    %v88 = vld [vmem:[%s0 + $0x78] sm:$0xff]
    %v89 = vld [vmem:[%s0 + $0x80] sm:$0xff]
    %v90 = vld [vmem:[%s0 + $0x88] sm:$0xff]
    %v91 = vld [vmem:[%s0 + $0x90] sm:$0xff]
    %v92 = vld [vmem:[%s0 + $0x98] sm:$0xff]
    %v93 = vld [vmem:[%s0 + $0xa0] sm:$0xff]
    %v94 = vld [vmem:[%s0 + $0xa8] sm:$0xff]
    %v95 = vld [vmem:[%s0 + $0xb0] sm:$0xff]
    %v96 = vld [vmem:[%s0 + $0xb8] sm:$0xff]
    %v97 = vld [vmem:[%s0 + $0xc0] sm:$0xff]
    %v98 = vld [vmem:[%s0 + $0xc8] sm:$0xff]
    %v99 = vld [vmem:[%s0 + $0xd0] sm:$0xff]
    %v100 = vld [vmem:[%s0 + $0xd8] sm:$0xff]
    %v101 = vld [vmem:[%s0 + $0xe0] sm:$0xff]
    %v102 = vld [vmem:[%s0 + $0xe8] sm:$0xff]
    %v103 = vld [vmem:[%s0 + $0xf0] sm:$0xff]
    %v104 = vld [vmem:[%s0 + $0xf8] sm:$0xff]
    %v105 = vld [vmem:[#allocation2] sm:$0x1]
    %v106 = vld [vmem:[#allocation5] sm:$0x1]
    %107 = vadd.xlane.f32.xlu0 %v73
    %v108 = vpop.xlane.xlu0 %107
    %109 = vadd.xlane.f32.xlu0 %v74
    %v110 = vpop.xlane.xlu0 %109
    %111 = vadd.xlane.f32.xlu0 %v75
    %v112 = vpop.xlane.xlu0 %111
    %113 = vadd.xlane.f32.xlu0 %v76
    %v114 = vpop.xlane.xlu0 %113
    %115 = vadd.xlane.f32.xlu0 %v77
    %v116 = vpop.xlane.xlu0 %115
    %117 = vadd.xlane.f32.xlu0 %v78
    %v118 = vpop.xlane.xlu0 %117
    %119 = vadd.xlane.f32.xlu0 %v79
    %v120 = vpop.xlane.xlu0 %119
    %121 = vadd.xlane.f32.xlu0 %v80
    %v122 = vpop.xlane.xlu0 %121
    %123 = vadd.xlane.f32.xlu0 %v81
    %v124 = vpop.xlane.xlu0 %123
    %125 = vadd.xlane.f32.xlu0 %v82
    %v126 = vpop.xlane.xlu0 %125
    %127 = vadd.xlane.f32.xlu0 %v83
    %v128 = vpop.xlane.xlu0 %127
    %129 = vadd.xlane.f32.xlu0 %v84
    %v130 = vpop.xlane.xlu0 %129
    %131 = vadd.xlane.f32.xlu0 %v85
    %v132 = vpop.xlane.xlu0 %131
    %133 = vadd.xlane.f32.xlu0 %v86
    %v134 = vpop.xlane.xlu0 %133
    %135 = vadd.xlane.f32.xlu0 %v87
    %v136 = vpop.xlane.xlu0 %135
    %137 = vadd.xlane.f32.xlu0 %v88
    %v138 = vpop.xlane.xlu0 %137
    %139 = vadd.xlane.f32.xlu0 %v89
    %v140 = vpop.xlane.xlu0 %139
    %141 = vadd.xlane.f32.xlu0 %v90
    %v142 = vpop.xlane.xlu0 %141
    %143 = vadd.xlane.f32.xlu0 %v91
    %v144 = vpop.xlane.xlu0 %143
    %145 = vadd.xlane.f32.xlu0 %v92
    %v146 = vpop.xlane.xlu0 %145
    %147 = vadd.xlane.f32.xlu0 %v93
    %v148 = vpop.xlane.xlu0 %147
    %149 = vadd.xlane.f32.xlu0 %v94
    %v150 = vpop.xlane.xlu0 %149
    %151 = vadd.xlane.f32.xlu0 %v95
    %v152 = vpop.xlane.xlu0 %151
    %153 = vadd.xlane.f32.xlu0 %v96
    %v154 = vpop.xlane.xlu0 %153
    %155 = vadd.xlane.f32.xlu0 %v97
    %v156 = vpop.xlane.xlu0 %155
    %157 = vadd.xlane.f32.xlu0 %v98
    %v158 = vpop.xlane.xlu0 %157
    %159 = vadd.xlane.f32.xlu0 %v99
    %v160 = vpop.xlane.xlu0 %159
    %161 = vadd.xlane.f32.xlu0 %v100
    %v162 = vpop.xlane.xlu0 %161
    %163 = vadd.xlane.f32.xlu0 %v101
    %v164 = vpop.xlane.xlu0 %163
    %165 = vadd.xlane.f32.xlu0 %v102
    %v166 = vpop.xlane.xlu0 %165
    %167 = vadd.xlane.f32.xlu0 %v103
    %v168 = vpop.xlane.xlu0 %167
    %169 = vadd.xlane.f32.xlu0 %v104
    %v170 = vpop.xlane.xlu0 %169
    %v171 = vrcp.pop 128.0
    %v172 = vmul.f32 %v108, %v171
    %v173 = vmul.f32 %v110, %v171
    %v174 = vmul.f32 %v112, %v171
    %v175 = vmul.f32 %v114, %v171
    %v176 = vmul.f32 %v116, %v171
    %v177 = vmul.f32 %v118, %v171
    %v178 = vmul.f32 %v120, %v171
    %v179 = vmul.f32 %v122, %v171
    %v180 = vmul.f32 %v124, %v171
    %v181 = vmul.f32 %v126, %v171
    %v182 = vmul.f32 %v128, %v171
    %v183 = vmul.f32 %v130, %v171
    %v184 = vmul.f32 %v132, %v171
    %v185 = vmul.f32 %v134, %v171
    %v186 = vmul.f32 %v136, %v171
    %v187 = vmul.f32 %v138, %v171
    %v188 = vmul.f32 %v140, %v171
    %v189 = vmul.f32 %v142, %v171
    %v190 = vmul.f32 %v144, %v171
    %v191 = vmul.f32 %v146, %v171
    %v192 = vmul.f32 %v148, %v171
    %v193 = vmul.f32 %v150, %v171
    %v194 = vmul.f32 %v152, %v171
    %v195 = vmul.f32 %v154, %v171
    %v196 = vmul.f32 %v156, %v171
    %v197 = vmul.f32 %v158, %v171
    %v198 = vmul.f32 %v160, %v171
    %v199 = vmul.f32 %v162, %v171
    %v200 = vmul.f32 %v164, %v171
    %v201 = vmul.f32 %v166, %v171
    %v202 = vmul.f32 %v168, %v171
    %v203 = vmul.f32 %v170, %v171
    %v204 = vmul.f32 %v73, %v73
    %v205 = vmul.f32 %v74, %v74
    %v206 = vmul.f32 %v75, %v75
    %v207 = vmul.f32 %v76, %v76
    %v208 = vmul.f32 %v77, %v77
    %v209 = vmul.f32 %v78, %v78
    %v210 = vmul.f32 %v79, %v79
    %v211 = vmul.f32 %v80, %v80
    %v212 = vmul.f32 %v81, %v81
    %v213 = vmul.f32 %v82, %v82
    %v214 = vmul.f32 %v83, %v83
    %v215 = vmul.f32 %v84, %v84
    %v216 = vmul.f32 %v85, %v85
    %v217 = vmul.f32 %v86, %v86
    %v218 = vmul.f32 %v87, %v87
    %v219 = vmul.f32 %v88, %v88
    %v220 = vmul.f32 %v89, %v89
    %v221 = vmul.f32 %v90, %v90
    %v222 = vmul.f32 %v91, %v91
    %v223 = vmul.f32 %v92, %v92
    %v224 = vmul.f32 %v93, %v93
    %v225 = vmul.f32 %v94, %v94
    %v226 = vmul.f32 %v95, %v95
    %v227 = vmul.f32 %v96, %v96
    %v228 = vmul.f32 %v97, %v97
    %v229 = vmul.f32 %v98, %v98
    %v230 = vmul.f32 %v99, %v99
    %v231 = vmul.f32 %v100, %v100
    %v232 = vmul.f32 %v101, %v101
    %v233 = vmul.f32 %v102, %v102
    %v234 = vmul.f32 %v103, %v103
    %v235 = vmul.f32 %v104, %v104
    %236 = vadd.xlane.f32.xlu0 %v204
    %v237 = vpop.xlane.xlu0 %236
    %238 = vadd.xlane.f32.xlu0 %v205
    %v239 = vpop.xlane.xlu0 %238
    %240 = vadd.xlane.f32.xlu0 %v206
    %v241 = vpop.xlane.xlu0 %240
    %242 = vadd.xlane.f32.xlu0 %v207
    %v243 = vpop.xlane.xlu0 %242
    %244 = vadd.xlane.f32.xlu0 %v208
    %v245 = vpop.xlane.xlu0 %244
    %246 = vadd.xlane.f32.xlu0 %v209
    %v247 = vpop.xlane.xlu0 %246
    %248 = vadd.xlane.f32.xlu0 %v210
    %v249 = vpop.xlane.xlu0 %248
    %250 = vadd.xlane.f32.xlu0 %v211
    %v251 = vpop.xlane.xlu0 %250
    %252 = vadd.xlane.f32.xlu0 %v212
    %v253 = vpop.xlane.xlu0 %252
    %254 = vadd.xlane.f32.xlu0 %v213
    %v255 = vpop.xlane.xlu0 %254
    %256 = vadd.xlane.f32.xlu0 %v214
    %v257 = vpop.xlane.xlu0 %256
    %258 = vadd.xlane.f32.xlu0 %v215
    %v259 = vpop.xlane.xlu0 %258
    %260 = vadd.xlane.f32.xlu0 %v216
    %v261 = vpop.xlane.xlu0 %260
    %262 = vadd.xlane.f32.xlu0 %v217
    %v263 = vpop.xlane.xlu0 %262
    %264 = vadd.xlane.f32.xlu0 %v218
    %v265 = vpop.xlane.xlu0 %264
    %266 = vadd.xlane.f32.xlu0 %v219
    %v267 = vpop.xlane.xlu0 %266
    %268 = vadd.xlane.f32.xlu0 %v220
    %v269 = vpop.xlane.xlu0 %268
    %270 = vadd.xlane.f32.xlu0 %v221
    %v271 = vpop.xlane.xlu0 %270
    %272 = vadd.xlane.f32.xlu0 %v222
    %v273 = vpop.xlane.xlu0 %272
    %274 = vadd.xlane.f32.xlu0 %v223
    %v275 = vpop.xlane.xlu0 %274
    %276 = vadd.xlane.f32.xlu0 %v224
    %v277 = vpop.xlane.xlu0 %276
    %278 = vadd.xlane.f32.xlu0 %v225
    %v279 = vpop.xlane.xlu0 %278
    %280 = vadd.xlane.f32.xlu0 %v226
    %v281 = vpop.xlane.xlu0 %280
    %282 = vadd.xlane.f32.xlu0 %v227
    %v283 = vpop.xlane.xlu0 %282
    %284 = vadd.xlane.f32.xlu0 %v228
    %v285 = vpop.xlane.xlu0 %284
    %286 = vadd.xlane.f32.xlu0 %v229
    %v287 = vpop.xlane.xlu0 %286
    %288 = vadd.xlane.f32.xlu0 %v230
    %v289 = vpop.xlane.xlu0 %288
    %290 = vadd.xlane.f32.xlu0 %v231
    %v291 = vpop.xlane.xlu0 %290
    %292 = vadd.xlane.f32.xlu0 %v232
    %v293 = vpop.xlane.xlu0 %292
    %294 = vadd.xlane.f32.xlu0 %v233
    %v295 = vpop.xlane.xlu0 %294
    %296 = vadd.xlane.f32.xlu0 %v234
    %v297 = vpop.xlane.xlu0 %296
    %298 = vadd.xlane.f32.xlu0 %v235
    %v299 = vpop.xlane.xlu0 %298
    %v300 = vmul.f32 %v237, %v171
    %v301 = vmul.f32 %v239, %v171
    %v302 = vmul.f32 %v241, %v171
    %v303 = vmul.f32 %v243, %v171
    %v304 = vmul.f32 %v245, %v171
    %v305 = vmul.f32 %v247, %v171
    %v306 = vmul.f32 %v249, %v171
    %v307 = vmul.f32 %v251, %v171
    %v308 = vmul.f32 %v253, %v171
    %v309 = vmul.f32 %v255, %v171
    %v310 = vmul.f32 %v257, %v171
    %v311 = vmul.f32 %v259, %v171
    %v312 = vmul.f32 %v261, %v171
    %v313 = vmul.f32 %v263, %v171
    %v314 = vmul.f32 %v265, %v171
    %v315 = vmul.f32 %v267, %v171
    %v316 = vmul.f32 %v269, %v171
    %v317 = vmul.f32 %v271, %v171
    %v318 = vmul.f32 %v273, %v171
    %v319 = vmul.f32 %v275, %v171
    %v320 = vmul.f32 %v277, %v171
    %v321 = vmul.f32 %v279, %v171
    %v322 = vmul.f32 %v281, %v171
    %v323 = vmul.f32 %v283, %v171
    %v324 = vmul.f32 %v285, %v171
    %v325 = vmul.f32 %v287, %v171
    %v326 = vmul.f32 %v289, %v171
    %v327 = vmul.f32 %v291, %v171
    %v328 = vmul.f32 %v293, %v171
    %v329 = vmul.f32 %v295, %v171
    %v330 = vmul.f32 %v297, %v171
    %v331 = vmul.f32 %v299, %v171
    %v332 = vmul.f32 %v172, %v172
    %v333 = vmul.f32 %v173, %v173
    %v334 = vmul.f32 %v174, %v174
    %v335 = vmul.f32 %v175, %v175
    %v336 = vmul.f32 %v176, %v176
    %v337 = vmul.f32 %v177, %v177
    %v338 = vmul.f32 %v178, %v178
    %v339 = vmul.f32 %v179, %v179
    %v340 = vmul.f32 %v180, %v180
    %v341 = vmul.f32 %v181, %v181
    %v342 = vmul.f32 %v182, %v182
    %v343 = vmul.f32 %v183, %v183
    %v344 = vmul.f32 %v184, %v184
    %v345 = vmul.f32 %v185, %v185
    %v346 = vmul.f32 %v186, %v186
    %v347 = vmul.f32 %v187, %v187
    %v348 = vmul.f32 %v188, %v188
    %v349 = vmul.f32 %v189, %v189
    %v350 = vmul.f32 %v190, %v190
    %v351 = vmul.f32 %v191, %v191
    %v352 = vmul.f32 %v192, %v192
    %v353 = vmul.f32 %v193, %v193
    %v354 = vmul.f32 %v194, %v194
    %v355 = vmul.f32 %v195, %v195
    %v356 = vmul.f32 %v196, %v196
    %v357 = vmul.f32 %v197, %v197
    %v358 = vmul.f32 %v198, %v198
    %v359 = vmul.f32 %v199, %v199
    %v360 = vmul.f32 %v200, %v200
    %v361 = vmul.f32 %v201, %v201
    %v362 = vmul.f32 %v202, %v202
    %v363 = vmul.f32 %v203, %v203
    %v364 = vsub.f32 %v300, %v332
    %v365 = vsub.f32 %v301, %v333
    %v366 = vsub.f32 %v302, %v334
    %v367 = vsub.f32 %v303, %v335
    %v368 = vsub.f32 %v304, %v336
    %v369 = vsub.f32 %v305, %v337
    %v370 = vsub.f32 %v306, %v338
    %v371 = vsub.f32 %v307, %v339
    %v372 = vsub.f32 %v308, %v340
    %v373 = vsub.f32 %v309, %v341
    %v374 = vsub.f32 %v310, %v342
    %v375 = vsub.f32 %v311, %v343
    %v376 = vsub.f32 %v312, %v344
    %v377 = vsub.f32 %v313, %v345
    %v378 = vsub.f32 %v314, %v346
    %v379 = vsub.f32 %v315, %v347
    %v380 = vsub.f32 %v316, %v348
    %v381 = vsub.f32 %v317, %v349
    %v382 = vsub.f32 %v318, %v350
    %v383 = vsub.f32 %v319, %v351
    %v384 = vsub.f32 %v320, %v352
    %v385 = vsub.f32 %v321, %v353
    %v386 = vsub.f32 %v322, %v354
    %v387 = vsub.f32 %v323, %v355
    %v388 = vsub.f32 %v324, %v356
    %v389 = vsub.f32 %v325, %v357
    %v390 = vsub.f32 %v326, %v358
    %v391 = vsub.f32 %v327, %v359
    %v392 = vsub.f32 %v328, %v360
    %v393 = vsub.f32 %v329, %v361
    %v394 = vsub.f32 %v330, %v362
    %v395 = vsub.f32 %v331, %v363
    %v396 = vmax.f32 %v364, 0.0
    %v397 = vmax.f32 %v365, 0.0
    %v398 = vmax.f32 %v366, 0.0
    %v399 = vmax.f32 %v367, 0.0
    %v400 = vmax.f32 %v368, 0.0
    %v401 = vmax.f32 %v369, 0.0
    %v402 = vmax.f32 %v370, 0.0
    %v403 = vmax.f32 %v371, 0.0
    %v404 = vmax.f32 %v372, 0.0
    %v405 = vmax.f32 %v373, 0.0
    %v406 = vmax.f32 %v374, 0.0
    %v407 = vmax.f32 %v375, 0.0
    %v408 = vmax.f32 %v376, 0.0
    %v409 = vmax.f32 %v377, 0.0
    %v410 = vmax.f32 %v378, 0.0
    %v411 = vmax.f32 %v379, 0.0
    %v412 = vmax.f32 %v380, 0.0
    %v413 = vmax.f32 %v381, 0.0
    %v414 = vmax.f32 %v382, 0.0
    %v415 = vmax.f32 %v383, 0.0
    %v416 = vmax.f32 %v384, 0.0
    %v417 = vmax.f32 %v385, 0.0
    %v418 = vmax.f32 %v386, 0.0
    %v419 = vmax.f32 %v387, 0.0
    %v420 = vmax.f32 %v388, 0.0
    %v421 = vmax.f32 %v389, 0.0
    %v422 = vmax.f32 %v390, 0.0
    %v423 = vmax.f32 %v391, 0.0
    %v424 = vmax.f32 %v392, 0.0
    %v425 = vmax.f32 %v393, 0.0
    %v426 = vmax.f32 %v394, 0.0
    %v427 = vmax.f32 %v395, 0.0
    %v428 = vsub.f32 %v73, %v172
    %v429 = vsub.f32 %v74, %v173
    %v430 = vsub.f32 %v75, %v174
    %v431 = vsub.f32 %v76, %v175
    %v432 = vsub.f32 %v77, %v176
    %v433 = vsub.f32 %v78, %v177
    %v434 = vsub.f32 %v79, %v178
    %v435 = vsub.f32 %v80, %v179
    %v436 = vsub.f32 %v81, %v180
    %v437 = vsub.f32 %v82, %v181
    %v438 = vsub.f32 %v83, %v182
    %v439 = vsub.f32 %v84, %v183
    %v440 = vsub.f32 %v85, %v184
    %v441 = vsub.f32 %v86, %v185
    %v442 = vsub.f32 %v87, %v186
    %v443 = vsub.f32 %v88, %v187
    %v444 = vsub.f32 %v89, %v188
    %v445 = vsub.f32 %v90, %v189
    %v446 = vsub.f32 %v91, %v190
    %v447 = vsub.f32 %v92, %v191
    %v448 = vsub.f32 %v93, %v192
    %v449 = vsub.f32 %v94, %v193
    %v450 = vsub.f32 %v95, %v194
    %v451 = vsub.f32 %v96, %v195
    %v452 = vsub.f32 %v97, %v196
    %v453 = vsub.f32 %v98, %v197
    %v454 = vsub.f32 %v99, %v198
    %v455 = vsub.f32 %v100, %v199
    %v456 = vsub.f32 %v101, %v200
    %v457 = vsub.f32 %v102, %v201
    %v458 = vsub.f32 %v103, %v202
    %v459 = vsub.f32 %v104, %v203
    %v460 = vadd.f32 %v396, 1e-05
    %v461 = vadd.f32 %v397, 1e-05
    %v462 = vadd.f32 %v398, 1e-05
    %v463 = vadd.f32 %v399, 1e-05
    %v464 = vadd.f32 %v400, 1e-05
    %v465 = vadd.f32 %v401, 1e-05
    %v466 = vadd.f32 %v402, 1e-05
    %v467 = vadd.f32 %v403, 1e-05
    %v468 = vadd.f32 %v404, 1e-05
    %v469 = vadd.f32 %v405, 1e-05
    %v470 = vadd.f32 %v406, 1e-05
    %v471 = vadd.f32 %v407, 1e-05
    %v472 = vadd.f32 %v408, 1e-05
    %v473 = vadd.f32 %v409, 1e-05
    %v474 = vadd.f32 %v410, 1e-05
    %v475 = vadd.f32 %v411, 1e-05
    %v476 = vadd.f32 %v412, 1e-05
    %v477 = vadd.f32 %v413, 1e-05
    %v478 = vadd.f32 %v414, 1e-05
    %v479 = vadd.f32 %v415, 1e-05
    %v480 = vadd.f32 %v416, 1e-05
    %v481 = vadd.f32 %v417, 1e-05
    %v482 = vadd.f32 %v418, 1e-05
    %v483 = vadd.f32 %v419, 1e-05
    %v484 = vadd.f32 %v420, 1e-05
    %v485 = vadd.f32 %v421, 1e-05
    %v486 = vadd.f32 %v422, 1e-05
    %v487 = vadd.f32 %v423, 1e-05
    %v488 = vadd.f32 %v424, 1e-05
    %v489 = vadd.f32 %v425, 1e-05
    %v490 = vadd.f32 %v426, 1e-05
    %v491 = vadd.f32 %v427, 1e-05
    %v492 = vrsqrt.pop %v460
    %v493 = vrsqrt.pop %v461
    %v494 = vrsqrt.pop %v462
    %v495 = vrsqrt.pop %v463
    %v496 = vrsqrt.pop %v464
    %v497 = vrsqrt.pop %v465
    %v498 = vrsqrt.pop %v466
    %v499 = vrsqrt.pop %v467
    %v500 = vrsqrt.pop %v468
    %v501 = vrsqrt.pop %v469
    %v502 = vrsqrt.pop %v470
    %v503 = vrsqrt.pop %v471
    %v504 = vrsqrt.pop %v472
    %v505 = vrsqrt.pop %v473
    %v506 = vrsqrt.pop %v474
    %v507 = vrsqrt.pop %v475
    %v508 = vrsqrt.pop %v476
    %v509 = vrsqrt.pop %v477
    %v510 = vrsqrt.pop %v478
    %v511 = vrsqrt.pop %v479
    %v512 = vrsqrt.pop %v480
    %v513 = vrsqrt.pop %v481
    %v514 = vrsqrt.pop %v482
    %v515 = vrsqrt.pop %v483
    %v516 = vrsqrt.pop %v484
    %v517 = vrsqrt.pop %v485
    %v518 = vrsqrt.pop %v486
    %v519 = vrsqrt.pop %v487
    %v520 = vrsqrt.pop %v488
    %v521 = vrsqrt.pop %v489
    %v522 = vrsqrt.pop %v490
    %v523 = vrsqrt.pop %v491
    %v524 = vmul.f32 %v428, %v492
    %v525 = vmul.f32 %v429, %v493
    %v526 = vmul.f32 %v430, %v494
    %v527 = vmul.f32 %v431, %v495
    %v528 = vmul.f32 %v432, %v496
    %v529 = vmul.f32 %v433, %v497
    %v530 = vmul.f32 %v434, %v498
    %v531 = vmul.f32 %v435, %v499
    %v532 = vmul.f32 %v436, %v500
    %v533 = vmul.f32 %v437, %v501
    %v534 = vmul.f32 %v438, %v502
    %v535 = vmul.f32 %v439, %v503
    %v536 = vmul.f32 %v440, %v504
    %v537 = vmul.f32 %v441, %v505
    %v538 = vmul.f32 %v442, %v506
    %v539 = vmul.f32 %v443, %v507
    %v540 = vmul.f32 %v444, %v508
    %v541 = vmul.f32 %v445, %v509
    %v542 = vmul.f32 %v446, %v510
    %v543 = vmul.f32 %v447, %v511
    %v544 = vmul.f32 %v448, %v512
    %v545 = vmul.f32 %v449, %v513
    %v546 = vmul.f32 %v450, %v514
    %v547 = vmul.f32 %v451, %v515
    %v548 = vmul.f32 %v452, %v516
    %v549 = vmul.f32 %v453, %v517
    %v550 = vmul.f32 %v454, %v518
    %v551 = vmul.f32 %v455, %v519
    %v552 = vmul.f32 %v456, %v520
    %v553 = vmul.f32 %v457, %v521
    %v554 = vmul.f32 %v458, %v522
    %v555 = vmul.f32 %v459, %v523
    %v557 = vlaneseq
    %v558 = vshrl.u32 %v557, 7
    %v559 = vsub.s32 0, %v558
    %v560 = vrot.slane %v105, %v559
    %v562 = vmul.f32 %v524, %v560
    %v563 = vmul.f32 %v525, %v560
    %v564 = vmul.f32 %v526, %v560
    %v565 = vmul.f32 %v527, %v560
    %v566 = vmul.f32 %v528, %v560
    %v567 = vmul.f32 %v529, %v560
    %v568 = vmul.f32 %v530, %v560
    %v569 = vmul.f32 %v531, %v560
    %v570 = vmul.f32 %v532, %v560
    %v571 = vmul.f32 %v533, %v560
    %v572 = vmul.f32 %v534, %v560
    %v573 = vmul.f32 %v535, %v560
    %v574 = vmul.f32 %v536, %v560
    %v575 = vmul.f32 %v537, %v560
    %v576 = vmul.f32 %v538, %v560
    %v577 = vmul.f32 %v539, %v560
    %v578 = vmul.f32 %v540, %v560
    %v579 = vmul.f32 %v541, %v560
    %v580 = vmul.f32 %v542, %v560
    %v581 = vmul.f32 %v543, %v560
    %v582 = vmul.f32 %v544, %v560
    %v583 = vmul.f32 %v545, %v560
    %v584 = vmul.f32 %v546, %v560
    %v585 = vmul.f32 %v547, %v560
    %v586 = vmul.f32 %v548, %v560
    %v587 = vmul.f32 %v549, %v560
    %v588 = vmul.f32 %v550, %v560
    %v589 = vmul.f32 %v551, %v560
    %v590 = vmul.f32 %v552, %v560
    %v591 = vmul.f32 %v553, %v560
    %v592 = vmul.f32 %v554, %v560
    %v593 = vmul.f32 %v555, %v560
    %v595 = vlaneseq
    %v596 = vshrl.u32 %v595, 7
    %v597 = vsub.s32 0, %v596
    %v598 = vrot.slane %v106, %v597
    %v600 = vadd.f32 %v562, %v598
    %v601 = vadd.f32 %v563, %v598
    %v602 = vadd.f32 %v564, %v598
    %v603 = vadd.f32 %v565, %v598
    %v604 = vadd.f32 %v566, %v598
    %v605 = vadd.f32 %v567, %v598
    %v606 = vadd.f32 %v568, %v598
    %v607 = vadd.f32 %v569, %v598
    %v608 = vadd.f32 %v570, %v598
    %v609 = vadd.f32 %v571, %v598
    %v610 = vadd.f32 %v572, %v598
    %v611 = vadd.f32 %v573, %v598
    %v612 = vadd.f32 %v574, %v598
    %v613 = vadd.f32 %v575, %v598
    %v614 = vadd.f32 %v576, %v598
    %v615 = vadd.f32 %v577, %v598
    %v616 = vadd.f32 %v578, %v598
    %v617 = vadd.f32 %v579, %v598
    %v618 = vadd.f32 %v580, %v598
    %v619 = vadd.f32 %v581, %v598
    %v620 = vadd.f32 %v582, %v598
    %v621 = vadd.f32 %v583, %v598
    %v622 = vadd.f32 %v584, %v598
    %v623 = vadd.f32 %v585, %v598
    %v624 = vadd.f32 %v586, %v598
    %v625 = vadd.f32 %v587, %v598
    %v626 = vadd.f32 %v588, %v598
    %v627 = vadd.f32 %v589, %v598
    %v628 = vadd.f32 %v590, %v598
    %v629 = vadd.f32 %v591, %v598
    %v630 = vadd.f32 %v592, %v598
    %v631 = vadd.f32 %v593, %v598
    %v632 = vpack.c.bf16 %v601, %v600
    %v633 = vpack.c.bf16 %v603, %v602
    %v634 = vpack.c.bf16 %v605, %v604
    %v635 = vpack.c.bf16 %v607, %v606
    %v636 = vpack.c.bf16 %v609, %v608
    %v637 = vpack.c.bf16 %v611, %v610
    %v638 = vpack.c.bf16 %v613, %v612
    %v639 = vpack.c.bf16 %v615, %v614
    %v640 = vpack.c.bf16 %v617, %v616
    %v641 = vpack.c.bf16 %v619, %v618
    %v642 = vpack.c.bf16 %v621, %v620
    %v643 = vpack.c.bf16 %v623, %v622
    %v644 = vpack.c.bf16 %v625, %v624
    %v645 = vpack.c.bf16 %v627, %v626
    %v646 = vpack.c.bf16 %v629, %v628
    %v647 = vpack.c.bf16 %v631, %v630
    %v648 = vlaneseq
    %v649 = vshrl.u32 %v648, 7
    %v650 = vadd.s32 %v649, 8
    %v651 = vadd.s32 %v649, 16
    %v652 = vadd.s32 %v649, 24
    %v653 = vadd.s32 %v649, 32
    %v654 = vadd.s32 %v649, 40
    %v655 = vadd.s32 %v649, 48
    %v656 = vadd.s32 %v649, 56
    %v657 = vadd.s32 %v649, 64
    %v658 = vadd.s32 %v649, 72
    %v659 = vadd.s32 %v649, 80
    %v660 = vadd.s32 %v649, 88
    %v661 = vadd.s32 %v649, 96
    %v662 = vadd.s32 %v649, 104
    %v663 = vadd.s32 %v649, 112
    %v664 = vadd.s32 %v649, 120
    %v665 = vlaneseq
    %v666 = vand.u32 %v665, 127
    %vm667 = vcmp.le.s32.totalorder %v666, %v649
    %vm668 = vcmp.le.s32.totalorder %v666, %v650
    %vm669 = vcmp.le.s32.totalorder %v666, %v651
    %vm670 = vcmp.le.s32.totalorder %v666, %v652
    %vm671 = vcmp.le.s32.totalorder %v666, %v653
    %vm672 = vcmp.le.s32.totalorder %v666, %v654
    %vm673 = vcmp.le.s32.totalorder %v666, %v655
    %vm674 = vcmp.le.s32.totalorder %v666, %v656
    %vm675 = vcmp.le.s32.totalorder %v666, %v657
    %vm676 = vcmp.le.s32.totalorder %v666, %v658
    %vm677 = vcmp.le.s32.totalorder %v666, %v659
    %vm678 = vcmp.le.s32.totalorder %v666, %v660
    %vm679 = vcmp.le.s32.totalorder %v666, %v661
    %vm680 = vcmp.le.s32.totalorder %v666, %v662
    %vm681 = vcmp.le.s32.totalorder %v666, %v663
    %vm682 = vcmp.le.s32.totalorder %v666, %v664
    %v683 = vld [vmem:[%s3] sm:$0xf]
    %v684 = vld [vmem:[%s3 + $0x4] sm:$0xf]
    %v685 = vld [vmem:[%s3 + $0x8] sm:$0xf]
    %v686 = vld [vmem:[%s3 + $0xc] sm:$0xf]
    %v687 = vld [vmem:[%s3 + $0x10] sm:$0xf]
    %v688 = vld [vmem:[%s3 + $0x14] sm:$0xf]
    %v689 = vld [vmem:[%s3 + $0x18] sm:$0xf]
    %v690 = vld [vmem:[%s3 + $0x1c] sm:$0xf]
    %v691 = vld [vmem:[%s3 + $0x20] sm:$0xf]
    %v692 = vld [vmem:[%s3 + $0x24] sm:$0xf]
    %v693 = vld [vmem:[%s3 + $0x28] sm:$0xf]
    %v694 = vld [vmem:[%s3 + $0x2c] sm:$0xf]
    %v695 = vld [vmem:[%s3 + $0x30] sm:$0xf]
    %v696 = vld [vmem:[%s3 + $0x34] sm:$0xf]
    %v697 = vld [vmem:[%s3 + $0x38] sm:$0xf]
    %v698 = vld [vmem:[%s3 + $0x3c] sm:$0xf]
    %v715 = vunpack.c.l.b16 %v683
    %v716 = vunpack.c.l.b16 %v684
    %v717 = vunpack.c.l.b16 %v685
    %v718 = vunpack.c.l.b16 %v686
    %v719 = vunpack.c.l.b16 %v687
    %v720 = vunpack.c.l.b16 %v688
    %v721 = vunpack.c.l.b16 %v689
    %v722 = vunpack.c.l.b16 %v690
    %v723 = vunpack.c.l.b16 %v691
    %v724 = vunpack.c.l.b16 %v692
    %v725 = vunpack.c.l.b16 %v693
    %v726 = vunpack.c.l.b16 %v694
    %v727 = vunpack.c.l.b16 %v695
    %v728 = vunpack.c.l.b16 %v696
    %v729 = vunpack.c.l.b16 %v697
    %v730 = vunpack.c.l.b16 %v698
    %v731 = vpack.c.b16 %v716, %v715
    %v732 = vpack.c.b16 %v718, %v717
    %v733 = vpack.c.b16 %v720, %v719
    %v734 = vpack.c.b16 %v722, %v721
    %v735 = vpack.c.b16 %v724, %v723
    %v736 = vpack.c.b16 %v726, %v725
    %v737 = vpack.c.b16 %v728, %v727
    %v738 = vpack.c.b16 %v730, %v729
    %747 = vmatprep.subr.bf16.mxu0 0
    %748 = vmatpush1.bf16.msra.mxu0 %v731
    %749 = vmatprep.subr.bf16.mxu0 0
    %750 = vmatpush1.bf16.msra.mxu0 %v732
    %751 = vmatprep.subr.bf16.mxu0 0
    %752 = vmatpush1.bf16.msra.mxu0 %v733
    %753 = vmatprep.subr.bf16.mxu0 0
    %754 = vmatpush1.bf16.msra.mxu0 %v734
    %755 = vmatprep.subr.bf16.mxu0 0
    %756 = vmatpush1.bf16.msra.mxu0 %v735
    %757 = vmatprep.subr.bf16.mxu0 0
    %758 = vmatpush1.bf16.msra.mxu0 %v736
    %759 = vmatprep.subr.bf16.mxu0 0
    %760 = vmatpush1.bf16.msra.mxu0 %v737
    %761 = vmatprep.subr.bf16.mxu0 0
    %762 = vmatpush1.bf16.msra.mxu0 %v738
    %763 = vmatprep.subr.bf16.mxu0 0
    %764 = vmatpush1.bf16.msra.mxu0 0
    %765 = vmatprep.subr.bf16.mxu0 0
    %766 = vmatpush1.bf16.msra.mxu0 0
    %767 = vmatprep.subr.bf16.mxu0 0
    %768 = vmatpush1.bf16.msra.mxu0 0
    %769 = vmatprep.subr.bf16.mxu0 0
    %770 = vmatpush1.bf16.msra.mxu0 0
    %771 = vmatprep.subr.bf16.mxu0 0
    %772 = vmatpush1.bf16.msra.mxu0 0
    %773 = vmatprep.subr.bf16.mxu0 0
    %774 = vmatpush1.bf16.msra.mxu0 0
    %775 = vmatprep.subr.bf16.mxu0 0
    %776 = vmatpush1.bf16.msra.mxu0 0
    %777 = vmatprep.subr.bf16.mxu0 0
    %778 = vmatpush1.bf16.msra.mxu0 0
    %779 = vmatprep.mubr.bf16.mxu0 0
    %780 = vmatmul.mubr.bf16.gmra.mrb[0].mxu0 %v632
    %v781 = vpop.f32.mrb[0].mxu0
    %v782 = vadd.f32 0.0, %v781
    %v783 = vpop.f32.mrb[0].mxu0
    %v784 = vpop.f32.mrb[0].mxu0
    %v785 = vadd.f32 0.0, %v784
    %v786 = vpop.f32.mrb[0].mxu0
    %787 = vmatprep.mubr.bf16.mxu0 0
    %788 = vmatmul.mubr.bf16.gmra.mrb[0].mxu0 %v633
    %v789 = vpop.f32.mrb[0].mxu0
    %v790 = vadd.f32 0.0, %v789
    %v791 = vpop.f32.mrb[0].mxu0
    %v792 = vpop.f32.mrb[0].mxu0
    %v793 = vadd.f32 0.0, %v792
    %v794 = vpop.f32.mrb[0].mxu0
    %795 = vmatprep.mubr.bf16.mxu0 0
    %796 = vmatmul.mubr.bf16.gmra.mrb[0].mxu0 %v634
    %v797 = vpop.f32.mrb[0].mxu0
    %v798 = vadd.f32 0.0, %v797
    %v799 = vpop.f32.mrb[0].mxu0
    %v800 = vpop.f32.mrb[0].mxu0
    %v801 = vadd.f32 0.0, %v800
    %v802 = vpop.f32.mrb[0].mxu0
    %803 = vmatprep.mubr.bf16.mxu0 0
    %804 = vmatmul.mubr.bf16.gmra.mrb[0].mxu0 %v635
    %v805 = vpop.f32.mrb[0].mxu0
    %v806 = vadd.f32 0.0, %v805
    %v807 = vpop.f32.mrb[0].mxu0
    %v808 = vpop.f32.mrb[0].mxu0
    %v809 = vadd.f32 0.0, %v808
    %v810 = vpop.f32.mrb[0].mxu0
    %811 = vmatprep.mubr.bf16.mxu0 0
    %812 = vmatmul.mubr.bf16.gmra.mrb[0].mxu0 %v636
    %v813 = vpop.f32.mrb[0].mxu0
    %v814 = vadd.f32 0.0, %v813
    %v815 = vpop.f32.mrb[0].mxu0
    %v816 = vpop.f32.mrb[0].mxu0
    %v817 = vadd.f32 0.0, %v816
    %v818 = vpop.f32.mrb[0].mxu0
    %819 = vmatprep.mubr.bf16.mxu0 0
    %820 = vmatmul.mubr.bf16.gmra.mrb[0].mxu0 %v637
    %v821 = vpop.f32.mrb[0].mxu0
    %v822 = vadd.f32 0.0, %v821
    %v823 = vpop.f32.mrb[0].mxu0
    %v824 = vpop.f32.mrb[0].mxu0
    %v825 = vadd.f32 0.0, %v824
    %v826 = vpop.f32.mrb[0].mxu0
    %827 = vmatprep.mubr.bf16.mxu0 0
    %828 = vmatmul.mubr.bf16.gmra.mrb[0].mxu0 %v638
    %v829 = vpop.f32.mrb[0].mxu0
    %v830 = vadd.f32 0.0, %v829
    %v831 = vpop.f32.mrb[0].mxu0
    %v832 = vpop.f32.mrb[0].mxu0
    %v833 = vadd.f32 0.0, %v832
    %v834 = vpop.f32.mrb[0].mxu0
    %835 = vmatprep.mubr.bf16.mxu0 0
    %836 = vmatmul.mubr.bf16.gmra.mrb[0].mxu0 %v639
    %v837 = vpop.f32.mrb[0].mxu0
    %v838 = vadd.f32 0.0, %v837
    %v839 = vpop.f32.mrb[0].mxu0
    %v840 = vpop.f32.mrb[0].mxu0
    %v841 = vadd.f32 0.0, %v840
    %v842 = vpop.f32.mrb[0].mxu0
    %843 = vmatprep.mubr.bf16.mxu0 0
    %844 = vmatmul.mubr.bf16.gmra.mrb[0].mxu0 %v640
    %v845 = vpop.f32.mrb[0].mxu0
    %v846 = vadd.f32 0.0, %v845
    %v847 = vpop.f32.mrb[0].mxu0
    %v848 = vpop.f32.mrb[0].mxu0
    %v849 = vadd.f32 0.0, %v848
    %v850 = vpop.f32.mrb[0].mxu0
    %851 = vmatprep.mubr.bf16.mxu0 0
    %852 = vmatmul.mubr.bf16.gmra.mrb[0].mxu0 %v641
    %v853 = vpop.f32.mrb[0].mxu0
    %v854 = vadd.f32 0.0, %v853
    %v855 = vpop.f32.mrb[0].mxu0
    %v856 = vpop.f32.mrb[0].mxu0
    %v857 = vadd.f32 0.0, %v856
    %v858 = vpop.f32.mrb[0].mxu0
    %859 = vmatprep.mubr.bf16.mxu0 0
    %860 = vmatmul.mubr.bf16.gmra.mrb[0].mxu0 %v642
    %v861 = vpop.f32.mrb[0].mxu0
    %v862 = vadd.f32 0.0, %v861
    %v863 = vpop.f32.mrb[0].mxu0
    %v864 = vpop.f32.mrb[0].mxu0
    %v865 = vadd.f32 0.0, %v864
    %v866 = vpop.f32.mrb[0].mxu0
    %867 = vmatprep.mubr.bf16.mxu0 0
    %868 = vmatmul.mubr.bf16.gmra.mrb[0].mxu0 %v643
    %v869 = vpop.f32.mrb[0].mxu0
    %v870 = vadd.f32 0.0, %v869
    %v871 = vpop.f32.mrb[0].mxu0
    %v872 = vpop.f32.mrb[0].mxu0
    %v873 = vadd.f32 0.0, %v872
    %v874 = vpop.f32.mrb[0].mxu0
    %875 = vmatprep.mubr.bf16.mxu0 0
    %876 = vmatmul.mubr.bf16.gmra.mrb[0].mxu0 %v644
    %v877 = vpop.f32.mrb[0].mxu0
    %v878 = vadd.f32 0.0, %v877
    %v879 = vpop.f32.mrb[0].mxu0
    %v880 = vpop.f32.mrb[0].mxu0
    %v881 = vadd.f32 0.0, %v880
    %v882 = vpop.f32.mrb[0].mxu0
    %883 = vmatprep.mubr.bf16.mxu0 0
    %884 = vmatmul.mubr.bf16.gmra.mrb[0].mxu0 %v645
    %v885 = vpop.f32.mrb[0].mxu0
    %v886 = vadd.f32 0.0, %v885
    %v887 = vpop.f32.mrb[0].mxu0
    %v888 = vpop.f32.mrb[0].mxu0
    %v889 = vadd.f32 0.0, %v888
    %v890 = vpop.f32.mrb[0].mxu0
    %891 = vmatprep.mubr.bf16.mxu0 0
    %892 = vmatmul.mubr.bf16.gmra.mrb[0].mxu0 %v646
    %v893 = vpop.f32.mrb[0].mxu0
    %v894 = vadd.f32 0.0, %v893
    %v895 = vpop.f32.mrb[0].mxu0
    %v896 = vpop.f32.mrb[0].mxu0
    %v897 = vadd.f32 0.0, %v896
    %v898 = vpop.f32.mrb[0].mxu0
    %899 = vmatprep.mubr.bf16.mxu0 0
    %900 = vmatmul.mubr.bf16.gmra.mrb[0].mxu0 %v647
    %v901 = vpop.f32.mrb[0].mxu0
    %v902 = vadd.f32 0.0, %v901
    %v903 = vpop.f32.mrb[0].mxu0
    %v904 = vpop.f32.mrb[0].mxu0
    %v905 = vadd.f32 0.0, %v904
    %v906 = vpop.f32.mrb[0].mxu0
    %907 = vdwg.mxu0
    %v908 = vpack.c.bf16 %v785, %v782
    %v909 = vpack.c.bf16 %v793, %v790
    %v910 = vpack.c.bf16 %v801, %v798
    %v911 = vpack.c.bf16 %v809, %v806
    %v912 = vpack.c.bf16 %v817, %v814
    %v913 = vpack.c.bf16 %v825, %v822
    %v914 = vpack.c.bf16 %v833, %v830
    %v915 = vpack.c.bf16 %v841, %v838
    %v916 = vpack.c.bf16 %v849, %v846
    %v917 = vpack.c.bf16 %v857, %v854
    %v918 = vpack.c.bf16 %v865, %v862
    %v919 = vpack.c.bf16 %v873, %v870
    %v920 = vpack.c.bf16 %v881, %v878
    %v921 = vpack.c.bf16 %v889, %v886
    %v922 = vpack.c.bf16 %v897, %v894
    %v923 = vpack.c.bf16 %v905, %v902
    %v924 = vld [vmem:[%s4] sm:$0xf]
    %v925 = vld [vmem:[%s4 + $0x4] sm:$0xf]
    %v926 = vld [vmem:[%s4 + $0x8] sm:$0xf]
    %v927 = vld [vmem:[%s4 + $0xc] sm:$0xf]
    %v928 = vld [vmem:[%s4 + $0x10] sm:$0xf]
    %v929 = vld [vmem:[%s4 + $0x14] sm:$0xf]
    %v930 = vld [vmem:[%s4 + $0x18] sm:$0xf]
    %v931 = vld [vmem:[%s4 + $0x1c] sm:$0xf]
    %v932 = vld [vmem:[%s4 + $0x20] sm:$0xf]
    %v933 = vld [vmem:[%s4 + $0x24] sm:$0xf]
    %v934 = vld [vmem:[%s4 + $0x28] sm:$0xf]
    %v935 = vld [vmem:[%s4 + $0x2c] sm:$0xf]
    %v936 = vld [vmem:[%s4 + $0x30] sm:$0xf]
    %v937 = vld [vmem:[%s4 + $0x34] sm:$0xf]
    %v938 = vld [vmem:[%s4 + $0x38] sm:$0xf]
    %v939 = vld [vmem:[%s4 + $0x3c] sm:$0xf]
    %v956 = vunpack.c.l.b16 %v924
    %v957 = vunpack.c.l.b16 %v925
    %v958 = vunpack.c.l.b16 %v926
    %v959 = vunpack.c.l.b16 %v927
    %v960 = vunpack.c.l.b16 %v928
    %v961 = vunpack.c.l.b16 %v929
    %v962 = vunpack.c.l.b16 %v930
    %v963 = vunpack.c.l.b16 %v931
    %v964 = vunpack.c.l.b16 %v932
    %v965 = vunpack.c.l.b16 %v933
    %v966 = vunpack.c.l.b16 %v934
    %v967 = vunpack.c.l.b16 %v935
    %v968 = vunpack.c.l.b16 %v936
    %v969 = vunpack.c.l.b16 %v937
    %v970 = vunpack.c.l.b16 %v938
    %v971 = vunpack.c.l.b16 %v939
    %v972 = vpack.c.b16 %v957, %v956
    %v973 = vpack.c.b16 %v959, %v958
    %v974 = vpack.c.b16 %v961, %v960
    %v975 = vpack.c.b16 %v963, %v962
    %v976 = vpack.c.b16 %v965, %v964
    %v977 = vpack.c.b16 %v967, %v966
    %v978 = vpack.c.b16 %v969, %v968
    %v979 = vpack.c.b16 %v971, %v970
    %988 = vmatprep.subr.bf16.mxu0 0
    %989 = vmatpush1.bf16.msra.mxu0 %v972
    %990 = vmatprep.subr.bf16.mxu0 0
    %991 = vmatpush1.bf16.msra.mxu0 %v973
    %992 = vmatprep.subr.bf16.mxu0 0
    %993 = vmatpush1.bf16.msra.mxu0 %v974
    %994 = vmatprep.subr.bf16.mxu0 0
    %995 = vmatpush1.bf16.msra.mxu0 %v975
    %996 = vmatprep.subr.bf16.mxu0 0
    %997 = vmatpush1.bf16.msra.mxu0 %v976
    %998 = vmatprep.subr.bf16.mxu0 0
    %999 = vmatpush1.bf16.msra.mxu0 %v977
    %1000 = vmatprep.subr.bf16.mxu0 0
    %1001 = vmatpush1.bf16.msra.mxu0 %v978
    %1002 = vmatprep.subr.bf16.mxu0 0
    %1003 = vmatpush1.bf16.msra.mxu0 %v979
    %1004 = vmatprep.subr.bf16.mxu0 0
    %1005 = vmatpush1.bf16.msra.mxu0 0
    %1006 = vmatprep.subr.bf16.mxu0 0
    %1007 = vmatpush1.bf16.msra.mxu0 0
    %1008 = vmatprep.subr.bf16.mxu0 0
    %1009 = vmatpush1.bf16.msra.mxu0 0
    %1010 = vmatprep.subr.bf16.mxu0 0
    %1011 = vmatpush1.bf16.msra.mxu0 0
    %1012 = vmatprep.subr.bf16.mxu0 0
    %1013 = vmatpush1.bf16.msra.mxu0 0
    %1014 = vmatprep.subr.bf16.mxu0 0
    %1015 = vmatpush1.bf16.msra.mxu0 0
    %1016 = vmatprep.subr.bf16.mxu0 0
    %1017 = vmatpush1.bf16.msra.mxu0 0
    %1018 = vmatprep.subr.bf16.mxu0 0
    %1019 = vmatpush1.bf16.msra.mxu0 0
    %1020 = vmatprep.mubr.bf16.mxu0 0
    %1021 = vmatmul.mubr.bf16.gmra.mrb[0].mxu0 %v632
    %v1022 = vpop.f32.mrb[0].mxu0
    %v1023 = vadd.f32 0.0, %v1022
    %v1024 = vpop.f32.mrb[0].mxu0
    %v1025 = vpop.f32.mrb[0].mxu0
    %v1026 = vadd.f32 0.0, %v1025
    %v1027 = vpop.f32.mrb[0].mxu0
    %1028 = vmatprep.mubr.bf16.mxu0 0
    %1029 = vmatmul.mubr.bf16.gmra.mrb[0].mxu0 %v633
    %v1030 = vpop.f32.mrb[0].mxu0
    %v1031 = vadd.f32 0.0, %v1030
    %v1032 = vpop.f32.mrb[0].mxu0
    %v1033 = vpop.f32.mrb[0].mxu0
    %v1034 = vadd.f32 0.0, %v1033
    %v1035 = vpop.f32.mrb[0].mxu0
    %1036 = vmatprep.mubr.bf16.mxu0 0
    %1037 = vmatmul.mubr.bf16.gmra.mrb[0].mxu0 %v634
    %v1038 = vpop.f32.mrb[0].mxu0
    %v1039 = vadd.f32 0.0, %v1038
    %v1040 = vpop.f32.mrb[0].mxu0
    %v1041 = vpop.f32.mrb[0].mxu0
    %v1042 = vadd.f32 0.0, %v1041
    %v1043 = vpop.f32.mrb[0].mxu0
    %1044 = vmatprep.mubr.bf16.mxu0 0
    %1045 = vmatmul.mubr.bf16.gmra.mrb[0].mxu0 %v635
    %v1046 = vpop.f32.mrb[0].mxu0
    %v1047 = vadd.f32 0.0, %v1046
    %v1048 = vpop.f32.mrb[0].mxu0
    %v1049 = vpop.f32.mrb[0].mxu0
    %v1050 = vadd.f32 0.0, %v1049
    %v1051 = vpop.f32.mrb[0].mxu0
    %1052 = vmatprep.mubr.bf16.mxu0 0
    %1053 = vmatmul.mubr.bf16.gmra.mrb[0].mxu0 %v636
    %v1054 = vpop.f32.mrb[0].mxu0
    %v1055 = vadd.f32 0.0, %v1054
    %v1056 = vpop.f32.mrb[0].mxu0
    %v1057 = vpop.f32.mrb[0].mxu0
    %v1058 = vadd.f32 0.0, %v1057
    %v1059 = vpop.f32.mrb[0].mxu0
    %1060 = vmatprep.mubr.bf16.mxu0 0
    %1061 = vmatmul.mubr.bf16.gmra.mrb[0].mxu0 %v637
    %v1062 = vpop.f32.mrb[0].mxu0
    %v1063 = vadd.f32 0.0, %v1062
    %v1064 = vpop.f32.mrb[0].mxu0
    %v1065 = vpop.f32.mrb[0].mxu0
    %v1066 = vadd.f32 0.0, %v1065
    %v1067 = vpop.f32.mrb[0].mxu0
    %1068 = vmatprep.mubr.bf16.mxu0 0
    %1069 = vmatmul.mubr.bf16.gmra.mrb[0].mxu0 %v638
    %v1070 = vpop.f32.mrb[0].mxu0
    %v1071 = vadd.f32 0.0, %v1070
    %v1072 = vpop.f32.mrb[0].mxu0
    %v1073 = vpop.f32.mrb[0].mxu0
    %v1074 = vadd.f32 0.0, %v1073
    %v1075 = vpop.f32.mrb[0].mxu0
    %1076 = vmatprep.mubr.bf16.mxu0 0
    %1077 = vmatmul.mubr.bf16.gmra.mrb[0].mxu0 %v639
    %v1078 = vpop.f32.mrb[0].mxu0
    %v1079 = vadd.f32 0.0, %v1078
    %v1080 = vpop.f32.mrb[0].mxu0
    %v1081 = vpop.f32.mrb[0].mxu0
    %v1082 = vadd.f32 0.0, %v1081
    %v1083 = vpop.f32.mrb[0].mxu0
    %1084 = vmatprep.mubr.bf16.mxu0 0
    %1085 = vmatmul.mubr.bf16.gmra.mrb[0].mxu0 %v640
    %v1086 = vpop.f32.mrb[0].mxu0
    %v1087 = vadd.f32 0.0, %v1086
    %v1088 = vpop.f32.mrb[0].mxu0
    %v1089 = vpop.f32.mrb[0].mxu0
    %v1090 = vadd.f32 0.0, %v1089
    %v1091 = vpop.f32.mrb[0].mxu0
    %1092 = vmatprep.mubr.bf16.mxu0 0
    %1093 = vmatmul.mubr.bf16.gmra.mrb[0].mxu0 %v641
    %v1094 = vpop.f32.mrb[0].mxu0
    %v1095 = vadd.f32 0.0, %v1094
    %v1096 = vpop.f32.mrb[0].mxu0
    %v1097 = vpop.f32.mrb[0].mxu0
    %v1098 = vadd.f32 0.0, %v1097
    %v1099 = vpop.f32.mrb[0].mxu0
    %1100 = vmatprep.mubr.bf16.mxu0 0
    %1101 = vmatmul.mubr.bf16.gmra.mrb[0].mxu0 %v642
    %v1102 = vpop.f32.mrb[0].mxu0
    %v1103 = vadd.f32 0.0, %v1102
    %v1104 = vpop.f32.mrb[0].mxu0
    %v1105 = vpop.f32.mrb[0].mxu0
    %v1106 = vadd.f32 0.0, %v1105
    %v1107 = vpop.f32.mrb[0].mxu0
    %1108 = vmatprep.mubr.bf16.mxu0 0
    %1109 = vmatmul.mubr.bf16.gmra.mrb[0].mxu0 %v643
    %v1110 = vpop.f32.mrb[0].mxu0
    %v1111 = vadd.f32 0.0, %v1110
    %v1112 = vpop.f32.mrb[0].mxu0
    %v1113 = vpop.f32.mrb[0].mxu0
    %v1114 = vadd.f32 0.0, %v1113
    %v1115 = vpop.f32.mrb[0].mxu0
    %1116 = vmatprep.mubr.bf16.mxu0 0
    %1117 = vmatmul.mubr.bf16.gmra.mrb[0].mxu0 %v644
    %v1118 = vpop.f32.mrb[0].mxu0
    %v1119 = vadd.f32 0.0, %v1118
    %v1120 = vpop.f32.mrb[0].mxu0
    %v1121 = vpop.f32.mrb[0].mxu0
    %v1122 = vadd.f32 0.0, %v1121
    %v1123 = vpop.f32.mrb[0].mxu0
    %1124 = vmatprep.mubr.bf16.mxu0 0
    %1125 = vmatmul.mubr.bf16.gmra.mrb[0].mxu0 %v645
    %v1126 = vpop.f32.mrb[0].mxu0
    %v1127 = vadd.f32 0.0, %v1126
    %v1128 = vpop.f32.mrb[0].mxu0
    %v1129 = vpop.f32.mrb[0].mxu0
    %v1130 = vadd.f32 0.0, %v1129
    %v1131 = vpop.f32.mrb[0].mxu0
    %1132 = vmatprep.mubr.bf16.mxu0 0
    %1133 = vmatmul.mubr.bf16.gmra.mrb[0].mxu0 %v646
    %v1134 = vpop.f32.mrb[0].mxu0
    %v1135 = vadd.f32 0.0, %v1134
    %v1136 = vpop.f32.mrb[0].mxu0
    %v1137 = vpop.f32.mrb[0].mxu0
    %v1138 = vadd.f32 0.0, %v1137
    %v1139 = vpop.f32.mrb[0].mxu0
    %1140 = vmatprep.mubr.bf16.mxu0 0
    %1141 = vmatmul.mubr.bf16.gmra.mrb[0].mxu0 %v647
    %v1142 = vpop.f32.mrb[0].mxu0
    %v1143 = vadd.f32 0.0, %v1142
    %v1144 = vpop.f32.mrb[0].mxu0
    %v1145 = vpop.f32.mrb[0].mxu0
    %v1146 = vadd.f32 0.0, %v1145
    %v1147 = vpop.f32.mrb[0].mxu0
    %1148 = vdwg.mxu0
    %v1149 = vpack.c.bf16 %v1026, %v1023
    %v1150 = vpack.c.bf16 %v1034, %v1031
    %v1151 = vpack.c.bf16 %v1042, %v1039
    %v1152 = vpack.c.bf16 %v1050, %v1047
    %v1153 = vpack.c.bf16 %v1058, %v1055
    %v1154 = vpack.c.bf16 %v1066, %v1063
    %v1155 = vpack.c.bf16 %v1074, %v1071
    %v1156 = vpack.c.bf16 %v1082, %v1079
    %v1157 = vpack.c.bf16 %v1090, %v1087
    %v1158 = vpack.c.bf16 %v1098, %v1095
    %v1159 = vpack.c.bf16 %v1106, %v1103
    %v1160 = vpack.c.bf16 %v1114, %v1111
    %v1161 = vpack.c.bf16 %v1122, %v1119
    %v1162 = vpack.c.bf16 %v1130, %v1127
    %v1163 = vpack.c.bf16 %v1138, %v1135
    %v1164 = vpack.c.bf16 %v1146, %v1143
    %v1165 = vld [vmem:[%s5] sm:$0xf]
    %v1166 = vld [vmem:[%s5 + $0x4] sm:$0xf]
    %v1167 = vld [vmem:[%s5 + $0x8] sm:$0xf]
    %v1168 = vld [vmem:[%s5 + $0xc] sm:$0xf]
    %v1169 = vld [vmem:[%s5 + $0x10] sm:$0xf]
    %v1170 = vld [vmem:[%s5 + $0x14] sm:$0xf]
    %v1171 = vld [vmem:[%s5 + $0x18] sm:$0xf]
    %v1172 = vld [vmem:[%s5 + $0x1c] sm:$0xf]
    %v1173 = vld [vmem:[%s5 + $0x20] sm:$0xf]
    %v1174 = vld [vmem:[%s5 + $0x24] sm:$0xf]
    %v1175 = vld [vmem:[%s5 + $0x28] sm:$0xf]
    %v1176 = vld [vmem:[%s5 + $0x2c] sm:$0xf]
    %v1177 = vld [vmem:[%s5 + $0x30] sm:$0xf]
    %v1178 = vld [vmem:[%s5 + $0x34] sm:$0xf]
    %v1179 = vld [vmem:[%s5 + $0x38] sm:$0xf]
    %v1180 = vld [vmem:[%s5 + $0x3c] sm:$0xf]
    %v1197 = vunpack.c.l.b16 %v1165
    %v1198 = vunpack.c.l.b16 %v1166
    %v1199 = vunpack.c.l.b16 %v1167
    %v1200 = vunpack.c.l.b16 %v1168
    %v1201 = vunpack.c.l.b16 %v1169
    %v1202 = vunpack.c.l.b16 %v1170
    %v1203 = vunpack.c.l.b16 %v1171
    %v1204 = vunpack.c.l.b16 %v1172
    %v1205 = vunpack.c.l.b16 %v1173
    %v1206 = vunpack.c.l.b16 %v1174
    %v1207 = vunpack.c.l.b16 %v1175
    %v1208 = vunpack.c.l.b16 %v1176
    %v1209 = vunpack.c.l.b16 %v1177
    %v1210 = vunpack.c.l.b16 %v1178
    %v1211 = vunpack.c.l.b16 %v1179
    %v1212 = vunpack.c.l.b16 %v1180
    %v1213 = vpack.c.b16 %v1198, %v1197
    %v1214 = vpack.c.b16 %v1200, %v1199
    %v1215 = vpack.c.b16 %v1202, %v1201
    %v1216 = vpack.c.b16 %v1204, %v1203
    %v1217 = vpack.c.b16 %v1206, %v1205
    %v1218 = vpack.c.b16 %v1208, %v1207
    %v1219 = vpack.c.b16 %v1210, %v1209
    %v1220 = vpack.c.b16 %v1212, %v1211
    %1229 = vmatprep.subr.bf16.mxu0 0
    %1230 = vmatpush1.bf16.msra.mxu0 %v1213
    %1231 = vmatprep.subr.bf16.mxu0 0
    %1232 = vmatpush1.bf16.msra.mxu0 %v1214
    %1233 = vmatprep.subr.bf16.mxu0 0
    %1234 = vmatpush1.bf16.msra.mxu0 %v1215
    %1235 = vmatprep.subr.bf16.mxu0 0
    %1236 = vmatpush1.bf16.msra.mxu0 %v1216
    %1237 = vmatprep.subr.bf16.mxu0 0
    %1238 = vmatpush1.bf16.msra.mxu0 %v1217
    %1239 = vmatprep.subr.bf16.mxu0 0
    %1240 = vmatpush1.bf16.msra.mxu0 %v1218
    %1241 = vmatprep.subr.bf16.mxu0 0
    %1242 = vmatpush1.bf16.msra.mxu0 %v1219
    %1243 = vmatprep.subr.bf16.mxu0 0
    %1244 = vmatpush1.bf16.msra.mxu0 %v1220
    %1245 = vmatprep.subr.bf16.mxu0 0
    %1246 = vmatpush1.bf16.msra.mxu0 0
    %1247 = vmatprep.subr.bf16.mxu0 0
    %1248 = vmatpush1.bf16.msra.mxu0 0
    %1249 = vmatprep.subr.bf16.mxu0 0
    %1250 = vmatpush1.bf16.msra.mxu0 0
    %1251 = vmatprep.subr.bf16.mxu0 0
    %1252 = vmatpush1.bf16.msra.mxu0 0
    %1253 = vmatprep.subr.bf16.mxu0 0
    %1254 = vmatpush1.bf16.msra.mxu0 0
    %1255 = vmatprep.subr.bf16.mxu0 0
    %1256 = vmatpush1.bf16.msra.mxu0 0
    %1257 = vmatprep.subr.bf16.mxu0 0
    %1258 = vmatpush1.bf16.msra.mxu0 0
    %1259 = vmatprep.subr.bf16.mxu0 0
    %1260 = vmatpush1.bf16.msra.mxu0 0
    %1261 = vmatprep.mubr.bf16.mxu0 0
    %1262 = vmatmul.mubr.bf16.gmra.mrb[0].mxu0 %v632
    %v1263 = vpop.f32.mrb[0].mxu0
    %v1264 = vadd.f32 0.0, %v1263
    %v1265 = vpop.f32.mrb[0].mxu0
    %v1266 = vpop.f32.mrb[0].mxu0
    %v1267 = vadd.f32 0.0, %v1266
    %v1268 = vpop.f32.mrb[0].mxu0
    %1269 = vmatprep.mubr.bf16.mxu0 0
    %1270 = vmatmul.mubr.bf16.gmra.mrb[0].mxu0 %v633
    %v1271 = vpop.f32.mrb[0].mxu0
    %v1272 = vadd.f32 0.0, %v1271
    %v1273 = vpop.f32.mrb[0].mxu0
    %v1274 = vpop.f32.mrb[0].mxu0
    %v1275 = vadd.f32 0.0, %v1274
    %v1276 = vpop.f32.mrb[0].mxu0
    %1277 = vmatprep.mubr.bf16.mxu0 0
    %1278 = vmatmul.mubr.bf16.gmra.mrb[0].mxu0 %v634
    %v1279 = vpop.f32.mrb[0].mxu0
    %v1280 = vadd.f32 0.0, %v1279
    %v1281 = vpop.f32.mrb[0].mxu0
    %v1282 = vpop.f32.mrb[0].mxu0
    %v1283 = vadd.f32 0.0, %v1282
    %v1284 = vpop.f32.mrb[0].mxu0
    %1285 = vmatprep.mubr.bf16.mxu0 0
    %1286 = vmatmul.mubr.bf16.gmra.mrb[0].mxu0 %v635
    %v1287 = vpop.f32.mrb[0].mxu0
    %v1288 = vadd.f32 0.0, %v1287
    %v1289 = vpop.f32.mrb[0].mxu0
    %v1290 = vpop.f32.mrb[0].mxu0
    %v1291 = vadd.f32 0.0, %v1290
    %v1292 = vpop.f32.mrb[0].mxu0
    %1293 = vmatprep.mubr.bf16.mxu0 0
    %1294 = vmatmul.mubr.bf16.gmra.mrb[0].mxu0 %v636
    %v1295 = vpop.f32.mrb[0].mxu0
    %v1296 = vadd.f32 0.0, %v1295
    %v1297 = vpop.f32.mrb[0].mxu0
    %v1298 = vpop.f32.mrb[0].mxu0
    %v1299 = vadd.f32 0.0, %v1298
    %v1300 = vpop.f32.mrb[0].mxu0
    %1301 = vmatprep.mubr.bf16.mxu0 0
    %1302 = vmatmul.mubr.bf16.gmra.mrb[0].mxu0 %v637
    %v1303 = vpop.f32.mrb[0].mxu0
    %v1304 = vadd.f32 0.0, %v1303
    %v1305 = vpop.f32.mrb[0].mxu0
    %v1306 = vpop.f32.mrb[0].mxu0
    %v1307 = vadd.f32 0.0, %v1306
    %v1308 = vpop.f32.mrb[0].mxu0
    %1309 = vmatprep.mubr.bf16.mxu0 0
    %1310 = vmatmul.mubr.bf16.gmra.mrb[0].mxu0 %v638
    %v1311 = vpop.f32.mrb[0].mxu0
    %v1312 = vadd.f32 0.0, %v1311
    %v1313 = vpop.f32.mrb[0].mxu0
    %v1314 = vpop.f32.mrb[0].mxu0
    %v1315 = vadd.f32 0.0, %v1314
    %v1316 = vpop.f32.mrb[0].mxu0
    %1317 = vmatprep.mubr.bf16.mxu0 0
    %1318 = vmatmul.mubr.bf16.gmra.mrb[0].mxu0 %v639
    %v1319 = vpop.f32.mrb[0].mxu0
    %v1320 = vadd.f32 0.0, %v1319
    %v1321 = vpop.f32.mrb[0].mxu0
    %v1322 = vpop.f32.mrb[0].mxu0
    %v1323 = vadd.f32 0.0, %v1322
    %v1324 = vpop.f32.mrb[0].mxu0
    %1325 = vmatprep.mubr.bf16.mxu0 0
    %1326 = vmatmul.mubr.bf16.gmra.mrb[0].mxu0 %v640
    %v1327 = vpop.f32.mrb[0].mxu0
    %v1328 = vadd.f32 0.0, %v1327
    %v1329 = vpop.f32.mrb[0].mxu0
    %v1330 = vpop.f32.mrb[0].mxu0
    %v1331 = vadd.f32 0.0, %v1330
    %v1332 = vpop.f32.mrb[0].mxu0
    %1333 = vmatprep.mubr.bf16.mxu0 0
    %1334 = vmatmul.mubr.bf16.gmra.mrb[0].mxu0 %v641
    %v1335 = vpop.f32.mrb[0].mxu0
    %v1336 = vadd.f32 0.0, %v1335
    %v1337 = vpop.f32.mrb[0].mxu0
    %v1338 = vpop.f32.mrb[0].mxu0
    %v1339 = vadd.f32 0.0, %v1338
    %v1340 = vpop.f32.mrb[0].mxu0
    %1341 = vmatprep.mubr.bf16.mxu0 0
    %1342 = vmatmul.mubr.bf16.gmra.mrb[0].mxu0 %v642
    %v1343 = vpop.f32.mrb[0].mxu0
    %v1344 = vadd.f32 0.0, %v1343
    %v1345 = vpop.f32.mrb[0].mxu0
    %v1346 = vpop.f32.mrb[0].mxu0
    %v1347 = vadd.f32 0.0, %v1346
    %v1348 = vpop.f32.mrb[0].mxu0
    %1349 = vmatprep.mubr.bf16.mxu0 0
    %1350 = vmatmul.mubr.bf16.gmra.mrb[0].mxu0 %v643
    %v1351 = vpop.f32.mrb[0].mxu0
    %v1352 = vadd.f32 0.0, %v1351
    %v1353 = vpop.f32.mrb[0].mxu0
    %v1354 = vpop.f32.mrb[0].mxu0
    %v1355 = vadd.f32 0.0, %v1354
    %v1356 = vpop.f32.mrb[0].mxu0
    %1357 = vmatprep.mubr.bf16.mxu0 0
    %1358 = vmatmul.mubr.bf16.gmra.mrb[0].mxu0 %v644
    %v1359 = vpop.f32.mrb[0].mxu0
    %v1360 = vadd.f32 0.0, %v1359
    %v1361 = vpop.f32.mrb[0].mxu0
    %v1362 = vpop.f32.mrb[0].mxu0
    %v1363 = vadd.f32 0.0, %v1362
    %v1364 = vpop.f32.mrb[0].mxu0
    %1365 = vmatprep.mubr.bf16.mxu0 0
    %1366 = vmatmul.mubr.bf16.gmra.mrb[0].mxu0 %v645
    %v1367 = vpop.f32.mrb[0].mxu0
    %v1368 = vadd.f32 0.0, %v1367
    %v1369 = vpop.f32.mrb[0].mxu0
    %v1370 = vpop.f32.mrb[0].mxu0
    %v1371 = vadd.f32 0.0, %v1370
    %v1372 = vpop.f32.mrb[0].mxu0
    %1373 = vmatprep.mubr.bf16.mxu0 0
    %1374 = vmatmul.mubr.bf16.gmra.mrb[0].mxu0 %v646
    %v1375 = vpop.f32.mrb[0].mxu0
    %v1376 = vadd.f32 0.0, %v1375
    %v1377 = vpop.f32.mrb[0].mxu0
    %v1378 = vpop.f32.mrb[0].mxu0
    %v1379 = vadd.f32 0.0, %v1378
    %v1380 = vpop.f32.mrb[0].mxu0
    %1381 = vmatprep.mubr.bf16.mxu0 0
    %1382 = vmatmul.mubr.bf16.gmra.mrb[0].mxu0 %v647
    %v1383 = vpop.f32.mrb[0].mxu0
    %v1384 = vadd.f32 0.0, %v1383
    %v1385 = vpop.f32.mrb[0].mxu0
    %v1386 = vpop.f32.mrb[0].mxu0
    %v1387 = vadd.f32 0.0, %v1386
    %v1388 = vpop.f32.mrb[0].mxu0
    %1389 = vdwg.mxu0
    %v1390 = vpack.c.bf16 %v1267, %v1264
    %v1391 = vpack.c.bf16 %v1275, %v1272
    %v1392 = vpack.c.bf16 %v1283, %v1280
    %v1393 = vpack.c.bf16 %v1291, %v1288
    %v1394 = vpack.c.bf16 %v1299, %v1296
    %v1395 = vpack.c.bf16 %v1307, %v1304
    %v1396 = vpack.c.bf16 %v1315, %v1312
    %v1397 = vpack.c.bf16 %v1323, %v1320
    %v1398 = vpack.c.bf16 %v1331, %v1328
    %v1399 = vpack.c.bf16 %v1339, %v1336
    %v1400 = vpack.c.bf16 %v1347, %v1344
    %v1401 = vpack.c.bf16 %v1355, %v1352
    %v1402 = vpack.c.bf16 %v1363, %v1360
    %v1403 = vpack.c.bf16 %v1371, %v1368
    %v1404 = vpack.c.bf16 %v1379, %v1376
    %v1405 = vpack.c.bf16 %v1387, %v1384
    %vm1406 = vcmask 261120
    %v1408 = vsel %vm1406, %v908, 0
    %v1411 = vsel %vm1406, %v909, 0
    %v1414 = vsel %vm1406, %v910, 0
    %v1417 = vsel %vm1406, %v911, 0
    %v1420 = vsel %vm1406, %v912, 0
    %v1423 = vsel %vm1406, %v913, 0
    %v1426 = vsel %vm1406, %v914, 0
    %v1429 = vsel %vm1406, %v915, 0
    %v1432 = vsel %vm1406, %v1149, 0
    %v1435 = vsel %vm1406, %v1150, 0
    %v1438 = vsel %vm1406, %v1151, 0
    %v1441 = vsel %vm1406, %v1152, 0
    %v1444 = vsel %vm1406, %v1153, 0
    %v1447 = vsel %vm1406, %v1154, 0
    %v1450 = vsel %vm1406, %v1155, 0
    %v1453 = vsel %vm1406, %v1156, 0
    %1455 = vmatprep.subr.bf16.mxu0 0
    %1456 = vmatpush1.bf16.xpose.msra.mxu0 %v1432
    %1457 = vmatprep.subr.bf16.mxu0 0
    %1458 = vmatpush1.bf16.xpose.msra.mxu0 %v1435
    %1459 = vmatprep.subr.bf16.mxu0 0
    %1460 = vmatpush1.bf16.xpose.msra.mxu0 %v1438
    %1461 = vmatprep.subr.bf16.mxu0 0
    %1462 = vmatpush1.bf16.xpose.msra.mxu0 %v1441
    %1463 = vmatprep.subr.bf16.mxu0 0
    %1464 = vmatpush1.bf16.xpose.msra.mxu0 %v1444
    %1465 = vmatprep.subr.bf16.mxu0 0
    %1466 = vmatpush1.bf16.xpose.msra.mxu0 %v1447
    %1467 = vmatprep.subr.bf16.mxu0 0
    %1468 = vmatpush1.bf16.xpose.msra.mxu0 %v1450
    %1469 = vmatprep.subr.bf16.mxu0 0
    %1470 = vmatpush1.bf16.xpose.msra.mxu0 %v1453
    %1471 = vmatprep.subr.bf16.mxu0 0
    %1472 = vmatpush1.bf16.xpose.msra.mxu0 0
    %1473 = vmatprep.subr.bf16.mxu0 0
    %1474 = vmatpush1.bf16.xpose.msra.mxu0 0
    %1475 = vmatprep.subr.bf16.mxu0 0
    %1476 = vmatpush1.bf16.xpose.msra.mxu0 0
    %1477 = vmatprep.subr.bf16.mxu0 0
    %1478 = vmatpush1.bf16.xpose.msra.mxu0 0
    %1479 = vmatprep.subr.bf16.mxu0 0
    %1480 = vmatpush1.bf16.xpose.msra.mxu0 0
    %1481 = vmatprep.subr.bf16.mxu0 0
    %1482 = vmatpush1.bf16.xpose.msra.mxu0 0
    %1483 = vmatprep.subr.bf16.mxu0 0
    %1484 = vmatpush1.bf16.xpose.msra.mxu0 0
    %1485 = vmatprep.subr.bf16.mxu0 0
    %1486 = vmatpush1.bf16.xpose.msra.mxu0 0
    %1487 = vmatprep.mubr.bf16.mxu0 0
    %1488 = vmatmul.mubr.bf16.gmra.mrb[0].mxu0 %v1408
    %v1489 = vpop.f32.mrb[0].mxu0
    %v1490 = vadd.f32 0.0, %v1489
    %v1491 = vpop.f32.mrb[0].mxu0
    %v1492 = vpop.f32.mrb[0].mxu0
    %v1493 = vadd.f32 0.0, %v1492
    %v1494 = vpop.f32.mrb[0].mxu0
    %1495 = vmatprep.mubr.bf16.mxu0 0
    %1496 = vmatmul.mubr.bf16.gmra.mrb[0].mxu0 %v1411
    %v1497 = vpop.f32.mrb[0].mxu0
    %v1498 = vadd.f32 0.0, %v1497
    %v1499 = vpop.f32.mrb[0].mxu0
    %v1500 = vpop.f32.mrb[0].mxu0
    %v1501 = vadd.f32 0.0, %v1500
    %v1502 = vpop.f32.mrb[0].mxu0
    %1503 = vmatprep.mubr.bf16.mxu0 0
    %1504 = vmatmul.mubr.bf16.gmra.mrb[0].mxu0 %v1414
    %v1505 = vpop.f32.mrb[0].mxu0
    %v1506 = vadd.f32 0.0, %v1505
    %v1507 = vpop.f32.mrb[0].mxu0
    %v1508 = vpop.f32.mrb[0].mxu0
    %v1509 = vadd.f32 0.0, %v1508
    %v1510 = vpop.f32.mrb[0].mxu0
    %1511 = vmatprep.mubr.bf16.mxu0 0
    %1512 = vmatmul.mubr.bf16.gmra.mrb[0].mxu0 %v1417
    %v1513 = vpop.f32.mrb[0].mxu0
    %v1514 = vadd.f32 0.0, %v1513
    %v1515 = vpop.f32.mrb[0].mxu0
    %v1516 = vpop.f32.mrb[0].mxu0
    %v1517 = vadd.f32 0.0, %v1516
    %v1518 = vpop.f32.mrb[0].mxu0
    %1519 = vmatprep.mubr.bf16.mxu0 0
    %1520 = vmatmul.mubr.bf16.gmra.mrb[0].mxu0 %v1420
    %v1521 = vpop.f32.mrb[0].mxu0
    %v1522 = vadd.f32 0.0, %v1521
    %v1523 = vpop.f32.mrb[0].mxu0
    %v1524 = vpop.f32.mrb[0].mxu0
    %v1525 = vadd.f32 0.0, %v1524
    %v1526 = vpop.f32.mrb[0].mxu0
    %1527 = vmatprep.mubr.bf16.mxu0 0
    %1528 = vmatmul.mubr.bf16.gmra.mrb[0].mxu0 %v1423
    %v1529 = vpop.f32.mrb[0].mxu0
    %v1530 = vadd.f32 0.0, %v1529
    %v1531 = vpop.f32.mrb[0].mxu0
    %v1532 = vpop.f32.mrb[0].mxu0
    %v1533 = vadd.f32 0.0, %v1532
    %v1534 = vpop.f32.mrb[0].mxu0
    %1535 = vmatprep.mubr.bf16.mxu0 0
    %1536 = vmatmul.mubr.bf16.gmra.mrb[0].mxu0 %v1426
    %v1537 = vpop.f32.mrb[0].mxu0
    %v1538 = vadd.f32 0.0, %v1537
    %v1539 = vpop.f32.mrb[0].mxu0
    %v1540 = vpop.f32.mrb[0].mxu0
    %v1541 = vadd.f32 0.0, %v1540
    %v1542 = vpop.f32.mrb[0].mxu0
    %1543 = vmatprep.mubr.bf16.mxu0 0
    %1544 = vmatmul.mubr.bf16.gmra.mrb[0].mxu0 %v1429
    %v1545 = vpop.f32.mrb[0].mxu0
    %v1546 = vadd.f32 0.0, %v1545
    %v1547 = vpop.f32.mrb[0].mxu0
    %v1548 = vpop.f32.mrb[0].mxu0
    %v1549 = vadd.f32 0.0, %v1548
    %v1550 = vpop.f32.mrb[0].mxu0
    %1551 = vdwg.mxu0
    %v1552 = vsel %vm667, %v1490, -inf
    %v1553 = vsel %vm668, %v1493, -inf
    %v1554 = vsel %vm669, %v1498, -inf
    %v1555 = vsel %vm670, %v1501, -inf
    %v1556 = vsel %vm671, %v1506, -inf
    %v1557 = vsel %vm672, %v1509, -inf
    %v1558 = vsel %vm673, %v1514, -inf
    %v1559 = vsel %vm674, %v1517, -inf
    %v1560 = vsel %vm675, %v1522, -inf
    %v1561 = vsel %vm676, %v1525, -inf
    %v1562 = vsel %vm677, %v1530, -inf
    %v1563 = vsel %vm678, %v1533, -inf
    %v1564 = vsel %vm679, %v1538, -inf
    %v1565 = vsel %vm680, %v1541, -inf
    %v1566 = vsel %vm681, %v1546, -inf
    %v1567 = vsel %vm682, %v1549, -inf
    %1568 = vmax.xlane.f32.xlu0 %v1552
    %v1569 = vpop.xlane.xlu0 %1568
    %1570 = vmax.xlane.f32.xlu0 %v1553
    %v1571 = vpop.xlane.xlu0 %1570
    %1572 = vmax.xlane.f32.xlu0 %v1554
    %v1573 = vpop.xlane.xlu0 %1572
    %1574 = vmax.xlane.f32.xlu0 %v1555
    %v1575 = vpop.xlane.xlu0 %1574
    %1576 = vmax.xlane.f32.xlu0 %v1556
    %v1577 = vpop.xlane.xlu0 %1576
    %1578 = vmax.xlane.f32.xlu0 %v1557
    %v1579 = vpop.xlane.xlu0 %1578
    %1580 = vmax.xlane.f32.xlu0 %v1558
    %v1581 = vpop.xlane.xlu0 %1580
    %1582 = vmax.xlane.f32.xlu0 %v1559
    %v1583 = vpop.xlane.xlu0 %1582
    %1584 = vmax.xlane.f32.xlu0 %v1560
    %v1585 = vpop.xlane.xlu0 %1584
    %1586 = vmax.xlane.f32.xlu0 %v1561
    %v1587 = vpop.xlane.xlu0 %1586
    %1588 = vmax.xlane.f32.xlu0 %v1562
    %v1589 = vpop.xlane.xlu0 %1588
    %1590 = vmax.xlane.f32.xlu0 %v1563
    %v1591 = vpop.xlane.xlu0 %1590
    %1592 = vmax.xlane.f32.xlu0 %v1564
    %v1593 = vpop.xlane.xlu0 %1592
    %1594 = vmax.xlane.f32.xlu0 %v1565
    %v1595 = vpop.xlane.xlu0 %1594
    %1596 = vmax.xlane.f32.xlu0 %v1566
    %v1597 = vpop.xlane.xlu0 %1596
    %1598 = vmax.xlane.f32.xlu0 %v1567
    %v1599 = vpop.xlane.xlu0 %1598
    %v1600 = vsub.f32 %v1552, %v1569
    %v1601 = vsub.f32 %v1553, %v1571
    %v1602 = vsub.f32 %v1554, %v1573
    %v1603 = vsub.f32 %v1555, %v1575
    %v1604 = vsub.f32 %v1556, %v1577
    %v1605 = vsub.f32 %v1557, %v1579
    %v1606 = vsub.f32 %v1558, %v1581
    %v1607 = vsub.f32 %v1559, %v1583
    %v1608 = vsub.f32 %v1560, %v1585
    %v1609 = vsub.f32 %v1561, %v1587
    %v1610 = vsub.f32 %v1562, %v1589
    %v1611 = vsub.f32 %v1563, %v1591
    %v1612 = vsub.f32 %v1564, %v1593
    %v1613 = vsub.f32 %v1565, %v1595
    %v1614 = vsub.f32 %v1566, %v1597
    %v1615 = vsub.f32 %v1567, %v1599
    %v1616 = vmul.f32 %v1600, 1.442695
    %v1617 = vpow.pop %v1616
    %v1618 = vmul.f32 %v1601, 1.442695
    %v1619 = vpow.pop %v1618
    %v1620 = vmul.f32 %v1602, 1.442695
    %v1621 = vpow.pop %v1620
    %v1622 = vmul.f32 %v1603, 1.442695
    %v1623 = vpow.pop %v1622
    %v1624 = vmul.f32 %v1604, 1.442695
    %v1625 = vpow.pop %v1624
    %v1626 = vmul.f32 %v1605, 1.442695
    %v1627 = vpow.pop %v1626
    %v1628 = vmul.f32 %v1606, 1.442695
    %v1629 = vpow.pop %v1628
    %v1630 = vmul.f32 %v1607, 1.442695
    %v1631 = vpow.pop %v1630
    %v1632 = vmul.f32 %v1608, 1.442695
    %v1633 = vpow.pop %v1632
    %v1634 = vmul.f32 %v1609, 1.442695
    %v1635 = vpow.pop %v1634
    %v1636 = vmul.f32 %v1610, 1.442695
    %v1637 = vpow.pop %v1636
    %v1638 = vmul.f32 %v1611, 1.442695
    %v1639 = vpow.pop %v1638
    %v1640 = vmul.f32 %v1612, 1.442695
    %v1641 = vpow.pop %v1640
    %v1642 = vmul.f32 %v1613, 1.442695
    %v1643 = vpow.pop %v1642
    %v1644 = vmul.f32 %v1614, 1.442695
    %v1645 = vpow.pop %v1644
    %v1646 = vmul.f32 %v1615, 1.442695
    %v1647 = vpow.pop %v1646
    %v1648 = vpack.c.bf16 %v1619, %v1617
    %v1649 = vpack.c.bf16 %v1623, %v1621
    %v1650 = vpack.c.bf16 %v1627, %v1625
    %v1651 = vpack.c.bf16 %v1631, %v1629
    %v1652 = vpack.c.bf16 %v1635, %v1633
    %v1653 = vpack.c.bf16 %v1639, %v1637
    %v1654 = vpack.c.bf16 %v1643, %v1641
    %v1655 = vpack.c.bf16 %v1647, %v1645
    %1656 = vmatprep.subr.bf16.mxu0 0
    %1657 = vmatpush1.bf16.msra.mxu0 %v1390
    %1658 = vmatprep.subr.bf16.mxu0 0
    %1659 = vmatpush1.bf16.msra.mxu0 %v1391
    %1660 = vmatprep.subr.bf16.mxu0 0
    %1661 = vmatpush1.bf16.msra.mxu0 %v1392
    %1662 = vmatprep.subr.bf16.mxu0 0
    %1663 = vmatpush1.bf16.msra.mxu0 %v1393
    %1664 = vmatprep.subr.bf16.mxu0 0
    %1665 = vmatpush1.bf16.msra.mxu0 %v1394
    %1666 = vmatprep.subr.bf16.mxu0 0
    %1667 = vmatpush1.bf16.msra.mxu0 %v1395
    %1668 = vmatprep.subr.bf16.mxu0 0
    %1669 = vmatpush1.bf16.msra.mxu0 %v1396
    %1670 = vmatprep.subr.bf16.mxu0 0
    %1671 = vmatpush1.bf16.msra.mxu0 %v1397
    %1672 = vmatprep.subr.bf16.mxu0 0
    %1673 = vmatpush1.bf16.msra.mxu0 0
    %1674 = vmatprep.subr.bf16.mxu0 0
    %1675 = vmatpush1.bf16.msra.mxu0 0
    %1676 = vmatprep.subr.bf16.mxu0 0
    %1677 = vmatpush1.bf16.msra.mxu0 0
    %1678 = vmatprep.subr.bf16.mxu0 0
    %1679 = vmatpush1.bf16.msra.mxu0 0
    %1680 = vmatprep.subr.bf16.mxu0 0
    %1681 = vmatpush1.bf16.msra.mxu0 0
    %1682 = vmatprep.subr.bf16.mxu0 0
    %1683 = vmatpush1.bf16.msra.mxu0 0
    %1684 = vmatprep.subr.bf16.mxu0 0
    %1685 = vmatpush1.bf16.msra.mxu0 0
    %1686 = vmatprep.subr.bf16.mxu0 0
    %1687 = vmatpush1.bf16.msra.mxu0 0
    %1688 = vmatprep.mubr.bf16.mxu0 0
    %1689 = vmatmul.mubr.bf16.gmra.mrb[0].mxu0 %v1648
    %v1690 = vpop.f32.mrb[0].mxu0
    %v1691 = vadd.f32 0.0, %v1690
    %v1692 = vpop.f32.mrb[0].mxu0
    %v1693 = vpop.f32.mrb[0].mxu0
    %v1694 = vadd.f32 0.0, %v1693
    %v1695 = vpop.f32.mrb[0].mxu0
    %1696 = vmatprep.mubr.bf16.mxu0 0
    %1697 = vmatmul.mubr.bf16.gmra.mrb[0].mxu0 %v1649
    %v1698 = vpop.f32.mrb[0].mxu0
    %v1699 = vadd.f32 0.0, %v1698
    %v1700 = vpop.f32.mrb[0].mxu0
    %v1701 = vpop.f32.mrb[0].mxu0
    %v1702 = vadd.f32 0.0, %v1701
    %v1703 = vpop.f32.mrb[0].mxu0
    %1704 = vmatprep.mubr.bf16.mxu0 0
    %1705 = vmatmul.mubr.bf16.gmra.mrb[0].mxu0 %v1650
    %v1706 = vpop.f32.mrb[0].mxu0
    %v1707 = vadd.f32 0.0, %v1706
    %v1708 = vpop.f32.mrb[0].mxu0
    %v1709 = vpop.f32.mrb[0].mxu0
    %v1710 = vadd.f32 0.0, %v1709
    %v1711 = vpop.f32.mrb[0].mxu0
    %1712 = vmatprep.mubr.bf16.mxu0 0
    %1713 = vmatmul.mubr.bf16.gmra.mrb[0].mxu0 %v1651
    %v1714 = vpop.f32.mrb[0].mxu0
    %v1715 = vadd.f32 0.0, %v1714
    %v1716 = vpop.f32.mrb[0].mxu0
    %v1717 = vpop.f32.mrb[0].mxu0
    %v1718 = vadd.f32 0.0, %v1717
    %v1719 = vpop.f32.mrb[0].mxu0
    %1720 = vmatprep.mubr.bf16.mxu0 0
    %1721 = vmatmul.mubr.bf16.gmra.mrb[0].mxu0 %v1652
    %v1722 = vpop.f32.mrb[0].mxu0
    %v1723 = vadd.f32 0.0, %v1722
    %v1724 = vpop.f32.mrb[0].mxu0
    %v1725 = vpop.f32.mrb[0].mxu0
    %v1726 = vadd.f32 0.0, %v1725
    %v1727 = vpop.f32.mrb[0].mxu0
    %1728 = vmatprep.mubr.bf16.mxu0 0
    %1729 = vmatmul.mubr.bf16.gmra.mrb[0].mxu0 %v1653
    %v1730 = vpop.f32.mrb[0].mxu0
    %v1731 = vadd.f32 0.0, %v1730
    %v1732 = vpop.f32.mrb[0].mxu0
    %v1733 = vpop.f32.mrb[0].mxu0
    %v1734 = vadd.f32 0.0, %v1733
    %v1735 = vpop.f32.mrb[0].mxu0
    %1736 = vmatprep.mubr.bf16.mxu0 0
    %1737 = vmatmul.mubr.bf16.gmra.mrb[0].mxu0 %v1654
    %v1738 = vpop.f32.mrb[0].mxu0
    %v1739 = vadd.f32 0.0, %v1738
    %v1740 = vpop.f32.mrb[0].mxu0
    %v1741 = vpop.f32.mrb[0].mxu0
    %v1742 = vadd.f32 0.0, %v1741
    %v1743 = vpop.f32.mrb[0].mxu0
    %1744 = vmatprep.mubr.bf16.mxu0 0
    %1745 = vmatmul.mubr.bf16.gmra.mrb[0].mxu0 %v1655
    %v1746 = vpop.f32.mrb[0].mxu0
    %v1747 = vadd.f32 0.0, %v1746
    %v1748 = vpop.f32.mrb[0].mxu0
    %v1749 = vpop.f32.mrb[0].mxu0
    %v1750 = vadd.f32 0.0, %v1749
    %v1751 = vpop.f32.mrb[0].mxu0
    %1752 = vdwg.mxu0
    %1753 = vadd.xlane.f32.xlu0 %v1617
    %v1754 = vpop.xlane.xlu0 %1753
    %1755 = vadd.xlane.f32.xlu0 %v1619
    %v1756 = vpop.xlane.xlu0 %1755
    %1757 = vadd.xlane.f32.xlu0 %v1621
    %v1758 = vpop.xlane.xlu0 %1757
    %1759 = vadd.xlane.f32.xlu0 %v1623
    %v1760 = vpop.xlane.xlu0 %1759
    %1761 = vadd.xlane.f32.xlu0 %v1625
    %v1762 = vpop.xlane.xlu0 %1761
    %1763 = vadd.xlane.f32.xlu0 %v1627
    %v1764 = vpop.xlane.xlu0 %1763
    %1765 = vadd.xlane.f32.xlu0 %v1629
    %v1766 = vpop.xlane.xlu0 %1765
    %1767 = vadd.xlane.f32.xlu0 %v1631
    %v1768 = vpop.xlane.xlu0 %1767
    %1769 = vadd.xlane.f32.xlu0 %v1633
    %v1770 = vpop.xlane.xlu0 %1769
    %1771 = vadd.xlane.f32.xlu0 %v1635
    %v1772 = vpop.xlane.xlu0 %1771
    %1773 = vadd.xlane.f32.xlu0 %v1637
    %v1774 = vpop.xlane.xlu0 %1773
    %1775 = vadd.xlane.f32.xlu0 %v1639
    %v1776 = vpop.xlane.xlu0 %1775
    %1777 = vadd.xlane.f32.xlu0 %v1641
    %v1778 = vpop.xlane.xlu0 %1777
    %1779 = vadd.xlane.f32.xlu0 %v1643
    %v1780 = vpop.xlane.xlu0 %1779
    %1781 = vadd.xlane.f32.xlu0 %v1645
    %v1782 = vpop.xlane.xlu0 %1781
    %1783 = vadd.xlane.f32.xlu0 %v1647
    %v1784 = vpop.xlane.xlu0 %1783
    %v1785 = vrcp.pop %v1754
    %v1786 = vrcp.pop %v1756
    %v1787 = vrcp.pop %v1758
    %v1788 = vrcp.pop %v1760
    %v1789 = vrcp.pop %v1762
    %v1790 = vrcp.pop %v1764
    %v1791 = vrcp.pop %v1766
    %v1792 = vrcp.pop %v1768
    %v1793 = vrcp.pop %v1770
    %v1794 = vrcp.pop %v1772
    %v1795 = vrcp.pop %v1774
    %v1796 = vrcp.pop %v1776
    %v1797 = vrcp.pop %v1778
    %v1798 = vrcp.pop %v1780
    %v1799 = vrcp.pop %v1782
    %v1800 = vrcp.pop %v1784
    %v1801 = vmul.f32 %v1691, %v1785
    %v1802 = vmul.f32 %v1694, %v1786
    %v1803 = vmul.f32 %v1699, %v1787
    %v1804 = vmul.f32 %v1702, %v1788
    %v1805 = vmul.f32 %v1707, %v1789
    %v1806 = vmul.f32 %v1710, %v1790
    %v1807 = vmul.f32 %v1715, %v1791
    %v1808 = vmul.f32 %v1718, %v1792
    %v1809 = vmul.f32 %v1723, %v1793
    %v1810 = vmul.f32 %v1726, %v1794
    %v1811 = vmul.f32 %v1731, %v1795
    %v1812 = vmul.f32 %v1734, %v1796
    %v1813 = vmul.f32 %v1739, %v1797
    %v1814 = vmul.f32 %v1742, %v1798
    %v1815 = vmul.f32 %v1747, %v1799
    %v1816 = vmul.f32 %v1750, %v1800
    %v1818 = vsel %vm1406, %v916, 0
    %v1821 = vsel %vm1406, %v917, 0
    %v1824 = vsel %vm1406, %v918, 0
    %v1827 = vsel %vm1406, %v919, 0
    %v1830 = vsel %vm1406, %v920, 0
    %v1833 = vsel %vm1406, %v921, 0
    %v1836 = vsel %vm1406, %v922, 0
    %v1839 = vsel %vm1406, %v923, 0
    %v1842 = vsel %vm1406, %v1157, 0
    %v1845 = vsel %vm1406, %v1158, 0
    %v1848 = vsel %vm1406, %v1159, 0
    %v1851 = vsel %vm1406, %v1160, 0
    %v1854 = vsel %vm1406, %v1161, 0
    %v1857 = vsel %vm1406, %v1162, 0
    %v1860 = vsel %vm1406, %v1163, 0
    %v1863 = vsel %vm1406, %v1164, 0
    %1865 = vmatprep.subr.bf16.mxu0 0
    %1866 = vmatpush1.bf16.xpose.msra.mxu0 %v1842
    %1867 = vmatprep.subr.bf16.mxu0 0
    %1868 = vmatpush1.bf16.xpose.msra.mxu0 %v1845
    %1869 = vmatprep.subr.bf16.mxu0 0
    %1870 = vmatpush1.bf16.xpose.msra.mxu0 %v1848
    %1871 = vmatprep.subr.bf16.mxu0 0
    %1872 = vmatpush1.bf16.xpose.msra.mxu0 %v1851
    %1873 = vmatprep.subr.bf16.mxu0 0
    %1874 = vmatpush1.bf16.xpose.msra.mxu0 %v1854
    %1875 = vmatprep.subr.bf16.mxu0 0
    %1876 = vmatpush1.bf16.xpose.msra.mxu0 %v1857
    %1877 = vmatprep.subr.bf16.mxu0 0
    %1878 = vmatpush1.bf16.xpose.msra.mxu0 %v1860
    %1879 = vmatprep.subr.bf16.mxu0 0
    %1880 = vmatpush1.bf16.xpose.msra.mxu0 %v1863
    %1881 = vmatprep.subr.bf16.mxu0 0
    %1882 = vmatpush1.bf16.xpose.msra.mxu0 0
    %1883 = vmatprep.subr.bf16.mxu0 0
    %1884 = vmatpush1.bf16.xpose.msra.mxu0 0
    %1885 = vmatprep.subr.bf16.mxu0 0
    %1886 = vmatpush1.bf16.xpose.msra.mxu0 0
    %1887 = vmatprep.subr.bf16.mxu0 0
    %1888 = vmatpush1.bf16.xpose.msra.mxu0 0
    %1889 = vmatprep.subr.bf16.mxu0 0
    %1890 = vmatpush1.bf16.xpose.msra.mxu0 0
    %1891 = vmatprep.subr.bf16.mxu0 0
    %1892 = vmatpush1.bf16.xpose.msra.mxu0 0
    %1893 = vmatprep.subr.bf16.mxu0 0
    %1894 = vmatpush1.bf16.xpose.msra.mxu0 0
    %1895 = vmatprep.subr.bf16.mxu0 0
    %1896 = vmatpush1.bf16.xpose.msra.mxu0 0
    %1897 = vmatprep.mubr.bf16.mxu0 0
    %1898 = vmatmul.mubr.bf16.gmra.mrb[0].mxu0 %v1818
    %v1899 = vpop.f32.mrb[0].mxu0
    %v1900 = vadd.f32 0.0, %v1899
    %v1901 = vpop.f32.mrb[0].mxu0
    %v1902 = vpop.f32.mrb[0].mxu0
    %v1903 = vadd.f32 0.0, %v1902
    %v1904 = vpop.f32.mrb[0].mxu0
    %1905 = vmatprep.mubr.bf16.mxu0 0
    %1906 = vmatmul.mubr.bf16.gmra.mrb[0].mxu0 %v1821
    %v1907 = vpop.f32.mrb[0].mxu0
    %v1908 = vadd.f32 0.0, %v1907
    %v1909 = vpop.f32.mrb[0].mxu0
    %v1910 = vpop.f32.mrb[0].mxu0
    %v1911 = vadd.f32 0.0, %v1910
    %v1912 = vpop.f32.mrb[0].mxu0
    %1913 = vmatprep.mubr.bf16.mxu0 0
    %1914 = vmatmul.mubr.bf16.gmra.mrb[0].mxu0 %v1824
    %v1915 = vpop.f32.mrb[0].mxu0
    %v1916 = vadd.f32 0.0, %v1915
    %v1917 = vpop.f32.mrb[0].mxu0
    %v1918 = vpop.f32.mrb[0].mxu0
    %v1919 = vadd.f32 0.0, %v1918
    %v1920 = vpop.f32.mrb[0].mxu0
    %1921 = vmatprep.mubr.bf16.mxu0 0
    %1922 = vmatmul.mubr.bf16.gmra.mrb[0].mxu0 %v1827
    %v1923 = vpop.f32.mrb[0].mxu0
    %v1924 = vadd.f32 0.0, %v1923
    %v1925 = vpop.f32.mrb[0].mxu0
    %v1926 = vpop.f32.mrb[0].mxu0
    %v1927 = vadd.f32 0.0, %v1926
    %v1928 = vpop.f32.mrb[0].mxu0
    %1929 = vmatprep.mubr.bf16.mxu0 0
    %1930 = vmatmul.mubr.bf16.gmra.mrb[0].mxu0 %v1830
    %v1931 = vpop.f32.mrb[0].mxu0
    %v1932 = vadd.f32 0.0, %v1931
    %v1933 = vpop.f32.mrb[0].mxu0
    %v1934 = vpop.f32.mrb[0].mxu0
    %v1935 = vadd.f32 0.0, %v1934
    %v1936 = vpop.f32.mrb[0].mxu0
    %1937 = vmatprep.mubr.bf16.mxu0 0
    %1938 = vmatmul.mubr.bf16.gmra.mrb[0].mxu0 %v1833
    %v1939 = vpop.f32.mrb[0].mxu0
    %v1940 = vadd.f32 0.0, %v1939
    %v1941 = vpop.f32.mrb[0].mxu0
    %v1942 = vpop.f32.mrb[0].mxu0
    %v1943 = vadd.f32 0.0, %v1942
    %v1944 = vpop.f32.mrb[0].mxu0
    %1945 = vmatprep.mubr.bf16.mxu0 0
    %1946 = vmatmul.mubr.bf16.gmra.mrb[0].mxu0 %v1836
    %v1947 = vpop.f32.mrb[0].mxu0
    %v1948 = vadd.f32 0.0, %v1947
    %v1949 = vpop.f32.mrb[0].mxu0
    %v1950 = vpop.f32.mrb[0].mxu0
    %v1951 = vadd.f32 0.0, %v1950
    %v1952 = vpop.f32.mrb[0].mxu0
    %1953 = vmatprep.mubr.bf16.mxu0 0
    %1954 = vmatmul.mubr.bf16.gmra.mrb[0].mxu0 %v1839
    %v1955 = vpop.f32.mrb[0].mxu0
    %v1956 = vadd.f32 0.0, %v1955
    %v1957 = vpop.f32.mrb[0].mxu0
    %v1958 = vpop.f32.mrb[0].mxu0
    %v1959 = vadd.f32 0.0, %v1958
    %v1960 = vpop.f32.mrb[0].mxu0
    %1961 = vdwg.mxu0
    %v1962 = vsel %vm667, %v1900, -inf
    %v1963 = vsel %vm668, %v1903, -inf
    %v1964 = vsel %vm669, %v1908, -inf
    %v1965 = vsel %vm670, %v1911, -inf
    %v1966 = vsel %vm671, %v1916, -inf
    %v1967 = vsel %vm672, %v1919, -inf
    %v1968 = vsel %vm673, %v1924, -inf
    %v1969 = vsel %vm674, %v1927, -inf
    %v1970 = vsel %vm675, %v1932, -inf
    %v1971 = vsel %vm676, %v1935, -inf
    %v1972 = vsel %vm677, %v1940, -inf
    %v1973 = vsel %vm678, %v1943, -inf
    %v1974 = vsel %vm679, %v1948, -inf
    %v1975 = vsel %vm680, %v1951, -inf
    %v1976 = vsel %vm681, %v1956, -inf
    %v1977 = vsel %vm682, %v1959, -inf
    %1978 = vmax.xlane.f32.xlu0 %v1962
    %v1979 = vpop.xlane.xlu0 %1978
    %1980 = vmax.xlane.f32.xlu0 %v1963
    %v1981 = vpop.xlane.xlu0 %1980
    %1982 = vmax.xlane.f32.xlu0 %v1964
    %v1983 = vpop.xlane.xlu0 %1982
    %1984 = vmax.xlane.f32.xlu0 %v1965
    %v1985 = vpop.xlane.xlu0 %1984
    %1986 = vmax.xlane.f32.xlu0 %v1966
    %v1987 = vpop.xlane.xlu0 %1986
    %1988 = vmax.xlane.f32.xlu0 %v1967
    %v1989 = vpop.xlane.xlu0 %1988
    %1990 = vmax.xlane.f32.xlu0 %v1968
    %v1991 = vpop.xlane.xlu0 %1990
    %1992 = vmax.xlane.f32.xlu0 %v1969
    %v1993 = vpop.xlane.xlu0 %1992
    %1994 = vmax.xlane.f32.xlu0 %v1970
    %v1995 = vpop.xlane.xlu0 %1994
    %1996 = vmax.xlane.f32.xlu0 %v1971
    %v1997 = vpop.xlane.xlu0 %1996
    %1998 = vmax.xlane.f32.xlu0 %v1972
    %v1999 = vpop.xlane.xlu0 %1998
    %2000 = vmax.xlane.f32.xlu0 %v1973
    %v2001 = vpop.xlane.xlu0 %2000
    %2002 = vmax.xlane.f32.xlu0 %v1974
    %v2003 = vpop.xlane.xlu0 %2002
    %2004 = vmax.xlane.f32.xlu0 %v1975
    %v2005 = vpop.xlane.xlu0 %2004
    %2006 = vmax.xlane.f32.xlu0 %v1976
    %v2007 = vpop.xlane.xlu0 %2006
    %2008 = vmax.xlane.f32.xlu0 %v1977
    %v2009 = vpop.xlane.xlu0 %2008
    %v2010 = vsub.f32 %v1962, %v1979
    %v2011 = vsub.f32 %v1963, %v1981
    %v2012 = vsub.f32 %v1964, %v1983
    %v2013 = vsub.f32 %v1965, %v1985
    %v2014 = vsub.f32 %v1966, %v1987
    %v2015 = vsub.f32 %v1967, %v1989
    %v2016 = vsub.f32 %v1968, %v1991
    %v2017 = vsub.f32 %v1969, %v1993
    %v2018 = vsub.f32 %v1970, %v1995
    %v2019 = vsub.f32 %v1971, %v1997
    %v2020 = vsub.f32 %v1972, %v1999
    %v2021 = vsub.f32 %v1973, %v2001
    %v2022 = vsub.f32 %v1974, %v2003
    %v2023 = vsub.f32 %v1975, %v2005
    %v2024 = vsub.f32 %v1976, %v2007
    %v2025 = vsub.f32 %v1977, %v2009
    %v2026 = vmul.f32 %v2010, 1.442695
    %v2027 = vpow.pop %v2026
    %v2028 = vmul.f32 %v2011, 1.442695
    %v2029 = vpow.pop %v2028
    %v2030 = vmul.f32 %v2012, 1.442695
    %v2031 = vpow.pop %v2030
    %v2032 = vmul.f32 %v2013, 1.442695
    %v2033 = vpow.pop %v2032
    %v2034 = vmul.f32 %v2014, 1.442695
    %v2035 = vpow.pop %v2034
    %v2036 = vmul.f32 %v2015, 1.442695
    %v2037 = vpow.pop %v2036
    %v2038 = vmul.f32 %v2016, 1.442695
    %v2039 = vpow.pop %v2038
    %v2040 = vmul.f32 %v2017, 1.442695
    %v2041 = vpow.pop %v2040
    %v2042 = vmul.f32 %v2018, 1.442695
    %v2043 = vpow.pop %v2042
    %v2044 = vmul.f32 %v2019, 1.442695
    %v2045 = vpow.pop %v2044
    %v2046 = vmul.f32 %v2020, 1.442695
    %v2047 = vpow.pop %v2046
    %v2048 = vmul.f32 %v2021, 1.442695
    %v2049 = vpow.pop %v2048
    %v2050 = vmul.f32 %v2022, 1.442695
    %v2051 = vpow.pop %v2050
    %v2052 = vmul.f32 %v2023, 1.442695
    %v2053 = vpow.pop %v2052
    %v2054 = vmul.f32 %v2024, 1.442695
    %v2055 = vpow.pop %v2054
    %v2056 = vmul.f32 %v2025, 1.442695
    %v2057 = vpow.pop %v2056
    %v2058 = vpack.c.bf16 %v2029, %v2027
    %v2059 = vpack.c.bf16 %v2033, %v2031
    %v2060 = vpack.c.bf16 %v2037, %v2035
    %v2061 = vpack.c.bf16 %v2041, %v2039
    %v2062 = vpack.c.bf16 %v2045, %v2043
    %v2063 = vpack.c.bf16 %v2049, %v2047
    %v2064 = vpack.c.bf16 %v2053, %v2051
    %v2065 = vpack.c.bf16 %v2057, %v2055
    %2066 = vmatprep.subr.bf16.mxu0 0
    %2067 = vmatpush1.bf16.msra.mxu0 %v1398
    %2068 = vmatprep.subr.bf16.mxu0 0
    %2069 = vmatpush1.bf16.msra.mxu0 %v1399
    %2070 = vmatprep.subr.bf16.mxu0 0
    %2071 = vmatpush1.bf16.msra.mxu0 %v1400
    %2072 = vmatprep.subr.bf16.mxu0 0
    %2073 = vmatpush1.bf16.msra.mxu0 %v1401
    %2074 = vmatprep.subr.bf16.mxu0 0
    %2075 = vmatpush1.bf16.msra.mxu0 %v1402
    %2076 = vmatprep.subr.bf16.mxu0 0
    %2077 = vmatpush1.bf16.msra.mxu0 %v1403
    %2078 = vmatprep.subr.bf16.mxu0 0
    %2079 = vmatpush1.bf16.msra.mxu0 %v1404
    %2080 = vmatprep.subr.bf16.mxu0 0
    %2081 = vmatpush1.bf16.msra.mxu0 %v1405
    %2082 = vmatprep.subr.bf16.mxu0 0
    %2083 = vmatpush1.bf16.msra.mxu0 0
    %2084 = vmatprep.subr.bf16.mxu0 0
    %2085 = vmatpush1.bf16.msra.mxu0 0
    %2086 = vmatprep.subr.bf16.mxu0 0
    %2087 = vmatpush1.bf16.msra.mxu0 0
    %2088 = vmatprep.subr.bf16.mxu0 0
    %2089 = vmatpush1.bf16.msra.mxu0 0
    %2090 = vmatprep.subr.bf16.mxu0 0
    %2091 = vmatpush1.bf16.msra.mxu0 0
    %2092 = vmatprep.subr.bf16.mxu0 0
    %2093 = vmatpush1.bf16.msra.mxu0 0
    %2094 = vmatprep.subr.bf16.mxu0 0
    %2095 = vmatpush1.bf16.msra.mxu0 0
    %2096 = vmatprep.subr.bf16.mxu0 0
    %2097 = vmatpush1.bf16.msra.mxu0 0
    %2098 = vmatprep.mubr.bf16.mxu0 0
    %2099 = vmatmul.mubr.bf16.gmra.mrb[0].mxu0 %v2058
    %v2100 = vpop.f32.mrb[0].mxu0
    %v2101 = vadd.f32 0.0, %v2100
    %v2102 = vpop.f32.mrb[0].mxu0
    %v2103 = vpop.f32.mrb[0].mxu0
    %v2104 = vadd.f32 0.0, %v2103
    %v2105 = vpop.f32.mrb[0].mxu0
    %2106 = vmatprep.mubr.bf16.mxu0 0
    %2107 = vmatmul.mubr.bf16.gmra.mrb[0].mxu0 %v2059
    %v2108 = vpop.f32.mrb[0].mxu0
    %v2109 = vadd.f32 0.0, %v2108
    %v2110 = vpop.f32.mrb[0].mxu0
    %v2111 = vpop.f32.mrb[0].mxu0
    %v2112 = vadd.f32 0.0, %v2111
    %v2113 = vpop.f32.mrb[0].mxu0
    %2114 = vmatprep.mubr.bf16.mxu0 0
    %2115 = vmatmul.mubr.bf16.gmra.mrb[0].mxu0 %v2060
    %v2116 = vpop.f32.mrb[0].mxu0
    %v2117 = vadd.f32 0.0, %v2116
    %v2118 = vpop.f32.mrb[0].mxu0
    %v2119 = vpop.f32.mrb[0].mxu0
    %v2120 = vadd.f32 0.0, %v2119
    %v2121 = vpop.f32.mrb[0].mxu0
    %2122 = vmatprep.mubr.bf16.mxu0 0
    %2123 = vmatmul.mubr.bf16.gmra.mrb[0].mxu0 %v2061
    %v2124 = vpop.f32.mrb[0].mxu0
    %v2125 = vadd.f32 0.0, %v2124
    %v2126 = vpop.f32.mrb[0].mxu0
    %v2127 = vpop.f32.mrb[0].mxu0
    %v2128 = vadd.f32 0.0, %v2127
    %v2129 = vpop.f32.mrb[0].mxu0
    %2130 = vmatprep.mubr.bf16.mxu0 0
    %2131 = vmatmul.mubr.bf16.gmra.mrb[0].mxu0 %v2062
    %v2132 = vpop.f32.mrb[0].mxu0
    %v2133 = vadd.f32 0.0, %v2132
    %v2134 = vpop.f32.mrb[0].mxu0
    %v2135 = vpop.f32.mrb[0].mxu0
    %v2136 = vadd.f32 0.0, %v2135
    %v2137 = vpop.f32.mrb[0].mxu0
    %2138 = vmatprep.mubr.bf16.mxu0 0
    %2139 = vmatmul.mubr.bf16.gmra.mrb[0].mxu0 %v2063
    %v2140 = vpop.f32.mrb[0].mxu0
    %v2141 = vadd.f32 0.0, %v2140
    %v2142 = vpop.f32.mrb[0].mxu0
    %v2143 = vpop.f32.mrb[0].mxu0
    %v2144 = vadd.f32 0.0, %v2143
    %v2145 = vpop.f32.mrb[0].mxu0
    %2146 = vmatprep.mubr.bf16.mxu0 0
    %2147 = vmatmul.mubr.bf16.gmra.mrb[0].mxu0 %v2064
    %v2148 = vpop.f32.mrb[0].mxu0
    %v2149 = vadd.f32 0.0, %v2148
    %v2150 = vpop.f32.mrb[0].mxu0
    %v2151 = vpop.f32.mrb[0].mxu0
    %v2152 = vadd.f32 0.0, %v2151
    %v2153 = vpop.f32.mrb[0].mxu0
    %2154 = vmatprep.mubr.bf16.mxu0 0
    %2155 = vmatmul.mubr.bf16.gmra.mrb[0].mxu0 %v2065
    %v2156 = vpop.f32.mrb[0].mxu0
    %v2157 = vadd.f32 0.0, %v2156
    %v2158 = vpop.f32.mrb[0].mxu0
    %v2159 = vpop.f32.mrb[0].mxu0
    %v2160 = vadd.f32 0.0, %v2159
    %v2161 = vpop.f32.mrb[0].mxu0
    %2162 = vdwg.mxu0
    %2163 = vadd.xlane.f32.xlu0 %v2027
    %v2164 = vpop.xlane.xlu0 %2163
    %2165 = vadd.xlane.f32.xlu0 %v2029
    %v2166 = vpop.xlane.xlu0 %2165
    %2167 = vadd.xlane.f32.xlu0 %v2031
    %v2168 = vpop.xlane.xlu0 %2167
    %2169 = vadd.xlane.f32.xlu0 %v2033
    %v2170 = vpop.xlane.xlu0 %2169
    %2171 = vadd.xlane.f32.xlu0 %v2035
    %v2172 = vpop.xlane.xlu0 %2171
    %2173 = vadd.xlane.f32.xlu0 %v2037
    %v2174 = vpop.xlane.xlu0 %2173
    %2175 = vadd.xlane.f32.xlu0 %v2039
    %v2176 = vpop.xlane.xlu0 %2175
    %2177 = vadd.xlane.f32.xlu0 %v2041
    %v2178 = vpop.xlane.xlu0 %2177
    %2179 = vadd.xlane.f32.xlu0 %v2043
    %v2180 = vpop.xlane.xlu0 %2179
    %2181 = vadd.xlane.f32.xlu0 %v2045
    %v2182 = vpop.xlane.xlu0 %2181
    %2183 = vadd.xlane.f32.xlu0 %v2047
    %v2184 = vpop.xlane.xlu0 %2183
    %2185 = vadd.xlane.f32.xlu0 %v2049
    %v2186 = vpop.xlane.xlu0 %2185
    %2187 = vadd.xlane.f32.xlu0 %v2051
    %v2188 = vpop.xlane.xlu0 %2187
    %2189 = vadd.xlane.f32.xlu0 %v2053
    %v2190 = vpop.xlane.xlu0 %2189
    %2191 = vadd.xlane.f32.xlu0 %v2055
    %v2192 = vpop.xlane.xlu0 %2191
    %2193 = vadd.xlane.f32.xlu0 %v2057
    %v2194 = vpop.xlane.xlu0 %2193
    %v2195 = vrcp.pop %v2164
    %v2196 = vrcp.pop %v2166
    %v2197 = vrcp.pop %v2168
    %v2198 = vrcp.pop %v2170
    %v2199 = vrcp.pop %v2172
    %v2200 = vrcp.pop %v2174
    %v2201 = vrcp.pop %v2176
    %v2202 = vrcp.pop %v2178
    %v2203 = vrcp.pop %v2180
    %v2204 = vrcp.pop %v2182
    %v2205 = vrcp.pop %v2184
    %v2206 = vrcp.pop %v2186
    %v2207 = vrcp.pop %v2188
    %v2208 = vrcp.pop %v2190
    %v2209 = vrcp.pop %v2192
    %v2210 = vrcp.pop %v2194
    %v2211 = vmul.f32 %v2101, %v2195
    %v2212 = vmul.f32 %v2104, %v2196
    %v2213 = vmul.f32 %v2109, %v2197
    %v2214 = vmul.f32 %v2112, %v2198
    %v2215 = vmul.f32 %v2117, %v2199
    %v2216 = vmul.f32 %v2120, %v2200
    %v2217 = vmul.f32 %v2125, %v2201
    %v2218 = vmul.f32 %v2128, %v2202
    %v2219 = vmul.f32 %v2133, %v2203
    %v2220 = vmul.f32 %v2136, %v2204
    %v2221 = vmul.f32 %v2141, %v2205
    %v2222 = vmul.f32 %v2144, %v2206
    %v2223 = vmul.f32 %v2149, %v2207
    %v2224 = vmul.f32 %v2152, %v2208
    %v2225 = vmul.f32 %v2157, %v2209
    %v2226 = vmul.f32 %v2160, %v2210
    %v2227 = vpack.c.bf16 %v1802, %v1801
    %v2228 = vpack.c.bf16 %v1804, %v1803
    %v2229 = vpack.c.bf16 %v1806, %v1805
    %v2230 = vpack.c.bf16 %v1808, %v1807
    %v2231 = vpack.c.bf16 %v1810, %v1809
    %v2232 = vpack.c.bf16 %v1812, %v1811
    %v2233 = vpack.c.bf16 %v1814, %v1813
    %v2234 = vpack.c.bf16 %v1816, %v1815
    %v2235 = vpack.c.bf16 %v2212, %v2211
    %v2236 = vpack.c.bf16 %v2214, %v2213
    %v2237 = vpack.c.bf16 %v2216, %v2215
    %v2238 = vpack.c.bf16 %v2218, %v2217
    %v2239 = vpack.c.bf16 %v2220, %v2219
    %v2240 = vpack.c.bf16 %v2222, %v2221
    %v2241 = vpack.c.bf16 %v2224, %v2223
    %v2242 = vpack.c.bf16 %v2226, %v2225
    %v2243 = vld [vmem:[%s6] sm:$0xf]
    %v2244 = vld [vmem:[%s6 + $0x4] sm:$0xf]
    %v2245 = vld [vmem:[%s6 + $0x8] sm:$0xf]
    %v2246 = vld [vmem:[%s6 + $0xc] sm:$0xf]
    %s2247 = scalar_lea.vmem %s3, 64
    %v2248 = vld [vmem:[%s2247] sm:$0xf]
    %v2249 = vld [vmem:[%s2247 + $0x4] sm:$0xf]
    %v2250 = vld [vmem:[%s2247 + $0x8] sm:$0xf]
    %v2251 = vld [vmem:[%s2247 + $0xc] sm:$0xf]
    %v2252 = vld [vmem:[%s2247 + $0x10] sm:$0xf]
    %v2253 = vld [vmem:[%s2247 + $0x14] sm:$0xf]
    %v2254 = vld [vmem:[%s2247 + $0x18] sm:$0xf]
    %v2255 = vld [vmem:[%s2247 + $0x1c] sm:$0xf]
    %v2256 = vld [vmem:[%s2247 + $0x20] sm:$0xf]
    %v2257 = vld [vmem:[%s2247 + $0x24] sm:$0xf]
    %v2258 = vld [vmem:[%s2247 + $0x28] sm:$0xf]
    %v2259 = vld [vmem:[%s2247 + $0x2c] sm:$0xf]
    %v2260 = vld [vmem:[%s2247 + $0x30] sm:$0xf]
    %v2261 = vld [vmem:[%s2247 + $0x34] sm:$0xf]
    %v2262 = vld [vmem:[%s2247 + $0x38] sm:$0xf]
    %v2263 = vld [vmem:[%s2247 + $0x3c] sm:$0xf]
    %v2280 = vunpack.c.l.b16 %v2248
    %v2281 = vunpack.c.l.b16 %v2249
    %v2282 = vunpack.c.l.b16 %v2250
    %v2283 = vunpack.c.l.b16 %v2251
    %v2284 = vunpack.c.l.b16 %v2252
    %v2285 = vunpack.c.l.b16 %v2253
    %v2286 = vunpack.c.l.b16 %v2254
    %v2287 = vunpack.c.l.b16 %v2255
    %v2288 = vunpack.c.l.b16 %v2256
    %v2289 = vunpack.c.l.b16 %v2257
    %v2290 = vunpack.c.l.b16 %v2258
    %v2291 = vunpack.c.l.b16 %v2259
    %v2292 = vunpack.c.l.b16 %v2260
    %v2293 = vunpack.c.l.b16 %v2261
    %v2294 = vunpack.c.l.b16 %v2262
    %v2295 = vunpack.c.l.b16 %v2263
    %v2296 = vpack.c.b16 %v2281, %v2280
    %v2297 = vpack.c.b16 %v2283, %v2282
    %v2298 = vpack.c.b16 %v2285, %v2284
    %v2299 = vpack.c.b16 %v2287, %v2286
    %v2300 = vpack.c.b16 %v2289, %v2288
    %v2301 = vpack.c.b16 %v2291, %v2290
    %v2302 = vpack.c.b16 %v2293, %v2292
    %v2303 = vpack.c.b16 %v2295, %v2294
    %2312 = vmatprep.subr.bf16.mxu0 0
    %2313 = vmatpush1.bf16.msra.mxu0 %v2296
    %2314 = vmatprep.subr.bf16.mxu0 0
    %2315 = vmatpush1.bf16.msra.mxu0 %v2297
    %2316 = vmatprep.subr.bf16.mxu0 0
    %2317 = vmatpush1.bf16.msra.mxu0 %v2298
    %2318 = vmatprep.subr.bf16.mxu0 0
    %2319 = vmatpush1.bf16.msra.mxu0 %v2299
    %2320 = vmatprep.subr.bf16.mxu0 0
    %2321 = vmatpush1.bf16.msra.mxu0 %v2300
    %2322 = vmatprep.subr.bf16.mxu0 0
    %2323 = vmatpush1.bf16.msra.mxu0 %v2301
    %2324 = vmatprep.subr.bf16.mxu0 0
    %2325 = vmatpush1.bf16.msra.mxu0 %v2302
    %2326 = vmatprep.subr.bf16.mxu0 0
    %2327 = vmatpush1.bf16.msra.mxu0 %v2303
    %2328 = vmatprep.subr.bf16.mxu0 0
    %2329 = vmatpush1.bf16.msra.mxu0 0
    %2330 = vmatprep.subr.bf16.mxu0 0
    %2331 = vmatpush1.bf16.msra.mxu0 0
    %2332 = vmatprep.subr.bf16.mxu0 0
    %2333 = vmatpush1.bf16.msra.mxu0 0
    %2334 = vmatprep.subr.bf16.mxu0 0
    %2335 = vmatpush1.bf16.msra.mxu0 0
    %2336 = vmatprep.subr.bf16.mxu0 0
    %2337 = vmatpush1.bf16.msra.mxu0 0
    %2338 = vmatprep.subr.bf16.mxu0 0
    %2339 = vmatpush1.bf16.msra.mxu0 0
    %2340 = vmatprep.subr.bf16.mxu0 0
    %2341 = vmatpush1.bf16.msra.mxu0 0
    %2342 = vmatprep.subr.bf16.mxu0 0
    %2343 = vmatpush1.bf16.msra.mxu0 0
    %2344 = vmatprep.mubr.bf16.mxu0 0
    %2345 = vmatmul.mubr.bf16.gmra.mrb[0].mxu0 %v632
    %v2346 = vpop.f32.mrb[0].mxu0
    %v2347 = vadd.f32 0.0, %v2346
    %v2348 = vpop.f32.mrb[0].mxu0
    %v2349 = vpop.f32.mrb[0].mxu0
    %v2350 = vadd.f32 0.0, %v2349
    %v2351 = vpop.f32.mrb[0].mxu0
    %2352 = vmatprep.mubr.bf16.mxu0 0
    %2353 = vmatmul.mubr.bf16.gmra.mrb[0].mxu0 %v633
    %v2354 = vpop.f32.mrb[0].mxu0
    %v2355 = vadd.f32 0.0, %v2354
    %v2356 = vpop.f32.mrb[0].mxu0
    %v2357 = vpop.f32.mrb[0].mxu0
    %v2358 = vadd.f32 0.0, %v2357
    %v2359 = vpop.f32.mrb[0].mxu0
    %2360 = vmatprep.mubr.bf16.mxu0 0
    %2361 = vmatmul.mubr.bf16.gmra.mrb[0].mxu0 %v634
    %v2362 = vpop.f32.mrb[0].mxu0
    %v2363 = vadd.f32 0.0, %v2362
    %v2364 = vpop.f32.mrb[0].mxu0
    %v2365 = vpop.f32.mrb[0].mxu0
    %v2366 = vadd.f32 0.0, %v2365
    %v2367 = vpop.f32.mrb[0].mxu0
    %2368 = vmatprep.mubr.bf16.mxu0 0
    %2369 = vmatmul.mubr.bf16.gmra.mrb[0].mxu0 %v635
    %v2370 = vpop.f32.mrb[0].mxu0
    %v2371 = vadd.f32 0.0, %v2370
    %v2372 = vpop.f32.mrb[0].mxu0
    %v2373 = vpop.f32.mrb[0].mxu0
    %v2374 = vadd.f32 0.0, %v2373
    %v2375 = vpop.f32.mrb[0].mxu0
    %2376 = vmatprep.mubr.bf16.mxu0 0
    %2377 = vmatmul.mubr.bf16.gmra.mrb[0].mxu0 %v636
    %v2378 = vpop.f32.mrb[0].mxu0
    %v2379 = vadd.f32 0.0, %v2378
    %v2380 = vpop.f32.mrb[0].mxu0
    %v2381 = vpop.f32.mrb[0].mxu0
    %v2382 = vadd.f32 0.0, %v2381
    %v2383 = vpop.f32.mrb[0].mxu0
    %2384 = vmatprep.mubr.bf16.mxu0 0
    %2385 = vmatmul.mubr.bf16.gmra.mrb[0].mxu0 %v637
    %v2386 = vpop.f32.mrb[0].mxu0
    %v2387 = vadd.f32 0.0, %v2386
    %v2388 = vpop.f32.mrb[0].mxu0
    %v2389 = vpop.f32.mrb[0].mxu0
    %v2390 = vadd.f32 0.0, %v2389
    %v2391 = vpop.f32.mrb[0].mxu0
    %2392 = vmatprep.mubr.bf16.mxu0 0
    %2393 = vmatmul.mubr.bf16.gmra.mrb[0].mxu0 %v638
    %v2394 = vpop.f32.mrb[0].mxu0
    %v2395 = vadd.f32 0.0, %v2394
    %v2396 = vpop.f32.mrb[0].mxu0
    %v2397 = vpop.f32.mrb[0].mxu0
    %v2398 = vadd.f32 0.0, %v2397
    %v2399 = vpop.f32.mrb[0].mxu0
    %2400 = vmatprep.mubr.bf16.mxu0 0
    %2401 = vmatmul.mubr.bf16.gmra.mrb[0].mxu0 %v639
    %v2402 = vpop.f32.mrb[0].mxu0
    %v2403 = vadd.f32 0.0, %v2402
    %v2404 = vpop.f32.mrb[0].mxu0
    %v2405 = vpop.f32.mrb[0].mxu0
    %v2406 = vadd.f32 0.0, %v2405
    %v2407 = vpop.f32.mrb[0].mxu0
    %2408 = vmatprep.mubr.bf16.mxu0 0
    %2409 = vmatmul.mubr.bf16.gmra.mrb[0].mxu0 %v640
    %v2410 = vpop.f32.mrb[0].mxu0
    %v2411 = vadd.f32 0.0, %v2410
    %v2412 = vpop.f32.mrb[0].mxu0
    %v2413 = vpop.f32.mrb[0].mxu0
    %v2414 = vadd.f32 0.0, %v2413
    %v2415 = vpop.f32.mrb[0].mxu0
    %2416 = vmatprep.mubr.bf16.mxu0 0
    %2417 = vmatmul.mubr.bf16.gmra.mrb[0].mxu0 %v641
    %v2418 = vpop.f32.mrb[0].mxu0
    %v2419 = vadd.f32 0.0, %v2418
    %v2420 = vpop.f32.mrb[0].mxu0
    %v2421 = vpop.f32.mrb[0].mxu0
    %v2422 = vadd.f32 0.0, %v2421
    %v2423 = vpop.f32.mrb[0].mxu0
    %2424 = vmatprep.mubr.bf16.mxu0 0
    %2425 = vmatmul.mubr.bf16.gmra.mrb[0].mxu0 %v642
    %v2426 = vpop.f32.mrb[0].mxu0
    %v2427 = vadd.f32 0.0, %v2426
    %v2428 = vpop.f32.mrb[0].mxu0
    %v2429 = vpop.f32.mrb[0].mxu0
    %v2430 = vadd.f32 0.0, %v2429
    %v2431 = vpop.f32.mrb[0].mxu0
    %2432 = vmatprep.mubr.bf16.mxu0 0
    %2433 = vmatmul.mubr.bf16.gmra.mrb[0].mxu0 %v643
    %v2434 = vpop.f32.mrb[0].mxu0
    %v2435 = vadd.f32 0.0, %v2434
    %v2436 = vpop.f32.mrb[0].mxu0
    %v2437 = vpop.f32.mrb[0].mxu0
    %v2438 = vadd.f32 0.0, %v2437
    %v2439 = vpop.f32.mrb[0].mxu0
    %2440 = vmatprep.mubr.bf16.mxu0 0
    %2441 = vmatmul.mubr.bf16.gmra.mrb[0].mxu0 %v644
    %v2442 = vpop.f32.mrb[0].mxu0
    %v2443 = vadd.f32 0.0, %v2442
    %v2444 = vpop.f32.mrb[0].mxu0
    %v2445 = vpop.f32.mrb[0].mxu0
    %v2446 = vadd.f32 0.0, %v2445
    %v2447 = vpop.f32.mrb[0].mxu0
    %2448 = vmatprep.mubr.bf16.mxu0 0
    %2449 = vmatmul.mubr.bf16.gmra.mrb[0].mxu0 %v645
    %v2450 = vpop.f32.mrb[0].mxu0
    %v2451 = vadd.f32 0.0, %v2450
    %v2452 = vpop.f32.mrb[0].mxu0
    %v2453 = vpop.f32.mrb[0].mxu0
    %v2454 = vadd.f32 0.0, %v2453
    %v2455 = vpop.f32.mrb[0].mxu0
    %2456 = vmatprep.mubr.bf16.mxu0 0
    %2457 = vmatmul.mubr.bf16.gmra.mrb[0].mxu0 %v646
    %v2458 = vpop.f32.mrb[0].mxu0
    %v2459 = vadd.f32 0.0, %v2458
    %v2460 = vpop.f32.mrb[0].mxu0
    %v2461 = vpop.f32.mrb[0].mxu0
    %v2462 = vadd.f32 0.0, %v2461
    %v2463 = vpop.f32.mrb[0].mxu0
    %2464 = vmatprep.mubr.bf16.mxu0 0
    %2465 = vmatmul.mubr.bf16.gmra.mrb[0].mxu0 %v647
    %v2466 = vpop.f32.mrb[0].mxu0
    %v2467 = vadd.f32 0.0, %v2466
    %v2468 = vpop.f32.mrb[0].mxu0
    %v2469 = vpop.f32.mrb[0].mxu0
    %v2470 = vadd.f32 0.0, %v2469
    %v2471 = vpop.f32.mrb[0].mxu0
    %2472 = vdwg.mxu0
    %v2473 = vpack.c.bf16 %v2350, %v2347
    %v2474 = vpack.c.bf16 %v2358, %v2355
    %v2475 = vpack.c.bf16 %v2366, %v2363
    %v2476 = vpack.c.bf16 %v2374, %v2371
    %v2477 = vpack.c.bf16 %v2382, %v2379
    %v2478 = vpack.c.bf16 %v2390, %v2387
    %v2479 = vpack.c.bf16 %v2398, %v2395
    %v2480 = vpack.c.bf16 %v2406, %v2403
    %v2481 = vpack.c.bf16 %v2414, %v2411
    %v2482 = vpack.c.bf16 %v2422, %v2419
    %v2483 = vpack.c.bf16 %v2430, %v2427
    %v2484 = vpack.c.bf16 %v2438, %v2435
    %v2485 = vpack.c.bf16 %v2446, %v2443
    %v2486 = vpack.c.bf16 %v2454, %v2451
    %v2487 = vpack.c.bf16 %v2462, %v2459
    %v2488 = vpack.c.bf16 %v2470, %v2467
    %s2489 = scalar_lea.vmem %s4, 64
    %v2490 = vld [vmem:[%s2489] sm:$0xf]
    %v2491 = vld [vmem:[%s2489 + $0x4] sm:$0xf]
    %v2492 = vld [vmem:[%s2489 + $0x8] sm:$0xf]
    %v2493 = vld [vmem:[%s2489 + $0xc] sm:$0xf]
    %v2494 = vld [vmem:[%s2489 + $0x10] sm:$0xf]
    %v2495 = vld [vmem:[%s2489 + $0x14] sm:$0xf]
    %v2496 = vld [vmem:[%s2489 + $0x18] sm:$0xf]
    %v2497 = vld [vmem:[%s2489 + $0x1c] sm:$0xf]
    %v2498 = vld [vmem:[%s2489 + $0x20] sm:$0xf]
    %v2499 = vld [vmem:[%s2489 + $0x24] sm:$0xf]
    %v2500 = vld [vmem:[%s2489 + $0x28] sm:$0xf]
    %v2501 = vld [vmem:[%s2489 + $0x2c] sm:$0xf]
    %v2502 = vld [vmem:[%s2489 + $0x30] sm:$0xf]
    %v2503 = vld [vmem:[%s2489 + $0x34] sm:$0xf]
    %v2504 = vld [vmem:[%s2489 + $0x38] sm:$0xf]
    %v2505 = vld [vmem:[%s2489 + $0x3c] sm:$0xf]
    %v2522 = vunpack.c.l.b16 %v2490
    %v2523 = vunpack.c.l.b16 %v2491
    %v2524 = vunpack.c.l.b16 %v2492
    %v2525 = vunpack.c.l.b16 %v2493
    %v2526 = vunpack.c.l.b16 %v2494
    %v2527 = vunpack.c.l.b16 %v2495
    %v2528 = vunpack.c.l.b16 %v2496
    %v2529 = vunpack.c.l.b16 %v2497
    %v2530 = vunpack.c.l.b16 %v2498
    %v2531 = vunpack.c.l.b16 %v2499
    %v2532 = vunpack.c.l.b16 %v2500
    %v2533 = vunpack.c.l.b16 %v2501
    %v2534 = vunpack.c.l.b16 %v2502
    %v2535 = vunpack.c.l.b16 %v2503
    %v2536 = vunpack.c.l.b16 %v2504
    %v2537 = vunpack.c.l.b16 %v2505
    %v2538 = vpack.c.b16 %v2523, %v2522
    %v2539 = vpack.c.b16 %v2525, %v2524
    %v2540 = vpack.c.b16 %v2527, %v2526
    %v2541 = vpack.c.b16 %v2529, %v2528
    %v2542 = vpack.c.b16 %v2531, %v2530
    %v2543 = vpack.c.b16 %v2533, %v2532
    %v2544 = vpack.c.b16 %v2535, %v2534
    %v2545 = vpack.c.b16 %v2537, %v2536
    %2554 = vmatprep.subr.bf16.mxu0 0
    %2555 = vmatpush1.bf16.msra.mxu0 %v2538
    %2556 = vmatprep.subr.bf16.mxu0 0
    %2557 = vmatpush1.bf16.msra.mxu0 %v2539
    %2558 = vmatprep.subr.bf16.mxu0 0
    %2559 = vmatpush1.bf16.msra.mxu0 %v2540
    %2560 = vmatprep.subr.bf16.mxu0 0
    %2561 = vmatpush1.bf16.msra.mxu0 %v2541
    %2562 = vmatprep.subr.bf16.mxu0 0
    %2563 = vmatpush1.bf16.msra.mxu0 %v2542
    %2564 = vmatprep.subr.bf16.mxu0 0
    %2565 = vmatpush1.bf16.msra.mxu0 %v2543
    %2566 = vmatprep.subr.bf16.mxu0 0
    %2567 = vmatpush1.bf16.msra.mxu0 %v2544
    %2568 = vmatprep.subr.bf16.mxu0 0
    %2569 = vmatpush1.bf16.msra.mxu0 %v2545
    %2570 = vmatprep.subr.bf16.mxu0 0
    %2571 = vmatpush1.bf16.msra.mxu0 0
    %2572 = vmatprep.subr.bf16.mxu0 0
    %2573 = vmatpush1.bf16.msra.mxu0 0
    %2574 = vmatprep.subr.bf16.mxu0 0
    %2575 = vmatpush1.bf16.msra.mxu0 0
    %2576 = vmatprep.subr.bf16.mxu0 0
    %2577 = vmatpush1.bf16.msra.mxu0 0
    %2578 = vmatprep.subr.bf16.mxu0 0
    %2579 = vmatpush1.bf16.msra.mxu0 0
    %2580 = vmatprep.subr.bf16.mxu0 0
    %2581 = vmatpush1.bf16.msra.mxu0 0
    %2582 = vmatprep.subr.bf16.mxu0 0
    %2583 = vmatpush1.bf16.msra.mxu0 0
    %2584 = vmatprep.subr.bf16.mxu0 0
    %2585 = vmatpush1.bf16.msra.mxu0 0
    %2586 = vmatprep.mubr.bf16.mxu0 0
    %2587 = vmatmul.mubr.bf16.gmra.mrb[0].mxu0 %v632
    %v2588 = vpop.f32.mrb[0].mxu0
    %v2589 = vadd.f32 0.0, %v2588
    %v2590 = vpop.f32.mrb[0].mxu0
    %v2591 = vpop.f32.mrb[0].mxu0
    %v2592 = vadd.f32 0.0, %v2591
    %v2593 = vpop.f32.mrb[0].mxu0
    %2594 = vmatprep.mubr.bf16.mxu0 0
    %2595 = vmatmul.mubr.bf16.gmra.mrb[0].mxu0 %v633
    %v2596 = vpop.f32.mrb[0].mxu0
    %v2597 = vadd.f32 0.0, %v2596
    %v2598 = vpop.f32.mrb[0].mxu0
    %v2599 = vpop.f32.mrb[0].mxu0
    %v2600 = vadd.f32 0.0, %v2599
    %v2601 = vpop.f32.mrb[0].mxu0
    %2602 = vmatprep.mubr.bf16.mxu0 0
    %2603 = vmatmul.mubr.bf16.gmra.mrb[0].mxu0 %v634
    %v2604 = vpop.f32.mrb[0].mxu0
    %v2605 = vadd.f32 0.0, %v2604
    %v2606 = vpop.f32.mrb[0].mxu0
    %v2607 = vpop.f32.mrb[0].mxu0
    %v2608 = vadd.f32 0.0, %v2607
    %v2609 = vpop.f32.mrb[0].mxu0
    %2610 = vmatprep.mubr.bf16.mxu0 0
    %2611 = vmatmul.mubr.bf16.gmra.mrb[0].mxu0 %v635
    %v2612 = vpop.f32.mrb[0].mxu0
    %v2613 = vadd.f32 0.0, %v2612
    %v2614 = vpop.f32.mrb[0].mxu0
    %v2615 = vpop.f32.mrb[0].mxu0
    %v2616 = vadd.f32 0.0, %v2615
    %v2617 = vpop.f32.mrb[0].mxu0
    %2618 = vmatprep.mubr.bf16.mxu0 0
    %2619 = vmatmul.mubr.bf16.gmra.mrb[0].mxu0 %v636
    %v2620 = vpop.f32.mrb[0].mxu0
    %v2621 = vadd.f32 0.0, %v2620
    %v2622 = vpop.f32.mrb[0].mxu0
    %v2623 = vpop.f32.mrb[0].mxu0
    %v2624 = vadd.f32 0.0, %v2623
    %v2625 = vpop.f32.mrb[0].mxu0
    %2626 = vmatprep.mubr.bf16.mxu0 0
    %2627 = vmatmul.mubr.bf16.gmra.mrb[0].mxu0 %v637
    %v2628 = vpop.f32.mrb[0].mxu0
    %v2629 = vadd.f32 0.0, %v2628
    %v2630 = vpop.f32.mrb[0].mxu0
    %v2631 = vpop.f32.mrb[0].mxu0
    %v2632 = vadd.f32 0.0, %v2631
    %v2633 = vpop.f32.mrb[0].mxu0
    %2634 = vmatprep.mubr.bf16.mxu0 0
    %2635 = vmatmul.mubr.bf16.gmra.mrb[0].mxu0 %v638
    %v2636 = vpop.f32.mrb[0].mxu0
    %v2637 = vadd.f32 0.0, %v2636
    %v2638 = vpop.f32.mrb[0].mxu0
    %v2639 = vpop.f32.mrb[0].mxu0
    %v2640 = vadd.f32 0.0, %v2639
    %v2641 = vpop.f32.mrb[0].mxu0
    %2642 = vmatprep.mubr.bf16.mxu0 0
    %2643 = vmatmul.mubr.bf16.gmra.mrb[0].mxu0 %v639
    %v2644 = vpop.f32.mrb[0].mxu0
    %v2645 = vadd.f32 0.0, %v2644
    %v2646 = vpop.f32.mrb[0].mxu0
    %v2647 = vpop.f32.mrb[0].mxu0
    %v2648 = vadd.f32 0.0, %v2647
    %v2649 = vpop.f32.mrb[0].mxu0
    %2650 = vmatprep.mubr.bf16.mxu0 0
    %2651 = vmatmul.mubr.bf16.gmra.mrb[0].mxu0 %v640
    %v2652 = vpop.f32.mrb[0].mxu0
    %v2653 = vadd.f32 0.0, %v2652
    %v2654 = vpop.f32.mrb[0].mxu0
    %v2655 = vpop.f32.mrb[0].mxu0
    %v2656 = vadd.f32 0.0, %v2655
    %v2657 = vpop.f32.mrb[0].mxu0
    %2658 = vmatprep.mubr.bf16.mxu0 0
    %2659 = vmatmul.mubr.bf16.gmra.mrb[0].mxu0 %v641
    %v2660 = vpop.f32.mrb[0].mxu0
    %v2661 = vadd.f32 0.0, %v2660
    %v2662 = vpop.f32.mrb[0].mxu0
    %v2663 = vpop.f32.mrb[0].mxu0
    %v2664 = vadd.f32 0.0, %v2663
    %v2665 = vpop.f32.mrb[0].mxu0
    %2666 = vmatprep.mubr.bf16.mxu0 0
    %2667 = vmatmul.mubr.bf16.gmra.mrb[0].mxu0 %v642
    %v2668 = vpop.f32.mrb[0].mxu0
    %v2669 = vadd.f32 0.0, %v2668
    %v2670 = vpop.f32.mrb[0].mxu0
    %v2671 = vpop.f32.mrb[0].mxu0
    %v2672 = vadd.f32 0.0, %v2671
    %v2673 = vpop.f32.mrb[0].mxu0
    %2674 = vmatprep.mubr.bf16.mxu0 0
    %2675 = vmatmul.mubr.bf16.gmra.mrb[0].mxu0 %v643
    %v2676 = vpop.f32.mrb[0].mxu0
    %v2677 = vadd.f32 0.0, %v2676
    %v2678 = vpop.f32.mrb[0].mxu0
    %v2679 = vpop.f32.mrb[0].mxu0
    %v2680 = vadd.f32 0.0, %v2679
    %v2681 = vpop.f32.mrb[0].mxu0
    %2682 = vmatprep.mubr.bf16.mxu0 0
    %2683 = vmatmul.mubr.bf16.gmra.mrb[0].mxu0 %v644
    %v2684 = vpop.f32.mrb[0].mxu0
    %v2685 = vadd.f32 0.0, %v2684
    %v2686 = vpop.f32.mrb[0].mxu0
    %v2687 = vpop.f32.mrb[0].mxu0
    %v2688 = vadd.f32 0.0, %v2687
    %v2689 = vpop.f32.mrb[0].mxu0
    %2690 = vmatprep.mubr.bf16.mxu0 0
    %2691 = vmatmul.mubr.bf16.gmra.mrb[0].mxu0 %v645
    %v2692 = vpop.f32.mrb[0].mxu0
    %v2693 = vadd.f32 0.0, %v2692
    %v2694 = vpop.f32.mrb[0].mxu0
    %v2695 = vpop.f32.mrb[0].mxu0
    %v2696 = vadd.f32 0.0, %v2695
    %v2697 = vpop.f32.mrb[0].mxu0
    %2698 = vmatprep.mubr.bf16.mxu0 0
    %2699 = vmatmul.mubr.bf16.gmra.mrb[0].mxu0 %v646
    %v2700 = vpop.f32.mrb[0].mxu0
    %v2701 = vadd.f32 0.0, %v2700
    %v2702 = vpop.f32.mrb[0].mxu0
    %v2703 = vpop.f32.mrb[0].mxu0
    %v2704 = vadd.f32 0.0, %v2703
    %v2705 = vpop.f32.mrb[0].mxu0
    %2706 = vmatprep.mubr.bf16.mxu0 0
    %2707 = vmatmul.mubr.bf16.gmra.mrb[0].mxu0 %v647
    %v2708 = vpop.f32.mrb[0].mxu0
    %v2709 = vadd.f32 0.0, %v2708
    %v2710 = vpop.f32.mrb[0].mxu0
    %v2711 = vpop.f32.mrb[0].mxu0
    %v2712 = vadd.f32 0.0, %v2711
    %v2713 = vpop.f32.mrb[0].mxu0
    %2714 = vdwg.mxu0
    %v2715 = vpack.c.bf16 %v2592, %v2589
    %v2716 = vpack.c.bf16 %v2600, %v2597
    %v2717 = vpack.c.bf16 %v2608, %v2605
    %v2718 = vpack.c.bf16 %v2616, %v2613
    %v2719 = vpack.c.bf16 %v2624, %v2621
    %v2720 = vpack.c.bf16 %v2632, %v2629
    %v2721 = vpack.c.bf16 %v2640, %v2637
    %v2722 = vpack.c.bf16 %v2648, %v2645
    %v2723 = vpack.c.bf16 %v2656, %v2653
    %v2724 = vpack.c.bf16 %v2664, %v2661
    %v2725 = vpack.c.bf16 %v2672, %v2669
    %v2726 = vpack.c.bf16 %v2680, %v2677
    %v2727 = vpack.c.bf16 %v2688, %v2685
    %v2728 = vpack.c.bf16 %v2696, %v2693
    %v2729 = vpack.c.bf16 %v2704, %v2701
    %v2730 = vpack.c.bf16 %v2712, %v2709
    %s2731 = scalar_lea.vmem %s5, 64
    %v2732 = vld [vmem:[%s2731] sm:$0xf]
    %v2733 = vld [vmem:[%s2731 + $0x4] sm:$0xf]
    %v2734 = vld [vmem:[%s2731 + $0x8] sm:$0xf]
    %v2735 = vld [vmem:[%s2731 + $0xc] sm:$0xf]
    %v2736 = vld [vmem:[%s2731 + $0x10] sm:$0xf]
    %v2737 = vld [vmem:[%s2731 + $0x14] sm:$0xf]
    %v2738 = vld [vmem:[%s2731 + $0x18] sm:$0xf]
    %v2739 = vld [vmem:[%s2731 + $0x1c] sm:$0xf]
    %v2740 = vld [vmem:[%s2731 + $0x20] sm:$0xf]
    %v2741 = vld [vmem:[%s2731 + $0x24] sm:$0xf]
    %v2742 = vld [vmem:[%s2731 + $0x28] sm:$0xf]
    %v2743 = vld [vmem:[%s2731 + $0x2c] sm:$0xf]
    %v2744 = vld [vmem:[%s2731 + $0x30] sm:$0xf]
    %v2745 = vld [vmem:[%s2731 + $0x34] sm:$0xf]
    %v2746 = vld [vmem:[%s2731 + $0x38] sm:$0xf]
    %v2747 = vld [vmem:[%s2731 + $0x3c] sm:$0xf]
    %v2764 = vunpack.c.l.b16 %v2732
    %v2765 = vunpack.c.l.b16 %v2733
    %v2766 = vunpack.c.l.b16 %v2734
    %v2767 = vunpack.c.l.b16 %v2735
    %v2768 = vunpack.c.l.b16 %v2736
    %v2769 = vunpack.c.l.b16 %v2737
    %v2770 = vunpack.c.l.b16 %v2738
    %v2771 = vunpack.c.l.b16 %v2739
    %v2772 = vunpack.c.l.b16 %v2740
    %v2773 = vunpack.c.l.b16 %v2741
    %v2774 = vunpack.c.l.b16 %v2742
    %v2775 = vunpack.c.l.b16 %v2743
    %v2776 = vunpack.c.l.b16 %v2744
    %v2777 = vunpack.c.l.b16 %v2745
    %v2778 = vunpack.c.l.b16 %v2746
    %v2779 = vunpack.c.l.b16 %v2747
    %v2780 = vpack.c.b16 %v2765, %v2764
    %v2781 = vpack.c.b16 %v2767, %v2766
    %v2782 = vpack.c.b16 %v2769, %v2768
    %v2783 = vpack.c.b16 %v2771, %v2770
    %v2784 = vpack.c.b16 %v2773, %v2772
    %v2785 = vpack.c.b16 %v2775, %v2774
    %v2786 = vpack.c.b16 %v2777, %v2776
    %v2787 = vpack.c.b16 %v2779, %v2778
    %2796 = vmatprep.subr.bf16.mxu0 0
    %2797 = vmatpush1.bf16.msra.mxu0 %v2780
    %2798 = vmatprep.subr.bf16.mxu0 0
    %2799 = vmatpush1.bf16.msra.mxu0 %v2781
    %2800 = vmatprep.subr.bf16.mxu0 0
    %2801 = vmatpush1.bf16.msra.mxu0 %v2782
    %2802 = vmatprep.subr.bf16.mxu0 0
    %2803 = vmatpush1.bf16.msra.mxu0 %v2783
    %2804 = vmatprep.subr.bf16.mxu0 0
    %2805 = vmatpush1.bf16.msra.mxu0 %v2784
    %2806 = vmatprep.subr.bf16.mxu0 0
    %2807 = vmatpush1.bf16.msra.mxu0 %v2785
    %2808 = vmatprep.subr.bf16.mxu0 0
    %2809 = vmatpush1.bf16.msra.mxu0 %v2786
    %2810 = vmatprep.subr.bf16.mxu0 0
    %2811 = vmatpush1.bf16.msra.mxu0 %v2787
    %2812 = vmatprep.subr.bf16.mxu0 0
    %2813 = vmatpush1.bf16.msra.mxu0 0
    %2814 = vmatprep.subr.bf16.mxu0 0
    %2815 = vmatpush1.bf16.msra.mxu0 0
    %2816 = vmatprep.subr.bf16.mxu0 0
    %2817 = vmatpush1.bf16.msra.mxu0 0
    %2818 = vmatprep.subr.bf16.mxu0 0
    %2819 = vmatpush1.bf16.msra.mxu0 0
    %2820 = vmatprep.subr.bf16.mxu0 0
    %2821 = vmatpush1.bf16.msra.mxu0 0
    %2822 = vmatprep.subr.bf16.mxu0 0
    %2823 = vmatpush1.bf16.msra.mxu0 0
    %2824 = vmatprep.subr.bf16.mxu0 0
    %2825 = vmatpush1.bf16.msra.mxu0 0
    %2826 = vmatprep.subr.bf16.mxu0 0
    %2827 = vmatpush1.bf16.msra.mxu0 0
    %2828 = vmatprep.mubr.bf16.mxu0 0
    %2829 = vmatmul.mubr.bf16.gmra.mrb[0].mxu0 %v632
    %v2830 = vpop.f32.mrb[0].mxu0
    %v2831 = vadd.f32 0.0, %v2830
    %v2832 = vpop.f32.mrb[0].mxu0
    %v2833 = vpop.f32.mrb[0].mxu0
    %v2834 = vadd.f32 0.0, %v2833
    %v2835 = vpop.f32.mrb[0].mxu0
    %2836 = vmatprep.mubr.bf16.mxu0 0
    %2837 = vmatmul.mubr.bf16.gmra.mrb[0].mxu0 %v633
    %v2838 = vpop.f32.mrb[0].mxu0
    %v2839 = vadd.f32 0.0, %v2838
    %v2840 = vpop.f32.mrb[0].mxu0
    %v2841 = vpop.f32.mrb[0].mxu0
    %v2842 = vadd.f32 0.0, %v2841
    %v2843 = vpop.f32.mrb[0].mxu0
    %2844 = vmatprep.mubr.bf16.mxu0 0
    %2845 = vmatmul.mubr.bf16.gmra.mrb[0].mxu0 %v634
    %v2846 = vpop.f32.mrb[0].mxu0
    %v2847 = vadd.f32 0.0, %v2846
    %v2848 = vpop.f32.mrb[0].mxu0
    %v2849 = vpop.f32.mrb[0].mxu0
    %v2850 = vadd.f32 0.0, %v2849
    %v2851 = vpop.f32.mrb[0].mxu0
    %2852 = vmatprep.mubr.bf16.mxu0 0
    %2853 = vmatmul.mubr.bf16.gmra.mrb[0].mxu0 %v635
    %v2854 = vpop.f32.mrb[0].mxu0
    %v2855 = vadd.f32 0.0, %v2854
    %v2856 = vpop.f32.mrb[0].mxu0
    %v2857 = vpop.f32.mrb[0].mxu0
    %v2858 = vadd.f32 0.0, %v2857
    %v2859 = vpop.f32.mrb[0].mxu0
    %2860 = vmatprep.mubr.bf16.mxu0 0
    %2861 = vmatmul.mubr.bf16.gmra.mrb[0].mxu0 %v636
    %v2862 = vpop.f32.mrb[0].mxu0
    %v2863 = vadd.f32 0.0, %v2862
    %v2864 = vpop.f32.mrb[0].mxu0
    %v2865 = vpop.f32.mrb[0].mxu0
    %v2866 = vadd.f32 0.0, %v2865
    %v2867 = vpop.f32.mrb[0].mxu0
    %2868 = vmatprep.mubr.bf16.mxu0 0
    %2869 = vmatmul.mubr.bf16.gmra.mrb[0].mxu0 %v637
    %v2870 = vpop.f32.mrb[0].mxu0
    %v2871 = vadd.f32 0.0, %v2870
    %v2872 = vpop.f32.mrb[0].mxu0
    %v2873 = vpop.f32.mrb[0].mxu0
    %v2874 = vadd.f32 0.0, %v2873
    %v2875 = vpop.f32.mrb[0].mxu0
    %2876 = vmatprep.mubr.bf16.mxu0 0
    %2877 = vmatmul.mubr.bf16.gmra.mrb[0].mxu0 %v638
    %v2878 = vpop.f32.mrb[0].mxu0
    %v2879 = vadd.f32 0.0, %v2878
    %v2880 = vpop.f32.mrb[0].mxu0
    %v2881 = vpop.f32.mrb[0].mxu0
    %v2882 = vadd.f32 0.0, %v2881
    %v2883 = vpop.f32.mrb[0].mxu0
    %2884 = vmatprep.mubr.bf16.mxu0 0
    %2885 = vmatmul.mubr.bf16.gmra.mrb[0].mxu0 %v639
    %v2886 = vpop.f32.mrb[0].mxu0
    %v2887 = vadd.f32 0.0, %v2886
    %v2888 = vpop.f32.mrb[0].mxu0
    %v2889 = vpop.f32.mrb[0].mxu0
    %v2890 = vadd.f32 0.0, %v2889
    %v2891 = vpop.f32.mrb[0].mxu0
    %2892 = vmatprep.mubr.bf16.mxu0 0
    %2893 = vmatmul.mubr.bf16.gmra.mrb[0].mxu0 %v640
    %v2894 = vpop.f32.mrb[0].mxu0
    %v2895 = vadd.f32 0.0, %v2894
    %v2896 = vpop.f32.mrb[0].mxu0
    %v2897 = vpop.f32.mrb[0].mxu0
    %v2898 = vadd.f32 0.0, %v2897
    %v2899 = vpop.f32.mrb[0].mxu0
    %2900 = vmatprep.mubr.bf16.mxu0 0
    %2901 = vmatmul.mubr.bf16.gmra.mrb[0].mxu0 %v641
    %v2902 = vpop.f32.mrb[0].mxu0
    %v2903 = vadd.f32 0.0, %v2902
    %v2904 = vpop.f32.mrb[0].mxu0
    %v2905 = vpop.f32.mrb[0].mxu0
    %v2906 = vadd.f32 0.0, %v2905
    %v2907 = vpop.f32.mrb[0].mxu0
    %2908 = vmatprep.mubr.bf16.mxu0 0
    %2909 = vmatmul.mubr.bf16.gmra.mrb[0].mxu0 %v642
    %v2910 = vpop.f32.mrb[0].mxu0
    %v2911 = vadd.f32 0.0, %v2910
    %v2912 = vpop.f32.mrb[0].mxu0
    %v2913 = vpop.f32.mrb[0].mxu0
    %v2914 = vadd.f32 0.0, %v2913
    %v2915 = vpop.f32.mrb[0].mxu0
    %2916 = vmatprep.mubr.bf16.mxu0 0
    %2917 = vmatmul.mubr.bf16.gmra.mrb[0].mxu0 %v643
    %v2918 = vpop.f32.mrb[0].mxu0
    %v2919 = vadd.f32 0.0, %v2918
    %v2920 = vpop.f32.mrb[0].mxu0
    %v2921 = vpop.f32.mrb[0].mxu0
    %v2922 = vadd.f32 0.0, %v2921
    %v2923 = vpop.f32.mrb[0].mxu0
    %2924 = vmatprep.mubr.bf16.mxu0 0
    %2925 = vmatmul.mubr.bf16.gmra.mrb[0].mxu0 %v644
    %v2926 = vpop.f32.mrb[0].mxu0
    %v2927 = vadd.f32 0.0, %v2926
    %v2928 = vpop.f32.mrb[0].mxu0
    %v2929 = vpop.f32.mrb[0].mxu0
    %v2930 = vadd.f32 0.0, %v2929
    %v2931 = vpop.f32.mrb[0].mxu0
    %2932 = vmatprep.mubr.bf16.mxu0 0
    %2933 = vmatmul.mubr.bf16.gmra.mrb[0].mxu0 %v645
    %v2934 = vpop.f32.mrb[0].mxu0
    %v2935 = vadd.f32 0.0, %v2934
    %v2936 = vpop.f32.mrb[0].mxu0
    %v2937 = vpop.f32.mrb[0].mxu0
    %v2938 = vadd.f32 0.0, %v2937
    %v2939 = vpop.f32.mrb[0].mxu0
    %2940 = vmatprep.mubr.bf16.mxu0 0
    %2941 = vmatmul.mubr.bf16.gmra.mrb[0].mxu0 %v646
    %v2942 = vpop.f32.mrb[0].mxu0
    %v2943 = vadd.f32 0.0, %v2942
    %v2944 = vpop.f32.mrb[0].mxu0
    %v2945 = vpop.f32.mrb[0].mxu0
    %v2946 = vadd.f32 0.0, %v2945
    %v2947 = vpop.f32.mrb[0].mxu0
    %2948 = vmatprep.mubr.bf16.mxu0 0
    %2949 = vmatmul.mubr.bf16.gmra.mrb[0].mxu0 %v647
    %v2950 = vpop.f32.mrb[0].mxu0
    %v2951 = vadd.f32 0.0, %v2950
    %v2952 = vpop.f32.mrb[0].mxu0
    %v2953 = vpop.f32.mrb[0].mxu0
    %v2954 = vadd.f32 0.0, %v2953
    %v2955 = vpop.f32.mrb[0].mxu0
    %2956 = vdwg.mxu0
    %v2957 = vpack.c.bf16 %v2834, %v2831
    %v2958 = vpack.c.bf16 %v2842, %v2839
    %v2959 = vpack.c.bf16 %v2850, %v2847
    %v2960 = vpack.c.bf16 %v2858, %v2855
    %v2961 = vpack.c.bf16 %v2866, %v2863
    %v2962 = vpack.c.bf16 %v2874, %v2871
    %v2963 = vpack.c.bf16 %v2882, %v2879
    %v2964 = vpack.c.bf16 %v2890, %v2887
    %v2965 = vpack.c.bf16 %v2898, %v2895
    %v2966 = vpack.c.bf16 %v2906, %v2903
    %v2967 = vpack.c.bf16 %v2914, %v2911
    %v2968 = vpack.c.bf16 %v2922, %v2919
    %v2969 = vpack.c.bf16 %v2930, %v2927
    %v2970 = vpack.c.bf16 %v2938, %v2935
    %v2971 = vpack.c.bf16 %v2946, %v2943
    %v2972 = vpack.c.bf16 %v2954, %v2951
    %v2974 = vsel %vm1406, %v2473, 0
    %v2977 = vsel %vm1406, %v2474, 0
    %v2980 = vsel %vm1406, %v2475, 0
    %v2983 = vsel %vm1406, %v2476, 0
    %v2986 = vsel %vm1406, %v2477, 0
    %v2989 = vsel %vm1406, %v2478, 0
    %v2992 = vsel %vm1406, %v2479, 0
    %v2995 = vsel %vm1406, %v2480, 0
    %v2998 = vsel %vm1406, %v2715, 0
    %v3001 = vsel %vm1406, %v2716, 0
    %v3004 = vsel %vm1406, %v2717, 0
    %v3007 = vsel %vm1406, %v2718, 0
    %v3010 = vsel %vm1406, %v2719, 0
    %v3013 = vsel %vm1406, %v2720, 0
    %v3016 = vsel %vm1406, %v2721, 0
    %v3019 = vsel %vm1406, %v2722, 0
    %3021 = vmatprep.subr.bf16.mxu0 0
    %3022 = vmatpush1.bf16.xpose.msra.mxu0 %v2998
    %3023 = vmatprep.subr.bf16.mxu0 0
    %3024 = vmatpush1.bf16.xpose.msra.mxu0 %v3001
    %3025 = vmatprep.subr.bf16.mxu0 0
    %3026 = vmatpush1.bf16.xpose.msra.mxu0 %v3004
    %3027 = vmatprep.subr.bf16.mxu0 0
    %3028 = vmatpush1.bf16.xpose.msra.mxu0 %v3007
    %3029 = vmatprep.subr.bf16.mxu0 0
    %3030 = vmatpush1.bf16.xpose.msra.mxu0 %v3010
    %3031 = vmatprep.subr.bf16.mxu0 0
    %3032 = vmatpush1.bf16.xpose.msra.mxu0 %v3013
    %3033 = vmatprep.subr.bf16.mxu0 0
    %3034 = vmatpush1.bf16.xpose.msra.mxu0 %v3016
    %3035 = vmatprep.subr.bf16.mxu0 0
    %3036 = vmatpush1.bf16.xpose.msra.mxu0 %v3019
    %3037 = vmatprep.subr.bf16.mxu0 0
    %3038 = vmatpush1.bf16.xpose.msra.mxu0 0
    %3039 = vmatprep.subr.bf16.mxu0 0
    %3040 = vmatpush1.bf16.xpose.msra.mxu0 0
    %3041 = vmatprep.subr.bf16.mxu0 0
    %3042 = vmatpush1.bf16.xpose.msra.mxu0 0
    %3043 = vmatprep.subr.bf16.mxu0 0
    %3044 = vmatpush1.bf16.xpose.msra.mxu0 0
    %3045 = vmatprep.subr.bf16.mxu0 0
    %3046 = vmatpush1.bf16.xpose.msra.mxu0 0
    %3047 = vmatprep.subr.bf16.mxu0 0
    %3048 = vmatpush1.bf16.xpose.msra.mxu0 0
    %3049 = vmatprep.subr.bf16.mxu0 0
    %3050 = vmatpush1.bf16.xpose.msra.mxu0 0
    %3051 = vmatprep.subr.bf16.mxu0 0
    %3052 = vmatpush1.bf16.xpose.msra.mxu0 0
    %3053 = vmatprep.mubr.bf16.mxu0 0
    %3054 = vmatmul.mubr.bf16.gmra.mrb[0].mxu0 %v2974
    %v3055 = vpop.f32.mrb[0].mxu0
    %v3056 = vadd.f32 0.0, %v3055
    %v3057 = vpop.f32.mrb[0].mxu0
    %v3058 = vpop.f32.mrb[0].mxu0
    %v3059 = vadd.f32 0.0, %v3058
    %v3060 = vpop.f32.mrb[0].mxu0
    %3061 = vmatprep.mubr.bf16.mxu0 0
    %3062 = vmatmul.mubr.bf16.gmra.mrb[0].mxu0 %v2977
    %v3063 = vpop.f32.mrb[0].mxu0
    %v3064 = vadd.f32 0.0, %v3063
    %v3065 = vpop.f32.mrb[0].mxu0
    %v3066 = vpop.f32.mrb[0].mxu0
    %v3067 = vadd.f32 0.0, %v3066
    %v3068 = vpop.f32.mrb[0].mxu0
    %3069 = vmatprep.mubr.bf16.mxu0 0
    %3070 = vmatmul.mubr.bf16.gmra.mrb[0].mxu0 %v2980
    %v3071 = vpop.f32.mrb[0].mxu0
    %v3072 = vadd.f32 0.0, %v3071
    %v3073 = vpop.f32.mrb[0].mxu0
    %v3074 = vpop.f32.mrb[0].mxu0
    %v3075 = vadd.f32 0.0, %v3074
    %v3076 = vpop.f32.mrb[0].mxu0
    %3077 = vmatprep.mubr.bf16.mxu0 0
    %3078 = vmatmul.mubr.bf16.gmra.mrb[0].mxu0 %v2983
    %v3079 = vpop.f32.mrb[0].mxu0
    %v3080 = vadd.f32 0.0, %v3079
    %v3081 = vpop.f32.mrb[0].mxu0
    %v3082 = vpop.f32.mrb[0].mxu0
    %v3083 = vadd.f32 0.0, %v3082
    %v3084 = vpop.f32.mrb[0].mxu0
    %3085 = vmatprep.mubr.bf16.mxu0 0
    %3086 = vmatmul.mubr.bf16.gmra.mrb[0].mxu0 %v2986
    %v3087 = vpop.f32.mrb[0].mxu0
    %v3088 = vadd.f32 0.0, %v3087
    %v3089 = vpop.f32.mrb[0].mxu0
    %v3090 = vpop.f32.mrb[0].mxu0
    %v3091 = vadd.f32 0.0, %v3090
    %v3092 = vpop.f32.mrb[0].mxu0
    %3093 = vmatprep.mubr.bf16.mxu0 0
    %3094 = vmatmul.mubr.bf16.gmra.mrb[0].mxu0 %v2989
    %v3095 = vpop.f32.mrb[0].mxu0
    %v3096 = vadd.f32 0.0, %v3095
    %v3097 = vpop.f32.mrb[0].mxu0
    %v3098 = vpop.f32.mrb[0].mxu0
    %v3099 = vadd.f32 0.0, %v3098
    %v3100 = vpop.f32.mrb[0].mxu0
    %3101 = vmatprep.mubr.bf16.mxu0 0
    %3102 = vmatmul.mubr.bf16.gmra.mrb[0].mxu0 %v2992
    %v3103 = vpop.f32.mrb[0].mxu0
    %v3104 = vadd.f32 0.0, %v3103
    %v3105 = vpop.f32.mrb[0].mxu0
    %v3106 = vpop.f32.mrb[0].mxu0
    %v3107 = vadd.f32 0.0, %v3106
    %v3108 = vpop.f32.mrb[0].mxu0
    %3109 = vmatprep.mubr.bf16.mxu0 0
    %3110 = vmatmul.mubr.bf16.gmra.mrb[0].mxu0 %v2995
    %v3111 = vpop.f32.mrb[0].mxu0
    %v3112 = vadd.f32 0.0, %v3111
    %v3113 = vpop.f32.mrb[0].mxu0
    %v3114 = vpop.f32.mrb[0].mxu0
    %v3115 = vadd.f32 0.0, %v3114
    %v3116 = vpop.f32.mrb[0].mxu0
    %3117 = vdwg.mxu0
    %v3118 = vsel %vm667, %v3056, -inf
    %v3119 = vsel %vm668, %v3059, -inf
    %v3120 = vsel %vm669, %v3064, -inf
    %v3121 = vsel %vm670, %v3067, -inf
    %v3122 = vsel %vm671, %v3072, -inf
    %v3123 = vsel %vm672, %v3075, -inf
    %v3124 = vsel %vm673, %v3080, -inf
    %v3125 = vsel %vm674, %v3083, -inf
    %v3126 = vsel %vm675, %v3088, -inf
    %v3127 = vsel %vm676, %v3091, -inf
    %v3128 = vsel %vm677, %v3096, -inf
    %v3129 = vsel %vm678, %v3099, -inf
    %v3130 = vsel %vm679, %v3104, -inf
    %v3131 = vsel %vm680, %v3107, -inf
    %v3132 = vsel %vm681, %v3112, -inf
    %v3133 = vsel %vm682, %v3115, -inf
    %3134 = vmax.xlane.f32.xlu0 %v3118
    %v3135 = vpop.xlane.xlu0 %3134
    %3136 = vmax.xlane.f32.xlu0 %v3119
    %v3137 = vpop.xlane.xlu0 %3136
    %3138 = vmax.xlane.f32.xlu0 %v3120
    %v3139 = vpop.xlane.xlu0 %3138
    %3140 = vmax.xlane.f32.xlu0 %v3121
    %v3141 = vpop.xlane.xlu0 %3140
    %3142 = vmax.xlane.f32.xlu0 %v3122
    %v3143 = vpop.xlane.xlu0 %3142
    %3144 = vmax.xlane.f32.xlu0 %v3123
    %v3145 = vpop.xlane.xlu0 %3144
    %3146 = vmax.xlane.f32.xlu0 %v3124
    %v3147 = vpop.xlane.xlu0 %3146
    %3148 = vmax.xlane.f32.xlu0 %v3125
    %v3149 = vpop.xlane.xlu0 %3148
    %3150 = vmax.xlane.f32.xlu0 %v3126
    %v3151 = vpop.xlane.xlu0 %3150
    %3152 = vmax.xlane.f32.xlu0 %v3127
    %v3153 = vpop.xlane.xlu0 %3152
    %3154 = vmax.xlane.f32.xlu0 %v3128
    %v3155 = vpop.xlane.xlu0 %3154
    %3156 = vmax.xlane.f32.xlu0 %v3129
    %v3157 = vpop.xlane.xlu0 %3156
    %3158 = vmax.xlane.f32.xlu0 %v3130
    %v3159 = vpop.xlane.xlu0 %3158
    %3160 = vmax.xlane.f32.xlu0 %v3131
    %v3161 = vpop.xlane.xlu0 %3160
    %3162 = vmax.xlane.f32.xlu0 %v3132
    %v3163 = vpop.xlane.xlu0 %3162
    %3164 = vmax.xlane.f32.xlu0 %v3133
    %v3165 = vpop.xlane.xlu0 %3164
    %v3166 = vsub.f32 %v3118, %v3135
    %v3167 = vsub.f32 %v3119, %v3137
    %v3168 = vsub.f32 %v3120, %v3139
    %v3169 = vsub.f32 %v3121, %v3141
    %v3170 = vsub.f32 %v3122, %v3143
    %v3171 = vsub.f32 %v3123, %v3145
    %v3172 = vsub.f32 %v3124, %v3147
    %v3173 = vsub.f32 %v3125, %v3149
    %v3174 = vsub.f32 %v3126, %v3151
    %v3175 = vsub.f32 %v3127, %v3153
    %v3176 = vsub.f32 %v3128, %v3155
    %v3177 = vsub.f32 %v3129, %v3157
    %v3178 = vsub.f32 %v3130, %v3159
    %v3179 = vsub.f32 %v3131, %v3161
    %v3180 = vsub.f32 %v3132, %v3163
    %v3181 = vsub.f32 %v3133, %v3165
    %v3182 = vmul.f32 %v3166, 1.442695
    %v3183 = vpow.pop %v3182
    %v3184 = vmul.f32 %v3167, 1.442695
    %v3185 = vpow.pop %v3184
    %v3186 = vmul.f32 %v3168, 1.442695
    %v3187 = vpow.pop %v3186
    %v3188 = vmul.f32 %v3169, 1.442695
    %v3189 = vpow.pop %v3188
    %v3190 = vmul.f32 %v3170, 1.442695
    %v3191 = vpow.pop %v3190
    %v3192 = vmul.f32 %v3171, 1.442695
    %v3193 = vpow.pop %v3192
    %v3194 = vmul.f32 %v3172, 1.442695
    %v3195 = vpow.pop %v3194
    %v3196 = vmul.f32 %v3173, 1.442695
    %v3197 = vpow.pop %v3196
    %v3198 = vmul.f32 %v3174, 1.442695
    %v3199 = vpow.pop %v3198
    %v3200 = vmul.f32 %v3175, 1.442695
    %v3201 = vpow.pop %v3200
    %v3202 = vmul.f32 %v3176, 1.442695
    %v3203 = vpow.pop %v3202
    %v3204 = vmul.f32 %v3177, 1.442695
    %v3205 = vpow.pop %v3204
    %v3206 = vmul.f32 %v3178, 1.442695
    %v3207 = vpow.pop %v3206
    %v3208 = vmul.f32 %v3179, 1.442695
    %v3209 = vpow.pop %v3208
    %v3210 = vmul.f32 %v3180, 1.442695
    %v3211 = vpow.pop %v3210
    %v3212 = vmul.f32 %v3181, 1.442695
    %v3213 = vpow.pop %v3212
    %v3214 = vpack.c.bf16 %v3185, %v3183
    %v3215 = vpack.c.bf16 %v3189, %v3187
    %v3216 = vpack.c.bf16 %v3193, %v3191
    %v3217 = vpack.c.bf16 %v3197, %v3195
    %v3218 = vpack.c.bf16 %v3201, %v3199
    %v3219 = vpack.c.bf16 %v3205, %v3203
    %v3220 = vpack.c.bf16 %v3209, %v3207
    %v3221 = vpack.c.bf16 %v3213, %v3211
    %3222 = vmatprep.subr.bf16.mxu0 0
    %3223 = vmatpush1.bf16.msra.mxu0 %v2957
    %3224 = vmatprep.subr.bf16.mxu0 0
    %3225 = vmatpush1.bf16.msra.mxu0 %v2958
    %3226 = vmatprep.subr.bf16.mxu0 0
    %3227 = vmatpush1.bf16.msra.mxu0 %v2959
    %3228 = vmatprep.subr.bf16.mxu0 0
    %3229 = vmatpush1.bf16.msra.mxu0 %v2960
    %3230 = vmatprep.subr.bf16.mxu0 0
    %3231 = vmatpush1.bf16.msra.mxu0 %v2961
    %3232 = vmatprep.subr.bf16.mxu0 0
    %3233 = vmatpush1.bf16.msra.mxu0 %v2962
    %3234 = vmatprep.subr.bf16.mxu0 0
    %3235 = vmatpush1.bf16.msra.mxu0 %v2963
    %3236 = vmatprep.subr.bf16.mxu0 0
    %3237 = vmatpush1.bf16.msra.mxu0 %v2964
    %3238 = vmatprep.subr.bf16.mxu0 0
    %3239 = vmatpush1.bf16.msra.mxu0 0
    %3240 = vmatprep.subr.bf16.mxu0 0
    %3241 = vmatpush1.bf16.msra.mxu0 0
    %3242 = vmatprep.subr.bf16.mxu0 0
    %3243 = vmatpush1.bf16.msra.mxu0 0
    %3244 = vmatprep.subr.bf16.mxu0 0
    %3245 = vmatpush1.bf16.msra.mxu0 0
    %3246 = vmatprep.subr.bf16.mxu0 0
    %3247 = vmatpush1.bf16.msra.mxu0 0
    %3248 = vmatprep.subr.bf16.mxu0 0
    %3249 = vmatpush1.bf16.msra.mxu0 0
    %3250 = vmatprep.subr.bf16.mxu0 0
    %3251 = vmatpush1.bf16.msra.mxu0 0
    %3252 = vmatprep.subr.bf16.mxu0 0
    %3253 = vmatpush1.bf16.msra.mxu0 0
    %3254 = vmatprep.mubr.bf16.mxu0 0
    %3255 = vmatmul.mubr.bf16.gmra.mrb[0].mxu0 %v3214
    %v3256 = vpop.f32.mrb[0].mxu0
    %v3257 = vadd.f32 0.0, %v3256
    %v3258 = vpop.f32.mrb[0].mxu0
    %v3259 = vpop.f32.mrb[0].mxu0
    %v3260 = vadd.f32 0.0, %v3259
    %v3261 = vpop.f32.mrb[0].mxu0
    %3262 = vmatprep.mubr.bf16.mxu0 0
    %3263 = vmatmul.mubr.bf16.gmra.mrb[0].mxu0 %v3215
    %v3264 = vpop.f32.mrb[0].mxu0
    %v3265 = vadd.f32 0.0, %v3264
    %v3266 = vpop.f32.mrb[0].mxu0
    %v3267 = vpop.f32.mrb[0].mxu0
    %v3268 = vadd.f32 0.0, %v3267
    %v3269 = vpop.f32.mrb[0].mxu0
    %3270 = vmatprep.mubr.bf16.mxu0 0
    %3271 = vmatmul.mubr.bf16.gmra.mrb[0].mxu0 %v3216
    %v3272 = vpop.f32.mrb[0].mxu0
    %v3273 = vadd.f32 0.0, %v3272
    %v3274 = vpop.f32.mrb[0].mxu0
    %v3275 = vpop.f32.mrb[0].mxu0
    %v3276 = vadd.f32 0.0, %v3275
    %v3277 = vpop.f32.mrb[0].mxu0
    %3278 = vmatprep.mubr.bf16.mxu0 0
    %3279 = vmatmul.mubr.bf16.gmra.mrb[0].mxu0 %v3217
    %v3280 = vpop.f32.mrb[0].mxu0
    %v3281 = vadd.f32 0.0, %v3280
    %v3282 = vpop.f32.mrb[0].mxu0
    %v3283 = vpop.f32.mrb[0].mxu0
    %v3284 = vadd.f32 0.0, %v3283
    %v3285 = vpop.f32.mrb[0].mxu0
    %3286 = vmatprep.mubr.bf16.mxu0 0
    %3287 = vmatmul.mubr.bf16.gmra.mrb[0].mxu0 %v3218
    %v3288 = vpop.f32.mrb[0].mxu0
    %v3289 = vadd.f32 0.0, %v3288
    %v3290 = vpop.f32.mrb[0].mxu0
    %v3291 = vpop.f32.mrb[0].mxu0
    %v3292 = vadd.f32 0.0, %v3291
    %v3293 = vpop.f32.mrb[0].mxu0
    %3294 = vmatprep.mubr.bf16.mxu0 0
    %3295 = vmatmul.mubr.bf16.gmra.mrb[0].mxu0 %v3219
    %v3296 = vpop.f32.mrb[0].mxu0
    %v3297 = vadd.f32 0.0, %v3296
    %v3298 = vpop.f32.mrb[0].mxu0
    %v3299 = vpop.f32.mrb[0].mxu0
    %v3300 = vadd.f32 0.0, %v3299
    %v3301 = vpop.f32.mrb[0].mxu0
    %3302 = vmatprep.mubr.bf16.mxu0 0
    %3303 = vmatmul.mubr.bf16.gmra.mrb[0].mxu0 %v3220
    %v3304 = vpop.f32.mrb[0].mxu0
    %v3305 = vadd.f32 0.0, %v3304
    %v3306 = vpop.f32.mrb[0].mxu0
    %v3307 = vpop.f32.mrb[0].mxu0
    %v3308 = vadd.f32 0.0, %v3307
    %v3309 = vpop.f32.mrb[0].mxu0
    %3310 = vmatprep.mubr.bf16.mxu0 0
    %3311 = vmatmul.mubr.bf16.gmra.mrb[0].mxu0 %v3221
    %v3312 = vpop.f32.mrb[0].mxu0
    %v3313 = vadd.f32 0.0, %v3312
    %v3314 = vpop.f32.mrb[0].mxu0
    %v3315 = vpop.f32.mrb[0].mxu0
    %v3316 = vadd.f32 0.0, %v3315
    %v3317 = vpop.f32.mrb[0].mxu0
    %3318 = vdwg.mxu0
    %3319 = vadd.xlane.f32.xlu0 %v3183
    %v3320 = vpop.xlane.xlu0 %3319
    %3321 = vadd.xlane.f32.xlu0 %v3185
    %v3322 = vpop.xlane.xlu0 %3321
    %3323 = vadd.xlane.f32.xlu0 %v3187
    %v3324 = vpop.xlane.xlu0 %3323
    %3325 = vadd.xlane.f32.xlu0 %v3189
    %v3326 = vpop.xlane.xlu0 %3325
    %3327 = vadd.xlane.f32.xlu0 %v3191
    %v3328 = vpop.xlane.xlu0 %3327
    %3329 = vadd.xlane.f32.xlu0 %v3193
    %v3330 = vpop.xlane.xlu0 %3329
    %3331 = vadd.xlane.f32.xlu0 %v3195
    %v3332 = vpop.xlane.xlu0 %3331
    %3333 = vadd.xlane.f32.xlu0 %v3197
    %v3334 = vpop.xlane.xlu0 %3333
    %3335 = vadd.xlane.f32.xlu0 %v3199
    %v3336 = vpop.xlane.xlu0 %3335
    %3337 = vadd.xlane.f32.xlu0 %v3201
    %v3338 = vpop.xlane.xlu0 %3337
    %3339 = vadd.xlane.f32.xlu0 %v3203
    %v3340 = vpop.xlane.xlu0 %3339
    %3341 = vadd.xlane.f32.xlu0 %v3205
    %v3342 = vpop.xlane.xlu0 %3341
    %3343 = vadd.xlane.f32.xlu0 %v3207
    %v3344 = vpop.xlane.xlu0 %3343
    %3345 = vadd.xlane.f32.xlu0 %v3209
    %v3346 = vpop.xlane.xlu0 %3345
    %3347 = vadd.xlane.f32.xlu0 %v3211
    %v3348 = vpop.xlane.xlu0 %3347
    %3349 = vadd.xlane.f32.xlu0 %v3213
    %v3350 = vpop.xlane.xlu0 %3349
    %v3351 = vrcp.pop %v3320
    %v3352 = vrcp.pop %v3322
    %v3353 = vrcp.pop %v3324
    %v3354 = vrcp.pop %v3326
    %v3355 = vrcp.pop %v3328
    %v3356 = vrcp.pop %v3330
    %v3357 = vrcp.pop %v3332
    %v3358 = vrcp.pop %v3334
    %v3359 = vrcp.pop %v3336
    %v3360 = vrcp.pop %v3338
    %v3361 = vrcp.pop %v3340
    %v3362 = vrcp.pop %v3342
    %v3363 = vrcp.pop %v3344
    %v3364 = vrcp.pop %v3346
    %v3365 = vrcp.pop %v3348
    %v3366 = vrcp.pop %v3350
    %v3367 = vmul.f32 %v3257, %v3351
    %v3368 = vmul.f32 %v3260, %v3352
    %v3369 = vmul.f32 %v3265, %v3353
    %v3370 = vmul.f32 %v3268, %v3354
    %v3371 = vmul.f32 %v3273, %v3355
    %v3372 = vmul.f32 %v3276, %v3356
    %v3373 = vmul.f32 %v3281, %v3357
    %v3374 = vmul.f32 %v3284, %v3358
    %v3375 = vmul.f32 %v3289, %v3359
    %v3376 = vmul.f32 %v3292, %v3360
    %v3377 = vmul.f32 %v3297, %v3361
    %v3378 = vmul.f32 %v3300, %v3362
    %v3379 = vmul.f32 %v3305, %v3363
    %v3380 = vmul.f32 %v3308, %v3364
    %v3381 = vmul.f32 %v3313, %v3365
    %v3382 = vmul.f32 %v3316, %v3366
    %v3384 = vsel %vm1406, %v2481, 0
    %v3387 = vsel %vm1406, %v2482, 0
    %v3390 = vsel %vm1406, %v2483, 0
    %v3393 = vsel %vm1406, %v2484, 0
    %v3396 = vsel %vm1406, %v2485, 0
    %v3399 = vsel %vm1406, %v2486, 0
    %v3402 = vsel %vm1406, %v2487, 0
    %v3405 = vsel %vm1406, %v2488, 0
    %v3408 = vsel %vm1406, %v2723, 0
    %v3411 = vsel %vm1406, %v2724, 0
    %v3414 = vsel %vm1406, %v2725, 0
    %v3417 = vsel %vm1406, %v2726, 0
    %v3420 = vsel %vm1406, %v2727, 0
    %v3423 = vsel %vm1406, %v2728, 0
    %v3426 = vsel %vm1406, %v2729, 0
    %v3429 = vsel %vm1406, %v2730, 0
    %3431 = vmatprep.subr.bf16.mxu0 0
    %3432 = vmatpush1.bf16.xpose.msra.mxu0 %v3408
    %3433 = vmatprep.subr.bf16.mxu0 0
    %3434 = vmatpush1.bf16.xpose.msra.mxu0 %v3411
    %3435 = vmatprep.subr.bf16.mxu0 0
    %3436 = vmatpush1.bf16.xpose.msra.mxu0 %v3414
    %3437 = vmatprep.subr.bf16.mxu0 0
    %3438 = vmatpush1.bf16.xpose.msra.mxu0 %v3417
    %3439 = vmatprep.subr.bf16.mxu0 0
    %3440 = vmatpush1.bf16.xpose.msra.mxu0 %v3420
    %3441 = vmatprep.subr.bf16.mxu0 0
    %3442 = vmatpush1.bf16.xpose.msra.mxu0 %v3423
    %3443 = vmatprep.subr.bf16.mxu0 0
    %3444 = vmatpush1.bf16.xpose.msra.mxu0 %v3426
    %3445 = vmatprep.subr.bf16.mxu0 0
    %3446 = vmatpush1.bf16.xpose.msra.mxu0 %v3429
    %3447 = vmatprep.subr.bf16.mxu0 0
    %3448 = vmatpush1.bf16.xpose.msra.mxu0 0
    %3449 = vmatprep.subr.bf16.mxu0 0
    %3450 = vmatpush1.bf16.xpose.msra.mxu0 0
    %3451 = vmatprep.subr.bf16.mxu0 0
    %3452 = vmatpush1.bf16.xpose.msra.mxu0 0
    %3453 = vmatprep.subr.bf16.mxu0 0
    %3454 = vmatpush1.bf16.xpose.msra.mxu0 0
    %3455 = vmatprep.subr.bf16.mxu0 0
    %3456 = vmatpush1.bf16.xpose.msra.mxu0 0
    %3457 = vmatprep.subr.bf16.mxu0 0
    %3458 = vmatpush1.bf16.xpose.msra.mxu0 0
    %3459 = vmatprep.subr.bf16.mxu0 0
    %3460 = vmatpush1.bf16.xpose.msra.mxu0 0
    %3461 = vmatprep.subr.bf16.mxu0 0
    %3462 = vmatpush1.bf16.xpose.msra.mxu0 0
    %3463 = vmatprep.mubr.bf16.mxu0 0
    %3464 = vmatmul.mubr.bf16.gmra.mrb[0].mxu0 %v3384
    %v3465 = vpop.f32.mrb[0].mxu0
    %v3466 = vadd.f32 0.0, %v3465
    %v3467 = vpop.f32.mrb[0].mxu0
    %v3468 = vpop.f32.mrb[0].mxu0
    %v3469 = vadd.f32 0.0, %v3468
    %v3470 = vpop.f32.mrb[0].mxu0
    %3471 = vmatprep.mubr.bf16.mxu0 0
    %3472 = vmatmul.mubr.bf16.gmra.mrb[0].mxu0 %v3387
    %v3473 = vpop.f32.mrb[0].mxu0
    %v3474 = vadd.f32 0.0, %v3473
    %v3475 = vpop.f32.mrb[0].mxu0
    %v3476 = vpop.f32.mrb[0].mxu0
    %v3477 = vadd.f32 0.0, %v3476
    %v3478 = vpop.f32.mrb[0].mxu0
    %3479 = vmatprep.mubr.bf16.mxu0 0
    %3480 = vmatmul.mubr.bf16.gmra.mrb[0].mxu0 %v3390
    %v3481 = vpop.f32.mrb[0].mxu0
    %v3482 = vadd.f32 0.0, %v3481
    %v3483 = vpop.f32.mrb[0].mxu0
    %v3484 = vpop.f32.mrb[0].mxu0
    %v3485 = vadd.f32 0.0, %v3484
    %v3486 = vpop.f32.mrb[0].mxu0
    %3487 = vmatprep.mubr.bf16.mxu0 0
    %3488 = vmatmul.mubr.bf16.gmra.mrb[0].mxu0 %v3393
    %v3489 = vpop.f32.mrb[0].mxu0
    %v3490 = vadd.f32 0.0, %v3489
    %v3491 = vpop.f32.mrb[0].mxu0
    %v3492 = vpop.f32.mrb[0].mxu0
    %v3493 = vadd.f32 0.0, %v3492
    %v3494 = vpop.f32.mrb[0].mxu0
    %3495 = vmatprep.mubr.bf16.mxu0 0
    %3496 = vmatmul.mubr.bf16.gmra.mrb[0].mxu0 %v3396
    %v3497 = vpop.f32.mrb[0].mxu0
    %v3498 = vadd.f32 0.0, %v3497
    %v3499 = vpop.f32.mrb[0].mxu0
    %v3500 = vpop.f32.mrb[0].mxu0
    %v3501 = vadd.f32 0.0, %v3500
    %v3502 = vpop.f32.mrb[0].mxu0
    %3503 = vmatprep.mubr.bf16.mxu0 0
    %3504 = vmatmul.mubr.bf16.gmra.mrb[0].mxu0 %v3399
    %v3505 = vpop.f32.mrb[0].mxu0
    %v3506 = vadd.f32 0.0, %v3505
    %v3507 = vpop.f32.mrb[0].mxu0
    %v3508 = vpop.f32.mrb[0].mxu0
    %v3509 = vadd.f32 0.0, %v3508
    %v3510 = vpop.f32.mrb[0].mxu0
    %3511 = vmatprep.mubr.bf16.mxu0 0
    %3512 = vmatmul.mubr.bf16.gmra.mrb[0].mxu0 %v3402
    %v3513 = vpop.f32.mrb[0].mxu0
    %v3514 = vadd.f32 0.0, %v3513
    %v3515 = vpop.f32.mrb[0].mxu0
    %v3516 = vpop.f32.mrb[0].mxu0
    %v3517 = vadd.f32 0.0, %v3516
    %v3518 = vpop.f32.mrb[0].mxu0
    %3519 = vmatprep.mubr.bf16.mxu0 0
    %3520 = vmatmul.mubr.bf16.gmra.mrb[0].mxu0 %v3405
    %v3521 = vpop.f32.mrb[0].mxu0
    %v3522 = vadd.f32 0.0, %v3521
    %v3523 = vpop.f32.mrb[0].mxu0
    %v3524 = vpop.f32.mrb[0].mxu0
    %v3525 = vadd.f32 0.0, %v3524
    %v3526 = vpop.f32.mrb[0].mxu0
    %3527 = vdwg.mxu0
    %v3528 = vsel %vm667, %v3466, -inf
    %v3529 = vsel %vm668, %v3469, -inf
    %v3530 = vsel %vm669, %v3474, -inf
    %v3531 = vsel %vm670, %v3477, -inf
    %v3532 = vsel %vm671, %v3482, -inf
    %v3533 = vsel %vm672, %v3485, -inf
    %v3534 = vsel %vm673, %v3490, -inf
    %v3535 = vsel %vm674, %v3493, -inf
    %v3536 = vsel %vm675, %v3498, -inf
    %v3537 = vsel %vm676, %v3501, -inf
    %v3538 = vsel %vm677, %v3506, -inf
    %v3539 = vsel %vm678, %v3509, -inf
    %v3540 = vsel %vm679, %v3514, -inf
    %v3541 = vsel %vm680, %v3517, -inf
    %v3542 = vsel %vm681, %v3522, -inf
    %v3543 = vsel %vm682, %v3525, -inf
    %3544 = vmax.xlane.f32.xlu0 %v3528
    %v3545 = vpop.xlane.xlu0 %3544
    %3546 = vmax.xlane.f32.xlu0 %v3529
    %v3547 = vpop.xlane.xlu0 %3546
    %3548 = vmax.xlane.f32.xlu0 %v3530
    %v3549 = vpop.xlane.xlu0 %3548
    %3550 = vmax.xlane.f32.xlu0 %v3531
    %v3551 = vpop.xlane.xlu0 %3550
    %3552 = vmax.xlane.f32.xlu0 %v3532
    %v3553 = vpop.xlane.xlu0 %3552
    %3554 = vmax.xlane.f32.xlu0 %v3533
    %v3555 = vpop.xlane.xlu0 %3554
    %3556 = vmax.xlane.f32.xlu0 %v3534
    %v3557 = vpop.xlane.xlu0 %3556
    %3558 = vmax.xlane.f32.xlu0 %v3535
    %v3559 = vpop.xlane.xlu0 %3558
    %3560 = vmax.xlane.f32.xlu0 %v3536
    %v3561 = vpop.xlane.xlu0 %3560
    %3562 = vmax.xlane.f32.xlu0 %v3537
    %v3563 = vpop.xlane.xlu0 %3562
    %3564 = vmax.xlane.f32.xlu0 %v3538
    %v3565 = vpop.xlane.xlu0 %3564
    %3566 = vmax.xlane.f32.xlu0 %v3539
    %v3567 = vpop.xlane.xlu0 %3566
    %3568 = vmax.xlane.f32.xlu0 %v3540
    %v3569 = vpop.xlane.xlu0 %3568
    %3570 = vmax.xlane.f32.xlu0 %v3541
    %v3571 = vpop.xlane.xlu0 %3570
    %3572 = vmax.xlane.f32.xlu0 %v3542
    %v3573 = vpop.xlane.xlu0 %3572
    %3574 = vmax.xlane.f32.xlu0 %v3543
    %v3575 = vpop.xlane.xlu0 %3574
    %v3576 = vsub.f32 %v3528, %v3545
    %v3577 = vsub.f32 %v3529, %v3547
    %v3578 = vsub.f32 %v3530, %v3549
    %v3579 = vsub.f32 %v3531, %v3551
    %v3580 = vsub.f32 %v3532, %v3553
    %v3581 = vsub.f32 %v3533, %v3555
    %v3582 = vsub.f32 %v3534, %v3557
    %v3583 = vsub.f32 %v3535, %v3559
    %v3584 = vsub.f32 %v3536, %v3561
    %v3585 = vsub.f32 %v3537, %v3563
    %v3586 = vsub.f32 %v3538, %v3565
    %v3587 = vsub.f32 %v3539, %v3567
    %v3588 = vsub.f32 %v3540, %v3569
    %v3589 = vsub.f32 %v3541, %v3571
    %v3590 = vsub.f32 %v3542, %v3573
    %v3591 = vsub.f32 %v3543, %v3575
    %v3592 = vmul.f32 %v3576, 1.442695
    %v3593 = vpow.pop %v3592
    %v3594 = vmul.f32 %v3577, 1.442695
    %v3595 = vpow.pop %v3594
    %v3596 = vmul.f32 %v3578, 1.442695
    %v3597 = vpow.pop %v3596
    %v3598 = vmul.f32 %v3579, 1.442695
    %v3599 = vpow.pop %v3598
    %v3600 = vmul.f32 %v3580, 1.442695
    %v3601 = vpow.pop %v3600
    %v3602 = vmul.f32 %v3581, 1.442695
    %v3603 = vpow.pop %v3602
    %v3604 = vmul.f32 %v3582, 1.442695
    %v3605 = vpow.pop %v3604
    %v3606 = vmul.f32 %v3583, 1.442695
    %v3607 = vpow.pop %v3606
    %v3608 = vmul.f32 %v3584, 1.442695
    %v3609 = vpow.pop %v3608
    %v3610 = vmul.f32 %v3585, 1.442695
    %v3611 = vpow.pop %v3610
    %v3612 = vmul.f32 %v3586, 1.442695
    %v3613 = vpow.pop %v3612
    %v3614 = vmul.f32 %v3587, 1.442695
    %v3615 = vpow.pop %v3614
    %v3616 = vmul.f32 %v3588, 1.442695
    %v3617 = vpow.pop %v3616
    %v3618 = vmul.f32 %v3589, 1.442695
    %v3619 = vpow.pop %v3618
    %v3620 = vmul.f32 %v3590, 1.442695
    %v3621 = vpow.pop %v3620
    %v3622 = vmul.f32 %v3591, 1.442695
    %v3623 = vpow.pop %v3622
    %v3624 = vpack.c.bf16 %v3595, %v3593
    %v3625 = vpack.c.bf16 %v3599, %v3597
    %v3626 = vpack.c.bf16 %v3603, %v3601
    %v3627 = vpack.c.bf16 %v3607, %v3605
    %v3628 = vpack.c.bf16 %v3611, %v3609
    %v3629 = vpack.c.bf16 %v3615, %v3613
    %v3630 = vpack.c.bf16 %v3619, %v3617
    %v3631 = vpack.c.bf16 %v3623, %v3621
    %3632 = vmatprep.subr.bf16.mxu0 0
    %3633 = vmatpush1.bf16.msra.mxu0 %v2965
    %3634 = vmatprep.subr.bf16.mxu0 0
    %3635 = vmatpush1.bf16.msra.mxu0 %v2966
    %3636 = vmatprep.subr.bf16.mxu0 0
    %3637 = vmatpush1.bf16.msra.mxu0 %v2967
    %3638 = vmatprep.subr.bf16.mxu0 0
    %3639 = vmatpush1.bf16.msra.mxu0 %v2968
    %3640 = vmatprep.subr.bf16.mxu0 0
    %3641 = vmatpush1.bf16.msra.mxu0 %v2969
    %3642 = vmatprep.subr.bf16.mxu0 0
    %3643 = vmatpush1.bf16.msra.mxu0 %v2970
    %3644 = vmatprep.subr.bf16.mxu0 0
    %3645 = vmatpush1.bf16.msra.mxu0 %v2971
    %3646 = vmatprep.subr.bf16.mxu0 0
    %3647 = vmatpush1.bf16.msra.mxu0 %v2972
    %3648 = vmatprep.subr.bf16.mxu0 0
    %3649 = vmatpush1.bf16.msra.mxu0 0
    %3650 = vmatprep.subr.bf16.mxu0 0
    %3651 = vmatpush1.bf16.msra.mxu0 0
    %3652 = vmatprep.subr.bf16.mxu0 0
    %3653 = vmatpush1.bf16.msra.mxu0 0
    %3654 = vmatprep.subr.bf16.mxu0 0
    %3655 = vmatpush1.bf16.msra.mxu0 0
    %3656 = vmatprep.subr.bf16.mxu0 0
    %3657 = vmatpush1.bf16.msra.mxu0 0
    %3658 = vmatprep.subr.bf16.mxu0 0
    %3659 = vmatpush1.bf16.msra.mxu0 0
    %3660 = vmatprep.subr.bf16.mxu0 0
    %3661 = vmatpush1.bf16.msra.mxu0 0
    %3662 = vmatprep.subr.bf16.mxu0 0
    %3663 = vmatpush1.bf16.msra.mxu0 0
    %3664 = vmatprep.mubr.bf16.mxu0 0
    %3665 = vmatmul.mubr.bf16.gmra.mrb[0].mxu0 %v3624
    %v3666 = vpop.f32.mrb[0].mxu0
    %v3667 = vadd.f32 0.0, %v3666
    %v3668 = vpop.f32.mrb[0].mxu0
    %v3669 = vpop.f32.mrb[0].mxu0
    %v3670 = vadd.f32 0.0, %v3669
    %v3671 = vpop.f32.mrb[0].mxu0
    %3672 = vmatprep.mubr.bf16.mxu0 0
    %3673 = vmatmul.mubr.bf16.gmra.mrb[0].mxu0 %v3625
    %v3674 = vpop.f32.mrb[0].mxu0
    %v3675 = vadd.f32 0.0, %v3674
    %v3676 = vpop.f32.mrb[0].mxu0
    %v3677 = vpop.f32.mrb[0].mxu0
    %v3678 = vadd.f32 0.0, %v3677
    %v3679 = vpop.f32.mrb[0].mxu0
    %3680 = vmatprep.mubr.bf16.mxu0 0
    %3681 = vmatmul.mubr.bf16.gmra.mrb[0].mxu0 %v3626
    %v3682 = vpop.f32.mrb[0].mxu0
    %v3683 = vadd.f32 0.0, %v3682
    %v3684 = vpop.f32.mrb[0].mxu0
    %v3685 = vpop.f32.mrb[0].mxu0
    %v3686 = vadd.f32 0.0, %v3685
    %v3687 = vpop.f32.mrb[0].mxu0
    %3688 = vmatprep.mubr.bf16.mxu0 0
    %3689 = vmatmul.mubr.bf16.gmra.mrb[0].mxu0 %v3627
    %v3690 = vpop.f32.mrb[0].mxu0
    %v3691 = vadd.f32 0.0, %v3690
    %v3692 = vpop.f32.mrb[0].mxu0
    %v3693 = vpop.f32.mrb[0].mxu0
    %v3694 = vadd.f32 0.0, %v3693
    %v3695 = vpop.f32.mrb[0].mxu0
    %3696 = vmatprep.mubr.bf16.mxu0 0
    %3697 = vmatmul.mubr.bf16.gmra.mrb[0].mxu0 %v3628
    %v3698 = vpop.f32.mrb[0].mxu0
    %v3699 = vadd.f32 0.0, %v3698
    %v3700 = vpop.f32.mrb[0].mxu0
    %v3701 = vpop.f32.mrb[0].mxu0
    %v3702 = vadd.f32 0.0, %v3701
    %v3703 = vpop.f32.mrb[0].mxu0
    %3704 = vmatprep.mubr.bf16.mxu0 0
    %3705 = vmatmul.mubr.bf16.gmra.mrb[0].mxu0 %v3629
    %v3706 = vpop.f32.mrb[0].mxu0
    %v3707 = vadd.f32 0.0, %v3706
    %v3708 = vpop.f32.mrb[0].mxu0
    %v3709 = vpop.f32.mrb[0].mxu0
    %v3710 = vadd.f32 0.0, %v3709
    %v3711 = vpop.f32.mrb[0].mxu0
    %3712 = vmatprep.mubr.bf16.mxu0 0
    %3713 = vmatmul.mubr.bf16.gmra.mrb[0].mxu0 %v3630
    %v3714 = vpop.f32.mrb[0].mxu0
    %v3715 = vadd.f32 0.0, %v3714
    %v3716 = vpop.f32.mrb[0].mxu0
    %v3717 = vpop.f32.mrb[0].mxu0
    %v3718 = vadd.f32 0.0, %v3717
    %v3719 = vpop.f32.mrb[0].mxu0
    %3720 = vmatprep.mubr.bf16.mxu0 0
    %3721 = vmatmul.mubr.bf16.gmra.mrb[0].mxu0 %v3631
    %v3722 = vpop.f32.mrb[0].mxu0
    %v3723 = vadd.f32 0.0, %v3722
    %v3724 = vpop.f32.mrb[0].mxu0
    %v3725 = vpop.f32.mrb[0].mxu0
    %v3726 = vadd.f32 0.0, %v3725
    %v3727 = vpop.f32.mrb[0].mxu0
    %3728 = vdwg.mxu0
    %3729 = vadd.xlane.f32.xlu0 %v3593
    %v3730 = vpop.xlane.xlu0 %3729
    %3731 = vadd.xlane.f32.xlu0 %v3595
    %v3732 = vpop.xlane.xlu0 %3731
    %3733 = vadd.xlane.f32.xlu0 %v3597
    %v3734 = vpop.xlane.xlu0 %3733
    %3735 = vadd.xlane.f32.xlu0 %v3599
    %v3736 = vpop.xlane.xlu0 %3735
    %3737 = vadd.xlane.f32.xlu0 %v3601
    %v3738 = vpop.xlane.xlu0 %3737
    %3739 = vadd.xlane.f32.xlu0 %v3603
    %v3740 = vpop.xlane.xlu0 %3739
    %3741 = vadd.xlane.f32.xlu0 %v3605
    %v3742 = vpop.xlane.xlu0 %3741
    %3743 = vadd.xlane.f32.xlu0 %v3607
    %v3744 = vpop.xlane.xlu0 %3743
    %3745 = vadd.xlane.f32.xlu0 %v3609
    %v3746 = vpop.xlane.xlu0 %3745
    %3747 = vadd.xlane.f32.xlu0 %v3611
    %v3748 = vpop.xlane.xlu0 %3747
    %3749 = vadd.xlane.f32.xlu0 %v3613
    %v3750 = vpop.xlane.xlu0 %3749
    %3751 = vadd.xlane.f32.xlu0 %v3615
    %v3752 = vpop.xlane.xlu0 %3751
    %3753 = vadd.xlane.f32.xlu0 %v3617
    %v3754 = vpop.xlane.xlu0 %3753
    %3755 = vadd.xlane.f32.xlu0 %v3619
    %v3756 = vpop.xlane.xlu0 %3755
    %3757 = vadd.xlane.f32.xlu0 %v3621
    %v3758 = vpop.xlane.xlu0 %3757
    %3759 = vadd.xlane.f32.xlu0 %v3623
    %v3760 = vpop.xlane.xlu0 %3759
    %v3761 = vrcp.pop %v3730
    %v3762 = vrcp.pop %v3732
    %v3763 = vrcp.pop %v3734
    %v3764 = vrcp.pop %v3736
    %v3765 = vrcp.pop %v3738
    %v3766 = vrcp.pop %v3740
    %v3767 = vrcp.pop %v3742
    %v3768 = vrcp.pop %v3744
    %v3769 = vrcp.pop %v3746
    %v3770 = vrcp.pop %v3748
    %v3771 = vrcp.pop %v3750
    %v3772 = vrcp.pop %v3752
    %v3773 = vrcp.pop %v3754
    %v3774 = vrcp.pop %v3756
    %v3775 = vrcp.pop %v3758
    %v3776 = vrcp.pop %v3760
    %v3777 = vmul.f32 %v3667, %v3761
    %v3778 = vmul.f32 %v3670, %v3762
    %v3779 = vmul.f32 %v3675, %v3763
    %v3780 = vmul.f32 %v3678, %v3764
    %v3781 = vmul.f32 %v3683, %v3765
    %v3782 = vmul.f32 %v3686, %v3766
    %v3783 = vmul.f32 %v3691, %v3767
    %v3784 = vmul.f32 %v3694, %v3768
    %v3785 = vmul.f32 %v3699, %v3769
    %v3786 = vmul.f32 %v3702, %v3770
    %v3787 = vmul.f32 %v3707, %v3771
    %v3788 = vmul.f32 %v3710, %v3772
    %v3789 = vmul.f32 %v3715, %v3773
    %v3790 = vmul.f32 %v3718, %v3774
    %v3791 = vmul.f32 %v3723, %v3775
    %v3792 = vmul.f32 %v3726, %v3776
    %v3793 = vpack.c.bf16 %v3368, %v3367
    %v3794 = vpack.c.bf16 %v3370, %v3369
    %v3795 = vpack.c.bf16 %v3372, %v3371
    %v3796 = vpack.c.bf16 %v3374, %v3373
    %v3797 = vpack.c.bf16 %v3376, %v3375
    %v3798 = vpack.c.bf16 %v3378, %v3377
    %v3799 = vpack.c.bf16 %v3380, %v3379
    %v3800 = vpack.c.bf16 %v3382, %v3381
    %v3801 = vpack.c.bf16 %v3778, %v3777
    %v3802 = vpack.c.bf16 %v3780, %v3779
    %v3803 = vpack.c.bf16 %v3782, %v3781
    %v3804 = vpack.c.bf16 %v3784, %v3783
    %v3805 = vpack.c.bf16 %v3786, %v3785
    %v3806 = vpack.c.bf16 %v3788, %v3787
    %v3807 = vpack.c.bf16 %v3790, %v3789
    %v3808 = vpack.c.bf16 %v3792, %v3791
    %s3809 = scalar_lea.vmem %s6, 16
    %v3810 = vld [vmem:[%s3809] sm:$0xf]
    %v3811 = vld [vmem:[%s3809 + $0x4] sm:$0xf]
    %v3812 = vld [vmem:[%s3809 + $0x8] sm:$0xf]
    %v3813 = vld [vmem:[%s3809 + $0xc] sm:$0xf]
    %v3818 = vunpack.c.l.b16 %v3810
    %v3819 = vunpack.c.l.b16 %v3811
    %v3820 = vunpack.c.l.b16 %v3812
    %v3821 = vunpack.c.l.b16 %v3813
    %v3822 = vpack.c.b16 %v3819, %v3818
    %v3823 = vpack.c.b16 %v3821, %v3820
    %v3827 = vsel %vm1406, %v3793, 0
    %v3830 = vsel %vm1406, %v3794, 0
    %v3833 = vsel %vm1406, %v3795, 0
    %v3836 = vsel %vm1406, %v3796, 0
    %v3839 = vsel %vm1406, %v3797, 0
    %v3842 = vsel %vm1406, %v3798, 0
    %v3845 = vsel %vm1406, %v3799, 0
    %v3848 = vsel %vm1406, %v3800, 0
    %v3851 = vsel %vm1406, %v3801, 0
    %v3854 = vsel %vm1406, %v3802, 0
    %v3857 = vsel %vm1406, %v3803, 0
    %v3860 = vsel %vm1406, %v3804, 0
    %v3863 = vsel %vm1406, %v3805, 0
    %v3866 = vsel %vm1406, %v3806, 0
    %v3869 = vsel %vm1406, %v3807, 0
    %v3872 = vsel %vm1406, %v3808, 0
    %3874 = vmatprep.subr.bf16.mxu0 0
    %3875 = vmatpush1.bf16.msra.mxu0 %v3822
    %3876 = vmatprep.subr.bf16.mxu0 0
    %3877 = vmatpush1.bf16.msra.mxu0 %v3823
    %3878 = vmatprep.subr.bf16.mxu0 0
    %3879 = vmatpush1.bf16.msra.mxu0 0
    %3880 = vmatprep.subr.bf16.mxu0 0
    %3881 = vmatpush1.bf16.msra.mxu0 0
    %3882 = vmatprep.subr.bf16.mxu0 0
    %3883 = vmatpush1.bf16.msra.mxu0 0
    %3884 = vmatprep.subr.bf16.mxu0 0
    %3885 = vmatpush1.bf16.msra.mxu0 0
    %3886 = vmatprep.subr.bf16.mxu0 0
    %3887 = vmatpush1.bf16.msra.mxu0 0
    %3888 = vmatprep.subr.bf16.mxu0 0
    %3889 = vmatpush1.bf16.msra.mxu0 0
    %3890 = vmatprep.subr.bf16.mxu0 0
    %3891 = vmatpush1.bf16.msra.mxu0 0
    %3892 = vmatprep.subr.bf16.mxu0 0
    %3893 = vmatpush1.bf16.msra.mxu0 0
    %3894 = vmatprep.subr.bf16.mxu0 0
    %3895 = vmatpush1.bf16.msra.mxu0 0
    %3896 = vmatprep.subr.bf16.mxu0 0
    %3897 = vmatpush1.bf16.msra.mxu0 0
    %3898 = vmatprep.subr.bf16.mxu0 0
    %3899 = vmatpush1.bf16.msra.mxu0 0
    %3900 = vmatprep.subr.bf16.mxu0 0
    %3901 = vmatpush1.bf16.msra.mxu0 0
    %3902 = vmatprep.subr.bf16.mxu0 0
    %3903 = vmatpush1.bf16.msra.mxu0 0
    %3904 = vmatprep.subr.bf16.mxu0 0
    %3905 = vmatpush1.bf16.msra.mxu0 0
    %3906 = vmatprep.mubr.bf16.mxu0 0
    %3907 = vmatmul.mubr.bf16.gmra.mrb[0].mxu0 %v3827
    %v3908 = vpop.f32.mrb[0].mxu0
    %v3909 = vadd.f32 0.0, %v3908
    %v3910 = vpop.f32.mrb[0].mxu0
    %v3911 = vpop.f32.mrb[0].mxu0
    %v3912 = vadd.f32 0.0, %v3911
    %v3913 = vpop.f32.mrb[0].mxu0
    %3914 = vmatprep.mubr.bf16.mxu0 0
    %3915 = vmatmul.mubr.bf16.gmra.mrb[0].mxu0 %v3830
    %v3916 = vpop.f32.mrb[0].mxu0
    %v3917 = vadd.f32 0.0, %v3916
    %v3918 = vpop.f32.mrb[0].mxu0
    %v3919 = vpop.f32.mrb[0].mxu0
    %v3920 = vadd.f32 0.0, %v3919
    %v3921 = vpop.f32.mrb[0].mxu0
    %3922 = vmatprep.mubr.bf16.mxu0 0
    %3923 = vmatmul.mubr.bf16.gmra.mrb[0].mxu0 %v3833
    %v3924 = vpop.f32.mrb[0].mxu0
    %v3925 = vadd.f32 0.0, %v3924
    %v3926 = vpop.f32.mrb[0].mxu0
    %v3927 = vpop.f32.mrb[0].mxu0
    %v3928 = vadd.f32 0.0, %v3927
    %v3929 = vpop.f32.mrb[0].mxu0
    %3930 = vmatprep.mubr.bf16.mxu0 0
    %3931 = vmatmul.mubr.bf16.gmra.mrb[0].mxu0 %v3836
    %v3932 = vpop.f32.mrb[0].mxu0
    %v3933 = vadd.f32 0.0, %v3932
    %v3934 = vpop.f32.mrb[0].mxu0
    %v3935 = vpop.f32.mrb[0].mxu0
    %v3936 = vadd.f32 0.0, %v3935
    %v3937 = vpop.f32.mrb[0].mxu0
    %3938 = vmatprep.mubr.bf16.mxu0 0
    %3939 = vmatmul.mubr.bf16.gmra.mrb[0].mxu0 %v3839
    %v3940 = vpop.f32.mrb[0].mxu0
    %v3941 = vadd.f32 0.0, %v3940
    %v3942 = vpop.f32.mrb[0].mxu0
    %v3943 = vpop.f32.mrb[0].mxu0
    %v3944 = vadd.f32 0.0, %v3943
    %v3945 = vpop.f32.mrb[0].mxu0
    %3946 = vmatprep.mubr.bf16.mxu0 0
    %3947 = vmatmul.mubr.bf16.gmra.mrb[0].mxu0 %v3842
    %v3948 = vpop.f32.mrb[0].mxu0
    %v3949 = vadd.f32 0.0, %v3948
    %v3950 = vpop.f32.mrb[0].mxu0
    %v3951 = vpop.f32.mrb[0].mxu0
    %v3952 = vadd.f32 0.0, %v3951
    %v3953 = vpop.f32.mrb[0].mxu0
    %3954 = vmatprep.mubr.bf16.mxu0 0
    %3955 = vmatmul.mubr.bf16.gmra.mrb[0].mxu0 %v3845
    %v3956 = vpop.f32.mrb[0].mxu0
    %v3957 = vadd.f32 0.0, %v3956
    %v3958 = vpop.f32.mrb[0].mxu0
    %v3959 = vpop.f32.mrb[0].mxu0
    %v3960 = vadd.f32 0.0, %v3959
    %v3961 = vpop.f32.mrb[0].mxu0
    %3962 = vmatprep.mubr.bf16.mxu0 0
    %3963 = vmatmul.mubr.bf16.gmra.mrb[0].mxu0 %v3848
    %v3964 = vpop.f32.mrb[0].mxu0
    %v3965 = vadd.f32 0.0, %v3964
    %v3966 = vpop.f32.mrb[0].mxu0
    %v3967 = vpop.f32.mrb[0].mxu0
    %v3968 = vadd.f32 0.0, %v3967
    %v3969 = vpop.f32.mrb[0].mxu0
    %3970 = vmatprep.mubr.bf16.mxu0 0
    %3971 = vmatmul.mubr.bf16.gmra.mrb[0].mxu0 %v3851
    %v3972 = vpop.f32.mrb[0].mxu0
    %v3973 = vadd.f32 0.0, %v3972
    %v3974 = vpop.f32.mrb[0].mxu0
    %v3975 = vpop.f32.mrb[0].mxu0
    %v3976 = vadd.f32 0.0, %v3975
    %v3977 = vpop.f32.mrb[0].mxu0
    %3978 = vmatprep.mubr.bf16.mxu0 0
    %3979 = vmatmul.mubr.bf16.gmra.mrb[0].mxu0 %v3854
    %v3980 = vpop.f32.mrb[0].mxu0
    %v3981 = vadd.f32 0.0, %v3980
    %v3982 = vpop.f32.mrb[0].mxu0
    %v3983 = vpop.f32.mrb[0].mxu0
    %v3984 = vadd.f32 0.0, %v3983
    %v3985 = vpop.f32.mrb[0].mxu0
    %3986 = vmatprep.mubr.bf16.mxu0 0
    %3987 = vmatmul.mubr.bf16.gmra.mrb[0].mxu0 %v3857
    %v3988 = vpop.f32.mrb[0].mxu0
    %v3989 = vadd.f32 0.0, %v3988
    %v3990 = vpop.f32.mrb[0].mxu0
    %v3991 = vpop.f32.mrb[0].mxu0
    %v3992 = vadd.f32 0.0, %v3991
    %v3993 = vpop.f32.mrb[0].mxu0
    %3994 = vmatprep.mubr.bf16.mxu0 0
    %3995 = vmatmul.mubr.bf16.gmra.mrb[0].mxu0 %v3860
    %v3996 = vpop.f32.mrb[0].mxu0
    %v3997 = vadd.f32 0.0, %v3996
    %v3998 = vpop.f32.mrb[0].mxu0
    %v3999 = vpop.f32.mrb[0].mxu0
    %v4000 = vadd.f32 0.0, %v3999
    %v4001 = vpop.f32.mrb[0].mxu0
    %4002 = vmatprep.mubr.bf16.mxu0 0
    %4003 = vmatmul.mubr.bf16.gmra.mrb[0].mxu0 %v3863
    %v4004 = vpop.f32.mrb[0].mxu0
    %v4005 = vadd.f32 0.0, %v4004
    %v4006 = vpop.f32.mrb[0].mxu0
    %v4007 = vpop.f32.mrb[0].mxu0
    %v4008 = vadd.f32 0.0, %v4007
    %v4009 = vpop.f32.mrb[0].mxu0
    %4010 = vmatprep.mubr.bf16.mxu0 0
    %4011 = vmatmul.mubr.bf16.gmra.mrb[0].mxu0 %v3866
    %v4012 = vpop.f32.mrb[0].mxu0
    %v4013 = vadd.f32 0.0, %v4012
    %v4014 = vpop.f32.mrb[0].mxu0
    %v4015 = vpop.f32.mrb[0].mxu0
    %v4016 = vadd.f32 0.0, %v4015
    %v4017 = vpop.f32.mrb[0].mxu0
    %4018 = vmatprep.mubr.bf16.mxu0 0
    %4019 = vmatmul.mubr.bf16.gmra.mrb[0].mxu0 %v3869
    %v4020 = vpop.f32.mrb[0].mxu0
    %v4021 = vadd.f32 0.0, %v4020
    %v4022 = vpop.f32.mrb[0].mxu0
    %v4023 = vpop.f32.mrb[0].mxu0
    %v4024 = vadd.f32 0.0, %v4023
    %v4025 = vpop.f32.mrb[0].mxu0
    %4026 = vmatprep.mubr.bf16.mxu0 0
    %4027 = vmatmul.mubr.bf16.gmra.mrb[0].mxu0 %v3872
    %v4028 = vpop.f32.mrb[0].mxu0
    %v4029 = vadd.f32 0.0, %v4028
    %v4030 = vpop.f32.mrb[0].mxu0
    %v4031 = vpop.f32.mrb[0].mxu0
    %v4032 = vadd.f32 0.0, %v4031
    %v4033 = vpop.f32.mrb[0].mxu0
    %4034 = vdwg.mxu0
    %v4039 = vunpack.c.l.b16 %v2243
    %v4040 = vunpack.c.l.b16 %v2244
    %v4041 = vunpack.c.l.b16 %v2245
    %v4042 = vunpack.c.l.b16 %v2246
    %v4043 = vpack.c.b16 %v4040, %v4039
    %v4044 = vpack.c.b16 %v4042, %v4041
    %v4048 = vsel %vm1406, %v2227, 0
    %v4051 = vsel %vm1406, %v2228, 0
    %v4054 = vsel %vm1406, %v2229, 0
    %v4057 = vsel %vm1406, %v2230, 0
    %v4060 = vsel %vm1406, %v2231, 0
    %v4063 = vsel %vm1406, %v2232, 0
    %v4066 = vsel %vm1406, %v2233, 0
    %v4069 = vsel %vm1406, %v2234, 0
    %v4072 = vsel %vm1406, %v2235, 0
    %v4075 = vsel %vm1406, %v2236, 0
    %v4078 = vsel %vm1406, %v2237, 0
    %v4081 = vsel %vm1406, %v2238, 0
    %v4084 = vsel %vm1406, %v2239, 0
    %v4087 = vsel %vm1406, %v2240, 0
    %v4090 = vsel %vm1406, %v2241, 0
    %v4093 = vsel %vm1406, %v2242, 0
    %4095 = vmatprep.subr.bf16.mxu0 0
    %4096 = vmatpush1.bf16.msra.mxu0 %v4043
    %4097 = vmatprep.subr.bf16.mxu0 0
    %4098 = vmatpush1.bf16.msra.mxu0 %v4044
    %4099 = vmatprep.subr.bf16.mxu0 0
    %4100 = vmatpush1.bf16.msra.mxu0 0
    %4101 = vmatprep.subr.bf16.mxu0 0
    %4102 = vmatpush1.bf16.msra.mxu0 0
    %4103 = vmatprep.subr.bf16.mxu0 0
    %4104 = vmatpush1.bf16.msra.mxu0 0
    %4105 = vmatprep.subr.bf16.mxu0 0
    %4106 = vmatpush1.bf16.msra.mxu0 0
    %4107 = vmatprep.subr.bf16.mxu0 0
    %4108 = vmatpush1.bf16.msra.mxu0 0
    %4109 = vmatprep.subr.bf16.mxu0 0
    %4110 = vmatpush1.bf16.msra.mxu0 0
    %4111 = vmatprep.subr.bf16.mxu0 0
    %4112 = vmatpush1.bf16.msra.mxu0 0
    %4113 = vmatprep.subr.bf16.mxu0 0
    %4114 = vmatpush1.bf16.msra.mxu0 0
    %4115 = vmatprep.subr.bf16.mxu0 0
    %4116 = vmatpush1.bf16.msra.mxu0 0
    %4117 = vmatprep.subr.bf16.mxu0 0
    %4118 = vmatpush1.bf16.msra.mxu0 0
    %4119 = vmatprep.subr.bf16.mxu0 0
    %4120 = vmatpush1.bf16.msra.mxu0 0
    %4121 = vmatprep.subr.bf16.mxu0 0
    %4122 = vmatpush1.bf16.msra.mxu0 0
    %4123 = vmatprep.subr.bf16.mxu0 0
    %4124 = vmatpush1.bf16.msra.mxu0 0
    %4125 = vmatprep.subr.bf16.mxu0 0
    %4126 = vmatpush1.bf16.msra.mxu0 0
    %4127 = vmatprep.mubr.bf16.mxu0 0
    %4128 = vmatmul.mubr.bf16.gmra.mrb[0].mxu0 %v4048
    %v4129 = vpop.f32.mrb[0].mxu0
    %v4130 = vadd.f32 %v3909, %v4129
    %v4131 = vpop.f32.mrb[0].mxu0
    %v4132 = vpop.f32.mrb[0].mxu0
    %v4133 = vadd.f32 %v3912, %v4132
    %v4134 = vpop.f32.mrb[0].mxu0
    %4135 = vmatprep.mubr.bf16.mxu0 0
    %4136 = vmatmul.mubr.bf16.gmra.mrb[0].mxu0 %v4051
    %v4137 = vpop.f32.mrb[0].mxu0
    %v4138 = vadd.f32 %v3917, %v4137
    %v4139 = vpop.f32.mrb[0].mxu0
    %v4140 = vpop.f32.mrb[0].mxu0
    %v4141 = vadd.f32 %v3920, %v4140
    %v4142 = vpop.f32.mrb[0].mxu0
    %4143 = vmatprep.mubr.bf16.mxu0 0
    %4144 = vmatmul.mubr.bf16.gmra.mrb[0].mxu0 %v4054
    %v4145 = vpop.f32.mrb[0].mxu0
    %v4146 = vadd.f32 %v3925, %v4145
    %v4147 = vpop.f32.mrb[0].mxu0
    %v4148 = vpop.f32.mrb[0].mxu0
    %v4149 = vadd.f32 %v3928, %v4148
    %v4150 = vpop.f32.mrb[0].mxu0
    %4151 = vmatprep.mubr.bf16.mxu0 0
    %4152 = vmatmul.mubr.bf16.gmra.mrb[0].mxu0 %v4057
    %v4153 = vpop.f32.mrb[0].mxu0
    %v4154 = vadd.f32 %v3933, %v4153
    %v4155 = vpop.f32.mrb[0].mxu0
    %v4156 = vpop.f32.mrb[0].mxu0
    %v4157 = vadd.f32 %v3936, %v4156
    %v4158 = vpop.f32.mrb[0].mxu0
    %4159 = vmatprep.mubr.bf16.mxu0 0
    %4160 = vmatmul.mubr.bf16.gmra.mrb[0].mxu0 %v4060
    %v4161 = vpop.f32.mrb[0].mxu0
    %v4162 = vadd.f32 %v3941, %v4161
    %v4163 = vpop.f32.mrb[0].mxu0
    %v4164 = vpop.f32.mrb[0].mxu0
    %v4165 = vadd.f32 %v3944, %v4164
    %v4166 = vpop.f32.mrb[0].mxu0
    %4167 = vmatprep.mubr.bf16.mxu0 0
    %4168 = vmatmul.mubr.bf16.gmra.mrb[0].mxu0 %v4063
    %v4169 = vpop.f32.mrb[0].mxu0
    %v4170 = vadd.f32 %v3949, %v4169
    %v4171 = vpop.f32.mrb[0].mxu0
    %v4172 = vpop.f32.mrb[0].mxu0
    %v4173 = vadd.f32 %v3952, %v4172
    %v4174 = vpop.f32.mrb[0].mxu0
    %4175 = vmatprep.mubr.bf16.mxu0 0
    %4176 = vmatmul.mubr.bf16.gmra.mrb[0].mxu0 %v4066
    %v4177 = vpop.f32.mrb[0].mxu0
    %v4178 = vadd.f32 %v3957, %v4177
    %v4179 = vpop.f32.mrb[0].mxu0
    %v4180 = vpop.f32.mrb[0].mxu0
    %v4181 = vadd.f32 %v3960, %v4180
    %v4182 = vpop.f32.mrb[0].mxu0
    %4183 = vmatprep.mubr.bf16.mxu0 0
    %4184 = vmatmul.mubr.bf16.gmra.mrb[0].mxu0 %v4069
    %v4185 = vpop.f32.mrb[0].mxu0
    %v4186 = vadd.f32 %v3965, %v4185
    %v4187 = vpop.f32.mrb[0].mxu0
    %v4188 = vpop.f32.mrb[0].mxu0
    %v4189 = vadd.f32 %v3968, %v4188
    %v4190 = vpop.f32.mrb[0].mxu0
    %4191 = vmatprep.mubr.bf16.mxu0 0
    %4192 = vmatmul.mubr.bf16.gmra.mrb[0].mxu0 %v4072
    %v4193 = vpop.f32.mrb[0].mxu0
    %v4194 = vadd.f32 %v3973, %v4193
    %v4195 = vpop.f32.mrb[0].mxu0
    %v4196 = vpop.f32.mrb[0].mxu0
    %v4197 = vadd.f32 %v3976, %v4196
    %v4198 = vpop.f32.mrb[0].mxu0
    %4199 = vmatprep.mubr.bf16.mxu0 0
    %4200 = vmatmul.mubr.bf16.gmra.mrb[0].mxu0 %v4075
    %v4201 = vpop.f32.mrb[0].mxu0
    %v4202 = vadd.f32 %v3981, %v4201
    %v4203 = vpop.f32.mrb[0].mxu0
    %v4204 = vpop.f32.mrb[0].mxu0
    %v4205 = vadd.f32 %v3984, %v4204
    %v4206 = vpop.f32.mrb[0].mxu0
    %4207 = vmatprep.mubr.bf16.mxu0 0
    %4208 = vmatmul.mubr.bf16.gmra.mrb[0].mxu0 %v4078
    %v4209 = vpop.f32.mrb[0].mxu0
    %v4210 = vadd.f32 %v3989, %v4209
    %v4211 = vpop.f32.mrb[0].mxu0
    %v4212 = vpop.f32.mrb[0].mxu0
    %v4213 = vadd.f32 %v3992, %v4212
    %v4214 = vpop.f32.mrb[0].mxu0
    %4215 = vmatprep.mubr.bf16.mxu0 0
    %4216 = vmatmul.mubr.bf16.gmra.mrb[0].mxu0 %v4081
    %v4217 = vpop.f32.mrb[0].mxu0
    %v4218 = vadd.f32 %v3997, %v4217
    %v4219 = vpop.f32.mrb[0].mxu0
    %v4220 = vpop.f32.mrb[0].mxu0
    %v4221 = vadd.f32 %v4000, %v4220
    %v4222 = vpop.f32.mrb[0].mxu0
    %4223 = vmatprep.mubr.bf16.mxu0 0
    %4224 = vmatmul.mubr.bf16.gmra.mrb[0].mxu0 %v4084
    %v4225 = vpop.f32.mrb[0].mxu0
    %v4226 = vadd.f32 %v4005, %v4225
    %v4227 = vpop.f32.mrb[0].mxu0
    %v4228 = vpop.f32.mrb[0].mxu0
    %v4229 = vadd.f32 %v4008, %v4228
    %v4230 = vpop.f32.mrb[0].mxu0
    %4231 = vmatprep.mubr.bf16.mxu0 0
    %4232 = vmatmul.mubr.bf16.gmra.mrb[0].mxu0 %v4087
    %v4233 = vpop.f32.mrb[0].mxu0
    %v4234 = vadd.f32 %v4013, %v4233
    %v4235 = vpop.f32.mrb[0].mxu0
    %v4236 = vpop.f32.mrb[0].mxu0
    %v4237 = vadd.f32 %v4016, %v4236
    %v4238 = vpop.f32.mrb[0].mxu0
    %4239 = vmatprep.mubr.bf16.mxu0 0
    %4240 = vmatmul.mubr.bf16.gmra.mrb[0].mxu0 %v4090
    %v4241 = vpop.f32.mrb[0].mxu0
    %v4242 = vadd.f32 %v4021, %v4241
    %v4243 = vpop.f32.mrb[0].mxu0
    %v4244 = vpop.f32.mrb[0].mxu0
    %v4245 = vadd.f32 %v4024, %v4244
    %v4246 = vpop.f32.mrb[0].mxu0
    %4247 = vmatprep.mubr.bf16.mxu0 0
    %4248 = vmatmul.mubr.bf16.gmra.mrb[0].mxu0 %v4093
    %v4249 = vpop.f32.mrb[0].mxu0
    %v4250 = vadd.f32 %v4029, %v4249
    %v4251 = vpop.f32.mrb[0].mxu0
    %v4252 = vpop.f32.mrb[0].mxu0
    %v4253 = vadd.f32 %v4032, %v4252
    %v4254 = vpop.f32.mrb[0].mxu0
    %4255 = vdwg.mxu0
    %s4256 = scalar_lea.vmem %s3, 128
    %v4257 = vld [vmem:[%s4256] sm:$0xf]
    %v4258 = vld [vmem:[%s4256 + $0x4] sm:$0xf]
    %v4259 = vld [vmem:[%s4256 + $0x8] sm:$0xf]
    %v4260 = vld [vmem:[%s4256 + $0xc] sm:$0xf]
    %v4261 = vld [vmem:[%s4256 + $0x10] sm:$0xf]
    %v4262 = vld [vmem:[%s4256 + $0x14] sm:$0xf]
    %v4263 = vld [vmem:[%s4256 + $0x18] sm:$0xf]
    %v4264 = vld [vmem:[%s4256 + $0x1c] sm:$0xf]
    %v4265 = vld [vmem:[%s4256 + $0x20] sm:$0xf]
    %v4266 = vld [vmem:[%s4256 + $0x24] sm:$0xf]
    %v4267 = vld [vmem:[%s4256 + $0x28] sm:$0xf]
    %v4268 = vld [vmem:[%s4256 + $0x2c] sm:$0xf]
    %v4269 = vld [vmem:[%s4256 + $0x30] sm:$0xf]
    %v4270 = vld [vmem:[%s4256 + $0x34] sm:$0xf]
    %v4271 = vld [vmem:[%s4256 + $0x38] sm:$0xf]
    %v4272 = vld [vmem:[%s4256 + $0x3c] sm:$0xf]
    %v4289 = vunpack.c.l.b16 %v4257
    %v4290 = vunpack.c.l.b16 %v4258
    %v4291 = vunpack.c.l.b16 %v4259
    %v4292 = vunpack.c.l.b16 %v4260
    %v4293 = vunpack.c.l.b16 %v4261
    %v4294 = vunpack.c.l.b16 %v4262
    %v4295 = vunpack.c.l.b16 %v4263
    %v4296 = vunpack.c.l.b16 %v4264
    %v4297 = vunpack.c.l.b16 %v4265
    %v4298 = vunpack.c.l.b16 %v4266
    %v4299 = vunpack.c.l.b16 %v4267
    %v4300 = vunpack.c.l.b16 %v4268
    %v4301 = vunpack.c.l.b16 %v4269
    %v4302 = vunpack.c.l.b16 %v4270
    %v4303 = vunpack.c.l.b16 %v4271
    %v4304 = vunpack.c.l.b16 %v4272
    %v4305 = vpack.c.b16 %v4290, %v4289
    %v4306 = vpack.c.b16 %v4292, %v4291
    %v4307 = vpack.c.b16 %v4294, %v4293
    %v4308 = vpack.c.b16 %v4296, %v4295
    %v4309 = vpack.c.b16 %v4298, %v4297
    %v4310 = vpack.c.b16 %v4300, %v4299
    %v4311 = vpack.c.b16 %v4302, %v4301
    %v4312 = vpack.c.b16 %v4304, %v4303
    %4321 = vmatprep.subr.bf16.mxu0 0
    %4322 = vmatpush1.bf16.msra.mxu0 %v4305
    %4323 = vmatprep.subr.bf16.mxu0 0
    %4324 = vmatpush1.bf16.msra.mxu0 %v4306
    %4325 = vmatprep.subr.bf16.mxu0 0
    %4326 = vmatpush1.bf16.msra.mxu0 %v4307
    %4327 = vmatprep.subr.bf16.mxu0 0
    %4328 = vmatpush1.bf16.msra.mxu0 %v4308
    %4329 = vmatprep.subr.bf16.mxu0 0
    %4330 = vmatpush1.bf16.msra.mxu0 %v4309
    %4331 = vmatprep.subr.bf16.mxu0 0
    %4332 = vmatpush1.bf16.msra.mxu0 %v4310
    %4333 = vmatprep.subr.bf16.mxu0 0
    %4334 = vmatpush1.bf16.msra.mxu0 %v4311
    %4335 = vmatprep.subr.bf16.mxu0 0
    %4336 = vmatpush1.bf16.msra.mxu0 %v4312
    %4337 = vmatprep.subr.bf16.mxu0 0
    %4338 = vmatpush1.bf16.msra.mxu0 0
    %4339 = vmatprep.subr.bf16.mxu0 0
    %4340 = vmatpush1.bf16.msra.mxu0 0
    %4341 = vmatprep.subr.bf16.mxu0 0
    %4342 = vmatpush1.bf16.msra.mxu0 0
    %4343 = vmatprep.subr.bf16.mxu0 0
    %4344 = vmatpush1.bf16.msra.mxu0 0
    %4345 = vmatprep.subr.bf16.mxu0 0
    %4346 = vmatpush1.bf16.msra.mxu0 0
    %4347 = vmatprep.subr.bf16.mxu0 0
    %4348 = vmatpush1.bf16.msra.mxu0 0
    %4349 = vmatprep.subr.bf16.mxu0 0
    %4350 = vmatpush1.bf16.msra.mxu0 0
    %4351 = vmatprep.subr.bf16.mxu0 0
    %4352 = vmatpush1.bf16.msra.mxu0 0
    %4353 = vmatprep.mubr.bf16.mxu0 0
    %4354 = vmatmul.mubr.bf16.gmra.mrb[0].mxu0 %v632
    %v4355 = vpop.f32.mrb[0].mxu0
    %v4356 = vadd.f32 0.0, %v4355
    %v4357 = vpop.f32.mrb[0].mxu0
    %v4358 = vpop.f32.mrb[0].mxu0
    %v4359 = vadd.f32 0.0, %v4358
    %v4360 = vpop.f32.mrb[0].mxu0
    %4361 = vmatprep.mubr.bf16.mxu0 0
    %4362 = vmatmul.mubr.bf16.gmra.mrb[0].mxu0 %v633
    %v4363 = vpop.f32.mrb[0].mxu0
    %v4364 = vadd.f32 0.0, %v4363
    %v4365 = vpop.f32.mrb[0].mxu0
    %v4366 = vpop.f32.mrb[0].mxu0
    %v4367 = vadd.f32 0.0, %v4366
    %v4368 = vpop.f32.mrb[0].mxu0
    %4369 = vmatprep.mubr.bf16.mxu0 0
    %4370 = vmatmul.mubr.bf16.gmra.mrb[0].mxu0 %v634
    %v4371 = vpop.f32.mrb[0].mxu0
    %v4372 = vadd.f32 0.0, %v4371
    %v4373 = vpop.f32.mrb[0].mxu0
    %v4374 = vpop.f32.mrb[0].mxu0
    %v4375 = vadd.f32 0.0, %v4374
    %v4376 = vpop.f32.mrb[0].mxu0
    %4377 = vmatprep.mubr.bf16.mxu0 0
    %4378 = vmatmul.mubr.bf16.gmra.mrb[0].mxu0 %v635
    %v4379 = vpop.f32.mrb[0].mxu0
    %v4380 = vadd.f32 0.0, %v4379
    %v4381 = vpop.f32.mrb[0].mxu0
    %v4382 = vpop.f32.mrb[0].mxu0
    %v4383 = vadd.f32 0.0, %v4382
    %v4384 = vpop.f32.mrb[0].mxu0
    %4385 = vmatprep.mubr.bf16.mxu0 0
    %4386 = vmatmul.mubr.bf16.gmra.mrb[0].mxu0 %v636
    %v4387 = vpop.f32.mrb[0].mxu0
    %v4388 = vadd.f32 0.0, %v4387
    %v4389 = vpop.f32.mrb[0].mxu0
    %v4390 = vpop.f32.mrb[0].mxu0
    %v4391 = vadd.f32 0.0, %v4390
    %v4392 = vpop.f32.mrb[0].mxu0
    %4393 = vmatprep.mubr.bf16.mxu0 0
    %4394 = vmatmul.mubr.bf16.gmra.mrb[0].mxu0 %v637
    %v4395 = vpop.f32.mrb[0].mxu0
    %v4396 = vadd.f32 0.0, %v4395
    %v4397 = vpop.f32.mrb[0].mxu0
    %v4398 = vpop.f32.mrb[0].mxu0
    %v4399 = vadd.f32 0.0, %v4398
    %v4400 = vpop.f32.mrb[0].mxu0
    %4401 = vmatprep.mubr.bf16.mxu0 0
    %4402 = vmatmul.mubr.bf16.gmra.mrb[0].mxu0 %v638
    %v4403 = vpop.f32.mrb[0].mxu0
    %v4404 = vadd.f32 0.0, %v4403
    %v4405 = vpop.f32.mrb[0].mxu0
    %v4406 = vpop.f32.mrb[0].mxu0
    %v4407 = vadd.f32 0.0, %v4406
    %v4408 = vpop.f32.mrb[0].mxu0
    %4409 = vmatprep.mubr.bf16.mxu0 0
    %4410 = vmatmul.mubr.bf16.gmra.mrb[0].mxu0 %v639
    %v4411 = vpop.f32.mrb[0].mxu0
    %v4412 = vadd.f32 0.0, %v4411
    %v4413 = vpop.f32.mrb[0].mxu0
    %v4414 = vpop.f32.mrb[0].mxu0
    %v4415 = vadd.f32 0.0, %v4414
    %v4416 = vpop.f32.mrb[0].mxu0
    %4417 = vmatprep.mubr.bf16.mxu0 0
    %4418 = vmatmul.mubr.bf16.gmra.mrb[0].mxu0 %v640
    %v4419 = vpop.f32.mrb[0].mxu0
    %v4420 = vadd.f32 0.0, %v4419
    %v4421 = vpop.f32.mrb[0].mxu0
    %v4422 = vpop.f32.mrb[0].mxu0
    %v4423 = vadd.f32 0.0, %v4422
    %v4424 = vpop.f32.mrb[0].mxu0
    %4425 = vmatprep.mubr.bf16.mxu0 0
    %4426 = vmatmul.mubr.bf16.gmra.mrb[0].mxu0 %v641
    %v4427 = vpop.f32.mrb[0].mxu0
    %v4428 = vadd.f32 0.0, %v4427
    %v4429 = vpop.f32.mrb[0].mxu0
    %v4430 = vpop.f32.mrb[0].mxu0
    %v4431 = vadd.f32 0.0, %v4430
    %v4432 = vpop.f32.mrb[0].mxu0
    %4433 = vmatprep.mubr.bf16.mxu0 0
    %4434 = vmatmul.mubr.bf16.gmra.mrb[0].mxu0 %v642
    %v4435 = vpop.f32.mrb[0].mxu0
    %v4436 = vadd.f32 0.0, %v4435
    %v4437 = vpop.f32.mrb[0].mxu0
    %v4438 = vpop.f32.mrb[0].mxu0
    %v4439 = vadd.f32 0.0, %v4438
    %v4440 = vpop.f32.mrb[0].mxu0
    %4441 = vmatprep.mubr.bf16.mxu0 0
    %4442 = vmatmul.mubr.bf16.gmra.mrb[0].mxu0 %v643
    %v4443 = vpop.f32.mrb[0].mxu0
    %v4444 = vadd.f32 0.0, %v4443
    %v4445 = vpop.f32.mrb[0].mxu0
    %v4446 = vpop.f32.mrb[0].mxu0
    %v4447 = vadd.f32 0.0, %v4446
    %v4448 = vpop.f32.mrb[0].mxu0
    %4449 = vmatprep.mubr.bf16.mxu0 0
    %4450 = vmatmul.mubr.bf16.gmra.mrb[0].mxu0 %v644
    %v4451 = vpop.f32.mrb[0].mxu0
    %v4452 = vadd.f32 0.0, %v4451
    %v4453 = vpop.f32.mrb[0].mxu0
    %v4454 = vpop.f32.mrb[0].mxu0
    %v4455 = vadd.f32 0.0, %v4454
    %v4456 = vpop.f32.mrb[0].mxu0
    %4457 = vmatprep.mubr.bf16.mxu0 0
    %4458 = vmatmul.mubr.bf16.gmra.mrb[0].mxu0 %v645
    %v4459 = vpop.f32.mrb[0].mxu0
    %v4460 = vadd.f32 0.0, %v4459
    %v4461 = vpop.f32.mrb[0].mxu0
    %v4462 = vpop.f32.mrb[0].mxu0
    %v4463 = vadd.f32 0.0, %v4462
    %v4464 = vpop.f32.mrb[0].mxu0
    %4465 = vmatprep.mubr.bf16.mxu0 0
    %4466 = vmatmul.mubr.bf16.gmra.mrb[0].mxu0 %v646
    %v4467 = vpop.f32.mrb[0].mxu0
    %v4468 = vadd.f32 0.0, %v4467
    %v4469 = vpop.f32.mrb[0].mxu0
    %v4470 = vpop.f32.mrb[0].mxu0
    %v4471 = vadd.f32 0.0, %v4470
    %v4472 = vpop.f32.mrb[0].mxu0
    %4473 = vmatprep.mubr.bf16.mxu0 0
    %4474 = vmatmul.mubr.bf16.gmra.mrb[0].mxu0 %v647
    %v4475 = vpop.f32.mrb[0].mxu0
    %v4476 = vadd.f32 0.0, %v4475
    %v4477 = vpop.f32.mrb[0].mxu0
    %v4478 = vpop.f32.mrb[0].mxu0
    %v4479 = vadd.f32 0.0, %v4478
    %v4480 = vpop.f32.mrb[0].mxu0
    %4481 = vdwg.mxu0
    %v4482 = vpack.c.bf16 %v4359, %v4356
    %v4483 = vpack.c.bf16 %v4367, %v4364
    %v4484 = vpack.c.bf16 %v4375, %v4372
    %v4485 = vpack.c.bf16 %v4383, %v4380
    %v4486 = vpack.c.bf16 %v4391, %v4388
    %v4487 = vpack.c.bf16 %v4399, %v4396
    %v4488 = vpack.c.bf16 %v4407, %v4404
    %v4489 = vpack.c.bf16 %v4415, %v4412
    %v4490 = vpack.c.bf16 %v4423, %v4420
    %v4491 = vpack.c.bf16 %v4431, %v4428
    %v4492 = vpack.c.bf16 %v4439, %v4436
    %v4493 = vpack.c.bf16 %v4447, %v4444
    %v4494 = vpack.c.bf16 %v4455, %v4452
    %v4495 = vpack.c.bf16 %v4463, %v4460
    %v4496 = vpack.c.bf16 %v4471, %v4468
    %v4497 = vpack.c.bf16 %v4479, %v4476
    %s4498 = scalar_lea.vmem %s4, 128
    %v4499 = vld [vmem:[%s4498] sm:$0xf]
    %v4500 = vld [vmem:[%s4498 + $0x4] sm:$0xf]
    %v4501 = vld [vmem:[%s4498 + $0x8] sm:$0xf]
    %v4502 = vld [vmem:[%s4498 + $0xc] sm:$0xf]
    %v4503 = vld [vmem:[%s4498 + $0x10] sm:$0xf]
    %v4504 = vld [vmem:[%s4498 + $0x14] sm:$0xf]
    %v4505 = vld [vmem:[%s4498 + $0x18] sm:$0xf]
    %v4506 = vld [vmem:[%s4498 + $0x1c] sm:$0xf]
    %v4507 = vld [vmem:[%s4498 + $0x20] sm:$0xf]
    %v4508 = vld [vmem:[%s4498 + $0x24] sm:$0xf]
    %v4509 = vld [vmem:[%s4498 + $0x28] sm:$0xf]
    %v4510 = vld [vmem:[%s4498 + $0x2c] sm:$0xf]
    %v4511 = vld [vmem:[%s4498 + $0x30] sm:$0xf]
    %v4512 = vld [vmem:[%s4498 + $0x34] sm:$0xf]
    %v4513 = vld [vmem:[%s4498 + $0x38] sm:$0xf]
    %v4514 = vld [vmem:[%s4498 + $0x3c] sm:$0xf]
    %v4531 = vunpack.c.l.b16 %v4499
    %v4532 = vunpack.c.l.b16 %v4500
    %v4533 = vunpack.c.l.b16 %v4501
    %v4534 = vunpack.c.l.b16 %v4502
    %v4535 = vunpack.c.l.b16 %v4503
    %v4536 = vunpack.c.l.b16 %v4504
    %v4537 = vunpack.c.l.b16 %v4505
    %v4538 = vunpack.c.l.b16 %v4506
    %v4539 = vunpack.c.l.b16 %v4507
    %v4540 = vunpack.c.l.b16 %v4508
    %v4541 = vunpack.c.l.b16 %v4509
    %v4542 = vunpack.c.l.b16 %v4510
    %v4543 = vunpack.c.l.b16 %v4511
    %v4544 = vunpack.c.l.b16 %v4512
    %v4545 = vunpack.c.l.b16 %v4513
    %v4546 = vunpack.c.l.b16 %v4514
    %v4547 = vpack.c.b16 %v4532, %v4531
    %v4548 = vpack.c.b16 %v4534, %v4533
    %v4549 = vpack.c.b16 %v4536, %v4535
    %v4550 = vpack.c.b16 %v4538, %v4537
    %v4551 = vpack.c.b16 %v4540, %v4539
    %v4552 = vpack.c.b16 %v4542, %v4541
    %v4553 = vpack.c.b16 %v4544, %v4543
    %v4554 = vpack.c.b16 %v4546, %v4545
    %4563 = vmatprep.subr.bf16.mxu0 0
    %4564 = vmatpush1.bf16.msra.mxu0 %v4547
    %4565 = vmatprep.subr.bf16.mxu0 0
    %4566 = vmatpush1.bf16.msra.mxu0 %v4548
    %4567 = vmatprep.subr.bf16.mxu0 0
    %4568 = vmatpush1.bf16.msra.mxu0 %v4549
    %4569 = vmatprep.subr.bf16.mxu0 0
    %4570 = vmatpush1.bf16.msra.mxu0 %v4550
    %4571 = vmatprep.subr.bf16.mxu0 0
    %4572 = vmatpush1.bf16.msra.mxu0 %v4551
    %4573 = vmatprep.subr.bf16.mxu0 0
    %4574 = vmatpush1.bf16.msra.mxu0 %v4552
    %4575 = vmatprep.subr.bf16.mxu0 0
    %4576 = vmatpush1.bf16.msra.mxu0 %v4553
    %4577 = vmatprep.subr.bf16.mxu0 0
    %4578 = vmatpush1.bf16.msra.mxu0 %v4554
    %4579 = vmatprep.subr.bf16.mxu0 0
    %4580 = vmatpush1.bf16.msra.mxu0 0
    %4581 = vmatprep.subr.bf16.mxu0 0
    %4582 = vmatpush1.bf16.msra.mxu0 0
    %4583 = vmatprep.subr.bf16.mxu0 0
    %4584 = vmatpush1.bf16.msra.mxu0 0
    %4585 = vmatprep.subr.bf16.mxu0 0
    %4586 = vmatpush1.bf16.msra.mxu0 0
    %4587 = vmatprep.subr.bf16.mxu0 0
    %4588 = vmatpush1.bf16.msra.mxu0 0
    %4589 = vmatprep.subr.bf16.mxu0 0
    %4590 = vmatpush1.bf16.msra.mxu0 0
    %4591 = vmatprep.subr.bf16.mxu0 0
    %4592 = vmatpush1.bf16.msra.mxu0 0
    %4593 = vmatprep.subr.bf16.mxu0 0
    %4594 = vmatpush1.bf16.msra.mxu0 0
    %4595 = vmatprep.mubr.bf16.mxu0 0
    %4596 = vmatmul.mubr.bf16.gmra.mrb[0].mxu0 %v632
    %v4597 = vpop.f32.mrb[0].mxu0
    %v4598 = vadd.f32 0.0, %v4597
    %v4599 = vpop.f32.mrb[0].mxu0
    %v4600 = vpop.f32.mrb[0].mxu0
    %v4601 = vadd.f32 0.0, %v4600
    %v4602 = vpop.f32.mrb[0].mxu0
    %4603 = vmatprep.mubr.bf16.mxu0 0
    %4604 = vmatmul.mubr.bf16.gmra.mrb[0].mxu0 %v633
    %v4605 = vpop.f32.mrb[0].mxu0
    %v4606 = vadd.f32 0.0, %v4605
    %v4607 = vpop.f32.mrb[0].mxu0
    %v4608 = vpop.f32.mrb[0].mxu0
    %v4609 = vadd.f32 0.0, %v4608
    %v4610 = vpop.f32.mrb[0].mxu0
    %4611 = vmatprep.mubr.bf16.mxu0 0
    %4612 = vmatmul.mubr.bf16.gmra.mrb[0].mxu0 %v634
    %v4613 = vpop.f32.mrb[0].mxu0
    %v4614 = vadd.f32 0.0, %v4613
    %v4615 = vpop.f32.mrb[0].mxu0
    %v4616 = vpop.f32.mrb[0].mxu0
    %v4617 = vadd.f32 0.0, %v4616
    %v4618 = vpop.f32.mrb[0].mxu0
    %4619 = vmatprep.mubr.bf16.mxu0 0
    %4620 = vmatmul.mubr.bf16.gmra.mrb[0].mxu0 %v635
    %v4621 = vpop.f32.mrb[0].mxu0
    %v4622 = vadd.f32 0.0, %v4621
    %v4623 = vpop.f32.mrb[0].mxu0
    %v4624 = vpop.f32.mrb[0].mxu0
    %v4625 = vadd.f32 0.0, %v4624
    %v4626 = vpop.f32.mrb[0].mxu0
    %4627 = vmatprep.mubr.bf16.mxu0 0
    %4628 = vmatmul.mubr.bf16.gmra.mrb[0].mxu0 %v636
    %v4629 = vpop.f32.mrb[0].mxu0
    %v4630 = vadd.f32 0.0, %v4629
    %v4631 = vpop.f32.mrb[0].mxu0
    %v4632 = vpop.f32.mrb[0].mxu0
    %v4633 = vadd.f32 0.0, %v4632
    %v4634 = vpop.f32.mrb[0].mxu0
    %4635 = vmatprep.mubr.bf16.mxu0 0
    %4636 = vmatmul.mubr.bf16.gmra.mrb[0].mxu0 %v637
    %v4637 = vpop.f32.mrb[0].mxu0
    %v4638 = vadd.f32 0.0, %v4637
    %v4639 = vpop.f32.mrb[0].mxu0
    %v4640 = vpop.f32.mrb[0].mxu0
    %v4641 = vadd.f32 0.0, %v4640
    %v4642 = vpop.f32.mrb[0].mxu0
    %4643 = vmatprep.mubr.bf16.mxu0 0
    %4644 = vmatmul.mubr.bf16.gmra.mrb[0].mxu0 %v638
    %v4645 = vpop.f32.mrb[0].mxu0
    %v4646 = vadd.f32 0.0, %v4645
    %v4647 = vpop.f32.mrb[0].mxu0
    %v4648 = vpop.f32.mrb[0].mxu0
    %v4649 = vadd.f32 0.0, %v4648
    %v4650 = vpop.f32.mrb[0].mxu0
    %4651 = vmatprep.mubr.bf16.mxu0 0
    %4652 = vmatmul.mubr.bf16.gmra.mrb[0].mxu0 %v639
    %v4653 = vpop.f32.mrb[0].mxu0
    %v4654 = vadd.f32 0.0, %v4653
    %v4655 = vpop.f32.mrb[0].mxu0
    %v4656 = vpop.f32.mrb[0].mxu0
    %v4657 = vadd.f32 0.0, %v4656
    %v4658 = vpop.f32.mrb[0].mxu0
    %4659 = vmatprep.mubr.bf16.mxu0 0
    %4660 = vmatmul.mubr.bf16.gmra.mrb[0].mxu0 %v640
    %v4661 = vpop.f32.mrb[0].mxu0
    %v4662 = vadd.f32 0.0, %v4661
    %v4663 = vpop.f32.mrb[0].mxu0
    %v4664 = vpop.f32.mrb[0].mxu0
    %v4665 = vadd.f32 0.0, %v4664
    %v4666 = vpop.f32.mrb[0].mxu0
    %4667 = vmatprep.mubr.bf16.mxu0 0
    %4668 = vmatmul.mubr.bf16.gmra.mrb[0].mxu0 %v641
    %v4669 = vpop.f32.mrb[0].mxu0
    %v4670 = vadd.f32 0.0, %v4669
    %v4671 = vpop.f32.mrb[0].mxu0
    %v4672 = vpop.f32.mrb[0].mxu0
    %v4673 = vadd.f32 0.0, %v4672
    %v4674 = vpop.f32.mrb[0].mxu0
    %4675 = vmatprep.mubr.bf16.mxu0 0
    %4676 = vmatmul.mubr.bf16.gmra.mrb[0].mxu0 %v642
    %v4677 = vpop.f32.mrb[0].mxu0
    %v4678 = vadd.f32 0.0, %v4677
    %v4679 = vpop.f32.mrb[0].mxu0
    %v4680 = vpop.f32.mrb[0].mxu0
    %v4681 = vadd.f32 0.0, %v4680
    %v4682 = vpop.f32.mrb[0].mxu0
    %4683 = vmatprep.mubr.bf16.mxu0 0
    %4684 = vmatmul.mubr.bf16.gmra.mrb[0].mxu0 %v643
    %v4685 = vpop.f32.mrb[0].mxu0
    %v4686 = vadd.f32 0.0, %v4685
    %v4687 = vpop.f32.mrb[0].mxu0
    %v4688 = vpop.f32.mrb[0].mxu0
    %v4689 = vadd.f32 0.0, %v4688
    %v4690 = vpop.f32.mrb[0].mxu0
    %4691 = vmatprep.mubr.bf16.mxu0 0
    %4692 = vmatmul.mubr.bf16.gmra.mrb[0].mxu0 %v644
    %v4693 = vpop.f32.mrb[0].mxu0
    %v4694 = vadd.f32 0.0, %v4693
    %v4695 = vpop.f32.mrb[0].mxu0
    %v4696 = vpop.f32.mrb[0].mxu0
    %v4697 = vadd.f32 0.0, %v4696
    %v4698 = vpop.f32.mrb[0].mxu0
    %4699 = vmatprep.mubr.bf16.mxu0 0
    %4700 = vmatmul.mubr.bf16.gmra.mrb[0].mxu0 %v645
    %v4701 = vpop.f32.mrb[0].mxu0
    %v4702 = vadd.f32 0.0, %v4701
    %v4703 = vpop.f32.mrb[0].mxu0
    %v4704 = vpop.f32.mrb[0].mxu0
    %v4705 = vadd.f32 0.0, %v4704
    %v4706 = vpop.f32.mrb[0].mxu0
    %4707 = vmatprep.mubr.bf16.mxu0 0
    %4708 = vmatmul.mubr.bf16.gmra.mrb[0].mxu0 %v646
    %v4709 = vpop.f32.mrb[0].mxu0
    %v4710 = vadd.f32 0.0, %v4709
    %v4711 = vpop.f32.mrb[0].mxu0
    %v4712 = vpop.f32.mrb[0].mxu0
    %v4713 = vadd.f32 0.0, %v4712
    %v4714 = vpop.f32.mrb[0].mxu0
    %4715 = vmatprep.mubr.bf16.mxu0 0
    %4716 = vmatmul.mubr.bf16.gmra.mrb[0].mxu0 %v647
    %v4717 = vpop.f32.mrb[0].mxu0
    %v4718 = vadd.f32 0.0, %v4717
    %v4719 = vpop.f32.mrb[0].mxu0
    %v4720 = vpop.f32.mrb[0].mxu0
    %v4721 = vadd.f32 0.0, %v4720
    %v4722 = vpop.f32.mrb[0].mxu0
    %4723 = vdwg.mxu0
    %v4724 = vpack.c.bf16 %v4601, %v4598
    %v4725 = vpack.c.bf16 %v4609, %v4606
    %v4726 = vpack.c.bf16 %v4617, %v4614
    %v4727 = vpack.c.bf16 %v4625, %v4622
    %v4728 = vpack.c.bf16 %v4633, %v4630
    %v4729 = vpack.c.bf16 %v4641, %v4638
    %v4730 = vpack.c.bf16 %v4649, %v4646
    %v4731 = vpack.c.bf16 %v4657, %v4654
    %v4732 = vpack.c.bf16 %v4665, %v4662
    %v4733 = vpack.c.bf16 %v4673, %v4670
    %v4734 = vpack.c.bf16 %v4681, %v4678
    %v4735 = vpack.c.bf16 %v4689, %v4686
    %v4736 = vpack.c.bf16 %v4697, %v4694
    %v4737 = vpack.c.bf16 %v4705, %v4702
    %v4738 = vpack.c.bf16 %v4713, %v4710
    %v4739 = vpack.c.bf16 %v4721, %v4718
    %s4740 = scalar_lea.vmem %s5, 128
    %v4741 = vld [vmem:[%s4740] sm:$0xf]
    %v4742 = vld [vmem:[%s4740 + $0x4] sm:$0xf]
    %v4743 = vld [vmem:[%s4740 + $0x8] sm:$0xf]
    %v4744 = vld [vmem:[%s4740 + $0xc] sm:$0xf]
    %v4745 = vld [vmem:[%s4740 + $0x10] sm:$0xf]
    %v4746 = vld [vmem:[%s4740 + $0x14] sm:$0xf]
    %v4747 = vld [vmem:[%s4740 + $0x18] sm:$0xf]
    %v4748 = vld [vmem:[%s4740 + $0x1c] sm:$0xf]
    %v4749 = vld [vmem:[%s4740 + $0x20] sm:$0xf]
    %v4750 = vld [vmem:[%s4740 + $0x24] sm:$0xf]
    %v4751 = vld [vmem:[%s4740 + $0x28] sm:$0xf]
    %v4752 = vld [vmem:[%s4740 + $0x2c] sm:$0xf]
    %v4753 = vld [vmem:[%s4740 + $0x30] sm:$0xf]
    %v4754 = vld [vmem:[%s4740 + $0x34] sm:$0xf]
    %v4755 = vld [vmem:[%s4740 + $0x38] sm:$0xf]
    %v4756 = vld [vmem:[%s4740 + $0x3c] sm:$0xf]
    %v4773 = vunpack.c.l.b16 %v4741
    %v4774 = vunpack.c.l.b16 %v4742
    %v4775 = vunpack.c.l.b16 %v4743
    %v4776 = vunpack.c.l.b16 %v4744
    %v4777 = vunpack.c.l.b16 %v4745
    %v4778 = vunpack.c.l.b16 %v4746
    %v4779 = vunpack.c.l.b16 %v4747
    %v4780 = vunpack.c.l.b16 %v4748
    %v4781 = vunpack.c.l.b16 %v4749
    %v4782 = vunpack.c.l.b16 %v4750
    %v4783 = vunpack.c.l.b16 %v4751
    %v4784 = vunpack.c.l.b16 %v4752
    %v4785 = vunpack.c.l.b16 %v4753
    %v4786 = vunpack.c.l.b16 %v4754
    %v4787 = vunpack.c.l.b16 %v4755
    %v4788 = vunpack.c.l.b16 %v4756
    %v4789 = vpack.c.b16 %v4774, %v4773
    %v4790 = vpack.c.b16 %v4776, %v4775
    %v4791 = vpack.c.b16 %v4778, %v4777
    %v4792 = vpack.c.b16 %v4780, %v4779
    %v4793 = vpack.c.b16 %v4782, %v4781
    %v4794 = vpack.c.b16 %v4784, %v4783
    %v4795 = vpack.c.b16 %v4786, %v4785
    %v4796 = vpack.c.b16 %v4788, %v4787
    %4805 = vmatprep.subr.bf16.mxu0 0
    %4806 = vmatpush1.bf16.msra.mxu0 %v4789
    %4807 = vmatprep.subr.bf16.mxu0 0
    %4808 = vmatpush1.bf16.msra.mxu0 %v4790
    %4809 = vmatprep.subr.bf16.mxu0 0
    %4810 = vmatpush1.bf16.msra.mxu0 %v4791
    %4811 = vmatprep.subr.bf16.mxu0 0
    %4812 = vmatpush1.bf16.msra.mxu0 %v4792
    %4813 = vmatprep.subr.bf16.mxu0 0
    %4814 = vmatpush1.bf16.msra.mxu0 %v4793
    %4815 = vmatprep.subr.bf16.mxu0 0
    %4816 = vmatpush1.bf16.msra.mxu0 %v4794
    %4817 = vmatprep.subr.bf16.mxu0 0
    %4818 = vmatpush1.bf16.msra.mxu0 %v4795
    %4819 = vmatprep.subr.bf16.mxu0 0
    %4820 = vmatpush1.bf16.msra.mxu0 %v4796
    %4821 = vmatprep.subr.bf16.mxu0 0
    %4822 = vmatpush1.bf16.msra.mxu0 0
    %4823 = vmatprep.subr.bf16.mxu0 0
    %4824 = vmatpush1.bf16.msra.mxu0 0
    %4825 = vmatprep.subr.bf16.mxu0 0
    %4826 = vmatpush1.bf16.msra.mxu0 0
    %4827 = vmatprep.subr.bf16.mxu0 0
    %4828 = vmatpush1.bf16.msra.mxu0 0
    %4829 = vmatprep.subr.bf16.mxu0 0
    %4830 = vmatpush1.bf16.msra.mxu0 0
    %4831 = vmatprep.subr.bf16.mxu0 0
    %4832 = vmatpush1.bf16.msra.mxu0 0
    %4833 = vmatprep.subr.bf16.mxu0 0
    %4834 = vmatpush1.bf16.msra.mxu0 0
    %4835 = vmatprep.subr.bf16.mxu0 0
    %4836 = vmatpush1.bf16.msra.mxu0 0
    %4837 = vmatprep.mubr.bf16.mxu0 0
    %4838 = vmatmul.mubr.bf16.gmra.mrb[0].mxu0 %v632
    %v4839 = vpop.f32.mrb[0].mxu0
    %v4840 = vadd.f32 0.0, %v4839
    %v4841 = vpop.f32.mrb[0].mxu0
    %v4842 = vpop.f32.mrb[0].mxu0
    %v4843 = vadd.f32 0.0, %v4842
    %v4844 = vpop.f32.mrb[0].mxu0
    %4845 = vmatprep.mubr.bf16.mxu0 0
    %4846 = vmatmul.mubr.bf16.gmra.mrb[0].mxu0 %v633
    %v4847 = vpop.f32.mrb[0].mxu0
    %v4848 = vadd.f32 0.0, %v4847
    %v4849 = vpop.f32.mrb[0].mxu0
    %v4850 = vpop.f32.mrb[0].mxu0
    %v4851 = vadd.f32 0.0, %v4850
    %v4852 = vpop.f32.mrb[0].mxu0
    %4853 = vmatprep.mubr.bf16.mxu0 0
    %4854 = vmatmul.mubr.bf16.gmra.mrb[0].mxu0 %v634
    %v4855 = vpop.f32.mrb[0].mxu0
    %v4856 = vadd.f32 0.0, %v4855
    %v4857 = vpop.f32.mrb[0].mxu0
    %v4858 = vpop.f32.mrb[0].mxu0
    %v4859 = vadd.f32 0.0, %v4858
    %v4860 = vpop.f32.mrb[0].mxu0
    %4861 = vmatprep.mubr.bf16.mxu0 0
    %4862 = vmatmul.mubr.bf16.gmra.mrb[0].mxu0 %v635
    %v4863 = vpop.f32.mrb[0].mxu0
    %v4864 = vadd.f32 0.0, %v4863
    %v4865 = vpop.f32.mrb[0].mxu0
    %v4866 = vpop.f32.mrb[0].mxu0
    %v4867 = vadd.f32 0.0, %v4866
    %v4868 = vpop.f32.mrb[0].mxu0
    %4869 = vmatprep.mubr.bf16.mxu0 0
    %4870 = vmatmul.mubr.bf16.gmra.mrb[0].mxu0 %v636
    %v4871 = vpop.f32.mrb[0].mxu0
    %v4872 = vadd.f32 0.0, %v4871
    %v4873 = vpop.f32.mrb[0].mxu0
    %v4874 = vpop.f32.mrb[0].mxu0
    %v4875 = vadd.f32 0.0, %v4874
    %v4876 = vpop.f32.mrb[0].mxu0
    %4877 = vmatprep.mubr.bf16.mxu0 0
    %4878 = vmatmul.mubr.bf16.gmra.mrb[0].mxu0 %v637
    %v4879 = vpop.f32.mrb[0].mxu0
    %v4880 = vadd.f32 0.0, %v4879
    %v4881 = vpop.f32.mrb[0].mxu0
    %v4882 = vpop.f32.mrb[0].mxu0
    %v4883 = vadd.f32 0.0, %v4882
    %v4884 = vpop.f32.mrb[0].mxu0
    %4885 = vmatprep.mubr.bf16.mxu0 0
    %4886 = vmatmul.mubr.bf16.gmra.mrb[0].mxu0 %v638
    %v4887 = vpop.f32.mrb[0].mxu0
    %v4888 = vadd.f32 0.0, %v4887
    %v4889 = vpop.f32.mrb[0].mxu0
    %v4890 = vpop.f32.mrb[0].mxu0
    %v4891 = vadd.f32 0.0, %v4890
    %v4892 = vpop.f32.mrb[0].mxu0
    %4893 = vmatprep.mubr.bf16.mxu0 0
    %4894 = vmatmul.mubr.bf16.gmra.mrb[0].mxu0 %v639
    %v4895 = vpop.f32.mrb[0].mxu0
    %v4896 = vadd.f32 0.0, %v4895
    %v4897 = vpop.f32.mrb[0].mxu0
    %v4898 = vpop.f32.mrb[0].mxu0
    %v4899 = vadd.f32 0.0, %v4898
    %v4900 = vpop.f32.mrb[0].mxu0
    %4901 = vmatprep.mubr.bf16.mxu0 0
    %4902 = vmatmul.mubr.bf16.gmra.mrb[0].mxu0 %v640
    %v4903 = vpop.f32.mrb[0].mxu0
    %v4904 = vadd.f32 0.0, %v4903
    %v4905 = vpop.f32.mrb[0].mxu0
    %v4906 = vpop.f32.mrb[0].mxu0
    %v4907 = vadd.f32 0.0, %v4906
    %v4908 = vpop.f32.mrb[0].mxu0
    %4909 = vmatprep.mubr.bf16.mxu0 0
    %4910 = vmatmul.mubr.bf16.gmra.mrb[0].mxu0 %v641
    %v4911 = vpop.f32.mrb[0].mxu0
    %v4912 = vadd.f32 0.0, %v4911
    %v4913 = vpop.f32.mrb[0].mxu0
    %v4914 = vpop.f32.mrb[0].mxu0
    %v4915 = vadd.f32 0.0, %v4914
    %v4916 = vpop.f32.mrb[0].mxu0
    %4917 = vmatprep.mubr.bf16.mxu0 0
    %4918 = vmatmul.mubr.bf16.gmra.mrb[0].mxu0 %v642
    %v4919 = vpop.f32.mrb[0].mxu0
    %v4920 = vadd.f32 0.0, %v4919
    %v4921 = vpop.f32.mrb[0].mxu0
    %v4922 = vpop.f32.mrb[0].mxu0
    %v4923 = vadd.f32 0.0, %v4922
    %v4924 = vpop.f32.mrb[0].mxu0
    %4925 = vmatprep.mubr.bf16.mxu0 0
    %4926 = vmatmul.mubr.bf16.gmra.mrb[0].mxu0 %v643
    %v4927 = vpop.f32.mrb[0].mxu0
    %v4928 = vadd.f32 0.0, %v4927
    %v4929 = vpop.f32.mrb[0].mxu0
    %v4930 = vpop.f32.mrb[0].mxu0
    %v4931 = vadd.f32 0.0, %v4930
    %v4932 = vpop.f32.mrb[0].mxu0
    %4933 = vmatprep.mubr.bf16.mxu0 0
    %4934 = vmatmul.mubr.bf16.gmra.mrb[0].mxu0 %v644
    %v4935 = vpop.f32.mrb[0].mxu0
    %v4936 = vadd.f32 0.0, %v4935
    %v4937 = vpop.f32.mrb[0].mxu0
    %v4938 = vpop.f32.mrb[0].mxu0
    %v4939 = vadd.f32 0.0, %v4938
    %v4940 = vpop.f32.mrb[0].mxu0
    %4941 = vmatprep.mubr.bf16.mxu0 0
    %4942 = vmatmul.mubr.bf16.gmra.mrb[0].mxu0 %v645
    %v4943 = vpop.f32.mrb[0].mxu0
    %v4944 = vadd.f32 0.0, %v4943
    %v4945 = vpop.f32.mrb[0].mxu0
    %v4946 = vpop.f32.mrb[0].mxu0
    %v4947 = vadd.f32 0.0, %v4946
    %v4948 = vpop.f32.mrb[0].mxu0
    %4949 = vmatprep.mubr.bf16.mxu0 0
    %4950 = vmatmul.mubr.bf16.gmra.mrb[0].mxu0 %v646
    %v4951 = vpop.f32.mrb[0].mxu0
    %v4952 = vadd.f32 0.0, %v4951
    %v4953 = vpop.f32.mrb[0].mxu0
    %v4954 = vpop.f32.mrb[0].mxu0
    %v4955 = vadd.f32 0.0, %v4954
    %v4956 = vpop.f32.mrb[0].mxu0
    %4957 = vmatprep.mubr.bf16.mxu0 0
    %4958 = vmatmul.mubr.bf16.gmra.mrb[0].mxu0 %v647
    %v4959 = vpop.f32.mrb[0].mxu0
    %v4960 = vadd.f32 0.0, %v4959
    %v4961 = vpop.f32.mrb[0].mxu0
    %v4962 = vpop.f32.mrb[0].mxu0
    %v4963 = vadd.f32 0.0, %v4962
    %v4964 = vpop.f32.mrb[0].mxu0
    %4965 = vdwg.mxu0
    %v4966 = vpack.c.bf16 %v4843, %v4840
    %v4967 = vpack.c.bf16 %v4851, %v4848
    %v4968 = vpack.c.bf16 %v4859, %v4856
    %v4969 = vpack.c.bf16 %v4867, %v4864
    %v4970 = vpack.c.bf16 %v4875, %v4872
    %v4971 = vpack.c.bf16 %v4883, %v4880
    %v4972 = vpack.c.bf16 %v4891, %v4888
    %v4973 = vpack.c.bf16 %v4899, %v4896
    %v4974 = vpack.c.bf16 %v4907, %v4904
    %v4975 = vpack.c.bf16 %v4915, %v4912
    %v4976 = vpack.c.bf16 %v4923, %v4920
    %v4977 = vpack.c.bf16 %v4931, %v4928
    %v4978 = vpack.c.bf16 %v4939, %v4936
    %v4979 = vpack.c.bf16 %v4947, %v4944
    %v4980 = vpack.c.bf16 %v4955, %v4952
    %v4981 = vpack.c.bf16 %v4963, %v4960
    %v4983 = vsel %vm1406, %v4482, 0
    %v4986 = vsel %vm1406, %v4483, 0
    %v4989 = vsel %vm1406, %v4484, 0
    %v4992 = vsel %vm1406, %v4485, 0
    %v4995 = vsel %vm1406, %v4486, 0
    %v4998 = vsel %vm1406, %v4487, 0
    %v5001 = vsel %vm1406, %v4488, 0
    %v5004 = vsel %vm1406, %v4489, 0
    %v5007 = vsel %vm1406, %v4724, 0
    %v5010 = vsel %vm1406, %v4725, 0
    %v5013 = vsel %vm1406, %v4726, 0
    %v5016 = vsel %vm1406, %v4727, 0
    %v5019 = vsel %vm1406, %v4728, 0
    %v5022 = vsel %vm1406, %v4729, 0
    %v5025 = vsel %vm1406, %v4730, 0
    %v5028 = vsel %vm1406, %v4731, 0
    %5030 = vmatprep.subr.bf16.mxu0 0
    %5031 = vmatpush1.bf16.xpose.msra.mxu0 %v5007
    %5032 = vmatprep.subr.bf16.mxu0 0
    %5033 = vmatpush1.bf16.xpose.msra.mxu0 %v5010
    %5034 = vmatprep.subr.bf16.mxu0 0
    %5035 = vmatpush1.bf16.xpose.msra.mxu0 %v5013
    %5036 = vmatprep.subr.bf16.mxu0 0
    %5037 = vmatpush1.bf16.xpose.msra.mxu0 %v5016
    %5038 = vmatprep.subr.bf16.mxu0 0
    %5039 = vmatpush1.bf16.xpose.msra.mxu0 %v5019
    %5040 = vmatprep.subr.bf16.mxu0 0
    %5041 = vmatpush1.bf16.xpose.msra.mxu0 %v5022
    %5042 = vmatprep.subr.bf16.mxu0 0
    %5043 = vmatpush1.bf16.xpose.msra.mxu0 %v5025
    %5044 = vmatprep.subr.bf16.mxu0 0
    %5045 = vmatpush1.bf16.xpose.msra.mxu0 %v5028
    %5046 = vmatprep.subr.bf16.mxu0 0
    %5047 = vmatpush1.bf16.xpose.msra.mxu0 0
    %5048 = vmatprep.subr.bf16.mxu0 0
    %5049 = vmatpush1.bf16.xpose.msra.mxu0 0
    %5050 = vmatprep.subr.bf16.mxu0 0
    %5051 = vmatpush1.bf16.xpose.msra.mxu0 0
    %5052 = vmatprep.subr.bf16.mxu0 0
    %5053 = vmatpush1.bf16.xpose.msra.mxu0 0
    %5054 = vmatprep.subr.bf16.mxu0 0
    %5055 = vmatpush1.bf16.xpose.msra.mxu0 0
    %5056 = vmatprep.subr.bf16.mxu0 0
    %5057 = vmatpush1.bf16.xpose.msra.mxu0 0
    %5058 = vmatprep.subr.bf16.mxu0 0
    %5059 = vmatpush1.bf16.xpose.msra.mxu0 0
    %5060 = vmatprep.subr.bf16.mxu0 0
    %5061 = vmatpush1.bf16.xpose.msra.mxu0 0
    %5062 = vmatprep.mubr.bf16.mxu0 0
    %5063 = vmatmul.mubr.bf16.gmra.mrb[0].mxu0 %v4983
    %v5064 = vpop.f32.mrb[0].mxu0
    %v5065 = vadd.f32 0.0, %v5064
    %v5066 = vpop.f32.mrb[0].mxu0
    %v5067 = vpop.f32.mrb[0].mxu0
    %v5068 = vadd.f32 0.0, %v5067
    %v5069 = vpop.f32.mrb[0].mxu0
    %5070 = vmatprep.mubr.bf16.mxu0 0
    %5071 = vmatmul.mubr.bf16.gmra.mrb[0].mxu0 %v4986
    %v5072 = vpop.f32.mrb[0].mxu0
    %v5073 = vadd.f32 0.0, %v5072
    %v5074 = vpop.f32.mrb[0].mxu0
    %v5075 = vpop.f32.mrb[0].mxu0
    %v5076 = vadd.f32 0.0, %v5075
    %v5077 = vpop.f32.mrb[0].mxu0
    %5078 = vmatprep.mubr.bf16.mxu0 0
    %5079 = vmatmul.mubr.bf16.gmra.mrb[0].mxu0 %v4989
    %v5080 = vpop.f32.mrb[0].mxu0
    %v5081 = vadd.f32 0.0, %v5080
    %v5082 = vpop.f32.mrb[0].mxu0
    %v5083 = vpop.f32.mrb[0].mxu0
    %v5084 = vadd.f32 0.0, %v5083
    %v5085 = vpop.f32.mrb[0].mxu0
    %5086 = vmatprep.mubr.bf16.mxu0 0
    %5087 = vmatmul.mubr.bf16.gmra.mrb[0].mxu0 %v4992
    %v5088 = vpop.f32.mrb[0].mxu0
    %v5089 = vadd.f32 0.0, %v5088
    %v5090 = vpop.f32.mrb[0].mxu0
    %v5091 = vpop.f32.mrb[0].mxu0
    %v5092 = vadd.f32 0.0, %v5091
    %v5093 = vpop.f32.mrb[0].mxu0
    %5094 = vmatprep.mubr.bf16.mxu0 0
    %5095 = vmatmul.mubr.bf16.gmra.mrb[0].mxu0 %v4995
    %v5096 = vpop.f32.mrb[0].mxu0
    %v5097 = vadd.f32 0.0, %v5096
    %v5098 = vpop.f32.mrb[0].mxu0
    %v5099 = vpop.f32.mrb[0].mxu0
    %v5100 = vadd.f32 0.0, %v5099
    %v5101 = vpop.f32.mrb[0].mxu0
    %5102 = vmatprep.mubr.bf16.mxu0 0
    %5103 = vmatmul.mubr.bf16.gmra.mrb[0].mxu0 %v4998
    %v5104 = vpop.f32.mrb[0].mxu0
    %v5105 = vadd.f32 0.0, %v5104
    %v5106 = vpop.f32.mrb[0].mxu0
    %v5107 = vpop.f32.mrb[0].mxu0
    %v5108 = vadd.f32 0.0, %v5107
    %v5109 = vpop.f32.mrb[0].mxu0
    %5110 = vmatprep.mubr.bf16.mxu0 0
    %5111 = vmatmul.mubr.bf16.gmra.mrb[0].mxu0 %v5001
    %v5112 = vpop.f32.mrb[0].mxu0
    %v5113 = vadd.f32 0.0, %v5112
    %v5114 = vpop.f32.mrb[0].mxu0
    %v5115 = vpop.f32.mrb[0].mxu0
    %v5116 = vadd.f32 0.0, %v5115
    %v5117 = vpop.f32.mrb[0].mxu0
    %5118 = vmatprep.mubr.bf16.mxu0 0
    %5119 = vmatmul.mubr.bf16.gmra.mrb[0].mxu0 %v5004
    %v5120 = vpop.f32.mrb[0].mxu0
    %v5121 = vadd.f32 0.0, %v5120
    %v5122 = vpop.f32.mrb[0].mxu0
    %v5123 = vpop.f32.mrb[0].mxu0
    %v5124 = vadd.f32 0.0, %v5123
    %v5125 = vpop.f32.mrb[0].mxu0
    %5126 = vdwg.mxu0
    %v5127 = vsel %vm667, %v5065, -inf
    %v5128 = vsel %vm668, %v5068, -inf
    %v5129 = vsel %vm669, %v5073, -inf
    %v5130 = vsel %vm670, %v5076, -inf
    %v5131 = vsel %vm671, %v5081, -inf
    %v5132 = vsel %vm672, %v5084, -inf
    %v5133 = vsel %vm673, %v5089, -inf
    %v5134 = vsel %vm674, %v5092, -inf
    %v5135 = vsel %vm675, %v5097, -inf
    %v5136 = vsel %vm676, %v5100, -inf
    %v5137 = vsel %vm677, %v5105, -inf
    %v5138 = vsel %vm678, %v5108, -inf
    %v5139 = vsel %vm679, %v5113, -inf
    %v5140 = vsel %vm680, %v5116, -inf
    %v5141 = vsel %vm681, %v5121, -inf
    %v5142 = vsel %vm682, %v5124, -inf
    %5143 = vmax.xlane.f32.xlu0 %v5127
    %v5144 = vpop.xlane.xlu0 %5143
    %5145 = vmax.xlane.f32.xlu0 %v5128
    %v5146 = vpop.xlane.xlu0 %5145
    %5147 = vmax.xlane.f32.xlu0 %v5129
    %v5148 = vpop.xlane.xlu0 %5147
    %5149 = vmax.xlane.f32.xlu0 %v5130
    %v5150 = vpop.xlane.xlu0 %5149
    %5151 = vmax.xlane.f32.xlu0 %v5131
    %v5152 = vpop.xlane.xlu0 %5151
    %5153 = vmax.xlane.f32.xlu0 %v5132
    %v5154 = vpop.xlane.xlu0 %5153
    %5155 = vmax.xlane.f32.xlu0 %v5133
    %v5156 = vpop.xlane.xlu0 %5155
    %5157 = vmax.xlane.f32.xlu0 %v5134
    %v5158 = vpop.xlane.xlu0 %5157
    %5159 = vmax.xlane.f32.xlu0 %v5135
    %v5160 = vpop.xlane.xlu0 %5159
    %5161 = vmax.xlane.f32.xlu0 %v5136
    %v5162 = vpop.xlane.xlu0 %5161
    %5163 = vmax.xlane.f32.xlu0 %v5137
    %v5164 = vpop.xlane.xlu0 %5163
    %5165 = vmax.xlane.f32.xlu0 %v5138
    %v5166 = vpop.xlane.xlu0 %5165
    %5167 = vmax.xlane.f32.xlu0 %v5139
    %v5168 = vpop.xlane.xlu0 %5167
    %5169 = vmax.xlane.f32.xlu0 %v5140
    %v5170 = vpop.xlane.xlu0 %5169
    %5171 = vmax.xlane.f32.xlu0 %v5141
    %v5172 = vpop.xlane.xlu0 %5171
    %5173 = vmax.xlane.f32.xlu0 %v5142
    %v5174 = vpop.xlane.xlu0 %5173
    %v5175 = vsub.f32 %v5127, %v5144
    %v5176 = vsub.f32 %v5128, %v5146
    %v5177 = vsub.f32 %v5129, %v5148
    %v5178 = vsub.f32 %v5130, %v5150
    %v5179 = vsub.f32 %v5131, %v5152
    %v5180 = vsub.f32 %v5132, %v5154
    %v5181 = vsub.f32 %v5133, %v5156
    %v5182 = vsub.f32 %v5134, %v5158
    %v5183 = vsub.f32 %v5135, %v5160
    %v5184 = vsub.f32 %v5136, %v5162
    %v5185 = vsub.f32 %v5137, %v5164
    %v5186 = vsub.f32 %v5138, %v5166
    %v5187 = vsub.f32 %v5139, %v5168
    %v5188 = vsub.f32 %v5140, %v5170
    %v5189 = vsub.f32 %v5141, %v5172
    %v5190 = vsub.f32 %v5142, %v5174
    %v5191 = vmul.f32 %v5175, 1.442695
    %v5192 = vpow.pop %v5191
    %v5193 = vmul.f32 %v5176, 1.442695
    %v5194 = vpow.pop %v5193
    %v5195 = vmul.f32 %v5177, 1.442695
    %v5196 = vpow.pop %v5195
    %v5197 = vmul.f32 %v5178, 1.442695
    %v5198 = vpow.pop %v5197
    %v5199 = vmul.f32 %v5179, 1.442695
    %v5200 = vpow.pop %v5199
    %v5201 = vmul.f32 %v5180, 1.442695
    %v5202 = vpow.pop %v5201
    %v5203 = vmul.f32 %v5181, 1.442695
    %v5204 = vpow.pop %v5203
    %v5205 = vmul.f32 %v5182, 1.442695
    %v5206 = vpow.pop %v5205
    %v5207 = vmul.f32 %v5183, 1.442695
    %v5208 = vpow.pop %v5207
    %v5209 = vmul.f32 %v5184, 1.442695
    %v5210 = vpow.pop %v5209
    %v5211 = vmul.f32 %v5185, 1.442695
    %v5212 = vpow.pop %v5211
    %v5213 = vmul.f32 %v5186, 1.442695
    %v5214 = vpow.pop %v5213
    %v5215 = vmul.f32 %v5187, 1.442695
    %v5216 = vpow.pop %v5215
    %v5217 = vmul.f32 %v5188, 1.442695
    %v5218 = vpow.pop %v5217
    %v5219 = vmul.f32 %v5189, 1.442695
    %v5220 = vpow.pop %v5219
    %v5221 = vmul.f32 %v5190, 1.442695
    %v5222 = vpow.pop %v5221
    %v5223 = vpack.c.bf16 %v5194, %v5192
    %v5224 = vpack.c.bf16 %v5198, %v5196
    %v5225 = vpack.c.bf16 %v5202, %v5200
    %v5226 = vpack.c.bf16 %v5206, %v5204
    %v5227 = vpack.c.bf16 %v5210, %v5208
    %v5228 = vpack.c.bf16 %v5214, %v5212
    %v5229 = vpack.c.bf16 %v5218, %v5216
    %v5230 = vpack.c.bf16 %v5222, %v5220
    %5231 = vmatprep.subr.bf16.mxu0 0
    %5232 = vmatpush1.bf16.msra.mxu0 %v4966
    %5233 = vmatprep.subr.bf16.mxu0 0
    %5234 = vmatpush1.bf16.msra.mxu0 %v4967
    %5235 = vmatprep.subr.bf16.mxu0 0
    %5236 = vmatpush1.bf16.msra.mxu0 %v4968
    %5237 = vmatprep.subr.bf16.mxu0 0
    %5238 = vmatpush1.bf16.msra.mxu0 %v4969
    %5239 = vmatprep.subr.bf16.mxu0 0
    %5240 = vmatpush1.bf16.msra.mxu0 %v4970
    %5241 = vmatprep.subr.bf16.mxu0 0
    %5242 = vmatpush1.bf16.msra.mxu0 %v4971
    %5243 = vmatprep.subr.bf16.mxu0 0
    %5244 = vmatpush1.bf16.msra.mxu0 %v4972
    %5245 = vmatprep.subr.bf16.mxu0 0
    %5246 = vmatpush1.bf16.msra.mxu0 %v4973
    %5247 = vmatprep.subr.bf16.mxu0 0
    %5248 = vmatpush1.bf16.msra.mxu0 0
    %5249 = vmatprep.subr.bf16.mxu0 0
    %5250 = vmatpush1.bf16.msra.mxu0 0
    %5251 = vmatprep.subr.bf16.mxu0 0
    %5252 = vmatpush1.bf16.msra.mxu0 0
    %5253 = vmatprep.subr.bf16.mxu0 0
    %5254 = vmatpush1.bf16.msra.mxu0 0
    %5255 = vmatprep.subr.bf16.mxu0 0
    %5256 = vmatpush1.bf16.msra.mxu0 0
    %5257 = vmatprep.subr.bf16.mxu0 0
    %5258 = vmatpush1.bf16.msra.mxu0 0
    %5259 = vmatprep.subr.bf16.mxu0 0
    %5260 = vmatpush1.bf16.msra.mxu0 0
    %5261 = vmatprep.subr.bf16.mxu0 0
    %5262 = vmatpush1.bf16.msra.mxu0 0
    %5263 = vmatprep.mubr.bf16.mxu0 0
    %5264 = vmatmul.mubr.bf16.gmra.mrb[0].mxu0 %v5223
    %v5265 = vpop.f32.mrb[0].mxu0
    %v5266 = vadd.f32 0.0, %v5265
    %v5267 = vpop.f32.mrb[0].mxu0
    %v5268 = vpop.f32.mrb[0].mxu0
    %v5269 = vadd.f32 0.0, %v5268
    %v5270 = vpop.f32.mrb[0].mxu0
    %5271 = vmatprep.mubr.bf16.mxu0 0
    %5272 = vmatmul.mubr.bf16.gmra.mrb[0].mxu0 %v5224
    %v5273 = vpop.f32.mrb[0].mxu0
    %v5274 = vadd.f32 0.0, %v5273
    %v5275 = vpop.f32.mrb[0].mxu0
    %v5276 = vpop.f32.mrb[0].mxu0
    %v5277 = vadd.f32 0.0, %v5276
    %v5278 = vpop.f32.mrb[0].mxu0
    %5279 = vmatprep.mubr.bf16.mxu0 0
    %5280 = vmatmul.mubr.bf16.gmra.mrb[0].mxu0 %v5225
    %v5281 = vpop.f32.mrb[0].mxu0
    %v5282 = vadd.f32 0.0, %v5281
    %v5283 = vpop.f32.mrb[0].mxu0
    %v5284 = vpop.f32.mrb[0].mxu0
    %v5285 = vadd.f32 0.0, %v5284
    %v5286 = vpop.f32.mrb[0].mxu0
    %5287 = vmatprep.mubr.bf16.mxu0 0
    %5288 = vmatmul.mubr.bf16.gmra.mrb[0].mxu0 %v5226
    %v5289 = vpop.f32.mrb[0].mxu0
    %v5290 = vadd.f32 0.0, %v5289
    %v5291 = vpop.f32.mrb[0].mxu0
    %v5292 = vpop.f32.mrb[0].mxu0
    %v5293 = vadd.f32 0.0, %v5292
    %v5294 = vpop.f32.mrb[0].mxu0
    %5295 = vmatprep.mubr.bf16.mxu0 0
    %5296 = vmatmul.mubr.bf16.gmra.mrb[0].mxu0 %v5227
    %v5297 = vpop.f32.mrb[0].mxu0
    %v5298 = vadd.f32 0.0, %v5297
    %v5299 = vpop.f32.mrb[0].mxu0
    %v5300 = vpop.f32.mrb[0].mxu0
    %v5301 = vadd.f32 0.0, %v5300
    %v5302 = vpop.f32.mrb[0].mxu0
    %5303 = vmatprep.mubr.bf16.mxu0 0
    %5304 = vmatmul.mubr.bf16.gmra.mrb[0].mxu0 %v5228
    %v5305 = vpop.f32.mrb[0].mxu0
    %v5306 = vadd.f32 0.0, %v5305
    %v5307 = vpop.f32.mrb[0].mxu0
    %v5308 = vpop.f32.mrb[0].mxu0
    %v5309 = vadd.f32 0.0, %v5308
    %v5310 = vpop.f32.mrb[0].mxu0
    %5311 = vmatprep.mubr.bf16.mxu0 0
    %5312 = vmatmul.mubr.bf16.gmra.mrb[0].mxu0 %v5229
    %v5313 = vpop.f32.mrb[0].mxu0
    %v5314 = vadd.f32 0.0, %v5313
    %v5315 = vpop.f32.mrb[0].mxu0
    %v5316 = vpop.f32.mrb[0].mxu0
    %v5317 = vadd.f32 0.0, %v5316
    %v5318 = vpop.f32.mrb[0].mxu0
    %5319 = vmatprep.mubr.bf16.mxu0 0
    %5320 = vmatmul.mubr.bf16.gmra.mrb[0].mxu0 %v5230
    %v5321 = vpop.f32.mrb[0].mxu0
    %v5322 = vadd.f32 0.0, %v5321
    %v5323 = vpop.f32.mrb[0].mxu0
    %v5324 = vpop.f32.mrb[0].mxu0
    %v5325 = vadd.f32 0.0, %v5324
    %v5326 = vpop.f32.mrb[0].mxu0
    %5327 = vdwg.mxu0
    %5328 = vadd.xlane.f32.xlu0 %v5192
    %v5329 = vpop.xlane.xlu0 %5328
    %5330 = vadd.xlane.f32.xlu0 %v5194
    %v5331 = vpop.xlane.xlu0 %5330
    %5332 = vadd.xlane.f32.xlu0 %v5196
    %v5333 = vpop.xlane.xlu0 %5332
    %5334 = vadd.xlane.f32.xlu0 %v5198
    %v5335 = vpop.xlane.xlu0 %5334
    %5336 = vadd.xlane.f32.xlu0 %v5200
    %v5337 = vpop.xlane.xlu0 %5336
    %5338 = vadd.xlane.f32.xlu0 %v5202
    %v5339 = vpop.xlane.xlu0 %5338
    %5340 = vadd.xlane.f32.xlu0 %v5204
    %v5341 = vpop.xlane.xlu0 %5340
    %5342 = vadd.xlane.f32.xlu0 %v5206
    %v5343 = vpop.xlane.xlu0 %5342
    %5344 = vadd.xlane.f32.xlu0 %v5208
    %v5345 = vpop.xlane.xlu0 %5344
    %5346 = vadd.xlane.f32.xlu0 %v5210
    %v5347 = vpop.xlane.xlu0 %5346
    %5348 = vadd.xlane.f32.xlu0 %v5212
    %v5349 = vpop.xlane.xlu0 %5348
    %5350 = vadd.xlane.f32.xlu0 %v5214
    %v5351 = vpop.xlane.xlu0 %5350
    %5352 = vadd.xlane.f32.xlu0 %v5216
    %v5353 = vpop.xlane.xlu0 %5352
    %5354 = vadd.xlane.f32.xlu0 %v5218
    %v5355 = vpop.xlane.xlu0 %5354
    %5356 = vadd.xlane.f32.xlu0 %v5220
    %v5357 = vpop.xlane.xlu0 %5356
    %5358 = vadd.xlane.f32.xlu0 %v5222
    %v5359 = vpop.xlane.xlu0 %5358
    %v5360 = vrcp.pop %v5329
    %v5361 = vrcp.pop %v5331
    %v5362 = vrcp.pop %v5333
    %v5363 = vrcp.pop %v5335
    %v5364 = vrcp.pop %v5337
    %v5365 = vrcp.pop %v5339
    %v5366 = vrcp.pop %v5341
    %v5367 = vrcp.pop %v5343
    %v5368 = vrcp.pop %v5345
    %v5369 = vrcp.pop %v5347
    %v5370 = vrcp.pop %v5349
    %v5371 = vrcp.pop %v5351
    %v5372 = vrcp.pop %v5353
    %v5373 = vrcp.pop %v5355
    %v5374 = vrcp.pop %v5357
    %v5375 = vrcp.pop %v5359
    %v5376 = vmul.f32 %v5266, %v5360
    %v5377 = vmul.f32 %v5269, %v5361
    %v5378 = vmul.f32 %v5274, %v5362
    %v5379 = vmul.f32 %v5277, %v5363
    %v5380 = vmul.f32 %v5282, %v5364
    %v5381 = vmul.f32 %v5285, %v5365
    %v5382 = vmul.f32 %v5290, %v5366
    %v5383 = vmul.f32 %v5293, %v5367
    %v5384 = vmul.f32 %v5298, %v5368
    %v5385 = vmul.f32 %v5301, %v5369
    %v5386 = vmul.f32 %v5306, %v5370
    %v5387 = vmul.f32 %v5309, %v5371
    %v5388 = vmul.f32 %v5314, %v5372
    %v5389 = vmul.f32 %v5317, %v5373
    %v5390 = vmul.f32 %v5322, %v5374
    %v5391 = vmul.f32 %v5325, %v5375
    %v5393 = vsel %vm1406, %v4490, 0
    %v5396 = vsel %vm1406, %v4491, 0
    %v5399 = vsel %vm1406, %v4492, 0
    %v5402 = vsel %vm1406, %v4493, 0
    %v5405 = vsel %vm1406, %v4494, 0
    %v5408 = vsel %vm1406, %v4495, 0
    %v5411 = vsel %vm1406, %v4496, 0
    %v5414 = vsel %vm1406, %v4497, 0
    %v5417 = vsel %vm1406, %v4732, 0
    %v5420 = vsel %vm1406, %v4733, 0
    %v5423 = vsel %vm1406, %v4734, 0
    %v5426 = vsel %vm1406, %v4735, 0
    %v5429 = vsel %vm1406, %v4736, 0
    %v5432 = vsel %vm1406, %v4737, 0
    %v5435 = vsel %vm1406, %v4738, 0
    %v5438 = vsel %vm1406, %v4739, 0
    %5440 = vmatprep.subr.bf16.mxu0 0
    %5441 = vmatpush1.bf16.xpose.msra.mxu0 %v5417
    %5442 = vmatprep.subr.bf16.mxu0 0
    %5443 = vmatpush1.bf16.xpose.msra.mxu0 %v5420
    %5444 = vmatprep.subr.bf16.mxu0 0
    %5445 = vmatpush1.bf16.xpose.msra.mxu0 %v5423
    %5446 = vmatprep.subr.bf16.mxu0 0
    %5447 = vmatpush1.bf16.xpose.msra.mxu0 %v5426
    %5448 = vmatprep.subr.bf16.mxu0 0
    %5449 = vmatpush1.bf16.xpose.msra.mxu0 %v5429
    %5450 = vmatprep.subr.bf16.mxu0 0
    %5451 = vmatpush1.bf16.xpose.msra.mxu0 %v5432
    %5452 = vmatprep.subr.bf16.mxu0 0
    %5453 = vmatpush1.bf16.xpose.msra.mxu0 %v5435
    %5454 = vmatprep.subr.bf16.mxu0 0
    %5455 = vmatpush1.bf16.xpose.msra.mxu0 %v5438
    %5456 = vmatprep.subr.bf16.mxu0 0
    %5457 = vmatpush1.bf16.xpose.msra.mxu0 0
    %5458 = vmatprep.subr.bf16.mxu0 0
    %5459 = vmatpush1.bf16.xpose.msra.mxu0 0
    %5460 = vmatprep.subr.bf16.mxu0 0
    %5461 = vmatpush1.bf16.xpose.msra.mxu0 0
    %5462 = vmatprep.subr.bf16.mxu0 0
    %5463 = vmatpush1.bf16.xpose.msra.mxu0 0
    %5464 = vmatprep.subr.bf16.mxu0 0
    %5465 = vmatpush1.bf16.xpose.msra.mxu0 0
    %5466 = vmatprep.subr.bf16.mxu0 0
    %5467 = vmatpush1.bf16.xpose.msra.mxu0 0
    %5468 = vmatprep.subr.bf16.mxu0 0
    %5469 = vmatpush1.bf16.xpose.msra.mxu0 0
    %5470 = vmatprep.subr.bf16.mxu0 0
    %5471 = vmatpush1.bf16.xpose.msra.mxu0 0
    %5472 = vmatprep.mubr.bf16.mxu0 0
    %5473 = vmatmul.mubr.bf16.gmra.mrb[0].mxu0 %v5393
    %v5474 = vpop.f32.mrb[0].mxu0
    %v5475 = vadd.f32 0.0, %v5474
    %v5476 = vpop.f32.mrb[0].mxu0
    %v5477 = vpop.f32.mrb[0].mxu0
    %v5478 = vadd.f32 0.0, %v5477
    %v5479 = vpop.f32.mrb[0].mxu0
    %5480 = vmatprep.mubr.bf16.mxu0 0
    %5481 = vmatmul.mubr.bf16.gmra.mrb[0].mxu0 %v5396
    %v5482 = vpop.f32.mrb[0].mxu0
    %v5483 = vadd.f32 0.0, %v5482
    %v5484 = vpop.f32.mrb[0].mxu0
    %v5485 = vpop.f32.mrb[0].mxu0
    %v5486 = vadd.f32 0.0, %v5485
    %v5487 = vpop.f32.mrb[0].mxu0
    %5488 = vmatprep.mubr.bf16.mxu0 0
    %5489 = vmatmul.mubr.bf16.gmra.mrb[0].mxu0 %v5399
    %v5490 = vpop.f32.mrb[0].mxu0
    %v5491 = vadd.f32 0.0, %v5490
    %v5492 = vpop.f32.mrb[0].mxu0
    %v5493 = vpop.f32.mrb[0].mxu0
    %v5494 = vadd.f32 0.0, %v5493
    %v5495 = vpop.f32.mrb[0].mxu0
    %5496 = vmatprep.mubr.bf16.mxu0 0
    %5497 = vmatmul.mubr.bf16.gmra.mrb[0].mxu0 %v5402
    %v5498 = vpop.f32.mrb[0].mxu0
    %v5499 = vadd.f32 0.0, %v5498
    %v5500 = vpop.f32.mrb[0].mxu0
    %v5501 = vpop.f32.mrb[0].mxu0
    %v5502 = vadd.f32 0.0, %v5501
    %v5503 = vpop.f32.mrb[0].mxu0
    %5504 = vmatprep.mubr.bf16.mxu0 0
    %5505 = vmatmul.mubr.bf16.gmra.mrb[0].mxu0 %v5405
    %v5506 = vpop.f32.mrb[0].mxu0
    %v5507 = vadd.f32 0.0, %v5506
    %v5508 = vpop.f32.mrb[0].mxu0
    %v5509 = vpop.f32.mrb[0].mxu0
    %v5510 = vadd.f32 0.0, %v5509
    %v5511 = vpop.f32.mrb[0].mxu0
    %5512 = vmatprep.mubr.bf16.mxu0 0
    %5513 = vmatmul.mubr.bf16.gmra.mrb[0].mxu0 %v5408
    %v5514 = vpop.f32.mrb[0].mxu0
    %v5515 = vadd.f32 0.0, %v5514
    %v5516 = vpop.f32.mrb[0].mxu0
    %v5517 = vpop.f32.mrb[0].mxu0
    %v5518 = vadd.f32 0.0, %v5517
    %v5519 = vpop.f32.mrb[0].mxu0
    %5520 = vmatprep.mubr.bf16.mxu0 0
    %5521 = vmatmul.mubr.bf16.gmra.mrb[0].mxu0 %v5411
    %v5522 = vpop.f32.mrb[0].mxu0
    %v5523 = vadd.f32 0.0, %v5522
    %v5524 = vpop.f32.mrb[0].mxu0
    %v5525 = vpop.f32.mrb[0].mxu0
    %v5526 = vadd.f32 0.0, %v5525
    %v5527 = vpop.f32.mrb[0].mxu0
    %5528 = vmatprep.mubr.bf16.mxu0 0
    %5529 = vmatmul.mubr.bf16.gmra.mrb[0].mxu0 %v5414
    %v5530 = vpop.f32.mrb[0].mxu0
    %v5531 = vadd.f32 0.0, %v5530
    %v5532 = vpop.f32.mrb[0].mxu0
    %v5533 = vpop.f32.mrb[0].mxu0
    %v5534 = vadd.f32 0.0, %v5533
    %v5535 = vpop.f32.mrb[0].mxu0
    %5536 = vdwg.mxu0
    %v5537 = vsel %vm667, %v5475, -inf
    %v5538 = vsel %vm668, %v5478, -inf
    %v5539 = vsel %vm669, %v5483, -inf
    %v5540 = vsel %vm670, %v5486, -inf
    %v5541 = vsel %vm671, %v5491, -inf
    %v5542 = vsel %vm672, %v5494, -inf
    %v5543 = vsel %vm673, %v5499, -inf
    %v5544 = vsel %vm674, %v5502, -inf
    %v5545 = vsel %vm675, %v5507, -inf
    %v5546 = vsel %vm676, %v5510, -inf
    %v5547 = vsel %vm677, %v5515, -inf
    %v5548 = vsel %vm678, %v5518, -inf
    %v5549 = vsel %vm679, %v5523, -inf
    %v5550 = vsel %vm680, %v5526, -inf
    %v5551 = vsel %vm681, %v5531, -inf
    %v5552 = vsel %vm682, %v5534, -inf
    %5553 = vmax.xlane.f32.xlu0 %v5537
    %v5554 = vpop.xlane.xlu0 %5553
    %5555 = vmax.xlane.f32.xlu0 %v5538
    %v5556 = vpop.xlane.xlu0 %5555
    %5557 = vmax.xlane.f32.xlu0 %v5539
    %v5558 = vpop.xlane.xlu0 %5557
    %5559 = vmax.xlane.f32.xlu0 %v5540
    %v5560 = vpop.xlane.xlu0 %5559
    %5561 = vmax.xlane.f32.xlu0 %v5541
    %v5562 = vpop.xlane.xlu0 %5561
    %5563 = vmax.xlane.f32.xlu0 %v5542
    %v5564 = vpop.xlane.xlu0 %5563
    %5565 = vmax.xlane.f32.xlu0 %v5543
    %v5566 = vpop.xlane.xlu0 %5565
    %5567 = vmax.xlane.f32.xlu0 %v5544
    %v5568 = vpop.xlane.xlu0 %5567
    %5569 = vmax.xlane.f32.xlu0 %v5545
    %v5570 = vpop.xlane.xlu0 %5569
    %5571 = vmax.xlane.f32.xlu0 %v5546
    %v5572 = vpop.xlane.xlu0 %5571
    %5573 = vmax.xlane.f32.xlu0 %v5547
    %v5574 = vpop.xlane.xlu0 %5573
    %5575 = vmax.xlane.f32.xlu0 %v5548
    %v5576 = vpop.xlane.xlu0 %5575
    %5577 = vmax.xlane.f32.xlu0 %v5549
    %v5578 = vpop.xlane.xlu0 %5577
    %5579 = vmax.xlane.f32.xlu0 %v5550
    %v5580 = vpop.xlane.xlu0 %5579
    %5581 = vmax.xlane.f32.xlu0 %v5551
    %v5582 = vpop.xlane.xlu0 %5581
    %5583 = vmax.xlane.f32.xlu0 %v5552
    %v5584 = vpop.xlane.xlu0 %5583
    %v5585 = vsub.f32 %v5537, %v5554
    %v5586 = vsub.f32 %v5538, %v5556
    %v5587 = vsub.f32 %v5539, %v5558
    %v5588 = vsub.f32 %v5540, %v5560
    %v5589 = vsub.f32 %v5541, %v5562
    %v5590 = vsub.f32 %v5542, %v5564
    %v5591 = vsub.f32 %v5543, %v5566
    %v5592 = vsub.f32 %v5544, %v5568
    %v5593 = vsub.f32 %v5545, %v5570
    %v5594 = vsub.f32 %v5546, %v5572
    %v5595 = vsub.f32 %v5547, %v5574
    %v5596 = vsub.f32 %v5548, %v5576
    %v5597 = vsub.f32 %v5549, %v5578
    %v5598 = vsub.f32 %v5550, %v5580
    %v5599 = vsub.f32 %v5551, %v5582
    %v5600 = vsub.f32 %v5552, %v5584
    %v5601 = vmul.f32 %v5585, 1.442695
    %v5602 = vpow.pop %v5601
    %v5603 = vmul.f32 %v5586, 1.442695
    %v5604 = vpow.pop %v5603
    %v5605 = vmul.f32 %v5587, 1.442695
    %v5606 = vpow.pop %v5605
    %v5607 = vmul.f32 %v5588, 1.442695
    %v5608 = vpow.pop %v5607
    %v5609 = vmul.f32 %v5589, 1.442695
    %v5610 = vpow.pop %v5609
    %v5611 = vmul.f32 %v5590, 1.442695
    %v5612 = vpow.pop %v5611
    %v5613 = vmul.f32 %v5591, 1.442695
    %v5614 = vpow.pop %v5613
    %v5615 = vmul.f32 %v5592, 1.442695
    %v5616 = vpow.pop %v5615
    %v5617 = vmul.f32 %v5593, 1.442695
    %v5618 = vpow.pop %v5617
    %v5619 = vmul.f32 %v5594, 1.442695
    %v5620 = vpow.pop %v5619
    %v5621 = vmul.f32 %v5595, 1.442695
    %v5622 = vpow.pop %v5621
    %v5623 = vmul.f32 %v5596, 1.442695
    %v5624 = vpow.pop %v5623
    %v5625 = vmul.f32 %v5597, 1.442695
    %v5626 = vpow.pop %v5625
    %v5627 = vmul.f32 %v5598, 1.442695
    %v5628 = vpow.pop %v5627
    %v5629 = vmul.f32 %v5599, 1.442695
    %v5630 = vpow.pop %v5629
    %v5631 = vmul.f32 %v5600, 1.442695
    %v5632 = vpow.pop %v5631
    %v5633 = vpack.c.bf16 %v5604, %v5602
    %v5634 = vpack.c.bf16 %v5608, %v5606
    %v5635 = vpack.c.bf16 %v5612, %v5610
    %v5636 = vpack.c.bf16 %v5616, %v5614
    %v5637 = vpack.c.bf16 %v5620, %v5618
    %v5638 = vpack.c.bf16 %v5624, %v5622
    %v5639 = vpack.c.bf16 %v5628, %v5626
    %v5640 = vpack.c.bf16 %v5632, %v5630
    %5641 = vmatprep.subr.bf16.mxu0 0
    %5642 = vmatpush1.bf16.msra.mxu0 %v4974
    %5643 = vmatprep.subr.bf16.mxu0 0
    %5644 = vmatpush1.bf16.msra.mxu0 %v4975
    %5645 = vmatprep.subr.bf16.mxu0 0
    %5646 = vmatpush1.bf16.msra.mxu0 %v4976
    %5647 = vmatprep.subr.bf16.mxu0 0
    %5648 = vmatpush1.bf16.msra.mxu0 %v4977
    %5649 = vmatprep.subr.bf16.mxu0 0
    %5650 = vmatpush1.bf16.msra.mxu0 %v4978
    %5651 = vmatprep.subr.bf16.mxu0 0
    %5652 = vmatpush1.bf16.msra.mxu0 %v4979
    %5653 = vmatprep.subr.bf16.mxu0 0
    %5654 = vmatpush1.bf16.msra.mxu0 %v4980
    %5655 = vmatprep.subr.bf16.mxu0 0
    %5656 = vmatpush1.bf16.msra.mxu0 %v4981
    %5657 = vmatprep.subr.bf16.mxu0 0
    %5658 = vmatpush1.bf16.msra.mxu0 0
    %5659 = vmatprep.subr.bf16.mxu0 0
    %5660 = vmatpush1.bf16.msra.mxu0 0
    %5661 = vmatprep.subr.bf16.mxu0 0
    %5662 = vmatpush1.bf16.msra.mxu0 0
    %5663 = vmatprep.subr.bf16.mxu0 0
    %5664 = vmatpush1.bf16.msra.mxu0 0
    %5665 = vmatprep.subr.bf16.mxu0 0
    %5666 = vmatpush1.bf16.msra.mxu0 0
    %5667 = vmatprep.subr.bf16.mxu0 0
    %5668 = vmatpush1.bf16.msra.mxu0 0
    %5669 = vmatprep.subr.bf16.mxu0 0
    %5670 = vmatpush1.bf16.msra.mxu0 0
    %5671 = vmatprep.subr.bf16.mxu0 0
    %5672 = vmatpush1.bf16.msra.mxu0 0
    %5673 = vmatprep.mubr.bf16.mxu0 0
    %5674 = vmatmul.mubr.bf16.gmra.mrb[0].mxu0 %v5633
    %v5675 = vpop.f32.mrb[0].mxu0
    %v5676 = vadd.f32 0.0, %v5675
    %v5677 = vpop.f32.mrb[0].mxu0
    %v5678 = vpop.f32.mrb[0].mxu0
    %v5679 = vadd.f32 0.0, %v5678
    %v5680 = vpop.f32.mrb[0].mxu0
    %5681 = vmatprep.mubr.bf16.mxu0 0
    %5682 = vmatmul.mubr.bf16.gmra.mrb[0].mxu0 %v5634
    %v5683 = vpop.f32.mrb[0].mxu0
    %v5684 = vadd.f32 0.0, %v5683
    %v5685 = vpop.f32.mrb[0].mxu0
    %v5686 = vpop.f32.mrb[0].mxu0
    %v5687 = vadd.f32 0.0, %v5686
    %v5688 = vpop.f32.mrb[0].mxu0
    %5689 = vmatprep.mubr.bf16.mxu0 0
    %5690 = vmatmul.mubr.bf16.gmra.mrb[0].mxu0 %v5635
    %v5691 = vpop.f32.mrb[0].mxu0
    %v5692 = vadd.f32 0.0, %v5691
    %v5693 = vpop.f32.mrb[0].mxu0
    %v5694 = vpop.f32.mrb[0].mxu0
    %v5695 = vadd.f32 0.0, %v5694
    %v5696 = vpop.f32.mrb[0].mxu0
    %5697 = vmatprep.mubr.bf16.mxu0 0
    %5698 = vmatmul.mubr.bf16.gmra.mrb[0].mxu0 %v5636
    %v5699 = vpop.f32.mrb[0].mxu0
    %v5700 = vadd.f32 0.0, %v5699
    %v5701 = vpop.f32.mrb[0].mxu0
    %v5702 = vpop.f32.mrb[0].mxu0
    %v5703 = vadd.f32 0.0, %v5702
    %v5704 = vpop.f32.mrb[0].mxu0
    %5705 = vmatprep.mubr.bf16.mxu0 0
    %5706 = vmatmul.mubr.bf16.gmra.mrb[0].mxu0 %v5637
    %v5707 = vpop.f32.mrb[0].mxu0
    %v5708 = vadd.f32 0.0, %v5707
    %v5709 = vpop.f32.mrb[0].mxu0
    %v5710 = vpop.f32.mrb[0].mxu0
    %v5711 = vadd.f32 0.0, %v5710
    %v5712 = vpop.f32.mrb[0].mxu0
    %5713 = vmatprep.mubr.bf16.mxu0 0
    %5714 = vmatmul.mubr.bf16.gmra.mrb[0].mxu0 %v5638
    %v5715 = vpop.f32.mrb[0].mxu0
    %v5716 = vadd.f32 0.0, %v5715
    %v5717 = vpop.f32.mrb[0].mxu0
    %v5718 = vpop.f32.mrb[0].mxu0
    %v5719 = vadd.f32 0.0, %v5718
    %v5720 = vpop.f32.mrb[0].mxu0
    %5721 = vmatprep.mubr.bf16.mxu0 0
    %5722 = vmatmul.mubr.bf16.gmra.mrb[0].mxu0 %v5639
    %v5723 = vpop.f32.mrb[0].mxu0
    %v5724 = vadd.f32 0.0, %v5723
    %v5725 = vpop.f32.mrb[0].mxu0
    %v5726 = vpop.f32.mrb[0].mxu0
    %v5727 = vadd.f32 0.0, %v5726
    %v5728 = vpop.f32.mrb[0].mxu0
    %5729 = vmatprep.mubr.bf16.mxu0 0
    %5730 = vmatmul.mubr.bf16.gmra.mrb[0].mxu0 %v5640
    %v5731 = vpop.f32.mrb[0].mxu0
    %v5732 = vadd.f32 0.0, %v5731
    %v5733 = vpop.f32.mrb[0].mxu0
    %v5734 = vpop.f32.mrb[0].mxu0
    %v5735 = vadd.f32 0.0, %v5734
    %v5736 = vpop.f32.mrb[0].mxu0
    %5737 = vdwg.mxu0
    %5738 = vadd.xlane.f32.xlu0 %v5602
    %v5739 = vpop.xlane.xlu0 %5738
    %5740 = vadd.xlane.f32.xlu0 %v5604
    %v5741 = vpop.xlane.xlu0 %5740
    %5742 = vadd.xlane.f32.xlu0 %v5606
    %v5743 = vpop.xlane.xlu0 %5742
    %5744 = vadd.xlane.f32.xlu0 %v5608
    %v5745 = vpop.xlane.xlu0 %5744
    %5746 = vadd.xlane.f32.xlu0 %v5610
    %v5747 = vpop.xlane.xlu0 %5746
    %5748 = vadd.xlane.f32.xlu0 %v5612
    %v5749 = vpop.xlane.xlu0 %5748
    %5750 = vadd.xlane.f32.xlu0 %v5614
    %v5751 = vpop.xlane.xlu0 %5750
    %5752 = vadd.xlane.f32.xlu0 %v5616
    %v5753 = vpop.xlane.xlu0 %5752
    %5754 = vadd.xlane.f32.xlu0 %v5618
    %v5755 = vpop.xlane.xlu0 %5754
    %5756 = vadd.xlane.f32.xlu0 %v5620
    %v5757 = vpop.xlane.xlu0 %5756
    %5758 = vadd.xlane.f32.xlu0 %v5622
    %v5759 = vpop.xlane.xlu0 %5758
    %5760 = vadd.xlane.f32.xlu0 %v5624
    %v5761 = vpop.xlane.xlu0 %5760
    %5762 = vadd.xlane.f32.xlu0 %v5626
    %v5763 = vpop.xlane.xlu0 %5762
    %5764 = vadd.xlane.f32.xlu0 %v5628
    %v5765 = vpop.xlane.xlu0 %5764
    %5766 = vadd.xlane.f32.xlu0 %v5630
    %v5767 = vpop.xlane.xlu0 %5766
    %5768 = vadd.xlane.f32.xlu0 %v5632
    %v5769 = vpop.xlane.xlu0 %5768
    %v5770 = vrcp.pop %v5739
    %v5771 = vrcp.pop %v5741
    %v5772 = vrcp.pop %v5743
    %v5773 = vrcp.pop %v5745
    %v5774 = vrcp.pop %v5747
    %v5775 = vrcp.pop %v5749
    %v5776 = vrcp.pop %v5751
    %v5777 = vrcp.pop %v5753
    %v5778 = vrcp.pop %v5755
    %v5779 = vrcp.pop %v5757
    %v5780 = vrcp.pop %v5759
    %v5781 = vrcp.pop %v5761
    %v5782 = vrcp.pop %v5763
    %v5783 = vrcp.pop %v5765
    %v5784 = vrcp.pop %v5767
    %v5785 = vrcp.pop %v5769
    %v5786 = vmul.f32 %v5676, %v5770
    %v5787 = vmul.f32 %v5679, %v5771
    %v5788 = vmul.f32 %v5684, %v5772
    %v5789 = vmul.f32 %v5687, %v5773
    %v5790 = vmul.f32 %v5692, %v5774
    %v5791 = vmul.f32 %v5695, %v5775
    %v5792 = vmul.f32 %v5700, %v5776
    %v5793 = vmul.f32 %v5703, %v5777
    %v5794 = vmul.f32 %v5708, %v5778
    %v5795 = vmul.f32 %v5711, %v5779
    %v5796 = vmul.f32 %v5716, %v5780
    %v5797 = vmul.f32 %v5719, %v5781
    %v5798 = vmul.f32 %v5724, %v5782
    %v5799 = vmul.f32 %v5727, %v5783
    %v5800 = vmul.f32 %v5732, %v5784
    %v5801 = vmul.f32 %v5735, %v5785
    %v5802 = vpack.c.bf16 %v5377, %v5376
    %v5803 = vpack.c.bf16 %v5379, %v5378
    %v5804 = vpack.c.bf16 %v5381, %v5380
    %v5805 = vpack.c.bf16 %v5383, %v5382
    %v5806 = vpack.c.bf16 %v5385, %v5384
    %v5807 = vpack.c.bf16 %v5387, %v5386
    %v5808 = vpack.c.bf16 %v5389, %v5388
    %v5809 = vpack.c.bf16 %v5391, %v5390
    %v5810 = vpack.c.bf16 %v5787, %v5786
    %v5811 = vpack.c.bf16 %v5789, %v5788
    %v5812 = vpack.c.bf16 %v5791, %v5790
    %v5813 = vpack.c.bf16 %v5793, %v5792
    %v5814 = vpack.c.bf16 %v5795, %v5794
    %v5815 = vpack.c.bf16 %v5797, %v5796
    %v5816 = vpack.c.bf16 %v5799, %v5798
    %v5817 = vpack.c.bf16 %v5801, %v5800
    %s5818 = scalar_lea.vmem %s6, 32
    %v5819 = vld [vmem:[%s5818] sm:$0xf]
    %v5820 = vld [vmem:[%s5818 + $0x4] sm:$0xf]
    %v5821 = vld [vmem:[%s5818 + $0x8] sm:$0xf]
    %v5822 = vld [vmem:[%s5818 + $0xc] sm:$0xf]
    %v5827 = vunpack.c.l.b16 %v5819
    %v5828 = vunpack.c.l.b16 %v5820
    %v5829 = vunpack.c.l.b16 %v5821
    %v5830 = vunpack.c.l.b16 %v5822
    %v5831 = vpack.c.b16 %v5828, %v5827
    %v5832 = vpack.c.b16 %v5830, %v5829
    %v5836 = vsel %vm1406, %v5802, 0
    %v5839 = vsel %vm1406, %v5803, 0
    %v5842 = vsel %vm1406, %v5804, 0
    %v5845 = vsel %vm1406, %v5805, 0
    %v5848 = vsel %vm1406, %v5806, 0
    %v5851 = vsel %vm1406, %v5807, 0
    %v5854 = vsel %vm1406, %v5808, 0
    %v5857 = vsel %vm1406, %v5809, 0
    %v5860 = vsel %vm1406, %v5810, 0
    %v5863 = vsel %vm1406, %v5811, 0
    %v5866 = vsel %vm1406, %v5812, 0
    %v5869 = vsel %vm1406, %v5813, 0
    %v5872 = vsel %vm1406, %v5814, 0
    %v5875 = vsel %vm1406, %v5815, 0
    %v5878 = vsel %vm1406, %v5816, 0
    %v5881 = vsel %vm1406, %v5817, 0
    %5883 = vmatprep.subr.bf16.mxu0 0
    %5884 = vmatpush1.bf16.msra.mxu0 %v5831
    %5885 = vmatprep.subr.bf16.mxu0 0
    %5886 = vmatpush1.bf16.msra.mxu0 %v5832
    %5887 = vmatprep.subr.bf16.mxu0 0
    %5888 = vmatpush1.bf16.msra.mxu0 0
    %5889 = vmatprep.subr.bf16.mxu0 0
    %5890 = vmatpush1.bf16.msra.mxu0 0
    %5891 = vmatprep.subr.bf16.mxu0 0
    %5892 = vmatpush1.bf16.msra.mxu0 0
    %5893 = vmatprep.subr.bf16.mxu0 0
    %5894 = vmatpush1.bf16.msra.mxu0 0
    %5895 = vmatprep.subr.bf16.mxu0 0
    %5896 = vmatpush1.bf16.msra.mxu0 0
    %5897 = vmatprep.subr.bf16.mxu0 0
    %5898 = vmatpush1.bf16.msra.mxu0 0
    %5899 = vmatprep.subr.bf16.mxu0 0
    %5900 = vmatpush1.bf16.msra.mxu0 0
    %5901 = vmatprep.subr.bf16.mxu0 0
    %5902 = vmatpush1.bf16.msra.mxu0 0
    %5903 = vmatprep.subr.bf16.mxu0 0
    %5904 = vmatpush1.bf16.msra.mxu0 0
    %5905 = vmatprep.subr.bf16.mxu0 0
    %5906 = vmatpush1.bf16.msra.mxu0 0
    %5907 = vmatprep.subr.bf16.mxu0 0
    %5908 = vmatpush1.bf16.msra.mxu0 0
    %5909 = vmatprep.subr.bf16.mxu0 0
    %5910 = vmatpush1.bf16.msra.mxu0 0
    %5911 = vmatprep.subr.bf16.mxu0 0
    %5912 = vmatpush1.bf16.msra.mxu0 0
    %5913 = vmatprep.subr.bf16.mxu0 0
    %5914 = vmatpush1.bf16.msra.mxu0 0
    %5915 = vmatprep.mubr.bf16.mxu0 0
    %5916 = vmatmul.mubr.bf16.gmra.mrb[0].mxu0 %v5836
    %v5917 = vpop.f32.mrb[0].mxu0
    %v5918 = vadd.f32 0.0, %v5917
    %v5919 = vpop.f32.mrb[0].mxu0
    %v5920 = vpop.f32.mrb[0].mxu0
    %v5921 = vadd.f32 0.0, %v5920
    %v5922 = vpop.f32.mrb[0].mxu0
    %5923 = vmatprep.mubr.bf16.mxu0 0
    %5924 = vmatmul.mubr.bf16.gmra.mrb[0].mxu0 %v5839
    %v5925 = vpop.f32.mrb[0].mxu0
    %v5926 = vadd.f32 0.0, %v5925
    %v5927 = vpop.f32.mrb[0].mxu0
    %v5928 = vpop.f32.mrb[0].mxu0
    %v5929 = vadd.f32 0.0, %v5928
    %v5930 = vpop.f32.mrb[0].mxu0
    %5931 = vmatprep.mubr.bf16.mxu0 0
    %5932 = vmatmul.mubr.bf16.gmra.mrb[0].mxu0 %v5842
    %v5933 = vpop.f32.mrb[0].mxu0
    %v5934 = vadd.f32 0.0, %v5933
    %v5935 = vpop.f32.mrb[0].mxu0
    %v5936 = vpop.f32.mrb[0].mxu0
    %v5937 = vadd.f32 0.0, %v5936
    %v5938 = vpop.f32.mrb[0].mxu0
    %5939 = vmatprep.mubr.bf16.mxu0 0
    %5940 = vmatmul.mubr.bf16.gmra.mrb[0].mxu0 %v5845
    %v5941 = vpop.f32.mrb[0].mxu0
    %v5942 = vadd.f32 0.0, %v5941
    %v5943 = vpop.f32.mrb[0].mxu0
    %v5944 = vpop.f32.mrb[0].mxu0
    %v5945 = vadd.f32 0.0, %v5944
    %v5946 = vpop.f32.mrb[0].mxu0
    %5947 = vmatprep.mubr.bf16.mxu0 0
    %5948 = vmatmul.mubr.bf16.gmra.mrb[0].mxu0 %v5848
    %v5949 = vpop.f32.mrb[0].mxu0
    %v5950 = vadd.f32 0.0, %v5949
    %v5951 = vpop.f32.mrb[0].mxu0
    %v5952 = vpop.f32.mrb[0].mxu0
    %v5953 = vadd.f32 0.0, %v5952
    %v5954 = vpop.f32.mrb[0].mxu0
    %5955 = vmatprep.mubr.bf16.mxu0 0
    %5956 = vmatmul.mubr.bf16.gmra.mrb[0].mxu0 %v5851
    %v5957 = vpop.f32.mrb[0].mxu0
    %v5958 = vadd.f32 0.0, %v5957
    %v5959 = vpop.f32.mrb[0].mxu0
    %v5960 = vpop.f32.mrb[0].mxu0
    %v5961 = vadd.f32 0.0, %v5960
    %v5962 = vpop.f32.mrb[0].mxu0
    %5963 = vmatprep.mubr.bf16.mxu0 0
    %5964 = vmatmul.mubr.bf16.gmra.mrb[0].mxu0 %v5854
    %v5965 = vpop.f32.mrb[0].mxu0
    %v5966 = vadd.f32 0.0, %v5965
    %v5967 = vpop.f32.mrb[0].mxu0
    %v5968 = vpop.f32.mrb[0].mxu0
    %v5969 = vadd.f32 0.0, %v5968
    %v5970 = vpop.f32.mrb[0].mxu0
    %5971 = vmatprep.mubr.bf16.mxu0 0
    %5972 = vmatmul.mubr.bf16.gmra.mrb[0].mxu0 %v5857
    %v5973 = vpop.f32.mrb[0].mxu0
    %v5974 = vadd.f32 0.0, %v5973
    %v5975 = vpop.f32.mrb[0].mxu0
    %v5976 = vpop.f32.mrb[0].mxu0
    %v5977 = vadd.f32 0.0, %v5976
    %v5978 = vpop.f32.mrb[0].mxu0
    %5979 = vmatprep.mubr.bf16.mxu0 0
    %5980 = vmatmul.mubr.bf16.gmra.mrb[0].mxu0 %v5860
    %v5981 = vpop.f32.mrb[0].mxu0
    %v5982 = vadd.f32 0.0, %v5981
    %v5983 = vpop.f32.mrb[0].mxu0
    %v5984 = vpop.f32.mrb[0].mxu0
    %v5985 = vadd.f32 0.0, %v5984
    %v5986 = vpop.f32.mrb[0].mxu0
    %5987 = vmatprep.mubr.bf16.mxu0 0
    %5988 = vmatmul.mubr.bf16.gmra.mrb[0].mxu0 %v5863
    %v5989 = vpop.f32.mrb[0].mxu0
    %v5990 = vadd.f32 0.0, %v5989
    %v5991 = vpop.f32.mrb[0].mxu0
    %v5992 = vpop.f32.mrb[0].mxu0
    %v5993 = vadd.f32 0.0, %v5992
    %v5994 = vpop.f32.mrb[0].mxu0
    %5995 = vmatprep.mubr.bf16.mxu0 0
    %5996 = vmatmul.mubr.bf16.gmra.mrb[0].mxu0 %v5866
    %v5997 = vpop.f32.mrb[0].mxu0
    %v5998 = vadd.f32 0.0, %v5997
    %v5999 = vpop.f32.mrb[0].mxu0
    %v6000 = vpop.f32.mrb[0].mxu0
    %v6001 = vadd.f32 0.0, %v6000
    %v6002 = vpop.f32.mrb[0].mxu0
    %6003 = vmatprep.mubr.bf16.mxu0 0
    %6004 = vmatmul.mubr.bf16.gmra.mrb[0].mxu0 %v5869
    %v6005 = vpop.f32.mrb[0].mxu0
    %v6006 = vadd.f32 0.0, %v6005
    %v6007 = vpop.f32.mrb[0].mxu0
    %v6008 = vpop.f32.mrb[0].mxu0
    %v6009 = vadd.f32 0.0, %v6008
    %v6010 = vpop.f32.mrb[0].mxu0
    %6011 = vmatprep.mubr.bf16.mxu0 0
    %6012 = vmatmul.mubr.bf16.gmra.mrb[0].mxu0 %v5872
    %v6013 = vpop.f32.mrb[0].mxu0
    %v6014 = vadd.f32 0.0, %v6013
    %v6015 = vpop.f32.mrb[0].mxu0
    %v6016 = vpop.f32.mrb[0].mxu0
    %v6017 = vadd.f32 0.0, %v6016
    %v6018 = vpop.f32.mrb[0].mxu0
    %6019 = vmatprep.mubr.bf16.mxu0 0
    %6020 = vmatmul.mubr.bf16.gmra.mrb[0].mxu0 %v5875
    %v6021 = vpop.f32.mrb[0].mxu0
    %v6022 = vadd.f32 0.0, %v6021
    %v6023 = vpop.f32.mrb[0].mxu0
    %v6024 = vpop.f32.mrb[0].mxu0
    %v6025 = vadd.f32 0.0, %v6024
    %v6026 = vpop.f32.mrb[0].mxu0
    %6027 = vmatprep.mubr.bf16.mxu0 0
    %6028 = vmatmul.mubr.bf16.gmra.mrb[0].mxu0 %v5878
    %v6029 = vpop.f32.mrb[0].mxu0
    %v6030 = vadd.f32 0.0, %v6029
    %v6031 = vpop.f32.mrb[0].mxu0
    %v6032 = vpop.f32.mrb[0].mxu0
    %v6033 = vadd.f32 0.0, %v6032
    %v6034 = vpop.f32.mrb[0].mxu0
    %6035 = vmatprep.mubr.bf16.mxu0 0
    %6036 = vmatmul.mubr.bf16.gmra.mrb[0].mxu0 %v5881
    %v6037 = vpop.f32.mrb[0].mxu0
    %v6038 = vadd.f32 0.0, %v6037
    %v6039 = vpop.f32.mrb[0].mxu0
    %v6040 = vpop.f32.mrb[0].mxu0
    %v6041 = vadd.f32 0.0, %v6040
    %v6042 = vpop.f32.mrb[0].mxu0
    %6043 = vdwg.mxu0
    %v6044 = vadd.f32 %v4130, %v5918
    %v6045 = vadd.f32 %v4133, %v5921
    %v6046 = vadd.f32 %v4138, %v5926
    %v6047 = vadd.f32 %v4141, %v5929
    %v6048 = vadd.f32 %v4146, %v5934
    %v6049 = vadd.f32 %v4149, %v5937
    %v6050 = vadd.f32 %v4154, %v5942
    %v6051 = vadd.f32 %v4157, %v5945
    %v6052 = vadd.f32 %v4162, %v5950
    %v6053 = vadd.f32 %v4165, %v5953
    %v6054 = vadd.f32 %v4170, %v5958
    %v6055 = vadd.f32 %v4173, %v5961
    %v6056 = vadd.f32 %v4178, %v5966
    %v6057 = vadd.f32 %v4181, %v5969
    %v6058 = vadd.f32 %v4186, %v5974
    %v6059 = vadd.f32 %v4189, %v5977
    %v6060 = vadd.f32 %v4194, %v5982
    %v6061 = vadd.f32 %v4197, %v5985
    %v6062 = vadd.f32 %v4202, %v5990
    %v6063 = vadd.f32 %v4205, %v5993
    %v6064 = vadd.f32 %v4210, %v5998
    %v6065 = vadd.f32 %v4213, %v6001
    %v6066 = vadd.f32 %v4218, %v6006
    %v6067 = vadd.f32 %v4221, %v6009
    %v6068 = vadd.f32 %v4226, %v6014
    %v6069 = vadd.f32 %v4229, %v6017
    %v6070 = vadd.f32 %v4234, %v6022
    %v6071 = vadd.f32 %v4237, %v6025
    %v6072 = vadd.f32 %v4242, %v6030
    %v6073 = vadd.f32 %v4245, %v6033
    %v6074 = vadd.f32 %v4250, %v6038
    %v6075 = vadd.f32 %v4253, %v6041
    %s6076 = scalar_lea.vmem %s3, 192
    %v6077 = vld [vmem:[%s6076] sm:$0xf]
    %v6078 = vld [vmem:[%s6076 + $0x4] sm:$0xf]
    %v6079 = vld [vmem:[%s6076 + $0x8] sm:$0xf]
    %v6080 = vld [vmem:[%s6076 + $0xc] sm:$0xf]
    %v6081 = vld [vmem:[%s6076 + $0x10] sm:$0xf]
    %v6082 = vld [vmem:[%s6076 + $0x14] sm:$0xf]
    %v6083 = vld [vmem:[%s6076 + $0x18] sm:$0xf]
    %v6084 = vld [vmem:[%s6076 + $0x1c] sm:$0xf]
    %v6085 = vld [vmem:[%s6076 + $0x20] sm:$0xf]
    %v6086 = vld [vmem:[%s6076 + $0x24] sm:$0xf]
    %v6087 = vld [vmem:[%s6076 + $0x28] sm:$0xf]
    %v6088 = vld [vmem:[%s6076 + $0x2c] sm:$0xf]
    %v6089 = vld [vmem:[%s6076 + $0x30] sm:$0xf]
    %v6090 = vld [vmem:[%s6076 + $0x34] sm:$0xf]
    %v6091 = vld [vmem:[%s6076 + $0x38] sm:$0xf]
    %v6092 = vld [vmem:[%s6076 + $0x3c] sm:$0xf]
    %v6109 = vunpack.c.l.b16 %v6077
    %v6110 = vunpack.c.l.b16 %v6078
    %v6111 = vunpack.c.l.b16 %v6079
    %v6112 = vunpack.c.l.b16 %v6080
    %v6113 = vunpack.c.l.b16 %v6081
    %v6114 = vunpack.c.l.b16 %v6082
    %v6115 = vunpack.c.l.b16 %v6083
    %v6116 = vunpack.c.l.b16 %v6084
    %v6117 = vunpack.c.l.b16 %v6085
    %v6118 = vunpack.c.l.b16 %v6086
    %v6119 = vunpack.c.l.b16 %v6087
    %v6120 = vunpack.c.l.b16 %v6088
    %v6121 = vunpack.c.l.b16 %v6089
    %v6122 = vunpack.c.l.b16 %v6090
    %v6123 = vunpack.c.l.b16 %v6091
    %v6124 = vunpack.c.l.b16 %v6092
    %v6125 = vpack.c.b16 %v6110, %v6109
    %v6126 = vpack.c.b16 %v6112, %v6111
    %v6127 = vpack.c.b16 %v6114, %v6113
    %v6128 = vpack.c.b16 %v6116, %v6115
    %v6129 = vpack.c.b16 %v6118, %v6117
    %v6130 = vpack.c.b16 %v6120, %v6119
    %v6131 = vpack.c.b16 %v6122, %v6121
    %v6132 = vpack.c.b16 %v6124, %v6123
    %6141 = vmatprep.subr.bf16.mxu0 0
    %6142 = vmatpush1.bf16.msra.mxu0 %v6125
    %6143 = vmatprep.subr.bf16.mxu0 0
    %6144 = vmatpush1.bf16.msra.mxu0 %v6126
    %6145 = vmatprep.subr.bf16.mxu0 0
    %6146 = vmatpush1.bf16.msra.mxu0 %v6127
    %6147 = vmatprep.subr.bf16.mxu0 0
    %6148 = vmatpush1.bf16.msra.mxu0 %v6128
    %6149 = vmatprep.subr.bf16.mxu0 0
    %6150 = vmatpush1.bf16.msra.mxu0 %v6129
    %6151 = vmatprep.subr.bf16.mxu0 0
    %6152 = vmatpush1.bf16.msra.mxu0 %v6130
    %6153 = vmatprep.subr.bf16.mxu0 0
    %6154 = vmatpush1.bf16.msra.mxu0 %v6131
    %6155 = vmatprep.subr.bf16.mxu0 0
    %6156 = vmatpush1.bf16.msra.mxu0 %v6132
    %6157 = vmatprep.subr.bf16.mxu0 0
    %6158 = vmatpush1.bf16.msra.mxu0 0
    %6159 = vmatprep.subr.bf16.mxu0 0
    %6160 = vmatpush1.bf16.msra.mxu0 0
    %6161 = vmatprep.subr.bf16.mxu0 0
    %6162 = vmatpush1.bf16.msra.mxu0 0
    %6163 = vmatprep.subr.bf16.mxu0 0
    %6164 = vmatpush1.bf16.msra.mxu0 0
    %6165 = vmatprep.subr.bf16.mxu0 0
    %6166 = vmatpush1.bf16.msra.mxu0 0
    %6167 = vmatprep.subr.bf16.mxu0 0
    %6168 = vmatpush1.bf16.msra.mxu0 0
    %6169 = vmatprep.subr.bf16.mxu0 0
    %6170 = vmatpush1.bf16.msra.mxu0 0
    %6171 = vmatprep.subr.bf16.mxu0 0
    %6172 = vmatpush1.bf16.msra.mxu0 0
    %6173 = vmatprep.mubr.bf16.mxu0 0
    %6174 = vmatmul.mubr.bf16.gmra.mrb[0].mxu0 %v632
    %v6175 = vpop.f32.mrb[0].mxu0
    %v6176 = vadd.f32 0.0, %v6175
    %v6177 = vpop.f32.mrb[0].mxu0
    %v6178 = vpop.f32.mrb[0].mxu0
    %v6179 = vadd.f32 0.0, %v6178
    %v6180 = vpop.f32.mrb[0].mxu0
    %6181 = vmatprep.mubr.bf16.mxu0 0
    %6182 = vmatmul.mubr.bf16.gmra.mrb[0].mxu0 %v633
    %v6183 = vpop.f32.mrb[0].mxu0
    %v6184 = vadd.f32 0.0, %v6183
    %v6185 = vpop.f32.mrb[0].mxu0
    %v6186 = vpop.f32.mrb[0].mxu0
    %v6187 = vadd.f32 0.0, %v6186
    %v6188 = vpop.f32.mrb[0].mxu0
    %6189 = vmatprep.mubr.bf16.mxu0 0
    %6190 = vmatmul.mubr.bf16.gmra.mrb[0].mxu0 %v634
    %v6191 = vpop.f32.mrb[0].mxu0
    %v6192 = vadd.f32 0.0, %v6191
    %v6193 = vpop.f32.mrb[0].mxu0
    %v6194 = vpop.f32.mrb[0].mxu0
    %v6195 = vadd.f32 0.0, %v6194
    %v6196 = vpop.f32.mrb[0].mxu0
    %6197 = vmatprep.mubr.bf16.mxu0 0
    %6198 = vmatmul.mubr.bf16.gmra.mrb[0].mxu0 %v635
    %v6199 = vpop.f32.mrb[0].mxu0
    %v6200 = vadd.f32 0.0, %v6199
    %v6201 = vpop.f32.mrb[0].mxu0
    %v6202 = vpop.f32.mrb[0].mxu0
    %v6203 = vadd.f32 0.0, %v6202
    %v6204 = vpop.f32.mrb[0].mxu0
    %6205 = vmatprep.mubr.bf16.mxu0 0
    %6206 = vmatmul.mubr.bf16.gmra.mrb[0].mxu0 %v636
    %v6207 = vpop.f32.mrb[0].mxu0
    %v6208 = vadd.f32 0.0, %v6207
    %v6209 = vpop.f32.mrb[0].mxu0
    %v6210 = vpop.f32.mrb[0].mxu0
    %v6211 = vadd.f32 0.0, %v6210
    %v6212 = vpop.f32.mrb[0].mxu0
    %6213 = vmatprep.mubr.bf16.mxu0 0
    %6214 = vmatmul.mubr.bf16.gmra.mrb[0].mxu0 %v637
    %v6215 = vpop.f32.mrb[0].mxu0
    %v6216 = vadd.f32 0.0, %v6215
    %v6217 = vpop.f32.mrb[0].mxu0
    %v6218 = vpop.f32.mrb[0].mxu0
    %v6219 = vadd.f32 0.0, %v6218
    %v6220 = vpop.f32.mrb[0].mxu0
    %6221 = vmatprep.mubr.bf16.mxu0 0
    %6222 = vmatmul.mubr.bf16.gmra.mrb[0].mxu0 %v638
    %v6223 = vpop.f32.mrb[0].mxu0
    %v6224 = vadd.f32 0.0, %v6223
    %v6225 = vpop.f32.mrb[0].mxu0
    %v6226 = vpop.f32.mrb[0].mxu0
    %v6227 = vadd.f32 0.0, %v6226
    %v6228 = vpop.f32.mrb[0].mxu0
    %6229 = vmatprep.mubr.bf16.mxu0 0
    %6230 = vmatmul.mubr.bf16.gmra.mrb[0].mxu0 %v639
    %v6231 = vpop.f32.mrb[0].mxu0
    %v6232 = vadd.f32 0.0, %v6231
    %v6233 = vpop.f32.mrb[0].mxu0
    %v6234 = vpop.f32.mrb[0].mxu0
    %v6235 = vadd.f32 0.0, %v6234
    %v6236 = vpop.f32.mrb[0].mxu0
    %6237 = vmatprep.mubr.bf16.mxu0 0
    %6238 = vmatmul.mubr.bf16.gmra.mrb[0].mxu0 %v640
    %v6239 = vpop.f32.mrb[0].mxu0
    %v6240 = vadd.f32 0.0, %v6239
    %v6241 = vpop.f32.mrb[0].mxu0
    %v6242 = vpop.f32.mrb[0].mxu0
    %v6243 = vadd.f32 0.0, %v6242
    %v6244 = vpop.f32.mrb[0].mxu0
    %6245 = vmatprep.mubr.bf16.mxu0 0
    %6246 = vmatmul.mubr.bf16.gmra.mrb[0].mxu0 %v641
    %v6247 = vpop.f32.mrb[0].mxu0
    %v6248 = vadd.f32 0.0, %v6247
    %v6249 = vpop.f32.mrb[0].mxu0
    %v6250 = vpop.f32.mrb[0].mxu0
    %v6251 = vadd.f32 0.0, %v6250
    %v6252 = vpop.f32.mrb[0].mxu0
    %6253 = vmatprep.mubr.bf16.mxu0 0
    %6254 = vmatmul.mubr.bf16.gmra.mrb[0].mxu0 %v642
    %v6255 = vpop.f32.mrb[0].mxu0
    %v6256 = vadd.f32 0.0, %v6255
    %v6257 = vpop.f32.mrb[0].mxu0
    %v6258 = vpop.f32.mrb[0].mxu0
    %v6259 = vadd.f32 0.0, %v6258
    %v6260 = vpop.f32.mrb[0].mxu0
    %6261 = vmatprep.mubr.bf16.mxu0 0
    %6262 = vmatmul.mubr.bf16.gmra.mrb[0].mxu0 %v643
    %v6263 = vpop.f32.mrb[0].mxu0
    %v6264 = vadd.f32 0.0, %v6263
    %v6265 = vpop.f32.mrb[0].mxu0
    %v6266 = vpop.f32.mrb[0].mxu0
    %v6267 = vadd.f32 0.0, %v6266
    %v6268 = vpop.f32.mrb[0].mxu0
    %6269 = vmatprep.mubr.bf16.mxu0 0
    %6270 = vmatmul.mubr.bf16.gmra.mrb[0].mxu0 %v644
    %v6271 = vpop.f32.mrb[0].mxu0
    %v6272 = vadd.f32 0.0, %v6271
    %v6273 = vpop.f32.mrb[0].mxu0
    %v6274 = vpop.f32.mrb[0].mxu0
    %v6275 = vadd.f32 0.0, %v6274
    %v6276 = vpop.f32.mrb[0].mxu0
    %6277 = vmatprep.mubr.bf16.mxu0 0
    %6278 = vmatmul.mubr.bf16.gmra.mrb[0].mxu0 %v645
    %v6279 = vpop.f32.mrb[0].mxu0
    %v6280 = vadd.f32 0.0, %v6279
    %v6281 = vpop.f32.mrb[0].mxu0
    %v6282 = vpop.f32.mrb[0].mxu0
    %v6283 = vadd.f32 0.0, %v6282
    %v6284 = vpop.f32.mrb[0].mxu0
    %6285 = vmatprep.mubr.bf16.mxu0 0
    %6286 = vmatmul.mubr.bf16.gmra.mrb[0].mxu0 %v646
    %v6287 = vpop.f32.mrb[0].mxu0
    %v6288 = vadd.f32 0.0, %v6287
    %v6289 = vpop.f32.mrb[0].mxu0
    %v6290 = vpop.f32.mrb[0].mxu0
    %v6291 = vadd.f32 0.0, %v6290
    %v6292 = vpop.f32.mrb[0].mxu0
    %6293 = vmatprep.mubr.bf16.mxu0 0
    %6294 = vmatmul.mubr.bf16.gmra.mrb[0].mxu0 %v647
    %v6295 = vpop.f32.mrb[0].mxu0
    %v6296 = vadd.f32 0.0, %v6295
    %v6297 = vpop.f32.mrb[0].mxu0
    %v6298 = vpop.f32.mrb[0].mxu0
    %v6299 = vadd.f32 0.0, %v6298
    %v6300 = vpop.f32.mrb[0].mxu0
    %6301 = vdwg.mxu0
    %v6302 = vpack.c.bf16 %v6179, %v6176
    %v6303 = vpack.c.bf16 %v6187, %v6184
    %v6304 = vpack.c.bf16 %v6195, %v6192
    %v6305 = vpack.c.bf16 %v6203, %v6200
    %v6306 = vpack.c.bf16 %v6211, %v6208
    %v6307 = vpack.c.bf16 %v6219, %v6216
    %v6308 = vpack.c.bf16 %v6227, %v6224
    %v6309 = vpack.c.bf16 %v6235, %v6232
    %v6310 = vpack.c.bf16 %v6243, %v6240
    %v6311 = vpack.c.bf16 %v6251, %v6248
    %v6312 = vpack.c.bf16 %v6259, %v6256
    %v6313 = vpack.c.bf16 %v6267, %v6264
    %v6314 = vpack.c.bf16 %v6275, %v6272
    %v6315 = vpack.c.bf16 %v6283, %v6280
    %v6316 = vpack.c.bf16 %v6291, %v6288
    %v6317 = vpack.c.bf16 %v6299, %v6296
    %s6318 = scalar_lea.vmem %s4, 192
    %v6319 = vld [vmem:[%s6318] sm:$0xf]
    %v6320 = vld [vmem:[%s6318 + $0x4] sm:$0xf]
    %v6321 = vld [vmem:[%s6318 + $0x8] sm:$0xf]
    %v6322 = vld [vmem:[%s6318 + $0xc] sm:$0xf]
    %v6323 = vld [vmem:[%s6318 + $0x10] sm:$0xf]
    %v6324 = vld [vmem:[%s6318 + $0x14] sm:$0xf]
    %v6325 = vld [vmem:[%s6318 + $0x18] sm:$0xf]
    %v6326 = vld [vmem:[%s6318 + $0x1c] sm:$0xf]
    %v6327 = vld [vmem:[%s6318 + $0x20] sm:$0xf]
    %v6328 = vld [vmem:[%s6318 + $0x24] sm:$0xf]
    %v6329 = vld [vmem:[%s6318 + $0x28] sm:$0xf]
    %v6330 = vld [vmem:[%s6318 + $0x2c] sm:$0xf]
    %v6331 = vld [vmem:[%s6318 + $0x30] sm:$0xf]
    %v6332 = vld [vmem:[%s6318 + $0x34] sm:$0xf]
    %v6333 = vld [vmem:[%s6318 + $0x38] sm:$0xf]
    %v6334 = vld [vmem:[%s6318 + $0x3c] sm:$0xf]
    %v6351 = vunpack.c.l.b16 %v6319
    %v6352 = vunpack.c.l.b16 %v6320
    %v6353 = vunpack.c.l.b16 %v6321
    %v6354 = vunpack.c.l.b16 %v6322
    %v6355 = vunpack.c.l.b16 %v6323
    %v6356 = vunpack.c.l.b16 %v6324
    %v6357 = vunpack.c.l.b16 %v6325
    %v6358 = vunpack.c.l.b16 %v6326
    %v6359 = vunpack.c.l.b16 %v6327
    %v6360 = vunpack.c.l.b16 %v6328
    %v6361 = vunpack.c.l.b16 %v6329
    %v6362 = vunpack.c.l.b16 %v6330
    %v6363 = vunpack.c.l.b16 %v6331
    %v6364 = vunpack.c.l.b16 %v6332
    %v6365 = vunpack.c.l.b16 %v6333
    %v6366 = vunpack.c.l.b16 %v6334
    %v6367 = vpack.c.b16 %v6352, %v6351
    %v6368 = vpack.c.b16 %v6354, %v6353
    %v6369 = vpack.c.b16 %v6356, %v6355
    %v6370 = vpack.c.b16 %v6358, %v6357
    %v6371 = vpack.c.b16 %v6360, %v6359
    %v6372 = vpack.c.b16 %v6362, %v6361
    %v6373 = vpack.c.b16 %v6364, %v6363
    %v6374 = vpack.c.b16 %v6366, %v6365
    %6383 = vmatprep.subr.bf16.mxu0 0
    %6384 = vmatpush1.bf16.msra.mxu0 %v6367
    %6385 = vmatprep.subr.bf16.mxu0 0
    %6386 = vmatpush1.bf16.msra.mxu0 %v6368
    %6387 = vmatprep.subr.bf16.mxu0 0
    %6388 = vmatpush1.bf16.msra.mxu0 %v6369
    %6389 = vmatprep.subr.bf16.mxu0 0
    %6390 = vmatpush1.bf16.msra.mxu0 %v6370
    %6391 = vmatprep.subr.bf16.mxu0 0
    %6392 = vmatpush1.bf16.msra.mxu0 %v6371
    %6393 = vmatprep.subr.bf16.mxu0 0
    %6394 = vmatpush1.bf16.msra.mxu0 %v6372
    %6395 = vmatprep.subr.bf16.mxu0 0
    %6396 = vmatpush1.bf16.msra.mxu0 %v6373
    %6397 = vmatprep.subr.bf16.mxu0 0
    %6398 = vmatpush1.bf16.msra.mxu0 %v6374
    %6399 = vmatprep.subr.bf16.mxu0 0
    %6400 = vmatpush1.bf16.msra.mxu0 0
    %6401 = vmatprep.subr.bf16.mxu0 0
    %6402 = vmatpush1.bf16.msra.mxu0 0
    %6403 = vmatprep.subr.bf16.mxu0 0
    %6404 = vmatpush1.bf16.msra.mxu0 0
    %6405 = vmatprep.subr.bf16.mxu0 0
    %6406 = vmatpush1.bf16.msra.mxu0 0
    %6407 = vmatprep.subr.bf16.mxu0 0
    %6408 = vmatpush1.bf16.msra.mxu0 0
    %6409 = vmatprep.subr.bf16.mxu0 0
    %6410 = vmatpush1.bf16.msra.mxu0 0
    %6411 = vmatprep.subr.bf16.mxu0 0
    %6412 = vmatpush1.bf16.msra.mxu0 0
    %6413 = vmatprep.subr.bf16.mxu0 0
    %6414 = vmatpush1.bf16.msra.mxu0 0
    %6415 = vmatprep.mubr.bf16.mxu0 0
    %6416 = vmatmul.mubr.bf16.gmra.mrb[0].mxu0 %v632
    %v6417 = vpop.f32.mrb[0].mxu0
    %v6418 = vadd.f32 0.0, %v6417
    %v6419 = vpop.f32.mrb[0].mxu0
    %v6420 = vpop.f32.mrb[0].mxu0
    %v6421 = vadd.f32 0.0, %v6420
    %v6422 = vpop.f32.mrb[0].mxu0
    %6423 = vmatprep.mubr.bf16.mxu0 0
    %6424 = vmatmul.mubr.bf16.gmra.mrb[0].mxu0 %v633
    %v6425 = vpop.f32.mrb[0].mxu0
    %v6426 = vadd.f32 0.0, %v6425
    %v6427 = vpop.f32.mrb[0].mxu0
    %v6428 = vpop.f32.mrb[0].mxu0
    %v6429 = vadd.f32 0.0, %v6428
    %v6430 = vpop.f32.mrb[0].mxu0
    %6431 = vmatprep.mubr.bf16.mxu0 0
    %6432 = vmatmul.mubr.bf16.gmra.mrb[0].mxu0 %v634
    %v6433 = vpop.f32.mrb[0].mxu0
    %v6434 = vadd.f32 0.0, %v6433
    %v6435 = vpop.f32.mrb[0].mxu0
    %v6436 = vpop.f32.mrb[0].mxu0
    %v6437 = vadd.f32 0.0, %v6436
    %v6438 = vpop.f32.mrb[0].mxu0
    %6439 = vmatprep.mubr.bf16.mxu0 0
    %6440 = vmatmul.mubr.bf16.gmra.mrb[0].mxu0 %v635
    %v6441 = vpop.f32.mrb[0].mxu0
    %v6442 = vadd.f32 0.0, %v6441
    %v6443 = vpop.f32.mrb[0].mxu0
    %v6444 = vpop.f32.mrb[0].mxu0
    %v6445 = vadd.f32 0.0, %v6444
    %v6446 = vpop.f32.mrb[0].mxu0
    %6447 = vmatprep.mubr.bf16.mxu0 0
    %6448 = vmatmul.mubr.bf16.gmra.mrb[0].mxu0 %v636
    %v6449 = vpop.f32.mrb[0].mxu0
    %v6450 = vadd.f32 0.0, %v6449
    %v6451 = vpop.f32.mrb[0].mxu0
    %v6452 = vpop.f32.mrb[0].mxu0
    %v6453 = vadd.f32 0.0, %v6452
    %v6454 = vpop.f32.mrb[0].mxu0
    %6455 = vmatprep.mubr.bf16.mxu0 0
    %6456 = vmatmul.mubr.bf16.gmra.mrb[0].mxu0 %v637
    %v6457 = vpop.f32.mrb[0].mxu0
    %v6458 = vadd.f32 0.0, %v6457
    %v6459 = vpop.f32.mrb[0].mxu0
    %v6460 = vpop.f32.mrb[0].mxu0
    %v6461 = vadd.f32 0.0, %v6460
    %v6462 = vpop.f32.mrb[0].mxu0
    %6463 = vmatprep.mubr.bf16.mxu0 0
    %6464 = vmatmul.mubr.bf16.gmra.mrb[0].mxu0 %v638
    %v6465 = vpop.f32.mrb[0].mxu0
    %v6466 = vadd.f32 0.0, %v6465
    %v6467 = vpop.f32.mrb[0].mxu0
    %v6468 = vpop.f32.mrb[0].mxu0
    %v6469 = vadd.f32 0.0, %v6468
    %v6470 = vpop.f32.mrb[0].mxu0
    %6471 = vmatprep.mubr.bf16.mxu0 0
    %6472 = vmatmul.mubr.bf16.gmra.mrb[0].mxu0 %v639
    %v6473 = vpop.f32.mrb[0].mxu0
    %v6474 = vadd.f32 0.0, %v6473
    %v6475 = vpop.f32.mrb[0].mxu0
    %v6476 = vpop.f32.mrb[0].mxu0
    %v6477 = vadd.f32 0.0, %v6476
    %v6478 = vpop.f32.mrb[0].mxu0
    %6479 = vmatprep.mubr.bf16.mxu0 0
    %6480 = vmatmul.mubr.bf16.gmra.mrb[0].mxu0 %v640
    %v6481 = vpop.f32.mrb[0].mxu0
    %v6482 = vadd.f32 0.0, %v6481
    %v6483 = vpop.f32.mrb[0].mxu0
    %v6484 = vpop.f32.mrb[0].mxu0
    %v6485 = vadd.f32 0.0, %v6484
    %v6486 = vpop.f32.mrb[0].mxu0
    %6487 = vmatprep.mubr.bf16.mxu0 0
    %6488 = vmatmul.mubr.bf16.gmra.mrb[0].mxu0 %v641
    %v6489 = vpop.f32.mrb[0].mxu0
    %v6490 = vadd.f32 0.0, %v6489
    %v6491 = vpop.f32.mrb[0].mxu0
    %v6492 = vpop.f32.mrb[0].mxu0
    %v6493 = vadd.f32 0.0, %v6492
    %v6494 = vpop.f32.mrb[0].mxu0
    %6495 = vmatprep.mubr.bf16.mxu0 0
    %6496 = vmatmul.mubr.bf16.gmra.mrb[0].mxu0 %v642
    %v6497 = vpop.f32.mrb[0].mxu0
    %v6498 = vadd.f32 0.0, %v6497
    %v6499 = vpop.f32.mrb[0].mxu0
    %v6500 = vpop.f32.mrb[0].mxu0
    %v6501 = vadd.f32 0.0, %v6500
    %v6502 = vpop.f32.mrb[0].mxu0
    %6503 = vmatprep.mubr.bf16.mxu0 0
    %6504 = vmatmul.mubr.bf16.gmra.mrb[0].mxu0 %v643
    %v6505 = vpop.f32.mrb[0].mxu0
    %v6506 = vadd.f32 0.0, %v6505
    %v6507 = vpop.f32.mrb[0].mxu0
    %v6508 = vpop.f32.mrb[0].mxu0
    %v6509 = vadd.f32 0.0, %v6508
    %v6510 = vpop.f32.mrb[0].mxu0
    %6511 = vmatprep.mubr.bf16.mxu0 0
    %6512 = vmatmul.mubr.bf16.gmra.mrb[0].mxu0 %v644
    %v6513 = vpop.f32.mrb[0].mxu0
    %v6514 = vadd.f32 0.0, %v6513
    %v6515 = vpop.f32.mrb[0].mxu0
    %v6516 = vpop.f32.mrb[0].mxu0
    %v6517 = vadd.f32 0.0, %v6516
    %v6518 = vpop.f32.mrb[0].mxu0
    %6519 = vmatprep.mubr.bf16.mxu0 0
    %6520 = vmatmul.mubr.bf16.gmra.mrb[0].mxu0 %v645
    %v6521 = vpop.f32.mrb[0].mxu0
    %v6522 = vadd.f32 0.0, %v6521
    %v6523 = vpop.f32.mrb[0].mxu0
    %v6524 = vpop.f32.mrb[0].mxu0
    %v6525 = vadd.f32 0.0, %v6524
    %v6526 = vpop.f32.mrb[0].mxu0
    %6527 = vmatprep.mubr.bf16.mxu0 0
    %6528 = vmatmul.mubr.bf16.gmra.mrb[0].mxu0 %v646
    %v6529 = vpop.f32.mrb[0].mxu0
    %v6530 = vadd.f32 0.0, %v6529
    %v6531 = vpop.f32.mrb[0].mxu0
    %v6532 = vpop.f32.mrb[0].mxu0
    %v6533 = vadd.f32 0.0, %v6532
    %v6534 = vpop.f32.mrb[0].mxu0
    %6535 = vmatprep.mubr.bf16.mxu0 0
    %6536 = vmatmul.mubr.bf16.gmra.mrb[0].mxu0 %v647
    %v6537 = vpop.f32.mrb[0].mxu0
    %v6538 = vadd.f32 0.0, %v6537
    %v6539 = vpop.f32.mrb[0].mxu0
    %v6540 = vpop.f32.mrb[0].mxu0
    %v6541 = vadd.f32 0.0, %v6540
    %v6542 = vpop.f32.mrb[0].mxu0
    %6543 = vdwg.mxu0
    %v6544 = vpack.c.bf16 %v6421, %v6418
    %v6545 = vpack.c.bf16 %v6429, %v6426
    %v6546 = vpack.c.bf16 %v6437, %v6434
    %v6547 = vpack.c.bf16 %v6445, %v6442
    %v6548 = vpack.c.bf16 %v6453, %v6450
    %v6549 = vpack.c.bf16 %v6461, %v6458
    %v6550 = vpack.c.bf16 %v6469, %v6466
    %v6551 = vpack.c.bf16 %v6477, %v6474
    %v6552 = vpack.c.bf16 %v6485, %v6482
    %v6553 = vpack.c.bf16 %v6493, %v6490
    %v6554 = vpack.c.bf16 %v6501, %v6498
    %v6555 = vpack.c.bf16 %v6509, %v6506
    %v6556 = vpack.c.bf16 %v6517, %v6514
    %v6557 = vpack.c.bf16 %v6525, %v6522
    %v6558 = vpack.c.bf16 %v6533, %v6530
    %v6559 = vpack.c.bf16 %v6541, %v6538
    %s6560 = scalar_lea.vmem %s5, 192
    %v6561 = vld [vmem:[%s6560] sm:$0xf]
    %v6562 = vld [vmem:[%s6560 + $0x4] sm:$0xf]
    %v6563 = vld [vmem:[%s6560 + $0x8] sm:$0xf]
    %v6564 = vld [vmem:[%s6560 + $0xc] sm:$0xf]
    %v6565 = vld [vmem:[%s6560 + $0x10] sm:$0xf]
    %v6566 = vld [vmem:[%s6560 + $0x14] sm:$0xf]
    %v6567 = vld [vmem:[%s6560 + $0x18] sm:$0xf]
    %v6568 = vld [vmem:[%s6560 + $0x1c] sm:$0xf]
    %v6569 = vld [vmem:[%s6560 + $0x20] sm:$0xf]
    %v6570 = vld [vmem:[%s6560 + $0x24] sm:$0xf]
    %v6571 = vld [vmem:[%s6560 + $0x28] sm:$0xf]
    %v6572 = vld [vmem:[%s6560 + $0x2c] sm:$0xf]
    %v6573 = vld [vmem:[%s6560 + $0x30] sm:$0xf]
    %v6574 = vld [vmem:[%s6560 + $0x34] sm:$0xf]
    %v6575 = vld [vmem:[%s6560 + $0x38] sm:$0xf]
    %v6576 = vld [vmem:[%s6560 + $0x3c] sm:$0xf]
    %v6593 = vunpack.c.l.b16 %v6561
    %v6594 = vunpack.c.l.b16 %v6562
    %v6595 = vunpack.c.l.b16 %v6563
    %v6596 = vunpack.c.l.b16 %v6564
    %v6597 = vunpack.c.l.b16 %v6565
    %v6598 = vunpack.c.l.b16 %v6566
    %v6599 = vunpack.c.l.b16 %v6567
    %v6600 = vunpack.c.l.b16 %v6568
    %v6601 = vunpack.c.l.b16 %v6569
    %v6602 = vunpack.c.l.b16 %v6570
    %v6603 = vunpack.c.l.b16 %v6571
    %v6604 = vunpack.c.l.b16 %v6572
    %v6605 = vunpack.c.l.b16 %v6573
    %v6606 = vunpack.c.l.b16 %v6574
    %v6607 = vunpack.c.l.b16 %v6575
    %v6608 = vunpack.c.l.b16 %v6576
    %v6609 = vpack.c.b16 %v6594, %v6593
    %v6610 = vpack.c.b16 %v6596, %v6595
    %v6611 = vpack.c.b16 %v6598, %v6597
    %v6612 = vpack.c.b16 %v6600, %v6599
    %v6613 = vpack.c.b16 %v6602, %v6601
    %v6614 = vpack.c.b16 %v6604, %v6603
    %v6615 = vpack.c.b16 %v6606, %v6605
    %v6616 = vpack.c.b16 %v6608, %v6607
    %6625 = vmatprep.subr.bf16.mxu0 0
    %6626 = vmatpush1.bf16.msra.mxu0 %v6609
    %6627 = vmatprep.subr.bf16.mxu0 0
    %6628 = vmatpush1.bf16.msra.mxu0 %v6610
    %6629 = vmatprep.subr.bf16.mxu0 0
    %6630 = vmatpush1.bf16.msra.mxu0 %v6611
    %6631 = vmatprep.subr.bf16.mxu0 0
    %6632 = vmatpush1.bf16.msra.mxu0 %v6612
    %6633 = vmatprep.subr.bf16.mxu0 0
    %6634 = vmatpush1.bf16.msra.mxu0 %v6613
    %6635 = vmatprep.subr.bf16.mxu0 0
    %6636 = vmatpush1.bf16.msra.mxu0 %v6614
    %6637 = vmatprep.subr.bf16.mxu0 0
    %6638 = vmatpush1.bf16.msra.mxu0 %v6615
    %6639 = vmatprep.subr.bf16.mxu0 0
    %6640 = vmatpush1.bf16.msra.mxu0 %v6616
    %6641 = vmatprep.subr.bf16.mxu0 0
    %6642 = vmatpush1.bf16.msra.mxu0 0
    %6643 = vmatprep.subr.bf16.mxu0 0
    %6644 = vmatpush1.bf16.msra.mxu0 0
    %6645 = vmatprep.subr.bf16.mxu0 0
    %6646 = vmatpush1.bf16.msra.mxu0 0
    %6647 = vmatprep.subr.bf16.mxu0 0
    %6648 = vmatpush1.bf16.msra.mxu0 0
    %6649 = vmatprep.subr.bf16.mxu0 0
    %6650 = vmatpush1.bf16.msra.mxu0 0
    %6651 = vmatprep.subr.bf16.mxu0 0
    %6652 = vmatpush1.bf16.msra.mxu0 0
    %6653 = vmatprep.subr.bf16.mxu0 0
    %6654 = vmatpush1.bf16.msra.mxu0 0
    %6655 = vmatprep.subr.bf16.mxu0 0
    %6656 = vmatpush1.bf16.msra.mxu0 0
    %6657 = vmatprep.mubr.bf16.mxu0 0
    %6658 = vmatmul.mubr.bf16.gmra.mrb[0].mxu0 %v632
    %v6659 = vpop.f32.mrb[0].mxu0
    %v6660 = vadd.f32 0.0, %v6659
    %v6661 = vpop.f32.mrb[0].mxu0
    %v6662 = vpop.f32.mrb[0].mxu0
    %v6663 = vadd.f32 0.0, %v6662
    %v6664 = vpop.f32.mrb[0].mxu0
    %6665 = vmatprep.mubr.bf16.mxu0 0
    %6666 = vmatmul.mubr.bf16.gmra.mrb[0].mxu0 %v633
    %v6667 = vpop.f32.mrb[0].mxu0
    %v6668 = vadd.f32 0.0, %v6667
    %v6669 = vpop.f32.mrb[0].mxu0
    %v6670 = vpop.f32.mrb[0].mxu0
    %v6671 = vadd.f32 0.0, %v6670
    %v6672 = vpop.f32.mrb[0].mxu0
    %6673 = vmatprep.mubr.bf16.mxu0 0
    %6674 = vmatmul.mubr.bf16.gmra.mrb[0].mxu0 %v634
    %v6675 = vpop.f32.mrb[0].mxu0
    %v6676 = vadd.f32 0.0, %v6675
    %v6677 = vpop.f32.mrb[0].mxu0
    %v6678 = vpop.f32.mrb[0].mxu0
    %v6679 = vadd.f32 0.0, %v6678
    %v6680 = vpop.f32.mrb[0].mxu0
    %6681 = vmatprep.mubr.bf16.mxu0 0
    %6682 = vmatmul.mubr.bf16.gmra.mrb[0].mxu0 %v635
    %v6683 = vpop.f32.mrb[0].mxu0
    %v6684 = vadd.f32 0.0, %v6683
    %v6685 = vpop.f32.mrb[0].mxu0
    %v6686 = vpop.f32.mrb[0].mxu0
    %v6687 = vadd.f32 0.0, %v6686
    %v6688 = vpop.f32.mrb[0].mxu0
    %6689 = vmatprep.mubr.bf16.mxu0 0
    %6690 = vmatmul.mubr.bf16.gmra.mrb[0].mxu0 %v636
    %v6691 = vpop.f32.mrb[0].mxu0
    %v6692 = vadd.f32 0.0, %v6691
    %v6693 = vpop.f32.mrb[0].mxu0
    %v6694 = vpop.f32.mrb[0].mxu0
    %v6695 = vadd.f32 0.0, %v6694
    %v6696 = vpop.f32.mrb[0].mxu0
    %6697 = vmatprep.mubr.bf16.mxu0 0
    %6698 = vmatmul.mubr.bf16.gmra.mrb[0].mxu0 %v637
    %v6699 = vpop.f32.mrb[0].mxu0
    %v6700 = vadd.f32 0.0, %v6699
    %v6701 = vpop.f32.mrb[0].mxu0
    %v6702 = vpop.f32.mrb[0].mxu0
    %v6703 = vadd.f32 0.0, %v6702
    %v6704 = vpop.f32.mrb[0].mxu0
    %6705 = vmatprep.mubr.bf16.mxu0 0
    %6706 = vmatmul.mubr.bf16.gmra.mrb[0].mxu0 %v638
    %v6707 = vpop.f32.mrb[0].mxu0
    %v6708 = vadd.f32 0.0, %v6707
    %v6709 = vpop.f32.mrb[0].mxu0
    %v6710 = vpop.f32.mrb[0].mxu0
    %v6711 = vadd.f32 0.0, %v6710
    %v6712 = vpop.f32.mrb[0].mxu0
    %6713 = vmatprep.mubr.bf16.mxu0 0
    %6714 = vmatmul.mubr.bf16.gmra.mrb[0].mxu0 %v639
    %v6715 = vpop.f32.mrb[0].mxu0
    %v6716 = vadd.f32 0.0, %v6715
    %v6717 = vpop.f32.mrb[0].mxu0
    %v6718 = vpop.f32.mrb[0].mxu0
    %v6719 = vadd.f32 0.0, %v6718
    %v6720 = vpop.f32.mrb[0].mxu0
    %6721 = vmatprep.mubr.bf16.mxu0 0
    %6722 = vmatmul.mubr.bf16.gmra.mrb[0].mxu0 %v640
    %v6723 = vpop.f32.mrb[0].mxu0
    %v6724 = vadd.f32 0.0, %v6723
    %v6725 = vpop.f32.mrb[0].mxu0
    %v6726 = vpop.f32.mrb[0].mxu0
    %v6727 = vadd.f32 0.0, %v6726
    %v6728 = vpop.f32.mrb[0].mxu0
    %6729 = vmatprep.mubr.bf16.mxu0 0
    %6730 = vmatmul.mubr.bf16.gmra.mrb[0].mxu0 %v641
    %v6731 = vpop.f32.mrb[0].mxu0
    %v6732 = vadd.f32 0.0, %v6731
    %v6733 = vpop.f32.mrb[0].mxu0
    %v6734 = vpop.f32.mrb[0].mxu0
    %v6735 = vadd.f32 0.0, %v6734
    %v6736 = vpop.f32.mrb[0].mxu0
    %6737 = vmatprep.mubr.bf16.mxu0 0
    %6738 = vmatmul.mubr.bf16.gmra.mrb[0].mxu0 %v642
    %v6739 = vpop.f32.mrb[0].mxu0
    %v6740 = vadd.f32 0.0, %v6739
    %v6741 = vpop.f32.mrb[0].mxu0
    %v6742 = vpop.f32.mrb[0].mxu0
    %v6743 = vadd.f32 0.0, %v6742
    %v6744 = vpop.f32.mrb[0].mxu0
    %6745 = vmatprep.mubr.bf16.mxu0 0
    %6746 = vmatmul.mubr.bf16.gmra.mrb[0].mxu0 %v643
    %v6747 = vpop.f32.mrb[0].mxu0
    %v6748 = vadd.f32 0.0, %v6747
    %v6749 = vpop.f32.mrb[0].mxu0
    %v6750 = vpop.f32.mrb[0].mxu0
    %v6751 = vadd.f32 0.0, %v6750
    %v6752 = vpop.f32.mrb[0].mxu0
    %6753 = vmatprep.mubr.bf16.mxu0 0
    %6754 = vmatmul.mubr.bf16.gmra.mrb[0].mxu0 %v644
    %v6755 = vpop.f32.mrb[0].mxu0
    %v6756 = vadd.f32 0.0, %v6755
    %v6757 = vpop.f32.mrb[0].mxu0
    %v6758 = vpop.f32.mrb[0].mxu0
    %v6759 = vadd.f32 0.0, %v6758
    %v6760 = vpop.f32.mrb[0].mxu0
    %6761 = vmatprep.mubr.bf16.mxu0 0
    %6762 = vmatmul.mubr.bf16.gmra.mrb[0].mxu0 %v645
    %v6763 = vpop.f32.mrb[0].mxu0
    %v6764 = vadd.f32 0.0, %v6763
    %v6765 = vpop.f32.mrb[0].mxu0
    %v6766 = vpop.f32.mrb[0].mxu0
    %v6767 = vadd.f32 0.0, %v6766
    %v6768 = vpop.f32.mrb[0].mxu0
    %6769 = vmatprep.mubr.bf16.mxu0 0
    %6770 = vmatmul.mubr.bf16.gmra.mrb[0].mxu0 %v646
    %v6771 = vpop.f32.mrb[0].mxu0
    %v6772 = vadd.f32 0.0, %v6771
    %v6773 = vpop.f32.mrb[0].mxu0
    %v6774 = vpop.f32.mrb[0].mxu0
    %v6775 = vadd.f32 0.0, %v6774
    %v6776 = vpop.f32.mrb[0].mxu0
    %6777 = vmatprep.mubr.bf16.mxu0 0
    %6778 = vmatmul.mubr.bf16.gmra.mrb[0].mxu0 %v647
    %v6779 = vpop.f32.mrb[0].mxu0
    %v6780 = vadd.f32 0.0, %v6779
    %v6781 = vpop.f32.mrb[0].mxu0
    %v6782 = vpop.f32.mrb[0].mxu0
    %v6783 = vadd.f32 0.0, %v6782
    %v6784 = vpop.f32.mrb[0].mxu0
    %6785 = vdwg.mxu0
    %v6786 = vpack.c.bf16 %v6663, %v6660
    %v6787 = vpack.c.bf16 %v6671, %v6668
    %v6788 = vpack.c.bf16 %v6679, %v6676
    %v6789 = vpack.c.bf16 %v6687, %v6684
    %v6790 = vpack.c.bf16 %v6695, %v6692
    %v6791 = vpack.c.bf16 %v6703, %v6700
    %v6792 = vpack.c.bf16 %v6711, %v6708
    %v6793 = vpack.c.bf16 %v6719, %v6716
    %v6794 = vpack.c.bf16 %v6727, %v6724
    %v6795 = vpack.c.bf16 %v6735, %v6732
    %v6796 = vpack.c.bf16 %v6743, %v6740
    %v6797 = vpack.c.bf16 %v6751, %v6748
    %v6798 = vpack.c.bf16 %v6759, %v6756
    %v6799 = vpack.c.bf16 %v6767, %v6764
    %v6800 = vpack.c.bf16 %v6775, %v6772
    %v6801 = vpack.c.bf16 %v6783, %v6780
    %v6803 = vsel %vm1406, %v6302, 0
    %v6806 = vsel %vm1406, %v6303, 0
    %v6809 = vsel %vm1406, %v6304, 0
    %v6812 = vsel %vm1406, %v6305, 0
    %v6815 = vsel %vm1406, %v6306, 0
    %v6818 = vsel %vm1406, %v6307, 0
    %v6821 = vsel %vm1406, %v6308, 0
    %v6824 = vsel %vm1406, %v6309, 0
    %v6827 = vsel %vm1406, %v6544, 0
    %v6830 = vsel %vm1406, %v6545, 0
    %v6833 = vsel %vm1406, %v6546, 0
    %v6836 = vsel %vm1406, %v6547, 0
    %v6839 = vsel %vm1406, %v6548, 0
    %v6842 = vsel %vm1406, %v6549, 0
    %v6845 = vsel %vm1406, %v6550, 0
    %v6848 = vsel %vm1406, %v6551, 0
    %6850 = vmatprep.subr.bf16.mxu0 0
    %6851 = vmatpush1.bf16.xpose.msra.mxu0 %v6827
    %6852 = vmatprep.subr.bf16.mxu0 0
    %6853 = vmatpush1.bf16.xpose.msra.mxu0 %v6830
    %6854 = vmatprep.subr.bf16.mxu0 0
    %6855 = vmatpush1.bf16.xpose.msra.mxu0 %v6833
    %6856 = vmatprep.subr.bf16.mxu0 0
    %6857 = vmatpush1.bf16.xpose.msra.mxu0 %v6836
    %6858 = vmatprep.subr.bf16.mxu0 0
    %6859 = vmatpush1.bf16.xpose.msra.mxu0 %v6839
    %6860 = vmatprep.subr.bf16.mxu0 0
    %6861 = vmatpush1.bf16.xpose.msra.mxu0 %v6842
    %6862 = vmatprep.subr.bf16.mxu0 0
    %6863 = vmatpush1.bf16.xpose.msra.mxu0 %v6845
    %6864 = vmatprep.subr.bf16.mxu0 0
    %6865 = vmatpush1.bf16.xpose.msra.mxu0 %v6848
    %6866 = vmatprep.subr.bf16.mxu0 0
    %6867 = vmatpush1.bf16.xpose.msra.mxu0 0
    %6868 = vmatprep.subr.bf16.mxu0 0
    %6869 = vmatpush1.bf16.xpose.msra.mxu0 0
    %6870 = vmatprep.subr.bf16.mxu0 0
    %6871 = vmatpush1.bf16.xpose.msra.mxu0 0
    %6872 = vmatprep.subr.bf16.mxu0 0
    %6873 = vmatpush1.bf16.xpose.msra.mxu0 0
    %6874 = vmatprep.subr.bf16.mxu0 0
    %6875 = vmatpush1.bf16.xpose.msra.mxu0 0
    %6876 = vmatprep.subr.bf16.mxu0 0
    %6877 = vmatpush1.bf16.xpose.msra.mxu0 0
    %6878 = vmatprep.subr.bf16.mxu0 0
    %6879 = vmatpush1.bf16.xpose.msra.mxu0 0
    %6880 = vmatprep.subr.bf16.mxu0 0
    %6881 = vmatpush1.bf16.xpose.msra.mxu0 0
    %6882 = vmatprep.mubr.bf16.mxu0 0
    %6883 = vmatmul.mubr.bf16.gmra.mrb[0].mxu0 %v6803
    %v6884 = vpop.f32.mrb[0].mxu0
    %v6885 = vadd.f32 0.0, %v6884
    %v6886 = vpop.f32.mrb[0].mxu0
    %v6887 = vpop.f32.mrb[0].mxu0
    %v6888 = vadd.f32 0.0, %v6887
    %v6889 = vpop.f32.mrb[0].mxu0
    %6890 = vmatprep.mubr.bf16.mxu0 0
    %6891 = vmatmul.mubr.bf16.gmra.mrb[0].mxu0 %v6806
    %v6892 = vpop.f32.mrb[0].mxu0
    %v6893 = vadd.f32 0.0, %v6892
    %v6894 = vpop.f32.mrb[0].mxu0
    %v6895 = vpop.f32.mrb[0].mxu0
    %v6896 = vadd.f32 0.0, %v6895
    %v6897 = vpop.f32.mrb[0].mxu0
    %6898 = vmatprep.mubr.bf16.mxu0 0
    %6899 = vmatmul.mubr.bf16.gmra.mrb[0].mxu0 %v6809
    %v6900 = vpop.f32.mrb[0].mxu0
    %v6901 = vadd.f32 0.0, %v6900
    %v6902 = vpop.f32.mrb[0].mxu0
    %v6903 = vpop.f32.mrb[0].mxu0
    %v6904 = vadd.f32 0.0, %v6903
    %v6905 = vpop.f32.mrb[0].mxu0
    %6906 = vmatprep.mubr.bf16.mxu0 0
    %6907 = vmatmul.mubr.bf16.gmra.mrb[0].mxu0 %v6812
    %v6908 = vpop.f32.mrb[0].mxu0
    %v6909 = vadd.f32 0.0, %v6908
    %v6910 = vpop.f32.mrb[0].mxu0
    %v6911 = vpop.f32.mrb[0].mxu0
    %v6912 = vadd.f32 0.0, %v6911
    %v6913 = vpop.f32.mrb[0].mxu0
    %6914 = vmatprep.mubr.bf16.mxu0 0
    %6915 = vmatmul.mubr.bf16.gmra.mrb[0].mxu0 %v6815
    %v6916 = vpop.f32.mrb[0].mxu0
    %v6917 = vadd.f32 0.0, %v6916
    %v6918 = vpop.f32.mrb[0].mxu0
    %v6919 = vpop.f32.mrb[0].mxu0
    %v6920 = vadd.f32 0.0, %v6919
    %v6921 = vpop.f32.mrb[0].mxu0
    %6922 = vmatprep.mubr.bf16.mxu0 0
    %6923 = vmatmul.mubr.bf16.gmra.mrb[0].mxu0 %v6818
    %v6924 = vpop.f32.mrb[0].mxu0
    %v6925 = vadd.f32 0.0, %v6924
    %v6926 = vpop.f32.mrb[0].mxu0
    %v6927 = vpop.f32.mrb[0].mxu0
    %v6928 = vadd.f32 0.0, %v6927
    %v6929 = vpop.f32.mrb[0].mxu0
    %6930 = vmatprep.mubr.bf16.mxu0 0
    %6931 = vmatmul.mubr.bf16.gmra.mrb[0].mxu0 %v6821
    %v6932 = vpop.f32.mrb[0].mxu0
    %v6933 = vadd.f32 0.0, %v6932
    %v6934 = vpop.f32.mrb[0].mxu0
    %v6935 = vpop.f32.mrb[0].mxu0
    %v6936 = vadd.f32 0.0, %v6935
    %v6937 = vpop.f32.mrb[0].mxu0
    %6938 = vmatprep.mubr.bf16.mxu0 0
    %6939 = vmatmul.mubr.bf16.gmra.mrb[0].mxu0 %v6824
    %v6940 = vpop.f32.mrb[0].mxu0
    %v6941 = vadd.f32 0.0, %v6940
    %v6942 = vpop.f32.mrb[0].mxu0
    %v6943 = vpop.f32.mrb[0].mxu0
    %v6944 = vadd.f32 0.0, %v6943
    %v6945 = vpop.f32.mrb[0].mxu0
    %6946 = vdwg.mxu0
    %v6947 = vsel %vm667, %v6885, -inf
    %v6948 = vsel %vm668, %v6888, -inf
    %v6949 = vsel %vm669, %v6893, -inf
    %v6950 = vsel %vm670, %v6896, -inf
    %v6951 = vsel %vm671, %v6901, -inf
    %v6952 = vsel %vm672, %v6904, -inf
    %v6953 = vsel %vm673, %v6909, -inf
    %v6954 = vsel %vm674, %v6912, -inf
    %v6955 = vsel %vm675, %v6917, -inf
    %v6956 = vsel %vm676, %v6920, -inf
    %v6957 = vsel %vm677, %v6925, -inf
    %v6958 = vsel %vm678, %v6928, -inf
    %v6959 = vsel %vm679, %v6933, -inf
    %v6960 = vsel %vm680, %v6936, -inf
    %v6961 = vsel %vm681, %v6941, -inf
    %v6962 = vsel %vm682, %v6944, -inf
    %6963 = vmax.xlane.f32.xlu0 %v6947
    %v6964 = vpop.xlane.xlu0 %6963
    %6965 = vmax.xlane.f32.xlu0 %v6948
    %v6966 = vpop.xlane.xlu0 %6965
    %6967 = vmax.xlane.f32.xlu0 %v6949
    %v6968 = vpop.xlane.xlu0 %6967
    %6969 = vmax.xlane.f32.xlu0 %v6950
    %v6970 = vpop.xlane.xlu0 %6969
    %6971 = vmax.xlane.f32.xlu0 %v6951
    %v6972 = vpop.xlane.xlu0 %6971
    %6973 = vmax.xlane.f32.xlu0 %v6952
    %v6974 = vpop.xlane.xlu0 %6973
    %6975 = vmax.xlane.f32.xlu0 %v6953
    %v6976 = vpop.xlane.xlu0 %6975
    %6977 = vmax.xlane.f32.xlu0 %v6954
    %v6978 = vpop.xlane.xlu0 %6977
    %6979 = vmax.xlane.f32.xlu0 %v6955
    %v6980 = vpop.xlane.xlu0 %6979
    %6981 = vmax.xlane.f32.xlu0 %v6956
    %v6982 = vpop.xlane.xlu0 %6981
    %6983 = vmax.xlane.f32.xlu0 %v6957
    %v6984 = vpop.xlane.xlu0 %6983
    %6985 = vmax.xlane.f32.xlu0 %v6958
    %v6986 = vpop.xlane.xlu0 %6985
    %6987 = vmax.xlane.f32.xlu0 %v6959
    %v6988 = vpop.xlane.xlu0 %6987
    %6989 = vmax.xlane.f32.xlu0 %v6960
    %v6990 = vpop.xlane.xlu0 %6989
    %6991 = vmax.xlane.f32.xlu0 %v6961
    %v6992 = vpop.xlane.xlu0 %6991
    %6993 = vmax.xlane.f32.xlu0 %v6962
    %v6994 = vpop.xlane.xlu0 %6993
    %v6995 = vsub.f32 %v6947, %v6964
    %v6996 = vsub.f32 %v6948, %v6966
    %v6997 = vsub.f32 %v6949, %v6968
    %v6998 = vsub.f32 %v6950, %v6970
    %v6999 = vsub.f32 %v6951, %v6972
    %v7000 = vsub.f32 %v6952, %v6974
    %v7001 = vsub.f32 %v6953, %v6976
    %v7002 = vsub.f32 %v6954, %v6978
    %v7003 = vsub.f32 %v6955, %v6980
    %v7004 = vsub.f32 %v6956, %v6982
    %v7005 = vsub.f32 %v6957, %v6984
    %v7006 = vsub.f32 %v6958, %v6986
    %v7007 = vsub.f32 %v6959, %v6988
    %v7008 = vsub.f32 %v6960, %v6990
    %v7009 = vsub.f32 %v6961, %v6992
    %v7010 = vsub.f32 %v6962, %v6994
    %v7011 = vmul.f32 %v6995, 1.442695
    %v7012 = vpow.pop %v7011
    %v7013 = vmul.f32 %v6996, 1.442695
    %v7014 = vpow.pop %v7013
    %v7015 = vmul.f32 %v6997, 1.442695
    %v7016 = vpow.pop %v7015
    %v7017 = vmul.f32 %v6998, 1.442695
    %v7018 = vpow.pop %v7017
    %v7019 = vmul.f32 %v6999, 1.442695
    %v7020 = vpow.pop %v7019
    %v7021 = vmul.f32 %v7000, 1.442695
    %v7022 = vpow.pop %v7021
    %v7023 = vmul.f32 %v7001, 1.442695
    %v7024 = vpow.pop %v7023
    %v7025 = vmul.f32 %v7002, 1.442695
    %v7026 = vpow.pop %v7025
    %v7027 = vmul.f32 %v7003, 1.442695
    %v7028 = vpow.pop %v7027
    %v7029 = vmul.f32 %v7004, 1.442695
    %v7030 = vpow.pop %v7029
    %v7031 = vmul.f32 %v7005, 1.442695
    %v7032 = vpow.pop %v7031
    %v7033 = vmul.f32 %v7006, 1.442695
    %v7034 = vpow.pop %v7033
    %v7035 = vmul.f32 %v7007, 1.442695
    %v7036 = vpow.pop %v7035
    %v7037 = vmul.f32 %v7008, 1.442695
    %v7038 = vpow.pop %v7037
    %v7039 = vmul.f32 %v7009, 1.442695
    %v7040 = vpow.pop %v7039
    %v7041 = vmul.f32 %v7010, 1.442695
    %v7042 = vpow.pop %v7041
    %v7043 = vpack.c.bf16 %v7014, %v7012
    %v7044 = vpack.c.bf16 %v7018, %v7016
    %v7045 = vpack.c.bf16 %v7022, %v7020
    %v7046 = vpack.c.bf16 %v7026, %v7024
    %v7047 = vpack.c.bf16 %v7030, %v7028
    %v7048 = vpack.c.bf16 %v7034, %v7032
    %v7049 = vpack.c.bf16 %v7038, %v7036
    %v7050 = vpack.c.bf16 %v7042, %v7040
    %7051 = vmatprep.subr.bf16.mxu0 0
    %7052 = vmatpush1.bf16.msra.mxu0 %v6786
    %7053 = vmatprep.subr.bf16.mxu0 0
    %7054 = vmatpush1.bf16.msra.mxu0 %v6787
    %7055 = vmatprep.subr.bf16.mxu0 0
    %7056 = vmatpush1.bf16.msra.mxu0 %v6788
    %7057 = vmatprep.subr.bf16.mxu0 0
    %7058 = vmatpush1.bf16.msra.mxu0 %v6789
    %7059 = vmatprep.subr.bf16.mxu0 0
    %7060 = vmatpush1.bf16.msra.mxu0 %v6790
    %7061 = vmatprep.subr.bf16.mxu0 0
    %7062 = vmatpush1.bf16.msra.mxu0 %v6791
    %7063 = vmatprep.subr.bf16.mxu0 0
    %7064 = vmatpush1.bf16.msra.mxu0 %v6792
    %7065 = vmatprep.subr.bf16.mxu0 0
    %7066 = vmatpush1.bf16.msra.mxu0 %v6793
    %7067 = vmatprep.subr.bf16.mxu0 0
    %7068 = vmatpush1.bf16.msra.mxu0 0
    %7069 = vmatprep.subr.bf16.mxu0 0
    %7070 = vmatpush1.bf16.msra.mxu0 0
    %7071 = vmatprep.subr.bf16.mxu0 0
    %7072 = vmatpush1.bf16.msra.mxu0 0
    %7073 = vmatprep.subr.bf16.mxu0 0
    %7074 = vmatpush1.bf16.msra.mxu0 0
    %7075 = vmatprep.subr.bf16.mxu0 0
    %7076 = vmatpush1.bf16.msra.mxu0 0
    %7077 = vmatprep.subr.bf16.mxu0 0
    %7078 = vmatpush1.bf16.msra.mxu0 0
    %7079 = vmatprep.subr.bf16.mxu0 0
    %7080 = vmatpush1.bf16.msra.mxu0 0
    %7081 = vmatprep.subr.bf16.mxu0 0
    %7082 = vmatpush1.bf16.msra.mxu0 0
    %7083 = vmatprep.mubr.bf16.mxu0 0
    %7084 = vmatmul.mubr.bf16.gmra.mrb[0].mxu0 %v7043
    %v7085 = vpop.f32.mrb[0].mxu0
    %v7086 = vadd.f32 0.0, %v7085
    %v7087 = vpop.f32.mrb[0].mxu0
    %v7088 = vpop.f32.mrb[0].mxu0
    %v7089 = vadd.f32 0.0, %v7088
    %v7090 = vpop.f32.mrb[0].mxu0
    %7091 = vmatprep.mubr.bf16.mxu0 0
    %7092 = vmatmul.mubr.bf16.gmra.mrb[0].mxu0 %v7044
    %v7093 = vpop.f32.mrb[0].mxu0
    %v7094 = vadd.f32 0.0, %v7093
    %v7095 = vpop.f32.mrb[0].mxu0
    %v7096 = vpop.f32.mrb[0].mxu0
    %v7097 = vadd.f32 0.0, %v7096
    %v7098 = vpop.f32.mrb[0].mxu0
    %7099 = vmatprep.mubr.bf16.mxu0 0
    %7100 = vmatmul.mubr.bf16.gmra.mrb[0].mxu0 %v7045
    %v7101 = vpop.f32.mrb[0].mxu0
    %v7102 = vadd.f32 0.0, %v7101
    %v7103 = vpop.f32.mrb[0].mxu0
    %v7104 = vpop.f32.mrb[0].mxu0
    %v7105 = vadd.f32 0.0, %v7104
    %v7106 = vpop.f32.mrb[0].mxu0
    %7107 = vmatprep.mubr.bf16.mxu0 0
    %7108 = vmatmul.mubr.bf16.gmra.mrb[0].mxu0 %v7046
    %v7109 = vpop.f32.mrb[0].mxu0
    %v7110 = vadd.f32 0.0, %v7109
    %v7111 = vpop.f32.mrb[0].mxu0
    %v7112 = vpop.f32.mrb[0].mxu0
    %v7113 = vadd.f32 0.0, %v7112
    %v7114 = vpop.f32.mrb[0].mxu0
    %7115 = vmatprep.mubr.bf16.mxu0 0
    %7116 = vmatmul.mubr.bf16.gmra.mrb[0].mxu0 %v7047
    %v7117 = vpop.f32.mrb[0].mxu0
    %v7118 = vadd.f32 0.0, %v7117
    %v7119 = vpop.f32.mrb[0].mxu0
    %v7120 = vpop.f32.mrb[0].mxu0
    %v7121 = vadd.f32 0.0, %v7120
    %v7122 = vpop.f32.mrb[0].mxu0
    %7123 = vmatprep.mubr.bf16.mxu0 0
    %7124 = vmatmul.mubr.bf16.gmra.mrb[0].mxu0 %v7048
    %v7125 = vpop.f32.mrb[0].mxu0
    %v7126 = vadd.f32 0.0, %v7125
    %v7127 = vpop.f32.mrb[0].mxu0
    %v7128 = vpop.f32.mrb[0].mxu0
    %v7129 = vadd.f32 0.0, %v7128
    %v7130 = vpop.f32.mrb[0].mxu0
    %7131 = vmatprep.mubr.bf16.mxu0 0
    %7132 = vmatmul.mubr.bf16.gmra.mrb[0].mxu0 %v7049
    %v7133 = vpop.f32.mrb[0].mxu0
    %v7134 = vadd.f32 0.0, %v7133
    %v7135 = vpop.f32.mrb[0].mxu0
    %v7136 = vpop.f32.mrb[0].mxu0
    %v7137 = vadd.f32 0.0, %v7136
    %v7138 = vpop.f32.mrb[0].mxu0
    %7139 = vmatprep.mubr.bf16.mxu0 0
    %7140 = vmatmul.mubr.bf16.gmra.mrb[0].mxu0 %v7050
    %v7141 = vpop.f32.mrb[0].mxu0
    %v7142 = vadd.f32 0.0, %v7141
    %v7143 = vpop.f32.mrb[0].mxu0
    %v7144 = vpop.f32.mrb[0].mxu0
    %v7145 = vadd.f32 0.0, %v7144
    %v7146 = vpop.f32.mrb[0].mxu0
    %7147 = vdwg.mxu0
    %7148 = vadd.xlane.f32.xlu0 %v7012
    %v7149 = vpop.xlane.xlu0 %7148
    %7150 = vadd.xlane.f32.xlu0 %v7014
    %v7151 = vpop.xlane.xlu0 %7150
    %7152 = vadd.xlane.f32.xlu0 %v7016
    %v7153 = vpop.xlane.xlu0 %7152
    %7154 = vadd.xlane.f32.xlu0 %v7018
    %v7155 = vpop.xlane.xlu0 %7154
    %7156 = vadd.xlane.f32.xlu0 %v7020
    %v7157 = vpop.xlane.xlu0 %7156
    %7158 = vadd.xlane.f32.xlu0 %v7022
    %v7159 = vpop.xlane.xlu0 %7158
    %7160 = vadd.xlane.f32.xlu0 %v7024
    %v7161 = vpop.xlane.xlu0 %7160
    %7162 = vadd.xlane.f32.xlu0 %v7026
    %v7163 = vpop.xlane.xlu0 %7162
    %7164 = vadd.xlane.f32.xlu0 %v7028
    %v7165 = vpop.xlane.xlu0 %7164
    %7166 = vadd.xlane.f32.xlu0 %v7030
    %v7167 = vpop.xlane.xlu0 %7166
    %7168 = vadd.xlane.f32.xlu0 %v7032
    %v7169 = vpop.xlane.xlu0 %7168
    %7170 = vadd.xlane.f32.xlu0 %v7034
    %v7171 = vpop.xlane.xlu0 %7170
    %7172 = vadd.xlane.f32.xlu0 %v7036
    %v7173 = vpop.xlane.xlu0 %7172
    %7174 = vadd.xlane.f32.xlu0 %v7038
    %v7175 = vpop.xlane.xlu0 %7174
    %7176 = vadd.xlane.f32.xlu0 %v7040
    %v7177 = vpop.xlane.xlu0 %7176
    %7178 = vadd.xlane.f32.xlu0 %v7042
    %v7179 = vpop.xlane.xlu0 %7178
    %v7180 = vrcp.pop %v7149
    %v7181 = vrcp.pop %v7151
    %v7182 = vrcp.pop %v7153
    %v7183 = vrcp.pop %v7155
    %v7184 = vrcp.pop %v7157
    %v7185 = vrcp.pop %v7159
    %v7186 = vrcp.pop %v7161
    %v7187 = vrcp.pop %v7163
    %v7188 = vrcp.pop %v7165
    %v7189 = vrcp.pop %v7167
    %v7190 = vrcp.pop %v7169
    %v7191 = vrcp.pop %v7171
    %v7192 = vrcp.pop %v7173
    %v7193 = vrcp.pop %v7175
    %v7194 = vrcp.pop %v7177
    %v7195 = vrcp.pop %v7179
    %v7196 = vmul.f32 %v7086, %v7180
    %v7197 = vmul.f32 %v7089, %v7181
    %v7198 = vmul.f32 %v7094, %v7182
    %v7199 = vmul.f32 %v7097, %v7183
    %v7200 = vmul.f32 %v7102, %v7184
    %v7201 = vmul.f32 %v7105, %v7185
    %v7202 = vmul.f32 %v7110, %v7186
    %v7203 = vmul.f32 %v7113, %v7187
    %v7204 = vmul.f32 %v7118, %v7188
    %v7205 = vmul.f32 %v7121, %v7189
    %v7206 = vmul.f32 %v7126, %v7190
    %v7207 = vmul.f32 %v7129, %v7191
    %v7208 = vmul.f32 %v7134, %v7192
    %v7209 = vmul.f32 %v7137, %v7193
    %v7210 = vmul.f32 %v7142, %v7194
    %v7211 = vmul.f32 %v7145, %v7195
    %v7213 = vsel %vm1406, %v6310, 0
    %v7216 = vsel %vm1406, %v6311, 0
    %v7219 = vsel %vm1406, %v6312, 0
    %v7222 = vsel %vm1406, %v6313, 0
    %v7225 = vsel %vm1406, %v6314, 0
    %v7228 = vsel %vm1406, %v6315, 0
    %v7231 = vsel %vm1406, %v6316, 0
    %v7234 = vsel %vm1406, %v6317, 0
    %v7237 = vsel %vm1406, %v6552, 0
    %v7240 = vsel %vm1406, %v6553, 0
    %v7243 = vsel %vm1406, %v6554, 0
    %v7246 = vsel %vm1406, %v6555, 0
    %v7249 = vsel %vm1406, %v6556, 0
    %v7252 = vsel %vm1406, %v6557, 0
    %v7255 = vsel %vm1406, %v6558, 0
    %v7258 = vsel %vm1406, %v6559, 0
    %7260 = vmatprep.subr.bf16.mxu0 0
    %7261 = vmatpush1.bf16.xpose.msra.mxu0 %v7237
    %7262 = vmatprep.subr.bf16.mxu0 0
    %7263 = vmatpush1.bf16.xpose.msra.mxu0 %v7240
    %7264 = vmatprep.subr.bf16.mxu0 0
    %7265 = vmatpush1.bf16.xpose.msra.mxu0 %v7243
    %7266 = vmatprep.subr.bf16.mxu0 0
    %7267 = vmatpush1.bf16.xpose.msra.mxu0 %v7246
    %7268 = vmatprep.subr.bf16.mxu0 0
    %7269 = vmatpush1.bf16.xpose.msra.mxu0 %v7249
    %7270 = vmatprep.subr.bf16.mxu0 0
    %7271 = vmatpush1.bf16.xpose.msra.mxu0 %v7252
    %7272 = vmatprep.subr.bf16.mxu0 0
    %7273 = vmatpush1.bf16.xpose.msra.mxu0 %v7255
    %7274 = vmatprep.subr.bf16.mxu0 0
    %7275 = vmatpush1.bf16.xpose.msra.mxu0 %v7258
    %7276 = vmatprep.subr.bf16.mxu0 0
    %7277 = vmatpush1.bf16.xpose.msra.mxu0 0
    %7278 = vmatprep.subr.bf16.mxu0 0
    %7279 = vmatpush1.bf16.xpose.msra.mxu0 0
    %7280 = vmatprep.subr.bf16.mxu0 0
    %7281 = vmatpush1.bf16.xpose.msra.mxu0 0
    %7282 = vmatprep.subr.bf16.mxu0 0
    %7283 = vmatpush1.bf16.xpose.msra.mxu0 0
    %7284 = vmatprep.subr.bf16.mxu0 0
    %7285 = vmatpush1.bf16.xpose.msra.mxu0 0
    %7286 = vmatprep.subr.bf16.mxu0 0
    %7287 = vmatpush1.bf16.xpose.msra.mxu0 0
    %7288 = vmatprep.subr.bf16.mxu0 0
    %7289 = vmatpush1.bf16.xpose.msra.mxu0 0
    %7290 = vmatprep.subr.bf16.mxu0 0
    %7291 = vmatpush1.bf16.xpose.msra.mxu0 0
    %7292 = vmatprep.mubr.bf16.mxu0 0
    %7293 = vmatmul.mubr.bf16.gmra.mrb[0].mxu0 %v7213
    %v7294 = vpop.f32.mrb[0].mxu0
    %v7295 = vadd.f32 0.0, %v7294
    %v7296 = vpop.f32.mrb[0].mxu0
    %v7297 = vpop.f32.mrb[0].mxu0
    %v7298 = vadd.f32 0.0, %v7297
    %v7299 = vpop.f32.mrb[0].mxu0
    %7300 = vmatprep.mubr.bf16.mxu0 0
    %7301 = vmatmul.mubr.bf16.gmra.mrb[0].mxu0 %v7216
    %v7302 = vpop.f32.mrb[0].mxu0
    %v7303 = vadd.f32 0.0, %v7302
    %v7304 = vpop.f32.mrb[0].mxu0
    %v7305 = vpop.f32.mrb[0].mxu0
    %v7306 = vadd.f32 0.0, %v7305
    %v7307 = vpop.f32.mrb[0].mxu0
    %7308 = vmatprep.mubr.bf16.mxu0 0
    %7309 = vmatmul.mubr.bf16.gmra.mrb[0].mxu0 %v7219
    %v7310 = vpop.f32.mrb[0].mxu0
    %v7311 = vadd.f32 0.0, %v7310
    %v7312 = vpop.f32.mrb[0].mxu0
    %v7313 = vpop.f32.mrb[0].mxu0
    %v7314 = vadd.f32 0.0, %v7313
    %v7315 = vpop.f32.mrb[0].mxu0
    %7316 = vmatprep.mubr.bf16.mxu0 0
    %7317 = vmatmul.mubr.bf16.gmra.mrb[0].mxu0 %v7222
    %v7318 = vpop.f32.mrb[0].mxu0
    %v7319 = vadd.f32 0.0, %v7318
    %v7320 = vpop.f32.mrb[0].mxu0
    %v7321 = vpop.f32.mrb[0].mxu0
    %v7322 = vadd.f32 0.0, %v7321
    %v7323 = vpop.f32.mrb[0].mxu0
    %7324 = vmatprep.mubr.bf16.mxu0 0
    %7325 = vmatmul.mubr.bf16.gmra.mrb[0].mxu0 %v7225
    %v7326 = vpop.f32.mrb[0].mxu0
    %v7327 = vadd.f32 0.0, %v7326
    %v7328 = vpop.f32.mrb[0].mxu0
    %v7329 = vpop.f32.mrb[0].mxu0
    %v7330 = vadd.f32 0.0, %v7329
    %v7331 = vpop.f32.mrb[0].mxu0
    %7332 = vmatprep.mubr.bf16.mxu0 0
    %7333 = vmatmul.mubr.bf16.gmra.mrb[0].mxu0 %v7228
    %v7334 = vpop.f32.mrb[0].mxu0
    %v7335 = vadd.f32 0.0, %v7334
    %v7336 = vpop.f32.mrb[0].mxu0
    %v7337 = vpop.f32.mrb[0].mxu0
    %v7338 = vadd.f32 0.0, %v7337
    %v7339 = vpop.f32.mrb[0].mxu0
    %7340 = vmatprep.mubr.bf16.mxu0 0
    %7341 = vmatmul.mubr.bf16.gmra.mrb[0].mxu0 %v7231
    %v7342 = vpop.f32.mrb[0].mxu0
    %v7343 = vadd.f32 0.0, %v7342
    %v7344 = vpop.f32.mrb[0].mxu0
    %v7345 = vpop.f32.mrb[0].mxu0
    %v7346 = vadd.f32 0.0, %v7345
    %v7347 = vpop.f32.mrb[0].mxu0
    %7348 = vmatprep.mubr.bf16.mxu0 0
    %7349 = vmatmul.mubr.bf16.gmra.mrb[0].mxu0 %v7234
    %v7350 = vpop.f32.mrb[0].mxu0
    %v7351 = vadd.f32 0.0, %v7350
    %v7352 = vpop.f32.mrb[0].mxu0
    %v7353 = vpop.f32.mrb[0].mxu0
    %v7354 = vadd.f32 0.0, %v7353
    %v7355 = vpop.f32.mrb[0].mxu0
    %7356 = vdwg.mxu0
    %v7357 = vsel %vm667, %v7295, -inf
    %v7358 = vsel %vm668, %v7298, -inf
    %v7359 = vsel %vm669, %v7303, -inf
    %v7360 = vsel %vm670, %v7306, -inf
    %v7361 = vsel %vm671, %v7311, -inf
    %v7362 = vsel %vm672, %v7314, -inf
    %v7363 = vsel %vm673, %v7319, -inf
    %v7364 = vsel %vm674, %v7322, -inf
    %v7365 = vsel %vm675, %v7327, -inf
    %v7366 = vsel %vm676, %v7330, -inf
    %v7367 = vsel %vm677, %v7335, -inf
    %v7368 = vsel %vm678, %v7338, -inf
    %v7369 = vsel %vm679, %v7343, -inf
    %v7370 = vsel %vm680, %v7346, -inf
    %v7371 = vsel %vm681, %v7351, -inf
    %v7372 = vsel %vm682, %v7354, -inf
    %7373 = vmax.xlane.f32.xlu0 %v7357
    %v7374 = vpop.xlane.xlu0 %7373
    %7375 = vmax.xlane.f32.xlu0 %v7358
    %v7376 = vpop.xlane.xlu0 %7375
    %7377 = vmax.xlane.f32.xlu0 %v7359
    %v7378 = vpop.xlane.xlu0 %7377
    %7379 = vmax.xlane.f32.xlu0 %v7360
    %v7380 = vpop.xlane.xlu0 %7379
    %7381 = vmax.xlane.f32.xlu0 %v7361
    %v7382 = vpop.xlane.xlu0 %7381
    %7383 = vmax.xlane.f32.xlu0 %v7362
    %v7384 = vpop.xlane.xlu0 %7383
    %7385 = vmax.xlane.f32.xlu0 %v7363
    %v7386 = vpop.xlane.xlu0 %7385
    %7387 = vmax.xlane.f32.xlu0 %v7364
    %v7388 = vpop.xlane.xlu0 %7387
    %7389 = vmax.xlane.f32.xlu0 %v7365
    %v7390 = vpop.xlane.xlu0 %7389
    %7391 = vmax.xlane.f32.xlu0 %v7366
    %v7392 = vpop.xlane.xlu0 %7391
    %7393 = vmax.xlane.f32.xlu0 %v7367
    %v7394 = vpop.xlane.xlu0 %7393
    %7395 = vmax.xlane.f32.xlu0 %v7368
    %v7396 = vpop.xlane.xlu0 %7395
    %7397 = vmax.xlane.f32.xlu0 %v7369
    %v7398 = vpop.xlane.xlu0 %7397
    %7399 = vmax.xlane.f32.xlu0 %v7370
    %v7400 = vpop.xlane.xlu0 %7399
    %7401 = vmax.xlane.f32.xlu0 %v7371
    %v7402 = vpop.xlane.xlu0 %7401
    %7403 = vmax.xlane.f32.xlu0 %v7372
    %v7404 = vpop.xlane.xlu0 %7403
    %v7405 = vsub.f32 %v7357, %v7374
    %v7406 = vsub.f32 %v7358, %v7376
    %v7407 = vsub.f32 %v7359, %v7378
    %v7408 = vsub.f32 %v7360, %v7380
    %v7409 = vsub.f32 %v7361, %v7382
    %v7410 = vsub.f32 %v7362, %v7384
    %v7411 = vsub.f32 %v7363, %v7386
    %v7412 = vsub.f32 %v7364, %v7388
    %v7413 = vsub.f32 %v7365, %v7390
    %v7414 = vsub.f32 %v7366, %v7392
    %v7415 = vsub.f32 %v7367, %v7394
    %v7416 = vsub.f32 %v7368, %v7396
    %v7417 = vsub.f32 %v7369, %v7398
    %v7418 = vsub.f32 %v7370, %v7400
    %v7419 = vsub.f32 %v7371, %v7402
    %v7420 = vsub.f32 %v7372, %v7404
    %v7421 = vmul.f32 %v7405, 1.442695
    %v7422 = vpow.pop %v7421
    %v7423 = vmul.f32 %v7406, 1.442695
    %v7424 = vpow.pop %v7423
    %v7425 = vmul.f32 %v7407, 1.442695
    %v7426 = vpow.pop %v7425
    %v7427 = vmul.f32 %v7408, 1.442695
    %v7428 = vpow.pop %v7427
    %v7429 = vmul.f32 %v7409, 1.442695
    %v7430 = vpow.pop %v7429
    %v7431 = vmul.f32 %v7410, 1.442695
    %v7432 = vpow.pop %v7431
    %v7433 = vmul.f32 %v7411, 1.442695
    %v7434 = vpow.pop %v7433
    %v7435 = vmul.f32 %v7412, 1.442695
    %v7436 = vpow.pop %v7435
    %v7437 = vmul.f32 %v7413, 1.442695
    %v7438 = vpow.pop %v7437
    %v7439 = vmul.f32 %v7414, 1.442695
    %v7440 = vpow.pop %v7439
    %v7441 = vmul.f32 %v7415, 1.442695
    %v7442 = vpow.pop %v7441
    %v7443 = vmul.f32 %v7416, 1.442695
    %v7444 = vpow.pop %v7443
    %v7445 = vmul.f32 %v7417, 1.442695
    %v7446 = vpow.pop %v7445
    %v7447 = vmul.f32 %v7418, 1.442695
    %v7448 = vpow.pop %v7447
    %v7449 = vmul.f32 %v7419, 1.442695
    %v7450 = vpow.pop %v7449
    %v7451 = vmul.f32 %v7420, 1.442695
    %v7452 = vpow.pop %v7451
    %v7453 = vpack.c.bf16 %v7424, %v7422
    %v7454 = vpack.c.bf16 %v7428, %v7426
    %v7455 = vpack.c.bf16 %v7432, %v7430
    %v7456 = vpack.c.bf16 %v7436, %v7434
    %v7457 = vpack.c.bf16 %v7440, %v7438
    %v7458 = vpack.c.bf16 %v7444, %v7442
    %v7459 = vpack.c.bf16 %v7448, %v7446
    %v7460 = vpack.c.bf16 %v7452, %v7450
    %7461 = vmatprep.subr.bf16.mxu0 0
    %7462 = vmatpush1.bf16.msra.mxu0 %v6794
    %7463 = vmatprep.subr.bf16.mxu0 0
    %7464 = vmatpush1.bf16.msra.mxu0 %v6795
    %7465 = vmatprep.subr.bf16.mxu0 0
    %7466 = vmatpush1.bf16.msra.mxu0 %v6796
    %7467 = vmatprep.subr.bf16.mxu0 0
    %7468 = vmatpush1.bf16.msra.mxu0 %v6797
    %7469 = vmatprep.subr.bf16.mxu0 0
    %7470 = vmatpush1.bf16.msra.mxu0 %v6798
    %7471 = vmatprep.subr.bf16.mxu0 0
    %7472 = vmatpush1.bf16.msra.mxu0 %v6799
    %7473 = vmatprep.subr.bf16.mxu0 0
    %7474 = vmatpush1.bf16.msra.mxu0 %v6800
    %7475 = vmatprep.subr.bf16.mxu0 0
    %7476 = vmatpush1.bf16.msra.mxu0 %v6801
    %7477 = vmatprep.subr.bf16.mxu0 0
    %7478 = vmatpush1.bf16.msra.mxu0 0
    %7479 = vmatprep.subr.bf16.mxu0 0
    %7480 = vmatpush1.bf16.msra.mxu0 0
    %7481 = vmatprep.subr.bf16.mxu0 0
    %7482 = vmatpush1.bf16.msra.mxu0 0
    %7483 = vmatprep.subr.bf16.mxu0 0
    %7484 = vmatpush1.bf16.msra.mxu0 0
    %7485 = vmatprep.subr.bf16.mxu0 0
    %7486 = vmatpush1.bf16.msra.mxu0 0
    %7487 = vmatprep.subr.bf16.mxu0 0
    %7488 = vmatpush1.bf16.msra.mxu0 0
    %7489 = vmatprep.subr.bf16.mxu0 0
    %7490 = vmatpush1.bf16.msra.mxu0 0
    %7491 = vmatprep.subr.bf16.mxu0 0
    %7492 = vmatpush1.bf16.msra.mxu0 0
    %7493 = vmatprep.mubr.bf16.mxu0 0
    %7494 = vmatmul.mubr.bf16.gmra.mrb[0].mxu0 %v7453
    %v7495 = vpop.f32.mrb[0].mxu0
    %v7496 = vadd.f32 0.0, %v7495
    %v7497 = vpop.f32.mrb[0].mxu0
    %v7498 = vpop.f32.mrb[0].mxu0
    %v7499 = vadd.f32 0.0, %v7498
    %v7500 = vpop.f32.mrb[0].mxu0
    %7501 = vmatprep.mubr.bf16.mxu0 0
    %7502 = vmatmul.mubr.bf16.gmra.mrb[0].mxu0 %v7454
    %v7503 = vpop.f32.mrb[0].mxu0
    %v7504 = vadd.f32 0.0, %v7503
    %v7505 = vpop.f32.mrb[0].mxu0
    %v7506 = vpop.f32.mrb[0].mxu0
    %v7507 = vadd.f32 0.0, %v7506
    %v7508 = vpop.f32.mrb[0].mxu0
    %7509 = vmatprep.mubr.bf16.mxu0 0
    %7510 = vmatmul.mubr.bf16.gmra.mrb[0].mxu0 %v7455
    %v7511 = vpop.f32.mrb[0].mxu0
    %v7512 = vadd.f32 0.0, %v7511
    %v7513 = vpop.f32.mrb[0].mxu0
    %v7514 = vpop.f32.mrb[0].mxu0
    %v7515 = vadd.f32 0.0, %v7514
    %v7516 = vpop.f32.mrb[0].mxu0
    %7517 = vmatprep.mubr.bf16.mxu0 0
    %7518 = vmatmul.mubr.bf16.gmra.mrb[0].mxu0 %v7456
    %v7519 = vpop.f32.mrb[0].mxu0
    %v7520 = vadd.f32 0.0, %v7519
    %v7521 = vpop.f32.mrb[0].mxu0
    %v7522 = vpop.f32.mrb[0].mxu0
    %v7523 = vadd.f32 0.0, %v7522
    %v7524 = vpop.f32.mrb[0].mxu0
    %7525 = vmatprep.mubr.bf16.mxu0 0
    %7526 = vmatmul.mubr.bf16.gmra.mrb[0].mxu0 %v7457
    %v7527 = vpop.f32.mrb[0].mxu0
    %v7528 = vadd.f32 0.0, %v7527
    %v7529 = vpop.f32.mrb[0].mxu0
    %v7530 = vpop.f32.mrb[0].mxu0
    %v7531 = vadd.f32 0.0, %v7530
    %v7532 = vpop.f32.mrb[0].mxu0
    %7533 = vmatprep.mubr.bf16.mxu0 0
    %7534 = vmatmul.mubr.bf16.gmra.mrb[0].mxu0 %v7458
    %v7535 = vpop.f32.mrb[0].mxu0
    %v7536 = vadd.f32 0.0, %v7535
    %v7537 = vpop.f32.mrb[0].mxu0
    %v7538 = vpop.f32.mrb[0].mxu0
    %v7539 = vadd.f32 0.0, %v7538
    %v7540 = vpop.f32.mrb[0].mxu0
    %7541 = vmatprep.mubr.bf16.mxu0 0
    %7542 = vmatmul.mubr.bf16.gmra.mrb[0].mxu0 %v7459
    %v7543 = vpop.f32.mrb[0].mxu0
    %v7544 = vadd.f32 0.0, %v7543
    %v7545 = vpop.f32.mrb[0].mxu0
    %v7546 = vpop.f32.mrb[0].mxu0
    %v7547 = vadd.f32 0.0, %v7546
    %v7548 = vpop.f32.mrb[0].mxu0
    %7549 = vmatprep.mubr.bf16.mxu0 0
    %7550 = vmatmul.mubr.bf16.gmra.mrb[0].mxu0 %v7460
    %v7551 = vpop.f32.mrb[0].mxu0
    %v7552 = vadd.f32 0.0, %v7551
    %v7553 = vpop.f32.mrb[0].mxu0
    %v7554 = vpop.f32.mrb[0].mxu0
    %v7555 = vadd.f32 0.0, %v7554
    %v7556 = vpop.f32.mrb[0].mxu0
    %7557 = vdwg.mxu0
    %7558 = vadd.xlane.f32.xlu0 %v7422
    %v7559 = vpop.xlane.xlu0 %7558
    %7560 = vadd.xlane.f32.xlu0 %v7424
    %v7561 = vpop.xlane.xlu0 %7560
    %7562 = vadd.xlane.f32.xlu0 %v7426
    %v7563 = vpop.xlane.xlu0 %7562
    %7564 = vadd.xlane.f32.xlu0 %v7428
    %v7565 = vpop.xlane.xlu0 %7564
    %7566 = vadd.xlane.f32.xlu0 %v7430
    %v7567 = vpop.xlane.xlu0 %7566
    %7568 = vadd.xlane.f32.xlu0 %v7432
    %v7569 = vpop.xlane.xlu0 %7568
    %7570 = vadd.xlane.f32.xlu0 %v7434
    %v7571 = vpop.xlane.xlu0 %7570
    %7572 = vadd.xlane.f32.xlu0 %v7436
    %v7573 = vpop.xlane.xlu0 %7572
    %7574 = vadd.xlane.f32.xlu0 %v7438
    %v7575 = vpop.xlane.xlu0 %7574
    %7576 = vadd.xlane.f32.xlu0 %v7440
    %v7577 = vpop.xlane.xlu0 %7576
    %7578 = vadd.xlane.f32.xlu0 %v7442
    %v7579 = vpop.xlane.xlu0 %7578
    %7580 = vadd.xlane.f32.xlu0 %v7444
    %v7581 = vpop.xlane.xlu0 %7580
    %7582 = vadd.xlane.f32.xlu0 %v7446
    %v7583 = vpop.xlane.xlu0 %7582
    %7584 = vadd.xlane.f32.xlu0 %v7448
    %v7585 = vpop.xlane.xlu0 %7584
    %7586 = vadd.xlane.f32.xlu0 %v7450
    %v7587 = vpop.xlane.xlu0 %7586
    %7588 = vadd.xlane.f32.xlu0 %v7452
    %v7589 = vpop.xlane.xlu0 %7588
    %v7590 = vrcp.pop %v7559
    %v7591 = vrcp.pop %v7561
    %v7592 = vrcp.pop %v7563
    %v7593 = vrcp.pop %v7565
    %v7594 = vrcp.pop %v7567
    %v7595 = vrcp.pop %v7569
    %v7596 = vrcp.pop %v7571
    %v7597 = vrcp.pop %v7573
    %v7598 = vrcp.pop %v7575
    %v7599 = vrcp.pop %v7577
    %v7600 = vrcp.pop %v7579
    %v7601 = vrcp.pop %v7581
    %v7602 = vrcp.pop %v7583
    %v7603 = vrcp.pop %v7585
    %v7604 = vrcp.pop %v7587
    %v7605 = vrcp.pop %v7589
    %v7606 = vmul.f32 %v7496, %v7590
    %v7607 = vmul.f32 %v7499, %v7591
    %v7608 = vmul.f32 %v7504, %v7592
    %v7609 = vmul.f32 %v7507, %v7593
    %v7610 = vmul.f32 %v7512, %v7594
    %v7611 = vmul.f32 %v7515, %v7595
    %v7612 = vmul.f32 %v7520, %v7596
    %v7613 = vmul.f32 %v7523, %v7597
    %v7614 = vmul.f32 %v7528, %v7598
    %v7615 = vmul.f32 %v7531, %v7599
    %v7616 = vmul.f32 %v7536, %v7600
    %v7617 = vmul.f32 %v7539, %v7601
    %v7618 = vmul.f32 %v7544, %v7602
    %v7619 = vmul.f32 %v7547, %v7603
    %v7620 = vmul.f32 %v7552, %v7604
    %v7621 = vmul.f32 %v7555, %v7605
    %v7622 = vpack.c.bf16 %v7197, %v7196
    %v7623 = vpack.c.bf16 %v7199, %v7198
    %v7624 = vpack.c.bf16 %v7201, %v7200
    %v7625 = vpack.c.bf16 %v7203, %v7202
    %v7626 = vpack.c.bf16 %v7205, %v7204
    %v7627 = vpack.c.bf16 %v7207, %v7206
    %v7628 = vpack.c.bf16 %v7209, %v7208
    %v7629 = vpack.c.bf16 %v7211, %v7210
    %v7630 = vpack.c.bf16 %v7607, %v7606
    %v7631 = vpack.c.bf16 %v7609, %v7608
    %v7632 = vpack.c.bf16 %v7611, %v7610
    %v7633 = vpack.c.bf16 %v7613, %v7612
    %v7634 = vpack.c.bf16 %v7615, %v7614
    %v7635 = vpack.c.bf16 %v7617, %v7616
    %v7636 = vpack.c.bf16 %v7619, %v7618
    %v7637 = vpack.c.bf16 %v7621, %v7620
    %s7638 = scalar_lea.vmem %s6, 48
    %v7639 = vld [vmem:[%s7638] sm:$0xf]
    %v7640 = vld [vmem:[%s7638 + $0x4] sm:$0xf]
    %v7641 = vld [vmem:[%s7638 + $0x8] sm:$0xf]
    %v7642 = vld [vmem:[%s7638 + $0xc] sm:$0xf]
    %v7647 = vunpack.c.l.b16 %v7639
    %v7648 = vunpack.c.l.b16 %v7640
    %v7649 = vunpack.c.l.b16 %v7641
    %v7650 = vunpack.c.l.b16 %v7642
    %v7651 = vpack.c.b16 %v7648, %v7647
    %v7652 = vpack.c.b16 %v7650, %v7649
    %v7656 = vsel %vm1406, %v7622, 0
    %v7659 = vsel %vm1406, %v7623, 0
    %v7662 = vsel %vm1406, %v7624, 0
    %v7665 = vsel %vm1406, %v7625, 0
    %v7668 = vsel %vm1406, %v7626, 0
    %v7671 = vsel %vm1406, %v7627, 0
    %v7674 = vsel %vm1406, %v7628, 0
    %v7677 = vsel %vm1406, %v7629, 0
    %v7680 = vsel %vm1406, %v7630, 0
    %v7683 = vsel %vm1406, %v7631, 0
    %v7686 = vsel %vm1406, %v7632, 0
    %v7689 = vsel %vm1406, %v7633, 0
    %v7692 = vsel %vm1406, %v7634, 0
    %v7695 = vsel %vm1406, %v7635, 0
    %v7698 = vsel %vm1406, %v7636, 0
    %v7701 = vsel %vm1406, %v7637, 0
    %7703 = vmatprep.subr.bf16.mxu0 0
    %7704 = vmatpush1.bf16.msra.mxu0 %v7651
    %7705 = vmatprep.subr.bf16.mxu0 0
    %7706 = vmatpush1.bf16.msra.mxu0 %v7652
    %7707 = vmatprep.subr.bf16.mxu0 0
    %7708 = vmatpush1.bf16.msra.mxu0 0
    %7709 = vmatprep.subr.bf16.mxu0 0
    %7710 = vmatpush1.bf16.msra.mxu0 0
    %7711 = vmatprep.subr.bf16.mxu0 0
    %7712 = vmatpush1.bf16.msra.mxu0 0
    %7713 = vmatprep.subr.bf16.mxu0 0
    %7714 = vmatpush1.bf16.msra.mxu0 0
    %7715 = vmatprep.subr.bf16.mxu0 0
    %7716 = vmatpush1.bf16.msra.mxu0 0
    %7717 = vmatprep.subr.bf16.mxu0 0
    %7718 = vmatpush1.bf16.msra.mxu0 0
    %7719 = vmatprep.subr.bf16.mxu0 0
    %7720 = vmatpush1.bf16.msra.mxu0 0
    %7721 = vmatprep.subr.bf16.mxu0 0
    %7722 = vmatpush1.bf16.msra.mxu0 0
    %7723 = vmatprep.subr.bf16.mxu0 0
    %7724 = vmatpush1.bf16.msra.mxu0 0
    %7725 = vmatprep.subr.bf16.mxu0 0
    %7726 = vmatpush1.bf16.msra.mxu0 0
    %7727 = vmatprep.subr.bf16.mxu0 0
    %7728 = vmatpush1.bf16.msra.mxu0 0
    %7729 = vmatprep.subr.bf16.mxu0 0
    %7730 = vmatpush1.bf16.msra.mxu0 0
    %7731 = vmatprep.subr.bf16.mxu0 0
    %7732 = vmatpush1.bf16.msra.mxu0 0
    %7733 = vmatprep.subr.bf16.mxu0 0
    %7734 = vmatpush1.bf16.msra.mxu0 0
    %7735 = vmatprep.mubr.bf16.mxu0 0
    %7736 = vmatmul.mubr.bf16.gmra.mrb[0].mxu0 %v7656
    %v7737 = vpop.f32.mrb[0].mxu0
    %v7738 = vadd.f32 0.0, %v7737
    %v7739 = vpop.f32.mrb[0].mxu0
    %v7740 = vpop.f32.mrb[0].mxu0
    %v7741 = vadd.f32 0.0, %v7740
    %v7742 = vpop.f32.mrb[0].mxu0
    %7743 = vmatprep.mubr.bf16.mxu0 0
    %7744 = vmatmul.mubr.bf16.gmra.mrb[0].mxu0 %v7659
    %v7745 = vpop.f32.mrb[0].mxu0
    %v7746 = vadd.f32 0.0, %v7745
    %v7747 = vpop.f32.mrb[0].mxu0
    %v7748 = vpop.f32.mrb[0].mxu0
    %v7749 = vadd.f32 0.0, %v7748
    %v7750 = vpop.f32.mrb[0].mxu0
    %7751 = vmatprep.mubr.bf16.mxu0 0
    %7752 = vmatmul.mubr.bf16.gmra.mrb[0].mxu0 %v7662
    %v7753 = vpop.f32.mrb[0].mxu0
    %v7754 = vadd.f32 0.0, %v7753
    %v7755 = vpop.f32.mrb[0].mxu0
    %v7756 = vpop.f32.mrb[0].mxu0
    %v7757 = vadd.f32 0.0, %v7756
    %v7758 = vpop.f32.mrb[0].mxu0
    %7759 = vmatprep.mubr.bf16.mxu0 0
    %7760 = vmatmul.mubr.bf16.gmra.mrb[0].mxu0 %v7665
    %v7761 = vpop.f32.mrb[0].mxu0
    %v7762 = vadd.f32 0.0, %v7761
    %v7763 = vpop.f32.mrb[0].mxu0
    %v7764 = vpop.f32.mrb[0].mxu0
    %v7765 = vadd.f32 0.0, %v7764
    %v7766 = vpop.f32.mrb[0].mxu0
    %7767 = vmatprep.mubr.bf16.mxu0 0
    %7768 = vmatmul.mubr.bf16.gmra.mrb[0].mxu0 %v7668
    %v7769 = vpop.f32.mrb[0].mxu0
    %v7770 = vadd.f32 0.0, %v7769
    %v7771 = vpop.f32.mrb[0].mxu0
    %v7772 = vpop.f32.mrb[0].mxu0
    %v7773 = vadd.f32 0.0, %v7772
    %v7774 = vpop.f32.mrb[0].mxu0
    %7775 = vmatprep.mubr.bf16.mxu0 0
    %7776 = vmatmul.mubr.bf16.gmra.mrb[0].mxu0 %v7671
    %v7777 = vpop.f32.mrb[0].mxu0
    %v7778 = vadd.f32 0.0, %v7777
    %v7779 = vpop.f32.mrb[0].mxu0
    %v7780 = vpop.f32.mrb[0].mxu0
    %v7781 = vadd.f32 0.0, %v7780
    %v7782 = vpop.f32.mrb[0].mxu0
    %7783 = vmatprep.mubr.bf16.mxu0 0
    %7784 = vmatmul.mubr.bf16.gmra.mrb[0].mxu0 %v7674
    %v7785 = vpop.f32.mrb[0].mxu0
    %v7786 = vadd.f32 0.0, %v7785
    %v7787 = vpop.f32.mrb[0].mxu0
    %v7788 = vpop.f32.mrb[0].mxu0
    %v7789 = vadd.f32 0.0, %v7788
    %v7790 = vpop.f32.mrb[0].mxu0
    %7791 = vmatprep.mubr.bf16.mxu0 0
    %7792 = vmatmul.mubr.bf16.gmra.mrb[0].mxu0 %v7677
    %v7793 = vpop.f32.mrb[0].mxu0
    %v7794 = vadd.f32 0.0, %v7793
    %v7795 = vpop.f32.mrb[0].mxu0
    %v7796 = vpop.f32.mrb[0].mxu0
    %v7797 = vadd.f32 0.0, %v7796
    %v7798 = vpop.f32.mrb[0].mxu0
    %7799 = vmatprep.mubr.bf16.mxu0 0
    %7800 = vmatmul.mubr.bf16.gmra.mrb[0].mxu0 %v7680
    %v7801 = vpop.f32.mrb[0].mxu0
    %v7802 = vadd.f32 0.0, %v7801
    %v7803 = vpop.f32.mrb[0].mxu0
    %v7804 = vpop.f32.mrb[0].mxu0
    %v7805 = vadd.f32 0.0, %v7804
    %v7806 = vpop.f32.mrb[0].mxu0
    %7807 = vmatprep.mubr.bf16.mxu0 0
    %7808 = vmatmul.mubr.bf16.gmra.mrb[0].mxu0 %v7683
    %v7809 = vpop.f32.mrb[0].mxu0
    %v7810 = vadd.f32 0.0, %v7809
    %v7811 = vpop.f32.mrb[0].mxu0
    %v7812 = vpop.f32.mrb[0].mxu0
    %v7813 = vadd.f32 0.0, %v7812
    %v7814 = vpop.f32.mrb[0].mxu0
    %7815 = vmatprep.mubr.bf16.mxu0 0
    %7816 = vmatmul.mubr.bf16.gmra.mrb[0].mxu0 %v7686
    %v7817 = vpop.f32.mrb[0].mxu0
    %v7818 = vadd.f32 0.0, %v7817
    %v7819 = vpop.f32.mrb[0].mxu0
    %v7820 = vpop.f32.mrb[0].mxu0
    %v7821 = vadd.f32 0.0, %v7820
    %v7822 = vpop.f32.mrb[0].mxu0
    %7823 = vmatprep.mubr.bf16.mxu0 0
    %7824 = vmatmul.mubr.bf16.gmra.mrb[0].mxu0 %v7689
    %v7825 = vpop.f32.mrb[0].mxu0
    %v7826 = vadd.f32 0.0, %v7825
    %v7827 = vpop.f32.mrb[0].mxu0
    %v7828 = vpop.f32.mrb[0].mxu0
    %v7829 = vadd.f32 0.0, %v7828
    %v7830 = vpop.f32.mrb[0].mxu0
    %7831 = vmatprep.mubr.bf16.mxu0 0
    %7832 = vmatmul.mubr.bf16.gmra.mrb[0].mxu0 %v7692
    %v7833 = vpop.f32.mrb[0].mxu0
    %v7834 = vadd.f32 0.0, %v7833
    %v7835 = vpop.f32.mrb[0].mxu0
    %v7836 = vpop.f32.mrb[0].mxu0
    %v7837 = vadd.f32 0.0, %v7836
    %v7838 = vpop.f32.mrb[0].mxu0
    %7839 = vmatprep.mubr.bf16.mxu0 0
    %7840 = vmatmul.mubr.bf16.gmra.mrb[0].mxu0 %v7695
    %v7841 = vpop.f32.mrb[0].mxu0
    %v7842 = vadd.f32 0.0, %v7841
    %v7843 = vpop.f32.mrb[0].mxu0
    %v7844 = vpop.f32.mrb[0].mxu0
    %v7845 = vadd.f32 0.0, %v7844
    %v7846 = vpop.f32.mrb[0].mxu0
    %7847 = vmatprep.mubr.bf16.mxu0 0
    %7848 = vmatmul.mubr.bf16.gmra.mrb[0].mxu0 %v7698
    %v7849 = vpop.f32.mrb[0].mxu0
    %v7850 = vadd.f32 0.0, %v7849
    %v7851 = vpop.f32.mrb[0].mxu0
    %v7852 = vpop.f32.mrb[0].mxu0
    %v7853 = vadd.f32 0.0, %v7852
    %v7854 = vpop.f32.mrb[0].mxu0
    %7855 = vmatprep.mubr.bf16.mxu0 0
    %7856 = vmatmul.mubr.bf16.gmra.mrb[0].mxu0 %v7701
    %v7857 = vpop.f32.mrb[0].mxu0
    %v7858 = vadd.f32 0.0, %v7857
    %v7859 = vpop.f32.mrb[0].mxu0
    %v7860 = vpop.f32.mrb[0].mxu0
    %v7861 = vadd.f32 0.0, %v7860
    %v7862 = vpop.f32.mrb[0].mxu0
    %7863 = vdwg.mxu0
    %v7864 = vadd.f32 %v6044, %v7738
    %v7865 = vadd.f32 %v6045, %v7741
    %v7866 = vadd.f32 %v6046, %v7746
    %v7867 = vadd.f32 %v6047, %v7749
    %v7868 = vadd.f32 %v6048, %v7754
    %v7869 = vadd.f32 %v6049, %v7757
    %v7870 = vadd.f32 %v6050, %v7762
    %v7871 = vadd.f32 %v6051, %v7765
    %v7872 = vadd.f32 %v6052, %v7770
    %v7873 = vadd.f32 %v6053, %v7773
    %v7874 = vadd.f32 %v6054, %v7778
    %v7875 = vadd.f32 %v6055, %v7781
    %v7876 = vadd.f32 %v6056, %v7786
    %v7877 = vadd.f32 %v6057, %v7789
    %v7878 = vadd.f32 %v6058, %v7794
    %v7879 = vadd.f32 %v6059, %v7797
    %v7880 = vadd.f32 %v6060, %v7802
    %v7881 = vadd.f32 %v6061, %v7805
    %v7882 = vadd.f32 %v6062, %v7810
    %v7883 = vadd.f32 %v6063, %v7813
    %v7884 = vadd.f32 %v6064, %v7818
    %v7885 = vadd.f32 %v6065, %v7821
    %v7886 = vadd.f32 %v6066, %v7826
    %v7887 = vadd.f32 %v6067, %v7829
    %v7888 = vadd.f32 %v6068, %v7834
    %v7889 = vadd.f32 %v6069, %v7837
    %v7890 = vadd.f32 %v6070, %v7842
    %v7891 = vadd.f32 %v6071, %v7845
    %v7892 = vadd.f32 %v6072, %v7850
    %v7893 = vadd.f32 %v6073, %v7853
    %v7894 = vadd.f32 %v6074, %v7858
    %v7895 = vadd.f32 %v6075, %v7861
    %v7896 = vadd.f32 %v73, %v7864
    %v7897 = vadd.f32 %v74, %v7865
    %v7898 = vadd.f32 %v75, %v7866
    %v7899 = vadd.f32 %v76, %v7867
    %v7900 = vadd.f32 %v77, %v7868
    %v7901 = vadd.f32 %v78, %v7869
    %v7902 = vadd.f32 %v79, %v7870
    %v7903 = vadd.f32 %v80, %v7871
    %v7904 = vadd.f32 %v81, %v7872
    %v7905 = vadd.f32 %v82, %v7873
    %v7906 = vadd.f32 %v83, %v7874
    %v7907 = vadd.f32 %v84, %v7875
    %v7908 = vadd.f32 %v85, %v7876
    %v7909 = vadd.f32 %v86, %v7877
    %v7910 = vadd.f32 %v87, %v7878
    %v7911 = vadd.f32 %v88, %v7879
    %v7912 = vadd.f32 %v89, %v7880
    %v7913 = vadd.f32 %v90, %v7881
    %v7914 = vadd.f32 %v91, %v7882
    %v7915 = vadd.f32 %v92, %v7883
    %v7916 = vadd.f32 %v93, %v7884
    %v7917 = vadd.f32 %v94, %v7885
    %v7918 = vadd.f32 %v95, %v7886
    %v7919 = vadd.f32 %v96, %v7887
    %v7920 = vadd.f32 %v97, %v7888
    %v7921 = vadd.f32 %v98, %v7889
    %v7922 = vadd.f32 %v99, %v7890
    %v7923 = vadd.f32 %v100, %v7891
    %v7924 = vadd.f32 %v101, %v7892
    %v7925 = vadd.f32 %v102, %v7893
    %v7926 = vadd.f32 %v103, %v7894
    %v7927 = vadd.f32 %v104, %v7895
    %v7928 = vld [vmem:[%s7] sm:$0x1]
    %v7930 = vlaneseq
    %v7931 = vshrl.u32 %v7930, 7
    %v7932 = vsub.s32 0, %v7931
    %v7933 = vrot.slane %v7928, %v7932
    %v7935 = vadd.f32 %v7896, %v7933
    %v7936 = vadd.f32 %v7897, %v7933
    %v7937 = vadd.f32 %v7898, %v7933
    %v7938 = vadd.f32 %v7899, %v7933
    %v7939 = vadd.f32 %v7900, %v7933
    %v7940 = vadd.f32 %v7901, %v7933
    %v7941 = vadd.f32 %v7902, %v7933
    %v7942 = vadd.f32 %v7903, %v7933
    %v7943 = vadd.f32 %v7904, %v7933
    %v7944 = vadd.f32 %v7905, %v7933
    %v7945 = vadd.f32 %v7906, %v7933
    %v7946 = vadd.f32 %v7907, %v7933
    %v7947 = vadd.f32 %v7908, %v7933
    %v7948 = vadd.f32 %v7909, %v7933
    %v7949 = vadd.f32 %v7910, %v7933
    %v7950 = vadd.f32 %v7911, %v7933
    %v7951 = vadd.f32 %v7912, %v7933
    %v7952 = vadd.f32 %v7913, %v7933
    %v7953 = vadd.f32 %v7914, %v7933
    %v7954 = vadd.f32 %v7915, %v7933
    %v7955 = vadd.f32 %v7916, %v7933
    %v7956 = vadd.f32 %v7917, %v7933
    %v7957 = vadd.f32 %v7918, %v7933
    %v7958 = vadd.f32 %v7919, %v7933
    %v7959 = vadd.f32 %v7920, %v7933
    %v7960 = vadd.f32 %v7921, %v7933
    %v7961 = vadd.f32 %v7922, %v7933
    %v7962 = vadd.f32 %v7923, %v7933
    %v7963 = vadd.f32 %v7924, %v7933
    %v7964 = vadd.f32 %v7925, %v7933
    %v7965 = vadd.f32 %v7926, %v7933
    %v7966 = vadd.f32 %v7927, %v7933
    %v7967 = vld [vmem:[%s8] sm:$0x1]
    %v7968 = vld [vmem:[%s9] sm:$0x1]
    %7969 = vadd.xlane.f32.xlu0 %v7935
    %v7970 = vpop.xlane.xlu0 %7969
    %7971 = vadd.xlane.f32.xlu0 %v7936
    %v7972 = vpop.xlane.xlu0 %7971
    %7973 = vadd.xlane.f32.xlu0 %v7937
    %v7974 = vpop.xlane.xlu0 %7973
    %7975 = vadd.xlane.f32.xlu0 %v7938
    %v7976 = vpop.xlane.xlu0 %7975
    %7977 = vadd.xlane.f32.xlu0 %v7939
    %v7978 = vpop.xlane.xlu0 %7977
    %7979 = vadd.xlane.f32.xlu0 %v7940
    %v7980 = vpop.xlane.xlu0 %7979
    %7981 = vadd.xlane.f32.xlu0 %v7941
    %v7982 = vpop.xlane.xlu0 %7981
    %7983 = vadd.xlane.f32.xlu0 %v7942
    %v7984 = vpop.xlane.xlu0 %7983
    %7985 = vadd.xlane.f32.xlu0 %v7943
    %v7986 = vpop.xlane.xlu0 %7985
    %7987 = vadd.xlane.f32.xlu0 %v7944
    %v7988 = vpop.xlane.xlu0 %7987
    %7989 = vadd.xlane.f32.xlu0 %v7945
    %v7990 = vpop.xlane.xlu0 %7989
    %7991 = vadd.xlane.f32.xlu0 %v7946
    %v7992 = vpop.xlane.xlu0 %7991
    %7993 = vadd.xlane.f32.xlu0 %v7947
    %v7994 = vpop.xlane.xlu0 %7993
    %7995 = vadd.xlane.f32.xlu0 %v7948
    %v7996 = vpop.xlane.xlu0 %7995
    %7997 = vadd.xlane.f32.xlu0 %v7949
    %v7998 = vpop.xlane.xlu0 %7997
    %7999 = vadd.xlane.f32.xlu0 %v7950
    %v8000 = vpop.xlane.xlu0 %7999
    %8001 = vadd.xlane.f32.xlu0 %v7951
    %v8002 = vpop.xlane.xlu0 %8001
    %8003 = vadd.xlane.f32.xlu0 %v7952
    %v8004 = vpop.xlane.xlu0 %8003
    %8005 = vadd.xlane.f32.xlu0 %v7953
    %v8006 = vpop.xlane.xlu0 %8005
    %8007 = vadd.xlane.f32.xlu0 %v7954
    %v8008 = vpop.xlane.xlu0 %8007
    %8009 = vadd.xlane.f32.xlu0 %v7955
    %v8010 = vpop.xlane.xlu0 %8009
    %8011 = vadd.xlane.f32.xlu0 %v7956
    %v8012 = vpop.xlane.xlu0 %8011
    %8013 = vadd.xlane.f32.xlu0 %v7957
    %v8014 = vpop.xlane.xlu0 %8013
    %8015 = vadd.xlane.f32.xlu0 %v7958
    %v8016 = vpop.xlane.xlu0 %8015
    %8017 = vadd.xlane.f32.xlu0 %v7959
    %v8018 = vpop.xlane.xlu0 %8017
    %8019 = vadd.xlane.f32.xlu0 %v7960
    %v8020 = vpop.xlane.xlu0 %8019
    %8021 = vadd.xlane.f32.xlu0 %v7961
    %v8022 = vpop.xlane.xlu0 %8021
    %8023 = vadd.xlane.f32.xlu0 %v7962
    %v8024 = vpop.xlane.xlu0 %8023
    %8025 = vadd.xlane.f32.xlu0 %v7963
    %v8026 = vpop.xlane.xlu0 %8025
    %8027 = vadd.xlane.f32.xlu0 %v7964
    %v8028 = vpop.xlane.xlu0 %8027
    %8029 = vadd.xlane.f32.xlu0 %v7965
    %v8030 = vpop.xlane.xlu0 %8029
    %8031 = vadd.xlane.f32.xlu0 %v7966
    %v8032 = vpop.xlane.xlu0 %8031
    %v8033 = vmul.f32 %v7970, %v171
    %v8034 = vmul.f32 %v7972, %v171
    %v8035 = vmul.f32 %v7974, %v171
    %v8036 = vmul.f32 %v7976, %v171
    %v8037 = vmul.f32 %v7978, %v171
    %v8038 = vmul.f32 %v7980, %v171
    %v8039 = vmul.f32 %v7982, %v171
    %v8040 = vmul.f32 %v7984, %v171
    %v8041 = vmul.f32 %v7986, %v171
    %v8042 = vmul.f32 %v7988, %v171
    %v8043 = vmul.f32 %v7990, %v171
    %v8044 = vmul.f32 %v7992, %v171
    %v8045 = vmul.f32 %v7994, %v171
    %v8046 = vmul.f32 %v7996, %v171
    %v8047 = vmul.f32 %v7998, %v171
    %v8048 = vmul.f32 %v8000, %v171
    %v8049 = vmul.f32 %v8002, %v171
    %v8050 = vmul.f32 %v8004, %v171
    %v8051 = vmul.f32 %v8006, %v171
    %v8052 = vmul.f32 %v8008, %v171
    %v8053 = vmul.f32 %v8010, %v171
    %v8054 = vmul.f32 %v8012, %v171
    %v8055 = vmul.f32 %v8014, %v171
    %v8056 = vmul.f32 %v8016, %v171
    %v8057 = vmul.f32 %v8018, %v171
    %v8058 = vmul.f32 %v8020, %v171
    %v8059 = vmul.f32 %v8022, %v171
    %v8060 = vmul.f32 %v8024, %v171
    %v8061 = vmul.f32 %v8026, %v171
    %v8062 = vmul.f32 %v8028, %v171
    %v8063 = vmul.f32 %v8030, %v171
    %v8064 = vmul.f32 %v8032, %v171
    %v8065 = vmul.f32 %v7935, %v7935
    %v8066 = vmul.f32 %v7936, %v7936
    %v8067 = vmul.f32 %v7937, %v7937
    %v8068 = vmul.f32 %v7938, %v7938
    %v8069 = vmul.f32 %v7939, %v7939
    %v8070 = vmul.f32 %v7940, %v7940
    %v8071 = vmul.f32 %v7941, %v7941
    %v8072 = vmul.f32 %v7942, %v7942
    %v8073 = vmul.f32 %v7943, %v7943
    %v8074 = vmul.f32 %v7944, %v7944
    %v8075 = vmul.f32 %v7945, %v7945
    %v8076 = vmul.f32 %v7946, %v7946
    %v8077 = vmul.f32 %v7947, %v7947
    %v8078 = vmul.f32 %v7948, %v7948
    %v8079 = vmul.f32 %v7949, %v7949
    %v8080 = vmul.f32 %v7950, %v7950
    %v8081 = vmul.f32 %v7951, %v7951
    %v8082 = vmul.f32 %v7952, %v7952
    %v8083 = vmul.f32 %v7953, %v7953
    %v8084 = vmul.f32 %v7954, %v7954
    %v8085 = vmul.f32 %v7955, %v7955
    %v8086 = vmul.f32 %v7956, %v7956
    %v8087 = vmul.f32 %v7957, %v7957
    %v8088 = vmul.f32 %v7958, %v7958
    %v8089 = vmul.f32 %v7959, %v7959
    %v8090 = vmul.f32 %v7960, %v7960
    %v8091 = vmul.f32 %v7961, %v7961
    %v8092 = vmul.f32 %v7962, %v7962
    %v8093 = vmul.f32 %v7963, %v7963
    %v8094 = vmul.f32 %v7964, %v7964
    %v8095 = vmul.f32 %v7965, %v7965
    %v8096 = vmul.f32 %v7966, %v7966
    %8097 = vadd.xlane.f32.xlu0 %v8065
    %v8098 = vpop.xlane.xlu0 %8097
    %8099 = vadd.xlane.f32.xlu0 %v8066
    %v8100 = vpop.xlane.xlu0 %8099
    %8101 = vadd.xlane.f32.xlu0 %v8067
    %v8102 = vpop.xlane.xlu0 %8101
    %8103 = vadd.xlane.f32.xlu0 %v8068
    %v8104 = vpop.xlane.xlu0 %8103
    %8105 = vadd.xlane.f32.xlu0 %v8069
    %v8106 = vpop.xlane.xlu0 %8105
    %8107 = vadd.xlane.f32.xlu0 %v8070
    %v8108 = vpop.xlane.xlu0 %8107
    %8109 = vadd.xlane.f32.xlu0 %v8071
    %v8110 = vpop.xlane.xlu0 %8109
    %8111 = vadd.xlane.f32.xlu0 %v8072
    %v8112 = vpop.xlane.xlu0 %8111
    %8113 = vadd.xlane.f32.xlu0 %v8073
    %v8114 = vpop.xlane.xlu0 %8113
    %8115 = vadd.xlane.f32.xlu0 %v8074
    %v8116 = vpop.xlane.xlu0 %8115
    %8117 = vadd.xlane.f32.xlu0 %v8075
    %v8118 = vpop.xlane.xlu0 %8117
    %8119 = vadd.xlane.f32.xlu0 %v8076
    %v8120 = vpop.xlane.xlu0 %8119
    %8121 = vadd.xlane.f32.xlu0 %v8077
    %v8122 = vpop.xlane.xlu0 %8121
    %8123 = vadd.xlane.f32.xlu0 %v8078
    %v8124 = vpop.xlane.xlu0 %8123
    %8125 = vadd.xlane.f32.xlu0 %v8079
    %v8126 = vpop.xlane.xlu0 %8125
    %8127 = vadd.xlane.f32.xlu0 %v8080
    %v8128 = vpop.xlane.xlu0 %8127
    %8129 = vadd.xlane.f32.xlu0 %v8081
    %v8130 = vpop.xlane.xlu0 %8129
    %8131 = vadd.xlane.f32.xlu0 %v8082
    %v8132 = vpop.xlane.xlu0 %8131
    %8133 = vadd.xlane.f32.xlu0 %v8083
    %v8134 = vpop.xlane.xlu0 %8133
    %8135 = vadd.xlane.f32.xlu0 %v8084
    %v8136 = vpop.xlane.xlu0 %8135
    %8137 = vadd.xlane.f32.xlu0 %v8085
    %v8138 = vpop.xlane.xlu0 %8137
    %8139 = vadd.xlane.f32.xlu0 %v8086
    %v8140 = vpop.xlane.xlu0 %8139
    %8141 = vadd.xlane.f32.xlu0 %v8087
    %v8142 = vpop.xlane.xlu0 %8141
    %8143 = vadd.xlane.f32.xlu0 %v8088
    %v8144 = vpop.xlane.xlu0 %8143
    %8145 = vadd.xlane.f32.xlu0 %v8089
    %v8146 = vpop.xlane.xlu0 %8145
    %8147 = vadd.xlane.f32.xlu0 %v8090
    %v8148 = vpop.xlane.xlu0 %8147
    %8149 = vadd.xlane.f32.xlu0 %v8091
    %v8150 = vpop.xlane.xlu0 %8149
    %8151 = vadd.xlane.f32.xlu0 %v8092
    %v8152 = vpop.xlane.xlu0 %8151
    %8153 = vadd.xlane.f32.xlu0 %v8093
    %v8154 = vpop.xlane.xlu0 %8153
    %8155 = vadd.xlane.f32.xlu0 %v8094
    %v8156 = vpop.xlane.xlu0 %8155
    %8157 = vadd.xlane.f32.xlu0 %v8095
    %v8158 = vpop.xlane.xlu0 %8157
    %8159 = vadd.xlane.f32.xlu0 %v8096
    %v8160 = vpop.xlane.xlu0 %8159
    %v8161 = vmul.f32 %v8098, %v171
    %v8162 = vmul.f32 %v8100, %v171
    %v8163 = vmul.f32 %v8102, %v171
    %v8164 = vmul.f32 %v8104, %v171
    %v8165 = vmul.f32 %v8106, %v171
    %v8166 = vmul.f32 %v8108, %v171
    %v8167 = vmul.f32 %v8110, %v171
    %v8168 = vmul.f32 %v8112, %v171
    %v8169 = vmul.f32 %v8114, %v171
    %v8170 = vmul.f32 %v8116, %v171
    %v8171 = vmul.f32 %v8118, %v171
    %v8172 = vmul.f32 %v8120, %v171
    %v8173 = vmul.f32 %v8122, %v171
    %v8174 = vmul.f32 %v8124, %v171
    %v8175 = vmul.f32 %v8126, %v171
    %v8176 = vmul.f32 %v8128, %v171
    %v8177 = vmul.f32 %v8130, %v171
    %v8178 = vmul.f32 %v8132, %v171
    %v8179 = vmul.f32 %v8134, %v171
    %v8180 = vmul.f32 %v8136, %v171
    %v8181 = vmul.f32 %v8138, %v171
    %v8182 = vmul.f32 %v8140, %v171
    %v8183 = vmul.f32 %v8142, %v171
    %v8184 = vmul.f32 %v8144, %v171
    %v8185 = vmul.f32 %v8146, %v171
    %v8186 = vmul.f32 %v8148, %v171
    %v8187 = vmul.f32 %v8150, %v171
    %v8188 = vmul.f32 %v8152, %v171
    %v8189 = vmul.f32 %v8154, %v171
    %v8190 = vmul.f32 %v8156, %v171
    %v8191 = vmul.f32 %v8158, %v171
    %v8192 = vmul.f32 %v8160, %v171
    %v8193 = vmul.f32 %v8033, %v8033
    %v8194 = vmul.f32 %v8034, %v8034
    %v8195 = vmul.f32 %v8035, %v8035
    %v8196 = vmul.f32 %v8036, %v8036
    %v8197 = vmul.f32 %v8037, %v8037
    %v8198 = vmul.f32 %v8038, %v8038
    %v8199 = vmul.f32 %v8039, %v8039
    %v8200 = vmul.f32 %v8040, %v8040
    %v8201 = vmul.f32 %v8041, %v8041
    %v8202 = vmul.f32 %v8042, %v8042
    %v8203 = vmul.f32 %v8043, %v8043
    %v8204 = vmul.f32 %v8044, %v8044
    %v8205 = vmul.f32 %v8045, %v8045
    %v8206 = vmul.f32 %v8046, %v8046
    %v8207 = vmul.f32 %v8047, %v8047
    %v8208 = vmul.f32 %v8048, %v8048
    %v8209 = vmul.f32 %v8049, %v8049
    %v8210 = vmul.f32 %v8050, %v8050
    %v8211 = vmul.f32 %v8051, %v8051
    %v8212 = vmul.f32 %v8052, %v8052
    %v8213 = vmul.f32 %v8053, %v8053
    %v8214 = vmul.f32 %v8054, %v8054
    %v8215 = vmul.f32 %v8055, %v8055
    %v8216 = vmul.f32 %v8056, %v8056
    %v8217 = vmul.f32 %v8057, %v8057
    %v8218 = vmul.f32 %v8058, %v8058
    %v8219 = vmul.f32 %v8059, %v8059
    %v8220 = vmul.f32 %v8060, %v8060
    %v8221 = vmul.f32 %v8061, %v8061
    %v8222 = vmul.f32 %v8062, %v8062
    %v8223 = vmul.f32 %v8063, %v8063
    %v8224 = vmul.f32 %v8064, %v8064
    %v8225 = vsub.f32 %v8161, %v8193
    %v8226 = vsub.f32 %v8162, %v8194
    %v8227 = vsub.f32 %v8163, %v8195
    %v8228 = vsub.f32 %v8164, %v8196
    %v8229 = vsub.f32 %v8165, %v8197
    %v8230 = vsub.f32 %v8166, %v8198
    %v8231 = vsub.f32 %v8167, %v8199
    %v8232 = vsub.f32 %v8168, %v8200
    %v8233 = vsub.f32 %v8169, %v8201
    %v8234 = vsub.f32 %v8170, %v8202
    %v8235 = vsub.f32 %v8171, %v8203
    %v8236 = vsub.f32 %v8172, %v8204
    %v8237 = vsub.f32 %v8173, %v8205
    %v8238 = vsub.f32 %v8174, %v8206
    %v8239 = vsub.f32 %v8175, %v8207
    %v8240 = vsub.f32 %v8176, %v8208
    %v8241 = vsub.f32 %v8177, %v8209
    %v8242 = vsub.f32 %v8178, %v8210
    %v8243 = vsub.f32 %v8179, %v8211
    %v8244 = vsub.f32 %v8180, %v8212
    %v8245 = vsub.f32 %v8181, %v8213
    %v8246 = vsub.f32 %v8182, %v8214
    %v8247 = vsub.f32 %v8183, %v8215
    %v8248 = vsub.f32 %v8184, %v8216
    %v8249 = vsub.f32 %v8185, %v8217
    %v8250 = vsub.f32 %v8186, %v8218
    %v8251 = vsub.f32 %v8187, %v8219
    %v8252 = vsub.f32 %v8188, %v8220
    %v8253 = vsub.f32 %v8189, %v8221
    %v8254 = vsub.f32 %v8190, %v8222
    %v8255 = vsub.f32 %v8191, %v8223
    %v8256 = vsub.f32 %v8192, %v8224
    %v8257 = vmax.f32 %v8225, 0.0
    %v8258 = vmax.f32 %v8226, 0.0
    %v8259 = vmax.f32 %v8227, 0.0
    %v8260 = vmax.f32 %v8228, 0.0
    %v8261 = vmax.f32 %v8229, 0.0
    %v8262 = vmax.f32 %v8230, 0.0
    %v8263 = vmax.f32 %v8231, 0.0
    %v8264 = vmax.f32 %v8232, 0.0
    %v8265 = vmax.f32 %v8233, 0.0
    %v8266 = vmax.f32 %v8234, 0.0
    %v8267 = vmax.f32 %v8235, 0.0
    %v8268 = vmax.f32 %v8236, 0.0
    %v8269 = vmax.f32 %v8237, 0.0
    %v8270 = vmax.f32 %v8238, 0.0
    %v8271 = vmax.f32 %v8239, 0.0
    %v8272 = vmax.f32 %v8240, 0.0
    %v8273 = vmax.f32 %v8241, 0.0
    %v8274 = vmax.f32 %v8242, 0.0
    %v8275 = vmax.f32 %v8243, 0.0
    %v8276 = vmax.f32 %v8244, 0.0
    %v8277 = vmax.f32 %v8245, 0.0
    %v8278 = vmax.f32 %v8246, 0.0
    %v8279 = vmax.f32 %v8247, 0.0
    %v8280 = vmax.f32 %v8248, 0.0
    %v8281 = vmax.f32 %v8249, 0.0
    %v8282 = vmax.f32 %v8250, 0.0
    %v8283 = vmax.f32 %v8251, 0.0
    %v8284 = vmax.f32 %v8252, 0.0
    %v8285 = vmax.f32 %v8253, 0.0
    %v8286 = vmax.f32 %v8254, 0.0
    %v8287 = vmax.f32 %v8255, 0.0
    %v8288 = vmax.f32 %v8256, 0.0
    %v8289 = vsub.f32 %v7935, %v8033
    %v8290 = vsub.f32 %v7936, %v8034
    %v8291 = vsub.f32 %v7937, %v8035
    %v8292 = vsub.f32 %v7938, %v8036
    %v8293 = vsub.f32 %v7939, %v8037
    %v8294 = vsub.f32 %v7940, %v8038
    %v8295 = vsub.f32 %v7941, %v8039
    %v8296 = vsub.f32 %v7942, %v8040
    %v8297 = vsub.f32 %v7943, %v8041
    %v8298 = vsub.f32 %v7944, %v8042
    %v8299 = vsub.f32 %v7945, %v8043
    %v8300 = vsub.f32 %v7946, %v8044
    %v8301 = vsub.f32 %v7947, %v8045
    %v8302 = vsub.f32 %v7948, %v8046
    %v8303 = vsub.f32 %v7949, %v8047
    %v8304 = vsub.f32 %v7950, %v8048
    %v8305 = vsub.f32 %v7951, %v8049
    %v8306 = vsub.f32 %v7952, %v8050
    %v8307 = vsub.f32 %v7953, %v8051
    %v8308 = vsub.f32 %v7954, %v8052
    %v8309 = vsub.f32 %v7955, %v8053
    %v8310 = vsub.f32 %v7956, %v8054
    %v8311 = vsub.f32 %v7957, %v8055
    %v8312 = vsub.f32 %v7958, %v8056
    %v8313 = vsub.f32 %v7959, %v8057
    %v8314 = vsub.f32 %v7960, %v8058
    %v8315 = vsub.f32 %v7961, %v8059
    %v8316 = vsub.f32 %v7962, %v8060
    %v8317 = vsub.f32 %v7963, %v8061
    %v8318 = vsub.f32 %v7964, %v8062
    %v8319 = vsub.f32 %v7965, %v8063
    %v8320 = vsub.f32 %v7966, %v8064
    %v8321 = vadd.f32 %v8257, 1e-05
    %v8322 = vadd.f32 %v8258, 1e-05
    %v8323 = vadd.f32 %v8259, 1e-05
    %v8324 = vadd.f32 %v8260, 1e-05
    %v8325 = vadd.f32 %v8261, 1e-05
    %v8326 = vadd.f32 %v8262, 1e-05
    %v8327 = vadd.f32 %v8263, 1e-05
    %v8328 = vadd.f32 %v8264, 1e-05
    %v8329 = vadd.f32 %v8265, 1e-05
    %v8330 = vadd.f32 %v8266, 1e-05
    %v8331 = vadd.f32 %v8267, 1e-05
    %v8332 = vadd.f32 %v8268, 1e-05
    %v8333 = vadd.f32 %v8269, 1e-05
    %v8334 = vadd.f32 %v8270, 1e-05
    %v8335 = vadd.f32 %v8271, 1e-05
    %v8336 = vadd.f32 %v8272, 1e-05
    %v8337 = vadd.f32 %v8273, 1e-05
    %v8338 = vadd.f32 %v8274, 1e-05
    %v8339 = vadd.f32 %v8275, 1e-05
    %v8340 = vadd.f32 %v8276, 1e-05
    %v8341 = vadd.f32 %v8277, 1e-05
    %v8342 = vadd.f32 %v8278, 1e-05
    %v8343 = vadd.f32 %v8279, 1e-05
    %v8344 = vadd.f32 %v8280, 1e-05
    %v8345 = vadd.f32 %v8281, 1e-05
    %v8346 = vadd.f32 %v8282, 1e-05
    %v8347 = vadd.f32 %v8283, 1e-05
    %v8348 = vadd.f32 %v8284, 1e-05
    %v8349 = vadd.f32 %v8285, 1e-05
    %v8350 = vadd.f32 %v8286, 1e-05
    %v8351 = vadd.f32 %v8287, 1e-05
    %v8352 = vadd.f32 %v8288, 1e-05
    %v8353 = vrsqrt.pop %v8321
    %v8354 = vrsqrt.pop %v8322
    %v8355 = vrsqrt.pop %v8323
    %v8356 = vrsqrt.pop %v8324
    %v8357 = vrsqrt.pop %v8325
    %v8358 = vrsqrt.pop %v8326
    %v8359 = vrsqrt.pop %v8327
    %v8360 = vrsqrt.pop %v8328
    %v8361 = vrsqrt.pop %v8329
    %v8362 = vrsqrt.pop %v8330
    %v8363 = vrsqrt.pop %v8331
    %v8364 = vrsqrt.pop %v8332
    %v8365 = vrsqrt.pop %v8333
    %v8366 = vrsqrt.pop %v8334
    %v8367 = vrsqrt.pop %v8335
    %v8368 = vrsqrt.pop %v8336
    %v8369 = vrsqrt.pop %v8337
    %v8370 = vrsqrt.pop %v8338
    %v8371 = vrsqrt.pop %v8339
    %v8372 = vrsqrt.pop %v8340
    %v8373 = vrsqrt.pop %v8341
    %v8374 = vrsqrt.pop %v8342
    %v8375 = vrsqrt.pop %v8343
    %v8376 = vrsqrt.pop %v8344
    %v8377 = vrsqrt.pop %v8345
    %v8378 = vrsqrt.pop %v8346
    %v8379 = vrsqrt.pop %v8347
    %v8380 = vrsqrt.pop %v8348
    %v8381 = vrsqrt.pop %v8349
    %v8382 = vrsqrt.pop %v8350
    %v8383 = vrsqrt.pop %v8351
    %v8384 = vrsqrt.pop %v8352
    %v8385 = vmul.f32 %v8289, %v8353
    %v8386 = vmul.f32 %v8290, %v8354
    %v8387 = vmul.f32 %v8291, %v8355
    %v8388 = vmul.f32 %v8292, %v8356
    %v8389 = vmul.f32 %v8293, %v8357
    %v8390 = vmul.f32 %v8294, %v8358
    %v8391 = vmul.f32 %v8295, %v8359
    %v8392 = vmul.f32 %v8296, %v8360
    %v8393 = vmul.f32 %v8297, %v8361
    %v8394 = vmul.f32 %v8298, %v8362
    %v8395 = vmul.f32 %v8299, %v8363
    %v8396 = vmul.f32 %v8300, %v8364
    %v8397 = vmul.f32 %v8301, %v8365
    %v8398 = vmul.f32 %v8302, %v8366
    %v8399 = vmul.f32 %v8303, %v8367
    %v8400 = vmul.f32 %v8304, %v8368
    %v8401 = vmul.f32 %v8305, %v8369
    %v8402 = vmul.f32 %v8306, %v8370
    %v8403 = vmul.f32 %v8307, %v8371
    %v8404 = vmul.f32 %v8308, %v8372
    %v8405 = vmul.f32 %v8309, %v8373
    %v8406 = vmul.f32 %v8310, %v8374
    %v8407 = vmul.f32 %v8311, %v8375
    %v8408 = vmul.f32 %v8312, %v8376
    %v8409 = vmul.f32 %v8313, %v8377
    %v8410 = vmul.f32 %v8314, %v8378
    %v8411 = vmul.f32 %v8315, %v8379
    %v8412 = vmul.f32 %v8316, %v8380
    %v8413 = vmul.f32 %v8317, %v8381
    %v8414 = vmul.f32 %v8318, %v8382
    %v8415 = vmul.f32 %v8319, %v8383
    %v8416 = vmul.f32 %v8320, %v8384
    %v8418 = vlaneseq
    %v8419 = vshrl.u32 %v8418, 7
    %v8420 = vsub.s32 0, %v8419
    %v8421 = vrot.slane %v7967, %v8420
    %v8423 = vmul.f32 %v8385, %v8421
    %v8424 = vmul.f32 %v8386, %v8421
    %v8425 = vmul.f32 %v8387, %v8421
    %v8426 = vmul.f32 %v8388, %v8421
    %v8427 = vmul.f32 %v8389, %v8421
    %v8428 = vmul.f32 %v8390, %v8421
    %v8429 = vmul.f32 %v8391, %v8421
    %v8430 = vmul.f32 %v8392, %v8421
    %v8431 = vmul.f32 %v8393, %v8421
    %v8432 = vmul.f32 %v8394, %v8421
    %v8433 = vmul.f32 %v8395, %v8421
    %v8434 = vmul.f32 %v8396, %v8421
    %v8435 = vmul.f32 %v8397, %v8421
    %v8436 = vmul.f32 %v8398, %v8421
    %v8437 = vmul.f32 %v8399, %v8421
    %v8438 = vmul.f32 %v8400, %v8421
    %v8439 = vmul.f32 %v8401, %v8421
    %v8440 = vmul.f32 %v8402, %v8421
    %v8441 = vmul.f32 %v8403, %v8421
    %v8442 = vmul.f32 %v8404, %v8421
    %v8443 = vmul.f32 %v8405, %v8421
    %v8444 = vmul.f32 %v8406, %v8421
    %v8445 = vmul.f32 %v8407, %v8421
    %v8446 = vmul.f32 %v8408, %v8421
    %v8447 = vmul.f32 %v8409, %v8421
    %v8448 = vmul.f32 %v8410, %v8421
    %v8449 = vmul.f32 %v8411, %v8421
    %v8450 = vmul.f32 %v8412, %v8421
    %v8451 = vmul.f32 %v8413, %v8421
    %v8452 = vmul.f32 %v8414, %v8421
    %v8453 = vmul.f32 %v8415, %v8421
    %v8454 = vmul.f32 %v8416, %v8421
    %v8456 = vlaneseq
    %v8457 = vshrl.u32 %v8456, 7
    %v8458 = vsub.s32 0, %v8457
    %v8459 = vrot.slane %v7968, %v8458
    %v8461 = vadd.f32 %v8423, %v8459
    %v8462 = vadd.f32 %v8424, %v8459
    %v8463 = vadd.f32 %v8425, %v8459
    %v8464 = vadd.f32 %v8426, %v8459
    %v8465 = vadd.f32 %v8427, %v8459
    %v8466 = vadd.f32 %v8428, %v8459
    %v8467 = vadd.f32 %v8429, %v8459
    %v8468 = vadd.f32 %v8430, %v8459
    %v8469 = vadd.f32 %v8431, %v8459
    %v8470 = vadd.f32 %v8432, %v8459
    %v8471 = vadd.f32 %v8433, %v8459
    %v8472 = vadd.f32 %v8434, %v8459
    %v8473 = vadd.f32 %v8435, %v8459
    %v8474 = vadd.f32 %v8436, %v8459
    %v8475 = vadd.f32 %v8437, %v8459
    %v8476 = vadd.f32 %v8438, %v8459
    %v8477 = vadd.f32 %v8439, %v8459
    %v8478 = vadd.f32 %v8440, %v8459
    %v8479 = vadd.f32 %v8441, %v8459
    %v8480 = vadd.f32 %v8442, %v8459
    %v8481 = vadd.f32 %v8443, %v8459
    %v8482 = vadd.f32 %v8444, %v8459
    %v8483 = vadd.f32 %v8445, %v8459
    %v8484 = vadd.f32 %v8446, %v8459
    %v8485 = vadd.f32 %v8447, %v8459
    %v8486 = vadd.f32 %v8448, %v8459
    %v8487 = vadd.f32 %v8449, %v8459
    %v8488 = vadd.f32 %v8450, %v8459
    %v8489 = vadd.f32 %v8451, %v8459
    %v8490 = vadd.f32 %v8452, %v8459
    %v8491 = vadd.f32 %v8453, %v8459
    %v8492 = vadd.f32 %v8454, %v8459
    %v8493 = vpack.c.bf16 %v8462, %v8461
    %v8494 = vpack.c.bf16 %v8464, %v8463
    %v8495 = vpack.c.bf16 %v8466, %v8465
    %v8496 = vpack.c.bf16 %v8468, %v8467
    %v8497 = vpack.c.bf16 %v8470, %v8469
    %v8498 = vpack.c.bf16 %v8472, %v8471
    %v8499 = vpack.c.bf16 %v8474, %v8473
    %v8500 = vpack.c.bf16 %v8476, %v8475
    %v8501 = vpack.c.bf16 %v8478, %v8477
    %v8502 = vpack.c.bf16 %v8480, %v8479
    %v8503 = vpack.c.bf16 %v8482, %v8481
    %v8504 = vpack.c.bf16 %v8484, %v8483
    %v8505 = vpack.c.bf16 %v8486, %v8485
    %v8506 = vpack.c.bf16 %v8488, %v8487
    %v8507 = vpack.c.bf16 %v8490, %v8489
    %v8508 = vpack.c.bf16 %v8492, %v8491
    %v8509 = vld [vmem:[%s10] sm:$0xff]
    %v8510 = vld [vmem:[%s10 + $0x8] sm:$0xff]
    %v8511 = vld [vmem:[%s10 + $0x10] sm:$0xff]
    %v8512 = vld [vmem:[%s10 + $0x18] sm:$0xff]
    %v8513 = vld [vmem:[%s10 + $0x20] sm:$0xff]
    %v8514 = vld [vmem:[%s10 + $0x28] sm:$0xff]
    %v8515 = vld [vmem:[%s10 + $0x30] sm:$0xff]
    %v8516 = vld [vmem:[%s10 + $0x38] sm:$0xff]
    %v8517 = vld [vmem:[%s10 + $0x40] sm:$0xff]
    %v8518 = vld [vmem:[%s10 + $0x48] sm:$0xff]
    %v8519 = vld [vmem:[%s10 + $0x50] sm:$0xff]
    %v8520 = vld [vmem:[%s10 + $0x58] sm:$0xff]
    %v8521 = vld [vmem:[%s10 + $0x60] sm:$0xff]
    %v8522 = vld [vmem:[%s10 + $0x68] sm:$0xff]
    %v8523 = vld [vmem:[%s10 + $0x70] sm:$0xff]
    %v8524 = vld [vmem:[%s10 + $0x78] sm:$0xff]
    %v8525 = vld [vmem:[%s10 + $0x80] sm:$0xff]
    %v8526 = vld [vmem:[%s10 + $0x88] sm:$0xff]
    %v8527 = vld [vmem:[%s10 + $0x90] sm:$0xff]
    %v8528 = vld [vmem:[%s10 + $0x98] sm:$0xff]
    %v8529 = vld [vmem:[%s10 + $0xa0] sm:$0xff]
    %v8530 = vld [vmem:[%s10 + $0xa8] sm:$0xff]
    %v8531 = vld [vmem:[%s10 + $0xb0] sm:$0xff]
    %v8532 = vld [vmem:[%s10 + $0xb8] sm:$0xff]
    %v8533 = vld [vmem:[%s10 + $0xc0] sm:$0xff]
    %v8534 = vld [vmem:[%s10 + $0xc8] sm:$0xff]
    %v8535 = vld [vmem:[%s10 + $0xd0] sm:$0xff]
    %v8536 = vld [vmem:[%s10 + $0xd8] sm:$0xff]
    %v8537 = vld [vmem:[%s10 + $0xe0] sm:$0xff]
    %v8538 = vld [vmem:[%s10 + $0xe8] sm:$0xff]
    %v8539 = vld [vmem:[%s10 + $0xf0] sm:$0xff]
    %v8540 = vld [vmem:[%s10 + $0xf8] sm:$0xff]
    %v8541 = vld [vmem:[%s11] sm:$0xf]
    %v8543 = vlaneseq
    %v8544 = vshrl.u32 %v8543, 7
    %v8545 = vsub.s32 0, %v8544
    %v8546 = vrot.slane %v8541, %v8545
    %v8547 = vlaneseq
    %v8548 = vshrl.u32 %v8547, 7
    %v8549 = vsub.s32 1, %v8548
    %v8550 = vrot.slane %v8541, %v8549
    %v8551 = vlaneseq
    %v8552 = vshrl.u32 %v8551, 7
    %v8553 = vsub.s32 2, %v8552
    %v8554 = vrot.slane %v8541, %v8553
    %v8555 = vlaneseq
    %v8556 = vshrl.u32 %v8555, 7
    %v8557 = vsub.s32 3, %v8556
    %v8558 = vrot.slane %v8541, %v8557
    %v8595 = vunpack.c.l.b16 %v8509
    %v8596 = vunpack.c.h.b16 %v8509
    %v8597 = vunpack.c.l.b16 %v8510
    %v8598 = vunpack.c.h.b16 %v8510
    %v8599 = vunpack.c.l.b16 %v8511
    %v8600 = vunpack.c.h.b16 %v8511
    %v8601 = vunpack.c.l.b16 %v8512
    %v8602 = vunpack.c.h.b16 %v8512
    %v8603 = vunpack.c.l.b16 %v8513
    %v8604 = vunpack.c.h.b16 %v8513
    %v8605 = vunpack.c.l.b16 %v8514
    %v8606 = vunpack.c.h.b16 %v8514
    %v8607 = vunpack.c.l.b16 %v8515
    %v8608 = vunpack.c.h.b16 %v8515
    %v8609 = vunpack.c.l.b16 %v8516
    %v8610 = vunpack.c.h.b16 %v8516
    %v8611 = vunpack.c.l.b16 %v8517
    %v8612 = vunpack.c.h.b16 %v8517
    %v8613 = vunpack.c.l.b16 %v8518
    %v8614 = vunpack.c.h.b16 %v8518
    %v8615 = vunpack.c.l.b16 %v8519
    %v8616 = vunpack.c.h.b16 %v8519
    %v8617 = vunpack.c.l.b16 %v8520
    %v8618 = vunpack.c.h.b16 %v8520
    %v8619 = vunpack.c.l.b16 %v8521
    %v8620 = vunpack.c.h.b16 %v8521
    %v8621 = vunpack.c.l.b16 %v8522
    %v8622 = vunpack.c.h.b16 %v8522
    %v8623 = vunpack.c.l.b16 %v8523
    %v8624 = vunpack.c.h.b16 %v8523
    %v8625 = vunpack.c.l.b16 %v8524
    %v8626 = vunpack.c.h.b16 %v8524
    %v8627 = vunpack.c.l.b16 %v8525
    %v8628 = vunpack.c.h.b16 %v8525
    %v8629 = vunpack.c.l.b16 %v8526
    %v8630 = vunpack.c.h.b16 %v8526
    %v8631 = vunpack.c.l.b16 %v8527
    %v8632 = vunpack.c.h.b16 %v8527
    %v8633 = vunpack.c.l.b16 %v8528
    %v8634 = vunpack.c.h.b16 %v8528
    %v8635 = vunpack.c.l.b16 %v8529
    %v8636 = vunpack.c.h.b16 %v8529
    %v8637 = vunpack.c.l.b16 %v8530
    %v8638 = vunpack.c.h.b16 %v8530
    %v8639 = vunpack.c.l.b16 %v8531
    %v8640 = vunpack.c.h.b16 %v8531
    %v8641 = vunpack.c.l.b16 %v8532
    %v8642 = vunpack.c.h.b16 %v8532
    %v8643 = vunpack.c.l.b16 %v8533
    %v8644 = vunpack.c.h.b16 %v8533
    %v8645 = vunpack.c.l.b16 %v8534
    %v8646 = vunpack.c.h.b16 %v8534
    %v8647 = vunpack.c.l.b16 %v8535
    %v8648 = vunpack.c.h.b16 %v8535
    %v8649 = vunpack.c.l.b16 %v8536
    %v8650 = vunpack.c.h.b16 %v8536
    %v8651 = vunpack.c.l.b16 %v8537
    %v8652 = vunpack.c.h.b16 %v8537
    %v8653 = vunpack.c.l.b16 %v8538
    %v8654 = vunpack.c.h.b16 %v8538
    %v8655 = vunpack.c.l.b16 %v8539
    %v8656 = vunpack.c.h.b16 %v8539
    %v8657 = vunpack.c.l.b16 %v8540
    %v8658 = vunpack.c.h.b16 %v8540
    %v8659 = vpack.c.b16 %v8599, %v8595
    %v8660 = vpack.c.b16 %v8600, %v8596
    %v8661 = vpack.c.b16 %v8601, %v8597
    %v8662 = vpack.c.b16 %v8602, %v8598
    %v8663 = vpack.c.b16 %v8607, %v8603
    %v8664 = vpack.c.b16 %v8608, %v8604
    %v8665 = vpack.c.b16 %v8609, %v8605
    %v8666 = vpack.c.b16 %v8610, %v8606
    %v8667 = vpack.c.b16 %v8615, %v8611
    %v8668 = vpack.c.b16 %v8616, %v8612
    %v8669 = vpack.c.b16 %v8617, %v8613
    %v8670 = vpack.c.b16 %v8618, %v8614
    %v8671 = vpack.c.b16 %v8623, %v8619
    %v8672 = vpack.c.b16 %v8624, %v8620
    %v8673 = vpack.c.b16 %v8625, %v8621
    %v8674 = vpack.c.b16 %v8626, %v8622
    %v8675 = vpack.c.b16 %v8631, %v8627
    %v8676 = vpack.c.b16 %v8632, %v8628
    %v8677 = vpack.c.b16 %v8633, %v8629
    %v8678 = vpack.c.b16 %v8634, %v8630
    %v8679 = vpack.c.b16 %v8639, %v8635
    %v8680 = vpack.c.b16 %v8640, %v8636
    %v8681 = vpack.c.b16 %v8641, %v8637
    %v8682 = vpack.c.b16 %v8642, %v8638
    %v8683 = vpack.c.b16 %v8647, %v8643
    %v8684 = vpack.c.b16 %v8648, %v8644
    %v8685 = vpack.c.b16 %v8649, %v8645
    %v8686 = vpack.c.b16 %v8650, %v8646
    %v8687 = vpack.c.b16 %v8655, %v8651
    %v8688 = vpack.c.b16 %v8656, %v8652
    %v8689 = vpack.c.b16 %v8657, %v8653
    %v8690 = vpack.c.b16 %v8658, %v8654
    %8723 = vmatprep.subr.bf16.mxu0 %v8660
    %8724 = vmatpush1.bf16.msra.mxu0 %v8659
    %8725 = vmatprep.subr.bf16.mxu0 %v8664
    %8726 = vmatpush1.bf16.msra.mxu0 %v8663
    %8727 = vmatprep.subr.bf16.mxu0 %v8668
    %8728 = vmatpush1.bf16.msra.mxu0 %v8667
    %8729 = vmatprep.subr.bf16.mxu0 %v8672
    %8730 = vmatpush1.bf16.msra.mxu0 %v8671
    %8731 = vmatprep.subr.bf16.mxu0 %v8676
    %8732 = vmatpush1.bf16.msra.mxu0 %v8675
    %8733 = vmatprep.subr.bf16.mxu0 %v8680
    %8734 = vmatpush1.bf16.msra.mxu0 %v8679
    %8735 = vmatprep.subr.bf16.mxu0 %v8684
    %8736 = vmatpush1.bf16.msra.mxu0 %v8683
    %8737 = vmatprep.subr.bf16.mxu0 %v8688
    %8738 = vmatpush1.bf16.msra.mxu0 %v8687
    %8739 = vmatprep.subr.bf16.mxu0 0
    %8740 = vmatpush1.bf16.msra.mxu0 0
    %8741 = vmatprep.subr.bf16.mxu0 0
    %8742 = vmatpush1.bf16.msra.mxu0 0
    %8743 = vmatprep.subr.bf16.mxu0 0
    %8744 = vmatpush1.bf16.msra.mxu0 0
    %8745 = vmatprep.subr.bf16.mxu0 0
    %8746 = vmatpush1.bf16.msra.mxu0 0
    %8747 = vmatprep.subr.bf16.mxu0 0
    %8748 = vmatpush1.bf16.msra.mxu0 0
    %8749 = vmatprep.subr.bf16.mxu0 0
    %8750 = vmatpush1.bf16.msra.mxu0 0
    %8751 = vmatprep.subr.bf16.mxu0 0
    %8752 = vmatpush1.bf16.msra.mxu0 0
    %8753 = vmatprep.subr.bf16.mxu0 0
    %8754 = vmatpush1.bf16.msra.mxu0 0
    %8755 = vmatprep.mubr.bf16.mxu0 0
    %8756 = vmatmul.mubr.bf16.gmra.mrb[0].mxu0 %v8493
    %v8757 = vpop.f32.mrb[0].mxu0
    %v8758 = vadd.f32 %v8546, %v8757
    %v8759 = vpop.f32.mrb[0].mxu0
    %v8760 = vadd.f32 %v8550, %v8759
    %v8761 = vpop.f32.mrb[0].mxu0
    %v8762 = vadd.f32 %v8546, %v8761
    %v8763 = vpop.f32.mrb[0].mxu0
    %v8764 = vadd.f32 %v8550, %v8763
    %8765 = vmatprep.mubr.bf16.mxu0 0
    %8766 = vmatmul.mubr.bf16.gmra.mrb[0].mxu0 %v8494
    %v8767 = vpop.f32.mrb[0].mxu0
    %v8768 = vadd.f32 %v8546, %v8767
    %v8769 = vpop.f32.mrb[0].mxu0
    %v8770 = vadd.f32 %v8550, %v8769
    %v8771 = vpop.f32.mrb[0].mxu0
    %v8772 = vadd.f32 %v8546, %v8771
    %v8773 = vpop.f32.mrb[0].mxu0
    %v8774 = vadd.f32 %v8550, %v8773
    %8775 = vmatprep.mubr.bf16.mxu0 0
    %8776 = vmatmul.mubr.bf16.gmra.mrb[0].mxu0 %v8495
    %v8777 = vpop.f32.mrb[0].mxu0
    %v8778 = vadd.f32 %v8546, %v8777
    %v8779 = vpop.f32.mrb[0].mxu0
    %v8780 = vadd.f32 %v8550, %v8779
    %v8781 = vpop.f32.mrb[0].mxu0
    %v8782 = vadd.f32 %v8546, %v8781
    %v8783 = vpop.f32.mrb[0].mxu0
    %v8784 = vadd.f32 %v8550, %v8783
    %8785 = vmatprep.mubr.bf16.mxu0 0
    %8786 = vmatmul.mubr.bf16.gmra.mrb[0].mxu0 %v8496
    %v8787 = vpop.f32.mrb[0].mxu0
    %v8788 = vadd.f32 %v8546, %v8787
    %v8789 = vpop.f32.mrb[0].mxu0
    %v8790 = vadd.f32 %v8550, %v8789
    %v8791 = vpop.f32.mrb[0].mxu0
    %v8792 = vadd.f32 %v8546, %v8791
    %v8793 = vpop.f32.mrb[0].mxu0
    %v8794 = vadd.f32 %v8550, %v8793
    %8795 = vmatprep.mubr.bf16.mxu0 0
    %8796 = vmatmul.mubr.bf16.gmra.mrb[0].mxu0 %v8497
    %v8797 = vpop.f32.mrb[0].mxu0
    %v8798 = vadd.f32 %v8546, %v8797
    %v8799 = vpop.f32.mrb[0].mxu0
    %v8800 = vadd.f32 %v8550, %v8799
    %v8801 = vpop.f32.mrb[0].mxu0
    %v8802 = vadd.f32 %v8546, %v8801
    %v8803 = vpop.f32.mrb[0].mxu0
    %v8804 = vadd.f32 %v8550, %v8803
    %8805 = vmatprep.mubr.bf16.mxu0 0
    %8806 = vmatmul.mubr.bf16.gmra.mrb[0].mxu0 %v8498
    %v8807 = vpop.f32.mrb[0].mxu0
    %v8808 = vadd.f32 %v8546, %v8807
    %v8809 = vpop.f32.mrb[0].mxu0
    %v8810 = vadd.f32 %v8550, %v8809
    %v8811 = vpop.f32.mrb[0].mxu0
    %v8812 = vadd.f32 %v8546, %v8811
    %v8813 = vpop.f32.mrb[0].mxu0
    %v8814 = vadd.f32 %v8550, %v8813
    %8815 = vmatprep.mubr.bf16.mxu0 0
    %8816 = vmatmul.mubr.bf16.gmra.mrb[0].mxu0 %v8499
    %v8817 = vpop.f32.mrb[0].mxu0
    %v8818 = vadd.f32 %v8546, %v8817
    %v8819 = vpop.f32.mrb[0].mxu0
    %v8820 = vadd.f32 %v8550, %v8819
    %v8821 = vpop.f32.mrb[0].mxu0
    %v8822 = vadd.f32 %v8546, %v8821
    %v8823 = vpop.f32.mrb[0].mxu0
    %v8824 = vadd.f32 %v8550, %v8823
    %8825 = vmatprep.mubr.bf16.mxu0 0
    %8826 = vmatmul.mubr.bf16.gmra.mrb[0].mxu0 %v8500
    %v8827 = vpop.f32.mrb[0].mxu0
    %v8828 = vadd.f32 %v8546, %v8827
    %v8829 = vpop.f32.mrb[0].mxu0
    %v8830 = vadd.f32 %v8550, %v8829
    %v8831 = vpop.f32.mrb[0].mxu0
    %v8832 = vadd.f32 %v8546, %v8831
    %v8833 = vpop.f32.mrb[0].mxu0
    %v8834 = vadd.f32 %v8550, %v8833
    %8835 = vmatprep.mubr.bf16.mxu0 0
    %8836 = vmatmul.mubr.bf16.gmra.mrb[0].mxu0 %v8501
    %v8837 = vpop.f32.mrb[0].mxu0
    %v8838 = vadd.f32 %v8546, %v8837
    %v8839 = vpop.f32.mrb[0].mxu0
    %v8840 = vadd.f32 %v8550, %v8839
    %v8841 = vpop.f32.mrb[0].mxu0
    %v8842 = vadd.f32 %v8546, %v8841
    %v8843 = vpop.f32.mrb[0].mxu0
    %v8844 = vadd.f32 %v8550, %v8843
    %8845 = vmatprep.mubr.bf16.mxu0 0
    %8846 = vmatmul.mubr.bf16.gmra.mrb[0].mxu0 %v8502
    %v8847 = vpop.f32.mrb[0].mxu0
    %v8848 = vadd.f32 %v8546, %v8847
    %v8849 = vpop.f32.mrb[0].mxu0
    %v8850 = vadd.f32 %v8550, %v8849
    %v8851 = vpop.f32.mrb[0].mxu0
    %v8852 = vadd.f32 %v8546, %v8851
    %v8853 = vpop.f32.mrb[0].mxu0
    %v8854 = vadd.f32 %v8550, %v8853
    %8855 = vmatprep.mubr.bf16.mxu0 0
    %8856 = vmatmul.mubr.bf16.gmra.mrb[0].mxu0 %v8503
    %v8857 = vpop.f32.mrb[0].mxu0
    %v8858 = vadd.f32 %v8546, %v8857
    %v8859 = vpop.f32.mrb[0].mxu0
    %v8860 = vadd.f32 %v8550, %v8859
    %v8861 = vpop.f32.mrb[0].mxu0
    %v8862 = vadd.f32 %v8546, %v8861
    %v8863 = vpop.f32.mrb[0].mxu0
    %v8864 = vadd.f32 %v8550, %v8863
    %8865 = vmatprep.mubr.bf16.mxu0 0
    %8866 = vmatmul.mubr.bf16.gmra.mrb[0].mxu0 %v8504
    %v8867 = vpop.f32.mrb[0].mxu0
    %v8868 = vadd.f32 %v8546, %v8867
    %v8869 = vpop.f32.mrb[0].mxu0
    %v8870 = vadd.f32 %v8550, %v8869
    %v8871 = vpop.f32.mrb[0].mxu0
    %v8872 = vadd.f32 %v8546, %v8871
    %v8873 = vpop.f32.mrb[0].mxu0
    %v8874 = vadd.f32 %v8550, %v8873
    %8875 = vmatprep.mubr.bf16.mxu0 0
    %8876 = vmatmul.mubr.bf16.gmra.mrb[0].mxu0 %v8505
    %v8877 = vpop.f32.mrb[0].mxu0
    %v8878 = vadd.f32 %v8546, %v8877
    %v8879 = vpop.f32.mrb[0].mxu0
    %v8880 = vadd.f32 %v8550, %v8879
    %v8881 = vpop.f32.mrb[0].mxu0
    %v8882 = vadd.f32 %v8546, %v8881
    %v8883 = vpop.f32.mrb[0].mxu0
    %v8884 = vadd.f32 %v8550, %v8883
    %8885 = vmatprep.mubr.bf16.mxu0 0
    %8886 = vmatmul.mubr.bf16.gmra.mrb[0].mxu0 %v8506
    %v8887 = vpop.f32.mrb[0].mxu0
    %v8888 = vadd.f32 %v8546, %v8887
    %v8889 = vpop.f32.mrb[0].mxu0
    %v8890 = vadd.f32 %v8550, %v8889
    %v8891 = vpop.f32.mrb[0].mxu0
    %v8892 = vadd.f32 %v8546, %v8891
    %v8893 = vpop.f32.mrb[0].mxu0
    %v8894 = vadd.f32 %v8550, %v8893
    %8895 = vmatprep.mubr.bf16.mxu0 0
    %8896 = vmatmul.mubr.bf16.gmra.mrb[0].mxu0 %v8507
    %v8897 = vpop.f32.mrb[0].mxu0
    %v8898 = vadd.f32 %v8546, %v8897
    %v8899 = vpop.f32.mrb[0].mxu0
    %v8900 = vadd.f32 %v8550, %v8899
    %v8901 = vpop.f32.mrb[0].mxu0
    %v8902 = vadd.f32 %v8546, %v8901
    %v8903 = vpop.f32.mrb[0].mxu0
    %v8904 = vadd.f32 %v8550, %v8903
    %8905 = vmatprep.mubr.bf16.mxu0 0
    %8906 = vmatmul.mubr.bf16.gmra.mrb[0].mxu0 %v8508
    %v8907 = vpop.f32.mrb[0].mxu0
    %v8908 = vadd.f32 %v8546, %v8907
    %v8909 = vpop.f32.mrb[0].mxu0
    %v8910 = vadd.f32 %v8550, %v8909
    %v8911 = vpop.f32.mrb[0].mxu0
    %v8912 = vadd.f32 %v8546, %v8911
    %v8913 = vpop.f32.mrb[0].mxu0
    %v8914 = vadd.f32 %v8550, %v8913
    %8915 = vdwg.mxu0
    %8916 = vmatprep.subr.bf16.mxu0 %v8662
    %8917 = vmatpush1.bf16.msra.mxu0 %v8661
    %8918 = vmatprep.subr.bf16.mxu0 %v8666
    %8919 = vmatpush1.bf16.msra.mxu0 %v8665
    %8920 = vmatprep.subr.bf16.mxu0 %v8670
    %8921 = vmatpush1.bf16.msra.mxu0 %v8669
    %8922 = vmatprep.subr.bf16.mxu0 %v8674
    %8923 = vmatpush1.bf16.msra.mxu0 %v8673
    %8924 = vmatprep.subr.bf16.mxu0 %v8678
    %8925 = vmatpush1.bf16.msra.mxu0 %v8677
    %8926 = vmatprep.subr.bf16.mxu0 %v8682
    %8927 = vmatpush1.bf16.msra.mxu0 %v8681
    %8928 = vmatprep.subr.bf16.mxu0 %v8686
    %8929 = vmatpush1.bf16.msra.mxu0 %v8685
    %8930 = vmatprep.subr.bf16.mxu0 %v8690
    %8931 = vmatpush1.bf16.msra.mxu0 %v8689
    %8932 = vmatprep.subr.bf16.mxu0 0
    %8933 = vmatpush1.bf16.msra.mxu0 0
    %8934 = vmatprep.subr.bf16.mxu0 0
    %8935 = vmatpush1.bf16.msra.mxu0 0
    %8936 = vmatprep.subr.bf16.mxu0 0
    %8937 = vmatpush1.bf16.msra.mxu0 0
    %8938 = vmatprep.subr.bf16.mxu0 0
    %8939 = vmatpush1.bf16.msra.mxu0 0
    %8940 = vmatprep.subr.bf16.mxu0 0
    %8941 = vmatpush1.bf16.msra.mxu0 0
    %8942 = vmatprep.subr.bf16.mxu0 0
    %8943 = vmatpush1.bf16.msra.mxu0 0
    %8944 = vmatprep.subr.bf16.mxu0 0
    %8945 = vmatpush1.bf16.msra.mxu0 0
    %8946 = vmatprep.subr.bf16.mxu0 0
    %8947 = vmatpush1.bf16.msra.mxu0 0
    %8948 = vmatprep.mubr.bf16.mxu0 0
    %8949 = vmatmul.mubr.bf16.gmra.mrb[0].mxu0 %v8493
    %v8950 = vpop.f32.mrb[0].mxu0
    %v8951 = vadd.f32 %v8554, %v8950
    %v8952 = vpop.f32.mrb[0].mxu0
    %v8953 = vadd.f32 %v8558, %v8952
    %v8954 = vpop.f32.mrb[0].mxu0
    %v8955 = vadd.f32 %v8554, %v8954
    %v8956 = vpop.f32.mrb[0].mxu0
    %v8957 = vadd.f32 %v8558, %v8956
    %8958 = vmatprep.mubr.bf16.mxu0 0
    %8959 = vmatmul.mubr.bf16.gmra.mrb[0].mxu0 %v8494
    %v8960 = vpop.f32.mrb[0].mxu0
    %v8961 = vadd.f32 %v8554, %v8960
    %v8962 = vpop.f32.mrb[0].mxu0
    %v8963 = vadd.f32 %v8558, %v8962
    %v8964 = vpop.f32.mrb[0].mxu0
    %v8965 = vadd.f32 %v8554, %v8964
    %v8966 = vpop.f32.mrb[0].mxu0
    %v8967 = vadd.f32 %v8558, %v8966
    %8968 = vmatprep.mubr.bf16.mxu0 0
    %8969 = vmatmul.mubr.bf16.gmra.mrb[0].mxu0 %v8495
    %v8970 = vpop.f32.mrb[0].mxu0
    %v8971 = vadd.f32 %v8554, %v8970
    %v8972 = vpop.f32.mrb[0].mxu0
    %v8973 = vadd.f32 %v8558, %v8972
    %v8974 = vpop.f32.mrb[0].mxu0
    %v8975 = vadd.f32 %v8554, %v8974
    %v8976 = vpop.f32.mrb[0].mxu0
    %v8977 = vadd.f32 %v8558, %v8976
    %8978 = vmatprep.mubr.bf16.mxu0 0
    %8979 = vmatmul.mubr.bf16.gmra.mrb[0].mxu0 %v8496
    %v8980 = vpop.f32.mrb[0].mxu0
    %v8981 = vadd.f32 %v8554, %v8980
    %v8982 = vpop.f32.mrb[0].mxu0
    %v8983 = vadd.f32 %v8558, %v8982
    %v8984 = vpop.f32.mrb[0].mxu0
    %v8985 = vadd.f32 %v8554, %v8984
    %v8986 = vpop.f32.mrb[0].mxu0
    %v8987 = vadd.f32 %v8558, %v8986
    %8988 = vmatprep.mubr.bf16.mxu0 0
    %8989 = vmatmul.mubr.bf16.gmra.mrb[0].mxu0 %v8497
    %v8990 = vpop.f32.mrb[0].mxu0
    %v8991 = vadd.f32 %v8554, %v8990
    %v8992 = vpop.f32.mrb[0].mxu0
    %v8993 = vadd.f32 %v8558, %v8992
    %v8994 = vpop.f32.mrb[0].mxu0
    %v8995 = vadd.f32 %v8554, %v8994
    %v8996 = vpop.f32.mrb[0].mxu0
    %v8997 = vadd.f32 %v8558, %v8996
    %8998 = vmatprep.mubr.bf16.mxu0 0
    %8999 = vmatmul.mubr.bf16.gmra.mrb[0].mxu0 %v8498
    %v9000 = vpop.f32.mrb[0].mxu0
    %v9001 = vadd.f32 %v8554, %v9000
    %v9002 = vpop.f32.mrb[0].mxu0
    %v9003 = vadd.f32 %v8558, %v9002
    %v9004 = vpop.f32.mrb[0].mxu0
    %v9005 = vadd.f32 %v8554, %v9004
    %v9006 = vpop.f32.mrb[0].mxu0
    %v9007 = vadd.f32 %v8558, %v9006
    %9008 = vmatprep.mubr.bf16.mxu0 0
    %9009 = vmatmul.mubr.bf16.gmra.mrb[0].mxu0 %v8499
    %v9010 = vpop.f32.mrb[0].mxu0
    %v9011 = vadd.f32 %v8554, %v9010
    %v9012 = vpop.f32.mrb[0].mxu0
    %v9013 = vadd.f32 %v8558, %v9012
    %v9014 = vpop.f32.mrb[0].mxu0
    %v9015 = vadd.f32 %v8554, %v9014
    %v9016 = vpop.f32.mrb[0].mxu0
    %v9017 = vadd.f32 %v8558, %v9016
    %9018 = vmatprep.mubr.bf16.mxu0 0
    %9019 = vmatmul.mubr.bf16.gmra.mrb[0].mxu0 %v8500
    %v9020 = vpop.f32.mrb[0].mxu0
    %v9021 = vadd.f32 %v8554, %v9020
    %v9022 = vpop.f32.mrb[0].mxu0
    %v9023 = vadd.f32 %v8558, %v9022
    %v9024 = vpop.f32.mrb[0].mxu0
    %v9025 = vadd.f32 %v8554, %v9024
    %v9026 = vpop.f32.mrb[0].mxu0
    %v9027 = vadd.f32 %v8558, %v9026
    %9028 = vmatprep.mubr.bf16.mxu0 0
    %9029 = vmatmul.mubr.bf16.gmra.mrb[0].mxu0 %v8501
    %v9030 = vpop.f32.mrb[0].mxu0
    %v9031 = vadd.f32 %v8554, %v9030
    %v9032 = vpop.f32.mrb[0].mxu0
    %v9033 = vadd.f32 %v8558, %v9032
    %v9034 = vpop.f32.mrb[0].mxu0
    %v9035 = vadd.f32 %v8554, %v9034
    %v9036 = vpop.f32.mrb[0].mxu0
    %v9037 = vadd.f32 %v8558, %v9036
    %9038 = vmatprep.mubr.bf16.mxu0 0
    %9039 = vmatmul.mubr.bf16.gmra.mrb[0].mxu0 %v8502
    %v9040 = vpop.f32.mrb[0].mxu0
    %v9041 = vadd.f32 %v8554, %v9040
    %v9042 = vpop.f32.mrb[0].mxu0
    %v9043 = vadd.f32 %v8558, %v9042
    %v9044 = vpop.f32.mrb[0].mxu0
    %v9045 = vadd.f32 %v8554, %v9044
    %v9046 = vpop.f32.mrb[0].mxu0
    %v9047 = vadd.f32 %v8558, %v9046
    %9048 = vmatprep.mubr.bf16.mxu0 0
    %9049 = vmatmul.mubr.bf16.gmra.mrb[0].mxu0 %v8503
    %v9050 = vpop.f32.mrb[0].mxu0
    %v9051 = vadd.f32 %v8554, %v9050
    %v9052 = vpop.f32.mrb[0].mxu0
    %v9053 = vadd.f32 %v8558, %v9052
    %v9054 = vpop.f32.mrb[0].mxu0
    %v9055 = vadd.f32 %v8554, %v9054
    %v9056 = vpop.f32.mrb[0].mxu0
    %v9057 = vadd.f32 %v8558, %v9056
    %9058 = vmatprep.mubr.bf16.mxu0 0
    %9059 = vmatmul.mubr.bf16.gmra.mrb[0].mxu0 %v8504
    %v9060 = vpop.f32.mrb[0].mxu0
    %v9061 = vadd.f32 %v8554, %v9060
    %v9062 = vpop.f32.mrb[0].mxu0
    %v9063 = vadd.f32 %v8558, %v9062
    %v9064 = vpop.f32.mrb[0].mxu0
    %v9065 = vadd.f32 %v8554, %v9064
    %v9066 = vpop.f32.mrb[0].mxu0
    %v9067 = vadd.f32 %v8558, %v9066
    %9068 = vmatprep.mubr.bf16.mxu0 0
    %9069 = vmatmul.mubr.bf16.gmra.mrb[0].mxu0 %v8505
    %v9070 = vpop.f32.mrb[0].mxu0
    %v9071 = vadd.f32 %v8554, %v9070
    %v9072 = vpop.f32.mrb[0].mxu0
    %v9073 = vadd.f32 %v8558, %v9072
    %v9074 = vpop.f32.mrb[0].mxu0
    %v9075 = vadd.f32 %v8554, %v9074
    %v9076 = vpop.f32.mrb[0].mxu0
    %v9077 = vadd.f32 %v8558, %v9076
    %9078 = vmatprep.mubr.bf16.mxu0 0
    %9079 = vmatmul.mubr.bf16.gmra.mrb[0].mxu0 %v8506
    %v9080 = vpop.f32.mrb[0].mxu0
    %v9081 = vadd.f32 %v8554, %v9080
    %v9082 = vpop.f32.mrb[0].mxu0
    %v9083 = vadd.f32 %v8558, %v9082
    %v9084 = vpop.f32.mrb[0].mxu0
    %v9085 = vadd.f32 %v8554, %v9084
    %v9086 = vpop.f32.mrb[0].mxu0
    %v9087 = vadd.f32 %v8558, %v9086
    %9088 = vmatprep.mubr.bf16.mxu0 0
    %9089 = vmatmul.mubr.bf16.gmra.mrb[0].mxu0 %v8507
    %v9090 = vpop.f32.mrb[0].mxu0
    %v9091 = vadd.f32 %v8554, %v9090
    %v9092 = vpop.f32.mrb[0].mxu0
    %v9093 = vadd.f32 %v8558, %v9092
    %v9094 = vpop.f32.mrb[0].mxu0
    %v9095 = vadd.f32 %v8554, %v9094
    %v9096 = vpop.f32.mrb[0].mxu0
    %v9097 = vadd.f32 %v8558, %v9096
    %9098 = vmatprep.mubr.bf16.mxu0 0
    %9099 = vmatmul.mubr.bf16.gmra.mrb[0].mxu0 %v8508
    %v9100 = vpop.f32.mrb[0].mxu0
    %v9101 = vadd.f32 %v8554, %v9100
    %v9102 = vpop.f32.mrb[0].mxu0
    %v9103 = vadd.f32 %v8558, %v9102
    %v9104 = vpop.f32.mrb[0].mxu0
    %v9105 = vadd.f32 %v8554, %v9104
    %v9106 = vpop.f32.mrb[0].mxu0
    %v9107 = vadd.f32 %v8558, %v9106
    %9108 = vdwg.mxu0
    %v9109 = vmax.f32 %v8758, 0.0
    %v9110 = vmax.f32 %v8760, 0.0
    %v9111 = vmax.f32 %v8951, 0.0
    %v9112 = vmax.f32 %v8953, 0.0
    %v9113 = vmax.f32 %v8762, 0.0
    %v9114 = vmax.f32 %v8764, 0.0
    %v9115 = vmax.f32 %v8955, 0.0
    %v9116 = vmax.f32 %v8957, 0.0
    %v9117 = vmax.f32 %v8768, 0.0
    %v9118 = vmax.f32 %v8770, 0.0
    %v9119 = vmax.f32 %v8961, 0.0
    %v9120 = vmax.f32 %v8963, 0.0
    %v9121 = vmax.f32 %v8772, 0.0
    %v9122 = vmax.f32 %v8774, 0.0
    %v9123 = vmax.f32 %v8965, 0.0
    %v9124 = vmax.f32 %v8967, 0.0
    %v9125 = vmax.f32 %v8778, 0.0
    %v9126 = vmax.f32 %v8780, 0.0
    %v9127 = vmax.f32 %v8971, 0.0
    %v9128 = vmax.f32 %v8973, 0.0
    %v9129 = vmax.f32 %v8782, 0.0
    %v9130 = vmax.f32 %v8784, 0.0
    %v9131 = vmax.f32 %v8975, 0.0
    %v9132 = vmax.f32 %v8977, 0.0
    %v9133 = vmax.f32 %v8788, 0.0
    %v9134 = vmax.f32 %v8790, 0.0
    %v9135 = vmax.f32 %v8981, 0.0
    %v9136 = vmax.f32 %v8983, 0.0
    %v9137 = vmax.f32 %v8792, 0.0
    %v9138 = vmax.f32 %v8794, 0.0
    %v9139 = vmax.f32 %v8985, 0.0
    %v9140 = vmax.f32 %v8987, 0.0
    %v9141 = vmax.f32 %v8798, 0.0
    %v9142 = vmax.f32 %v8800, 0.0
    %v9143 = vmax.f32 %v8991, 0.0
    %v9144 = vmax.f32 %v8993, 0.0
    %v9145 = vmax.f32 %v8802, 0.0
    %v9146 = vmax.f32 %v8804, 0.0
    %v9147 = vmax.f32 %v8995, 0.0
    %v9148 = vmax.f32 %v8997, 0.0
    %v9149 = vmax.f32 %v8808, 0.0
    %v9150 = vmax.f32 %v8810, 0.0
    %v9151 = vmax.f32 %v9001, 0.0
    %v9152 = vmax.f32 %v9003, 0.0
    %v9153 = vmax.f32 %v8812, 0.0
    %v9154 = vmax.f32 %v8814, 0.0
    %v9155 = vmax.f32 %v9005, 0.0
    %v9156 = vmax.f32 %v9007, 0.0
    %v9157 = vmax.f32 %v8818, 0.0
    %v9158 = vmax.f32 %v8820, 0.0
    %v9159 = vmax.f32 %v9011, 0.0
    %v9160 = vmax.f32 %v9013, 0.0
    %v9161 = vmax.f32 %v8822, 0.0
    %v9162 = vmax.f32 %v8824, 0.0
    %v9163 = vmax.f32 %v9015, 0.0
    %v9164 = vmax.f32 %v9017, 0.0
    %v9165 = vmax.f32 %v8828, 0.0
    %v9166 = vmax.f32 %v8830, 0.0
    %v9167 = vmax.f32 %v9021, 0.0
    %v9168 = vmax.f32 %v9023, 0.0
    %v9169 = vmax.f32 %v8832, 0.0
    %v9170 = vmax.f32 %v8834, 0.0
    %v9171 = vmax.f32 %v9025, 0.0
    %v9172 = vmax.f32 %v9027, 0.0
    %v9173 = vmax.f32 %v8838, 0.0
    %v9174 = vmax.f32 %v8840, 0.0
    %v9175 = vmax.f32 %v9031, 0.0
    %v9176 = vmax.f32 %v9033, 0.0
    %v9177 = vmax.f32 %v8842, 0.0
    %v9178 = vmax.f32 %v8844, 0.0
    %v9179 = vmax.f32 %v9035, 0.0
    %v9180 = vmax.f32 %v9037, 0.0
    %v9181 = vmax.f32 %v8848, 0.0
    %v9182 = vmax.f32 %v8850, 0.0
    %v9183 = vmax.f32 %v9041, 0.0
    %v9184 = vmax.f32 %v9043, 0.0
    %v9185 = vmax.f32 %v8852, 0.0
    %v9186 = vmax.f32 %v8854, 0.0
    %v9187 = vmax.f32 %v9045, 0.0
    %v9188 = vmax.f32 %v9047, 0.0
    %v9189 = vmax.f32 %v8858, 0.0
    %v9190 = vmax.f32 %v8860, 0.0
    %v9191 = vmax.f32 %v9051, 0.0
    %v9192 = vmax.f32 %v9053, 0.0
    %v9193 = vmax.f32 %v8862, 0.0
    %v9194 = vmax.f32 %v8864, 0.0
    %v9195 = vmax.f32 %v9055, 0.0
    %v9196 = vmax.f32 %v9057, 0.0
    %v9197 = vmax.f32 %v8868, 0.0
    %v9198 = vmax.f32 %v8870, 0.0
    %v9199 = vmax.f32 %v9061, 0.0
    %v9200 = vmax.f32 %v9063, 0.0
    %v9201 = vmax.f32 %v8872, 0.0
    %v9202 = vmax.f32 %v8874, 0.0
    %v9203 = vmax.f32 %v9065, 0.0
    %v9204 = vmax.f32 %v9067, 0.0
    %v9205 = vmax.f32 %v8878, 0.0
    %v9206 = vmax.f32 %v8880, 0.0
    %v9207 = vmax.f32 %v9071, 0.0
    %v9208 = vmax.f32 %v9073, 0.0
    %v9209 = vmax.f32 %v8882, 0.0
    %v9210 = vmax.f32 %v8884, 0.0
    %v9211 = vmax.f32 %v9075, 0.0
    %v9212 = vmax.f32 %v9077, 0.0
    %v9213 = vmax.f32 %v8888, 0.0
    %v9214 = vmax.f32 %v8890, 0.0
    %v9215 = vmax.f32 %v9081, 0.0
    %v9216 = vmax.f32 %v9083, 0.0
    %v9217 = vmax.f32 %v8892, 0.0
    %v9218 = vmax.f32 %v8894, 0.0
    %v9219 = vmax.f32 %v9085, 0.0
    %v9220 = vmax.f32 %v9087, 0.0
    %v9221 = vmax.f32 %v8898, 0.0
    %v9222 = vmax.f32 %v8900, 0.0
    %v9223 = vmax.f32 %v9091, 0.0
    %v9224 = vmax.f32 %v9093, 0.0
    %v9225 = vmax.f32 %v8902, 0.0
    %v9226 = vmax.f32 %v8904, 0.0
    %v9227 = vmax.f32 %v9095, 0.0
    %v9228 = vmax.f32 %v9097, 0.0
    %v9229 = vmax.f32 %v8908, 0.0
    %v9230 = vmax.f32 %v8910, 0.0
    %v9231 = vmax.f32 %v9101, 0.0
    %v9232 = vmax.f32 %v9103, 0.0
    %v9233 = vmax.f32 %v8912, 0.0
    %v9234 = vmax.f32 %v8914, 0.0
    %v9235 = vmax.f32 %v9105, 0.0
    %v9236 = vmax.f32 %v9107, 0.0
    %v9237 = vpack.c.bf16 %v9113, %v9109
    %v9238 = vpack.c.bf16 %v9114, %v9110
    %v9239 = vpack.c.bf16 %v9115, %v9111
    %v9240 = vpack.c.bf16 %v9116, %v9112
    %v9241 = vpack.c.bf16 %v9121, %v9117
    %v9242 = vpack.c.bf16 %v9122, %v9118
    %v9243 = vpack.c.bf16 %v9123, %v9119
    %v9244 = vpack.c.bf16 %v9124, %v9120
    %v9245 = vpack.c.bf16 %v9129, %v9125
    %v9246 = vpack.c.bf16 %v9130, %v9126
    %v9247 = vpack.c.bf16 %v9131, %v9127
    %v9248 = vpack.c.bf16 %v9132, %v9128
    %v9249 = vpack.c.bf16 %v9137, %v9133
    %v9250 = vpack.c.bf16 %v9138, %v9134
    %v9251 = vpack.c.bf16 %v9139, %v9135
    %v9252 = vpack.c.bf16 %v9140, %v9136
    %v9253 = vpack.c.bf16 %v9145, %v9141
    %v9254 = vpack.c.bf16 %v9146, %v9142
    %v9255 = vpack.c.bf16 %v9147, %v9143
    %v9256 = vpack.c.bf16 %v9148, %v9144
    %v9257 = vpack.c.bf16 %v9153, %v9149
    %v9258 = vpack.c.bf16 %v9154, %v9150
    %v9259 = vpack.c.bf16 %v9155, %v9151
    %v9260 = vpack.c.bf16 %v9156, %v9152
    %v9261 = vpack.c.bf16 %v9161, %v9157
    %v9262 = vpack.c.bf16 %v9162, %v9158
    %v9263 = vpack.c.bf16 %v9163, %v9159
    %v9264 = vpack.c.bf16 %v9164, %v9160
    %v9265 = vpack.c.bf16 %v9169, %v9165
    %v9266 = vpack.c.bf16 %v9170, %v9166
    %v9267 = vpack.c.bf16 %v9171, %v9167
    %v9268 = vpack.c.bf16 %v9172, %v9168
    %v9269 = vpack.c.bf16 %v9177, %v9173
    %v9270 = vpack.c.bf16 %v9178, %v9174
    %v9271 = vpack.c.bf16 %v9179, %v9175
    %v9272 = vpack.c.bf16 %v9180, %v9176
    %v9273 = vpack.c.bf16 %v9185, %v9181
    %v9274 = vpack.c.bf16 %v9186, %v9182
    %v9275 = vpack.c.bf16 %v9187, %v9183
    %v9276 = vpack.c.bf16 %v9188, %v9184
    %v9277 = vpack.c.bf16 %v9193, %v9189
    %v9278 = vpack.c.bf16 %v9194, %v9190
    %v9279 = vpack.c.bf16 %v9195, %v9191
    %v9280 = vpack.c.bf16 %v9196, %v9192
    %v9281 = vpack.c.bf16 %v9201, %v9197
    %v9282 = vpack.c.bf16 %v9202, %v9198
    %v9283 = vpack.c.bf16 %v9203, %v9199
    %v9284 = vpack.c.bf16 %v9204, %v9200
    %v9285 = vpack.c.bf16 %v9209, %v9205
    %v9286 = vpack.c.bf16 %v9210, %v9206
    %v9287 = vpack.c.bf16 %v9211, %v9207
    %v9288 = vpack.c.bf16 %v9212, %v9208
    %v9289 = vpack.c.bf16 %v9217, %v9213
    %v9290 = vpack.c.bf16 %v9218, %v9214
    %v9291 = vpack.c.bf16 %v9219, %v9215
    %v9292 = vpack.c.bf16 %v9220, %v9216
    %v9293 = vpack.c.bf16 %v9225, %v9221
    %v9294 = vpack.c.bf16 %v9226, %v9222
    %v9295 = vpack.c.bf16 %v9227, %v9223
    %v9296 = vpack.c.bf16 %v9228, %v9224
    %v9297 = vpack.c.bf16 %v9233, %v9229
    %v9298 = vpack.c.bf16 %v9234, %v9230
    %v9299 = vpack.c.bf16 %v9235, %v9231
    %v9300 = vpack.c.bf16 %v9236, %v9232
    %v9301 = vld [vmem:[%s12] sm:$0xf]
    %v9302 = vld [vmem:[%s12 + $0x4] sm:$0xf]
    %v9303 = vld [vmem:[%s12 + $0x8] sm:$0xf]
    %v9304 = vld [vmem:[%s12 + $0xc] sm:$0xf]
    %v9305 = vld [vmem:[%s12 + $0x10] sm:$0xf]
    %v9306 = vld [vmem:[%s12 + $0x14] sm:$0xf]
    %v9307 = vld [vmem:[%s12 + $0x18] sm:$0xf]
    %v9308 = vld [vmem:[%s12 + $0x1c] sm:$0xf]
    %v9309 = vld [vmem:[%s12 + $0x20] sm:$0xf]
    %v9310 = vld [vmem:[%s12 + $0x24] sm:$0xf]
    %v9311 = vld [vmem:[%s12 + $0x28] sm:$0xf]
    %v9312 = vld [vmem:[%s12 + $0x2c] sm:$0xf]
    %v9313 = vld [vmem:[%s12 + $0x30] sm:$0xf]
    %v9314 = vld [vmem:[%s12 + $0x34] sm:$0xf]
    %v9315 = vld [vmem:[%s12 + $0x38] sm:$0xf]
    %v9316 = vld [vmem:[%s12 + $0x3c] sm:$0xf]
    %v9317 = vld [vmem:[%s12 + $0x40] sm:$0xf]
    %v9318 = vld [vmem:[%s12 + $0x44] sm:$0xf]
    %v9319 = vld [vmem:[%s12 + $0x48] sm:$0xf]
    %v9320 = vld [vmem:[%s12 + $0x4c] sm:$0xf]
    %v9321 = vld [vmem:[%s12 + $0x50] sm:$0xf]
    %v9322 = vld [vmem:[%s12 + $0x54] sm:$0xf]
    %v9323 = vld [vmem:[%s12 + $0x58] sm:$0xf]
    %v9324 = vld [vmem:[%s12 + $0x5c] sm:$0xf]
    %v9325 = vld [vmem:[%s12 + $0x60] sm:$0xf]
    %v9326 = vld [vmem:[%s12 + $0x64] sm:$0xf]
    %v9327 = vld [vmem:[%s12 + $0x68] sm:$0xf]
    %v9328 = vld [vmem:[%s12 + $0x6c] sm:$0xf]
    %v9329 = vld [vmem:[%s12 + $0x70] sm:$0xf]
    %v9330 = vld [vmem:[%s12 + $0x74] sm:$0xf]
    %v9331 = vld [vmem:[%s12 + $0x78] sm:$0xf]
    %v9332 = vld [vmem:[%s12 + $0x7c] sm:$0xf]
    %v9333 = vld [vmem:[%s12 + $0x80] sm:$0xf]
    %v9334 = vld [vmem:[%s12 + $0x84] sm:$0xf]
    %v9335 = vld [vmem:[%s12 + $0x88] sm:$0xf]
    %v9336 = vld [vmem:[%s12 + $0x8c] sm:$0xf]
    %v9337 = vld [vmem:[%s12 + $0x90] sm:$0xf]
    %v9338 = vld [vmem:[%s12 + $0x94] sm:$0xf]
    %v9339 = vld [vmem:[%s12 + $0x98] sm:$0xf]
    %v9340 = vld [vmem:[%s12 + $0x9c] sm:$0xf]
    %v9341 = vld [vmem:[%s12 + $0xa0] sm:$0xf]
    %v9342 = vld [vmem:[%s12 + $0xa4] sm:$0xf]
    %v9343 = vld [vmem:[%s12 + $0xa8] sm:$0xf]
    %v9344 = vld [vmem:[%s12 + $0xac] sm:$0xf]
    %v9345 = vld [vmem:[%s12 + $0xb0] sm:$0xf]
    %v9346 = vld [vmem:[%s12 + $0xb4] sm:$0xf]
    %v9347 = vld [vmem:[%s12 + $0xb8] sm:$0xf]
    %v9348 = vld [vmem:[%s12 + $0xbc] sm:$0xf]
    %v9349 = vld [vmem:[%s12 + $0xc0] sm:$0xf]
    %v9350 = vld [vmem:[%s12 + $0xc4] sm:$0xf]
    %v9351 = vld [vmem:[%s12 + $0xc8] sm:$0xf]
    %v9352 = vld [vmem:[%s12 + $0xcc] sm:$0xf]
    %v9353 = vld [vmem:[%s12 + $0xd0] sm:$0xf]
    %v9354 = vld [vmem:[%s12 + $0xd4] sm:$0xf]
    %v9355 = vld [vmem:[%s12 + $0xd8] sm:$0xf]
    %v9356 = vld [vmem:[%s12 + $0xdc] sm:$0xf]
    %v9357 = vld [vmem:[%s12 + $0xe0] sm:$0xf]
    %v9358 = vld [vmem:[%s12 + $0xe4] sm:$0xf]
    %v9359 = vld [vmem:[%s12 + $0xe8] sm:$0xf]
    %v9360 = vld [vmem:[%s12 + $0xec] sm:$0xf]
    %v9361 = vld [vmem:[%s12 + $0xf0] sm:$0xf]
    %v9362 = vld [vmem:[%s12 + $0xf4] sm:$0xf]
    %v9363 = vld [vmem:[%s12 + $0xf8] sm:$0xf]
    %v9364 = vld [vmem:[%s12 + $0xfc] sm:$0xf]
    %v9365 = vld [vmem:[%s13] sm:$0x1]
    %v9367 = vlaneseq
    %v9368 = vshrl.u32 %v9367, 7
    %v9369 = vsub.s32 0, %v9368
    %v9370 = vrot.slane %v9365, %v9369
    %v9436 = vunpack.c.l.b16 %v9301
    %v9437 = vunpack.c.l.b16 %v9302
    %v9438 = vunpack.c.l.b16 %v9303
    %v9439 = vunpack.c.l.b16 %v9304
    %v9440 = vunpack.c.l.b16 %v9305
    %v9441 = vunpack.c.l.b16 %v9306
    %v9442 = vunpack.c.l.b16 %v9307
    %v9443 = vunpack.c.l.b16 %v9308
    %v9444 = vunpack.c.l.b16 %v9309
    %v9445 = vunpack.c.l.b16 %v9310
    %v9446 = vunpack.c.l.b16 %v9311
    %v9447 = vunpack.c.l.b16 %v9312
    %v9448 = vunpack.c.l.b16 %v9313
    %v9449 = vunpack.c.l.b16 %v9314
    %v9450 = vunpack.c.l.b16 %v9315
    %v9451 = vunpack.c.l.b16 %v9316
    %v9452 = vunpack.c.l.b16 %v9317
    %v9453 = vunpack.c.l.b16 %v9318
    %v9454 = vunpack.c.l.b16 %v9319
    %v9455 = vunpack.c.l.b16 %v9320
    %v9456 = vunpack.c.l.b16 %v9321
    %v9457 = vunpack.c.l.b16 %v9322
    %v9458 = vunpack.c.l.b16 %v9323
    %v9459 = vunpack.c.l.b16 %v9324
    %v9460 = vunpack.c.l.b16 %v9325
    %v9461 = vunpack.c.l.b16 %v9326
    %v9462 = vunpack.c.l.b16 %v9327
    %v9463 = vunpack.c.l.b16 %v9328
    %v9464 = vunpack.c.l.b16 %v9329
    %v9465 = vunpack.c.l.b16 %v9330
    %v9466 = vunpack.c.l.b16 %v9331
    %v9467 = vunpack.c.l.b16 %v9332
    %v9468 = vunpack.c.l.b16 %v9333
    %v9469 = vunpack.c.l.b16 %v9334
    %v9470 = vunpack.c.l.b16 %v9335
    %v9471 = vunpack.c.l.b16 %v9336
    %v9472 = vunpack.c.l.b16 %v9337
    %v9473 = vunpack.c.l.b16 %v9338
    %v9474 = vunpack.c.l.b16 %v9339
    %v9475 = vunpack.c.l.b16 %v9340
    %v9476 = vunpack.c.l.b16 %v9341
    %v9477 = vunpack.c.l.b16 %v9342
    %v9478 = vunpack.c.l.b16 %v9343
    %v9479 = vunpack.c.l.b16 %v9344
    %v9480 = vunpack.c.l.b16 %v9345
    %v9481 = vunpack.c.l.b16 %v9346
    %v9482 = vunpack.c.l.b16 %v9347
    %v9483 = vunpack.c.l.b16 %v9348
    %v9484 = vunpack.c.l.b16 %v9349
    %v9485 = vunpack.c.l.b16 %v9350
    %v9486 = vunpack.c.l.b16 %v9351
    %v9487 = vunpack.c.l.b16 %v9352
    %v9488 = vunpack.c.l.b16 %v9353
    %v9489 = vunpack.c.l.b16 %v9354
    %v9490 = vunpack.c.l.b16 %v9355
    %v9491 = vunpack.c.l.b16 %v9356
    %v9492 = vunpack.c.l.b16 %v9357
    %v9493 = vunpack.c.l.b16 %v9358
    %v9494 = vunpack.c.l.b16 %v9359
    %v9495 = vunpack.c.l.b16 %v9360
    %v9496 = vunpack.c.l.b16 %v9361
    %v9497 = vunpack.c.l.b16 %v9362
    %v9498 = vunpack.c.l.b16 %v9363
    %v9499 = vunpack.c.l.b16 %v9364
    %v9500 = vpack.c.b16 %v9437, %v9436
    %v9501 = vpack.c.b16 %v9439, %v9438
    %v9502 = vpack.c.b16 %v9441, %v9440
    %v9503 = vpack.c.b16 %v9443, %v9442
    %v9504 = vpack.c.b16 %v9445, %v9444
    %v9505 = vpack.c.b16 %v9447, %v9446
    %v9506 = vpack.c.b16 %v9449, %v9448
    %v9507 = vpack.c.b16 %v9451, %v9450
    %v9508 = vpack.c.b16 %v9453, %v9452
    %v9509 = vpack.c.b16 %v9455, %v9454
    %v9510 = vpack.c.b16 %v9457, %v9456
    %v9511 = vpack.c.b16 %v9459, %v9458
    %v9512 = vpack.c.b16 %v9461, %v9460
    %v9513 = vpack.c.b16 %v9463, %v9462
    %v9514 = vpack.c.b16 %v9465, %v9464
    %v9515 = vpack.c.b16 %v9467, %v9466
    %v9516 = vpack.c.b16 %v9469, %v9468
    %v9517 = vpack.c.b16 %v9471, %v9470
    %v9518 = vpack.c.b16 %v9473, %v9472
    %v9519 = vpack.c.b16 %v9475, %v9474
    %v9520 = vpack.c.b16 %v9477, %v9476
    %v9521 = vpack.c.b16 %v9479, %v9478
    %v9522 = vpack.c.b16 %v9481, %v9480
    %v9523 = vpack.c.b16 %v9483, %v9482
    %v9524 = vpack.c.b16 %v9485, %v9484
    %v9525 = vpack.c.b16 %v9487, %v9486
    %v9526 = vpack.c.b16 %v9489, %v9488
    %v9527 = vpack.c.b16 %v9491, %v9490
    %v9528 = vpack.c.b16 %v9493, %v9492
    %v9529 = vpack.c.b16 %v9495, %v9494
    %v9530 = vpack.c.b16 %v9497, %v9496
    %v9531 = vpack.c.b16 %v9499, %v9498
    %9564 = vmatprep.subr.bf16.mxu0 0
    %9565 = vmatpush1.bf16.msra.mxu0 %v9500
    %9566 = vmatprep.subr.bf16.mxu0 0
    %9567 = vmatpush1.bf16.msra.mxu0 %v9501
    %9568 = vmatprep.subr.bf16.mxu0 0
    %9569 = vmatpush1.bf16.msra.mxu0 %v9502
    %9570 = vmatprep.subr.bf16.mxu0 0
    %9571 = vmatpush1.bf16.msra.mxu0 %v9503
    %9572 = vmatprep.subr.bf16.mxu0 0
    %9573 = vmatpush1.bf16.msra.mxu0 %v9504
    %9574 = vmatprep.subr.bf16.mxu0 0
    %9575 = vmatpush1.bf16.msra.mxu0 %v9505
    %9576 = vmatprep.subr.bf16.mxu0 0
    %9577 = vmatpush1.bf16.msra.mxu0 %v9506
    %9578 = vmatprep.subr.bf16.mxu0 0
    %9579 = vmatpush1.bf16.msra.mxu0 %v9507
    %9580 = vmatprep.subr.bf16.mxu0 0
    %9581 = vmatpush1.bf16.msra.mxu0 %v9508
    %9582 = vmatprep.subr.bf16.mxu0 0
    %9583 = vmatpush1.bf16.msra.mxu0 %v9509
    %9584 = vmatprep.subr.bf16.mxu0 0
    %9585 = vmatpush1.bf16.msra.mxu0 %v9510
    %9586 = vmatprep.subr.bf16.mxu0 0
    %9587 = vmatpush1.bf16.msra.mxu0 %v9511
    %9588 = vmatprep.subr.bf16.mxu0 0
    %9589 = vmatpush1.bf16.msra.mxu0 %v9512
    %9590 = vmatprep.subr.bf16.mxu0 0
    %9591 = vmatpush1.bf16.msra.mxu0 %v9513
    %9592 = vmatprep.subr.bf16.mxu0 0
    %9593 = vmatpush1.bf16.msra.mxu0 %v9514
    %9594 = vmatprep.subr.bf16.mxu0 0
    %9595 = vmatpush1.bf16.msra.mxu0 %v9515
    %9596 = vmatprep.mubr.bf16.mxu0 %v9238
    %9597 = vmatmul.mubr.bf16.gmra.mrb[0].mxu0 %v9237
    %v9598 = vpop.f32.mrb[0].mxu0
    %v9599 = vadd.f32 %v9370, %v9598
    %v9600 = vpop.f32.mrb[0].mxu0
    %v9601 = vpop.f32.mrb[0].mxu0
    %v9602 = vadd.f32 %v9370, %v9601
    %v9603 = vpop.f32.mrb[0].mxu0
    %9604 = vmatprep.mubr.bf16.mxu0 %v9242
    %9605 = vmatmul.mubr.bf16.gmra.mrb[0].mxu0 %v9241
    %v9606 = vpop.f32.mrb[0].mxu0
    %v9607 = vadd.f32 %v9370, %v9606
    %v9608 = vpop.f32.mrb[0].mxu0
    %v9609 = vpop.f32.mrb[0].mxu0
    %v9610 = vadd.f32 %v9370, %v9609
    %v9611 = vpop.f32.mrb[0].mxu0
    %9612 = vmatprep.mubr.bf16.mxu0 %v9246
    %9613 = vmatmul.mubr.bf16.gmra.mrb[0].mxu0 %v9245
    %v9614 = vpop.f32.mrb[0].mxu0
    %v9615 = vadd.f32 %v9370, %v9614
    %v9616 = vpop.f32.mrb[0].mxu0
    %v9617 = vpop.f32.mrb[0].mxu0
    %v9618 = vadd.f32 %v9370, %v9617
    %v9619 = vpop.f32.mrb[0].mxu0
    %9620 = vmatprep.mubr.bf16.mxu0 %v9250
    %9621 = vmatmul.mubr.bf16.gmra.mrb[0].mxu0 %v9249
    %v9622 = vpop.f32.mrb[0].mxu0
    %v9623 = vadd.f32 %v9370, %v9622
    %v9624 = vpop.f32.mrb[0].mxu0
    %v9625 = vpop.f32.mrb[0].mxu0
    %v9626 = vadd.f32 %v9370, %v9625
    %v9627 = vpop.f32.mrb[0].mxu0
    %9628 = vmatprep.mubr.bf16.mxu0 %v9254
    %9629 = vmatmul.mubr.bf16.gmra.mrb[0].mxu0 %v9253
    %v9630 = vpop.f32.mrb[0].mxu0
    %v9631 = vadd.f32 %v9370, %v9630
    %v9632 = vpop.f32.mrb[0].mxu0
    %v9633 = vpop.f32.mrb[0].mxu0
    %v9634 = vadd.f32 %v9370, %v9633
    %v9635 = vpop.f32.mrb[0].mxu0
    %9636 = vmatprep.mubr.bf16.mxu0 %v9258
    %9637 = vmatmul.mubr.bf16.gmra.mrb[0].mxu0 %v9257
    %v9638 = vpop.f32.mrb[0].mxu0
    %v9639 = vadd.f32 %v9370, %v9638
    %v9640 = vpop.f32.mrb[0].mxu0
    %v9641 = vpop.f32.mrb[0].mxu0
    %v9642 = vadd.f32 %v9370, %v9641
    %v9643 = vpop.f32.mrb[0].mxu0
    %9644 = vmatprep.mubr.bf16.mxu0 %v9262
    %9645 = vmatmul.mubr.bf16.gmra.mrb[0].mxu0 %v9261
    %v9646 = vpop.f32.mrb[0].mxu0
    %v9647 = vadd.f32 %v9370, %v9646
    %v9648 = vpop.f32.mrb[0].mxu0
    %v9649 = vpop.f32.mrb[0].mxu0
    %v9650 = vadd.f32 %v9370, %v9649
    %v9651 = vpop.f32.mrb[0].mxu0
    %9652 = vmatprep.mubr.bf16.mxu0 %v9266
    %9653 = vmatmul.mubr.bf16.gmra.mrb[0].mxu0 %v9265
    %v9654 = vpop.f32.mrb[0].mxu0
    %v9655 = vadd.f32 %v9370, %v9654
    %v9656 = vpop.f32.mrb[0].mxu0
    %v9657 = vpop.f32.mrb[0].mxu0
    %v9658 = vadd.f32 %v9370, %v9657
    %v9659 = vpop.f32.mrb[0].mxu0
    %9660 = vmatprep.mubr.bf16.mxu0 %v9270
    %9661 = vmatmul.mubr.bf16.gmra.mrb[0].mxu0 %v9269
    %v9662 = vpop.f32.mrb[0].mxu0
    %v9663 = vadd.f32 %v9370, %v9662
    %v9664 = vpop.f32.mrb[0].mxu0
    %v9665 = vpop.f32.mrb[0].mxu0
    %v9666 = vadd.f32 %v9370, %v9665
    %v9667 = vpop.f32.mrb[0].mxu0
    %9668 = vmatprep.mubr.bf16.mxu0 %v9274
    %9669 = vmatmul.mubr.bf16.gmra.mrb[0].mxu0 %v9273
    %v9670 = vpop.f32.mrb[0].mxu0
    %v9671 = vadd.f32 %v9370, %v9670
    %v9672 = vpop.f32.mrb[0].mxu0
    %v9673 = vpop.f32.mrb[0].mxu0
    %v9674 = vadd.f32 %v9370, %v9673
    %v9675 = vpop.f32.mrb[0].mxu0
    %9676 = vmatprep.mubr.bf16.mxu0 %v9278
    %9677 = vmatmul.mubr.bf16.gmra.mrb[0].mxu0 %v9277
    %v9678 = vpop.f32.mrb[0].mxu0
    %v9679 = vadd.f32 %v9370, %v9678
    %v9680 = vpop.f32.mrb[0].mxu0
    %v9681 = vpop.f32.mrb[0].mxu0
    %v9682 = vadd.f32 %v9370, %v9681
    %v9683 = vpop.f32.mrb[0].mxu0
    %9684 = vmatprep.mubr.bf16.mxu0 %v9282
    %9685 = vmatmul.mubr.bf16.gmra.mrb[0].mxu0 %v9281
    %v9686 = vpop.f32.mrb[0].mxu0
    %v9687 = vadd.f32 %v9370, %v9686
    %v9688 = vpop.f32.mrb[0].mxu0
    %v9689 = vpop.f32.mrb[0].mxu0
    %v9690 = vadd.f32 %v9370, %v9689
    %v9691 = vpop.f32.mrb[0].mxu0
    %9692 = vmatprep.mubr.bf16.mxu0 %v9286
    %9693 = vmatmul.mubr.bf16.gmra.mrb[0].mxu0 %v9285
    %v9694 = vpop.f32.mrb[0].mxu0
    %v9695 = vadd.f32 %v9370, %v9694
    %v9696 = vpop.f32.mrb[0].mxu0
    %v9697 = vpop.f32.mrb[0].mxu0
    %v9698 = vadd.f32 %v9370, %v9697
    %v9699 = vpop.f32.mrb[0].mxu0
    %9700 = vmatprep.mubr.bf16.mxu0 %v9290
    %9701 = vmatmul.mubr.bf16.gmra.mrb[0].mxu0 %v9289
    %v9702 = vpop.f32.mrb[0].mxu0
    %v9703 = vadd.f32 %v9370, %v9702
    %v9704 = vpop.f32.mrb[0].mxu0
    %v9705 = vpop.f32.mrb[0].mxu0
    %v9706 = vadd.f32 %v9370, %v9705
    %v9707 = vpop.f32.mrb[0].mxu0
    %9708 = vmatprep.mubr.bf16.mxu0 %v9294
    %9709 = vmatmul.mubr.bf16.gmra.mrb[0].mxu0 %v9293
    %v9710 = vpop.f32.mrb[0].mxu0
    %v9711 = vadd.f32 %v9370, %v9710
    %v9712 = vpop.f32.mrb[0].mxu0
    %v9713 = vpop.f32.mrb[0].mxu0
    %v9714 = vadd.f32 %v9370, %v9713
    %v9715 = vpop.f32.mrb[0].mxu0
    %9716 = vmatprep.mubr.bf16.mxu0 %v9298
    %9717 = vmatmul.mubr.bf16.gmra.mrb[0].mxu0 %v9297
    %v9718 = vpop.f32.mrb[0].mxu0
    %v9719 = vadd.f32 %v9370, %v9718
    %v9720 = vpop.f32.mrb[0].mxu0
    %v9721 = vpop.f32.mrb[0].mxu0
    %v9722 = vadd.f32 %v9370, %v9721
    %v9723 = vpop.f32.mrb[0].mxu0
    %9724 = vdwg.mxu0
    %9725 = vmatprep.subr.bf16.mxu0 0
    %9726 = vmatpush1.bf16.msra.mxu0 %v9516
    %9727 = vmatprep.subr.bf16.mxu0 0
    %9728 = vmatpush1.bf16.msra.mxu0 %v9517
    %9729 = vmatprep.subr.bf16.mxu0 0
    %9730 = vmatpush1.bf16.msra.mxu0 %v9518
    %9731 = vmatprep.subr.bf16.mxu0 0
    %9732 = vmatpush1.bf16.msra.mxu0 %v9519
    %9733 = vmatprep.subr.bf16.mxu0 0
    %9734 = vmatpush1.bf16.msra.mxu0 %v9520
    %9735 = vmatprep.subr.bf16.mxu0 0
    %9736 = vmatpush1.bf16.msra.mxu0 %v9521
    %9737 = vmatprep.subr.bf16.mxu0 0
    %9738 = vmatpush1.bf16.msra.mxu0 %v9522
    %9739 = vmatprep.subr.bf16.mxu0 0
    %9740 = vmatpush1.bf16.msra.mxu0 %v9523
    %9741 = vmatprep.subr.bf16.mxu0 0
    %9742 = vmatpush1.bf16.msra.mxu0 %v9524
    %9743 = vmatprep.subr.bf16.mxu0 0
    %9744 = vmatpush1.bf16.msra.mxu0 %v9525
    %9745 = vmatprep.subr.bf16.mxu0 0
    %9746 = vmatpush1.bf16.msra.mxu0 %v9526
    %9747 = vmatprep.subr.bf16.mxu0 0
    %9748 = vmatpush1.bf16.msra.mxu0 %v9527
    %9749 = vmatprep.subr.bf16.mxu0 0
    %9750 = vmatpush1.bf16.msra.mxu0 %v9528
    %9751 = vmatprep.subr.bf16.mxu0 0
    %9752 = vmatpush1.bf16.msra.mxu0 %v9529
    %9753 = vmatprep.subr.bf16.mxu0 0
    %9754 = vmatpush1.bf16.msra.mxu0 %v9530
    %9755 = vmatprep.subr.bf16.mxu0 0
    %9756 = vmatpush1.bf16.msra.mxu0 %v9531
    %9757 = vmatprep.mubr.bf16.mxu0 %v9240
    %9758 = vmatmul.mubr.bf16.gmra.mrb[0].mxu0 %v9239
    %v9759 = vpop.f32.mrb[0].mxu0
    %v9760 = vadd.f32 %v9599, %v9759
    %v9761 = vpop.f32.mrb[0].mxu0
    %v9762 = vpop.f32.mrb[0].mxu0
    %v9763 = vadd.f32 %v9602, %v9762
    %v9764 = vpop.f32.mrb[0].mxu0
    %9765 = vmatprep.mubr.bf16.mxu0 %v9244
    %9766 = vmatmul.mubr.bf16.gmra.mrb[0].mxu0 %v9243
    %v9767 = vpop.f32.mrb[0].mxu0
    %v9768 = vadd.f32 %v9607, %v9767
    %v9769 = vpop.f32.mrb[0].mxu0
    %v9770 = vpop.f32.mrb[0].mxu0
    %v9771 = vadd.f32 %v9610, %v9770
    %v9772 = vpop.f32.mrb[0].mxu0
    %9773 = vmatprep.mubr.bf16.mxu0 %v9248
    %9774 = vmatmul.mubr.bf16.gmra.mrb[0].mxu0 %v9247
    %v9775 = vpop.f32.mrb[0].mxu0
    %v9776 = vadd.f32 %v9615, %v9775
    %v9777 = vpop.f32.mrb[0].mxu0
    %v9778 = vpop.f32.mrb[0].mxu0
    %v9779 = vadd.f32 %v9618, %v9778
    %v9780 = vpop.f32.mrb[0].mxu0
    %9781 = vmatprep.mubr.bf16.mxu0 %v9252
    %9782 = vmatmul.mubr.bf16.gmra.mrb[0].mxu0 %v9251
    %v9783 = vpop.f32.mrb[0].mxu0
    %v9784 = vadd.f32 %v9623, %v9783
    %v9785 = vpop.f32.mrb[0].mxu0
    %v9786 = vpop.f32.mrb[0].mxu0
    %v9787 = vadd.f32 %v9626, %v9786
    %v9788 = vpop.f32.mrb[0].mxu0
    %9789 = vmatprep.mubr.bf16.mxu0 %v9256
    %9790 = vmatmul.mubr.bf16.gmra.mrb[0].mxu0 %v9255
    %v9791 = vpop.f32.mrb[0].mxu0
    %v9792 = vadd.f32 %v9631, %v9791
    %v9793 = vpop.f32.mrb[0].mxu0
    %v9794 = vpop.f32.mrb[0].mxu0
    %v9795 = vadd.f32 %v9634, %v9794
    %v9796 = vpop.f32.mrb[0].mxu0
    %9797 = vmatprep.mubr.bf16.mxu0 %v9260
    %9798 = vmatmul.mubr.bf16.gmra.mrb[0].mxu0 %v9259
    %v9799 = vpop.f32.mrb[0].mxu0
    %v9800 = vadd.f32 %v9639, %v9799
    %v9801 = vpop.f32.mrb[0].mxu0
    %v9802 = vpop.f32.mrb[0].mxu0
    %v9803 = vadd.f32 %v9642, %v9802
    %v9804 = vpop.f32.mrb[0].mxu0
    %9805 = vmatprep.mubr.bf16.mxu0 %v9264
    %9806 = vmatmul.mubr.bf16.gmra.mrb[0].mxu0 %v9263
    %v9807 = vpop.f32.mrb[0].mxu0
    %v9808 = vadd.f32 %v9647, %v9807
    %v9809 = vpop.f32.mrb[0].mxu0
    %v9810 = vpop.f32.mrb[0].mxu0
    %v9811 = vadd.f32 %v9650, %v9810
    %v9812 = vpop.f32.mrb[0].mxu0
    %9813 = vmatprep.mubr.bf16.mxu0 %v9268
    %9814 = vmatmul.mubr.bf16.gmra.mrb[0].mxu0 %v9267
    %v9815 = vpop.f32.mrb[0].mxu0
    %v9816 = vadd.f32 %v9655, %v9815
    %v9817 = vpop.f32.mrb[0].mxu0
    %v9818 = vpop.f32.mrb[0].mxu0
    %v9819 = vadd.f32 %v9658, %v9818
    %v9820 = vpop.f32.mrb[0].mxu0
    %9821 = vmatprep.mubr.bf16.mxu0 %v9272
    %9822 = vmatmul.mubr.bf16.gmra.mrb[0].mxu0 %v9271
    %v9823 = vpop.f32.mrb[0].mxu0
    %v9824 = vadd.f32 %v9663, %v9823
    %v9825 = vpop.f32.mrb[0].mxu0
    %v9826 = vpop.f32.mrb[0].mxu0
    %v9827 = vadd.f32 %v9666, %v9826
    %v9828 = vpop.f32.mrb[0].mxu0
    %9829 = vmatprep.mubr.bf16.mxu0 %v9276
    %9830 = vmatmul.mubr.bf16.gmra.mrb[0].mxu0 %v9275
    %v9831 = vpop.f32.mrb[0].mxu0
    %v9832 = vadd.f32 %v9671, %v9831
    %v9833 = vpop.f32.mrb[0].mxu0
    %v9834 = vpop.f32.mrb[0].mxu0
    %v9835 = vadd.f32 %v9674, %v9834
    %v9836 = vpop.f32.mrb[0].mxu0
    %9837 = vmatprep.mubr.bf16.mxu0 %v9280
    %9838 = vmatmul.mubr.bf16.gmra.mrb[0].mxu0 %v9279
    %v9839 = vpop.f32.mrb[0].mxu0
    %v9840 = vadd.f32 %v9679, %v9839
    %v9841 = vpop.f32.mrb[0].mxu0
    %v9842 = vpop.f32.mrb[0].mxu0
    %v9843 = vadd.f32 %v9682, %v9842
    %v9844 = vpop.f32.mrb[0].mxu0
    %9845 = vmatprep.mubr.bf16.mxu0 %v9284
    %9846 = vmatmul.mubr.bf16.gmra.mrb[0].mxu0 %v9283
    %v9847 = vpop.f32.mrb[0].mxu0
    %v9848 = vadd.f32 %v9687, %v9847
    %v9849 = vpop.f32.mrb[0].mxu0
    %v9850 = vpop.f32.mrb[0].mxu0
    %v9851 = vadd.f32 %v9690, %v9850
    %v9852 = vpop.f32.mrb[0].mxu0
    %9853 = vmatprep.mubr.bf16.mxu0 %v9288
    %9854 = vmatmul.mubr.bf16.gmra.mrb[0].mxu0 %v9287
    %v9855 = vpop.f32.mrb[0].mxu0
    %v9856 = vadd.f32 %v9695, %v9855
    %v9857 = vpop.f32.mrb[0].mxu0
    %v9858 = vpop.f32.mrb[0].mxu0
    %v9859 = vadd.f32 %v9698, %v9858
    %v9860 = vpop.f32.mrb[0].mxu0
    %9861 = vmatprep.mubr.bf16.mxu0 %v9292
    %9862 = vmatmul.mubr.bf16.gmra.mrb[0].mxu0 %v9291
    %v9863 = vpop.f32.mrb[0].mxu0
    %v9864 = vadd.f32 %v9703, %v9863
    %v9865 = vpop.f32.mrb[0].mxu0
    %v9866 = vpop.f32.mrb[0].mxu0
    %v9867 = vadd.f32 %v9706, %v9866
    %v9868 = vpop.f32.mrb[0].mxu0
    %9869 = vmatprep.mubr.bf16.mxu0 %v9296
    %9870 = vmatmul.mubr.bf16.gmra.mrb[0].mxu0 %v9295
    %v9871 = vpop.f32.mrb[0].mxu0
    %v9872 = vadd.f32 %v9711, %v9871
    %v9873 = vpop.f32.mrb[0].mxu0
    %v9874 = vpop.f32.mrb[0].mxu0
    %v9875 = vadd.f32 %v9714, %v9874
    %v9876 = vpop.f32.mrb[0].mxu0
    %9877 = vmatprep.mubr.bf16.mxu0 %v9300
    %9878 = vmatmul.mubr.bf16.gmra.mrb[0].mxu0 %v9299
    %v9879 = vpop.f32.mrb[0].mxu0
    %v9880 = vadd.f32 %v9719, %v9879
    %v9881 = vpop.f32.mrb[0].mxu0
    %v9882 = vpop.f32.mrb[0].mxu0
    %v9883 = vadd.f32 %v9722, %v9882
    %v9884 = vpop.f32.mrb[0].mxu0
    %9885 = vdwg.mxu0
    %v9886 = vadd.f32 %v7935, %v9760
    %v9887 = vadd.f32 %v7936, %v9763
    %v9888 = vadd.f32 %v7937, %v9768
    %v9889 = vadd.f32 %v7938, %v9771
    %v9890 = vadd.f32 %v7939, %v9776
    %v9891 = vadd.f32 %v7940, %v9779
    %v9892 = vadd.f32 %v7941, %v9784
    %v9893 = vadd.f32 %v7942, %v9787
    %v9894 = vadd.f32 %v7943, %v9792
    %v9895 = vadd.f32 %v7944, %v9795
    %v9896 = vadd.f32 %v7945, %v9800
    %v9897 = vadd.f32 %v7946, %v9803
    %v9898 = vadd.f32 %v7947, %v9808
    %v9899 = vadd.f32 %v7948, %v9811
    %v9900 = vadd.f32 %v7949, %v9816
    %v9901 = vadd.f32 %v7950, %v9819
    %v9902 = vadd.f32 %v7951, %v9824
    %v9903 = vadd.f32 %v7952, %v9827
    %v9904 = vadd.f32 %v7953, %v9832
    %v9905 = vadd.f32 %v7954, %v9835
    %v9906 = vadd.f32 %v7955, %v9840
    %v9907 = vadd.f32 %v7956, %v9843
    %v9908 = vadd.f32 %v7957, %v9848
    %v9909 = vadd.f32 %v7958, %v9851
    %v9910 = vadd.f32 %v7959, %v9856
    %v9911 = vadd.f32 %v7960, %v9859
    %v9912 = vadd.f32 %v7961, %v9864
    %v9913 = vadd.f32 %v7962, %v9867
    %v9914 = vadd.f32 %v7963, %v9872
    %v9915 = vadd.f32 %v7964, %v9875
    %v9916 = vadd.f32 %v7965, %v9880
    %v9917 = vadd.f32 %v7966, %v9883
    %9918 = vst [vmem:[#allocation7] sm:$0xff] %v9886
    %9919 = vst [vmem:[#allocation7 + $0x8] sm:$0xff] %v9887
    %9920 = vst [vmem:[#allocation7 + $0x10] sm:$0xff] %v9888
    %9921 = vst [vmem:[#allocation7 + $0x18] sm:$0xff] %v9889
    %9922 = vst [vmem:[#allocation7 + $0x20] sm:$0xff] %v9890
    %9923 = vst [vmem:[#allocation7 + $0x28] sm:$0xff] %v9891
    %9924 = vst [vmem:[#allocation7 + $0x30] sm:$0xff] %v9892
    %9925 = vst [vmem:[#allocation7 + $0x38] sm:$0xff] %v9893
    %9926 = vst [vmem:[#allocation7 + $0x40] sm:$0xff] %v9894
    %9927 = vst [vmem:[#allocation7 + $0x48] sm:$0xff] %v9895
    %9928 = vst [vmem:[#allocation7 + $0x50] sm:$0xff] %v9896
    %9929 = vst [vmem:[#allocation7 + $0x58] sm:$0xff] %v9897
    %9930 = vst [vmem:[#allocation7 + $0x60] sm:$0xff] %v9898
    %9931 = vst [vmem:[#allocation7 + $0x68] sm:$0xff] %v9899
    %9932 = vst [vmem:[#allocation7 + $0x70] sm:$0xff] %v9900
    %9933 = vst [vmem:[#allocation7 + $0x78] sm:$0xff] %v9901
    %9934 = vst [vmem:[#allocation7 + $0x80] sm:$0xff] %v9902
    %9935 = vst [vmem:[#allocation7 + $0x88] sm:$0xff] %v9903
    %9936 = vst [vmem:[#allocation7 + $0x90] sm:$0xff] %v9904
    %9937 = vst [vmem:[#allocation7 + $0x98] sm:$0xff] %v9905
    %9938 = vst [vmem:[#allocation7 + $0xa0] sm:$0xff] %v9906
    %9939 = vst [vmem:[#allocation7 + $0xa8] sm:$0xff] %v9907
    %9940 = vst [vmem:[#allocation7 + $0xb0] sm:$0xff] %v9908
    %9941 = vst [vmem:[#allocation7 + $0xb8] sm:$0xff] %v9909
    %9942 = vst [vmem:[#allocation7 + $0xc0] sm:$0xff] %v9910
    %9943 = vst [vmem:[#allocation7 + $0xc8] sm:$0xff] %v9911
    %9944 = vst [vmem:[#allocation7 + $0xd0] sm:$0xff] %v9912
    %9945 = vst [vmem:[#allocation7 + $0xd8] sm:$0xff] %v9913
    %9946 = vst [vmem:[#allocation7 + $0xe0] sm:$0xff] %v9914
    %9947 = vst [vmem:[#allocation7 + $0xe8] sm:$0xff] %v9915
    %9948 = vst [vmem:[#allocation7 + $0xf0] sm:$0xff] %v9916
    %9949 = vst [vmem:[#allocation7 + $0xf8] sm:$0xff] %v9917
    // Predicated region
    $region66: #{tpu_custom_call.1} parent=1 // pred_check
      _
    $region67: #{tpu_custom_call.1} parent=1 // pred_check_branch
      %9951 = sbr.rel (0) target = $region69
    $region68: #{tpu_custom_call.1} parent=1 // pred_region
      %s9953 = ssub.s32 4096, 4096
      %9954 = vsyncadd [#allocation4], %s9953
      %s9955 = sshll.u32 [#allocation7], 4
      %s9956 = int_to_ptr.vmem [resolvable:$true] %s9955
      %9961 = dma.vmem_to_hbm [thread:$0]  %s9956, 4096, %s14, [#allocation4], 128, 128, 8
    $region69: #{tpu_custom_call.1} parent=1 // pred_fallthru
      _
    // Predicated region
    $region70: #{tpu_custom_call.1} parent=1 // pred_check
      _
    $region71: #{tpu_custom_call.1} parent=1 // pred_check_branch
      %9963 = sbr.rel (0) target = $region73
    $region72: #{tpu_custom_call.1} parent=1 // pred_region
      %9964 = dma.done [#allocation4], 4096
    $region73: #{tpu_custom_call.1} parent=1 // pred_fallthru
      _
    %9965 = vsyncpa [#allocation3], 1
    %9966 = vsyncpa [#allocation6], 1
    %9967 = vsyncpa [#allocation4], 1

</llo_original>
